<compile_context>
chip_gen: v7x
topology: tpu7x:2x2x1
jax: 0.10.0
libtpu: 0.0.40
codegen_flags: <defaults>
</compile_context>

<pallas_src>
import functools

import numpy as np
import jax
import jax.numpy as jnp
from jax import lax
from jax.experimental import pallas as pl
from jax.experimental.pallas import tpu as pltpu

KSZ = 3                    # kernel_size of every ConvTranspose3d tap
HS = 16                    # padded H-strip height (== bf16 sublane pack -> layout-free reshape)
N_PAD = 128                # lane-dense padded output width
COMPUTE_DTYPE = jnp.bfloat16


def _conv_t5d_kernel(x_ref, w_ref, b_ref, o_ref, *, T, d_out, kx_width):
    """One (batch, c-window, t-window) grid step.

    x_ref : (c_dim*T, Dp, HS, 3*Wp*Cin) bf16  all padded slabs of this batch (VMEM-resident)
    w_ref : (9, 3, 3*Wp*Cin, 128)       bf16  per-(dc,dt,kz) W-banded, ky-folded weights
    b_ref : (1, 128)                    f32   mean bias tiled over xo, zero beyond w_out*Cout
    o_ref : (d_out*HS, 128)             f32   lane-dense output block for this (c, t) window
    """
    c0 = pl.program_id(1)
    t0 = pl.program_id(2)
    m = d_out * HS

    acc = jnp.zeros((m, N_PAD), jnp.float32)
    for dc in range(KSZ):
        for dt in range(KSZ):
            # dynamic leading-axis index selects slab (c0+dc, t0+dt) of the resident input
            slab = x_ref[(c0 + dc) * T + (t0 + dt)]            # (Dp, HS, 3*Wp*Cin)
            s = dc * KSZ + dt
            for kz in range(KSZ):
                # leading-axis slice + layout-free reshape (second-minor dim == 16)
                lhs = slab[kz:kz + d_out].reshape(m, kx_width)
                acc = acc + jnp.dot(lhs, w_ref[s, kz],
                                    preferred_element_type=jnp.float32)
    o_ref[...] = acc + b_ref[...]


@jax.jit
def conv_transpose5d(x, w_all, b_all):
    """x: (B, Cin, c_dim, T, D, H, W) PyTorch layout.
    w_all: (3, 3, Cin, Cout, 3, 3, 3) -- weight of conv_c{dc+1}.conv_t{dt+1} at [dc, dt].
    b_all: (3, 3, Cout)               -- corresponding biases.
    returns: (B, Cout, c_dim-2, T-2, D+1, H+1, W+1)
    """
    B, Cin, c_dim, T, D, H, W = x.shape
    Cout = w_all.shape[3]
    assert c_dim >= 3 and T >= 3, "degenerate fallback path not implemented"
    # TODO(synk): the single-conv fallback branches (c_dim < 3 or time_steps < 3) are not
    # implemented.

    c_win, t_win = c_dim - 2, T - 2
    d_out, h_out, w_out = D + 1, H + 1, W + 1
    Dp, Wp = D + 3, W + 3
    assert h_out <= HS, "H > 15 needs a tiled H-strip; not implemented"
    KX = KSZ * Wp * Cin            # contraction width: (ky, padded-width, Cin) folded in
    N = w_out * Cout               # valid output lanes
    assert N <= N_PAD
    M = d_out * HS                 # matmul M (depth x padded output rows)

    # --- glue: layout / padding / ky-fold (pure XLA data movement, ~3x input in HBM) -------
    xt = jnp.transpose(x, (0, 2, 3, 4, 5, 6, 1))                          # channels last
    xp = jnp.pad(xt, ((0, 0), (0, 0), (0, 0),
                      (1, 2), (1, HS + 1 - H), (1, 2), (0, 0)))
    # xp: (B, c_dim, T, Dp, HS+2, Wp, Cin); H rows beyond H+3 are extra zero alignment pad.
    xcat = jnp.stack([xp[:, :, :, :, ky:ky + HS] for ky in range(KSZ)], axis=5)
    # xcat[b,c,t,z,y,ky,xi,ci] = xp[b,c,t,z,y+ky,xi,ci]
    xcat = xcat.reshape(B, c_dim * T, Dp, HS, KX).astype(COMPUTE_DTYPE)

    # --- merged, W-banded, ky-folded weights (flip + /9 average folded in) ------------------
    wflip = (w_all[..., ::-1, ::-1, ::-1] / 9.0).astype(jnp.float32)      # (dc,dt,ci,co,kz,ky,kx)
    sel = np.zeros((KSZ, Wp, w_out), np.float32)                          # sel[kx, xi, xo]
    for kx in range(KSZ):
        sel[kx, np.arange(w_out) + kx, np.arange(w_out)] = 1.0
    # wband[dc,dt,kz,ky,xi,ci,xo,co] = wflip[dc,dt,ci,co,kz,ky,xi-xo] (zero outside the band)
    wband = jnp.einsum('xuv,pqiozyx->pqzyuivo', jnp.asarray(sel), wflip)
    wband = wband.reshape(9, KSZ, KX, N)
    wband = jnp.pad(wband, ((0, 0), (0, 0), (0, 0), (0, N_PAD - N))).astype(COMPUTE_DTYPE)

    b_eff = jnp.tile(jnp.mean(b_all, axis=(0, 1)), w_out)                 # (w_out*Cout,)
    b_eff = jnp.pad(b_eff, (0, N_PAD - N)).reshape(1, N_PAD).astype(jnp.float32)

    # --- Pallas call -------------------------------------------------------------------------
    kernel = functools.partial(_conv_t5d_kernel, T=T, d_out=d_out, kx_width=KX)
    out = pl.pallas_call(
        kernel,
        out_shape=jax.ShapeDtypeStruct((B, c_win, t_win, M, N_PAD), jnp.float32),
        grid=(B, c_win, t_win),
        in_specs=[
            pl.BlockSpec((None, c_dim * T, Dp, HS, KX),
                         lambda b, c, t: (b, 0, 0, 0, 0)),     # per-batch resident input
            pl.BlockSpec((9, KSZ, KX, N_PAD),
                         lambda b, c, t: (0, 0, 0, 0)),        # resident weights (1 DMA)
            pl.BlockSpec((1, N_PAD), lambda b, c, t: (0, 0)),  # resident bias
        ],
        out_specs=pl.BlockSpec((None, None, None, M, N_PAD),
                               lambda b, c, t: (b, c, t, 0, 0)),
        compiler_params=pltpu.CompilerParams(
            dimension_semantics=("parallel", "parallel", "parallel"),
            vmem_limit_bytes=32 * 1024 * 1024),
    )(xcat, wband, b_eff)

    # --- unpad / back to PyTorch layout (B, Cout, c_win, t_win, D_out, H_out, W_out) --------
    out = out.reshape(B, c_win, t_win, d_out, HS, N_PAD)[:, :, :, :, :h_out, :N]
    out = out.reshape(B, c_win, t_win, d_out, h_out, w_out, Cout)
    return jnp.transpose(out, (0, 6, 1, 2, 3, 4, 5))


# ------------------------------- pure-JAX reference ---------------------------------------
def _ref_conv_transpose3d(u, w, b):
    # u: (B, Cin, D, H, W); w: (Cin, Cout, 3,3,3); b: (Cout,)
    wf = w[:, :, ::-1, ::-1, ::-1]
    v = lax.conv_general_dilated(
        u, wf, window_strides=(1, 1, 1),
        padding=((1, 2), (1, 2), (1, 2)),
        dimension_numbers=('NCDHW', 'IODHW', 'NCDHW'),
        precision=lax.Precision.HIGHEST)
    return v + b[None, :, None, None, None]


def reference(x, w_all, b_all):
    B, Cin, c_dim, T, D, H, W = x.shape
    c_res = []
    for c in range(c_dim - 2):
        t_res = []
        for t in range(T - 2):
            acc = 0.0
            for dc in range(3):
                for dt in range(3):
                    acc = acc + _ref_conv_transpose3d(
                        x[:, :, c + dc, t + dt], w_all[dc, dt], b_all[dc, dt])
            t_res.append(acc / 9.0)
        c_res.append(jnp.stack(t_res, axis=2))
    return jnp.stack(c_res, axis=2)


if __name__ == "__main__":
    B, Cin, Cout = 2, 4, 4
    c_dim, T, D, H, W = 4, 6, 8, 8, 8

    key = jax.random.PRNGKey(0)
    kw, kb, kx = jax.random.split(key, 3)
    # deterministic synthetic parameters (shapes match 9x nn.ConvTranspose3d(4, 4, 3))
    w_all = jax.random.normal(kw, (3, 3, Cin, Cout, 3, 3, 3), jnp.float32) * 0.1
    b_all = jax.random.normal(kb, (3, 3, Cout), jnp.float32) * 0.1
    x = jax.random.normal(kx, (B, Cin, c_dim, T, D, H, W), jnp.float32)

    out = conv_transpose5d(x, w_all, b_all)
    out = jax.block_until_ready(out)

    ref = reference(x, w_all, b_all)
    np.testing.assert_allclose(np.asarray(out), np.asarray(ref), rtol=1e-2, atol=1e-2)
    assert out.shape == (B, Cout, c_dim - 2, T - 2, D + 1, H + 1, W + 1)
    print("KERNEL_OK")
</pallas_src>

<mosaic_0001>
module attributes {stable_mosaic.version = 11 : i64} {
  func.func @_conv_t5d_kernel(%arg0: i32, %arg1: i32, %arg2: i32, %arg3: memref<1x24x11x16x132xbf16, #tpu.memory_space<vmem>>, %arg4: memref<9x3x132x128xbf16, #tpu.memory_space<vmem>>, %arg5: memref<1x128xf32, #tpu.memory_space<vmem>>, %arg6: memref<1x1x1x144x128xf32, #tpu.memory_space<vmem>>) attributes {dimension_semantics = [#tpu.dimension_semantics<parallel>, #tpu.dimension_semantics<parallel>, #tpu.dimension_semantics<parallel>], iteration_bounds = array<i64: 2, 2, 4>, scalar_prefetch = 0 : i64, scratch_operands = 0 : i64, tpu.core_type = #tpu.core_type<tc>, window_params = [{transform_indices = @transform_0, window_bounds = array<i64: 1, 24, 11, 16, 132>}, {pipeline_mode = #tpu.pipeline_mode<synchronous>, transform_indices = @transform_1, window_bounds = array<i64: 9, 3, 132, 128>}, {pipeline_mode = #tpu.pipeline_mode<synchronous>, transform_indices = @transform_2, window_bounds = array<i64: 1, 128>}, {transform_indices = @transform_3, window_bounds = array<i64: 1, 1, 1, 144, 128>}]} {
    %cst = arith.constant 0.000000e+00 : f32
    %0 = vector.broadcast %cst : f32 to vector<144x128xf32>
    %c0_i32 = arith.constant 0 : i32
    %1 = arith.addi %arg1, %c0_i32 : i32
    %c6_i32 = arith.constant 6 : i32
    %2 = arith.muli %1, %c6_i32 : i32
    %c0_i32_0 = arith.constant 0 : i32
    %3 = arith.addi %arg2, %c0_i32_0 : i32
    %4 = arith.addi %2, %3 : i32
    %c0 = arith.constant 0 : index
    %5 = arith.index_cast %4 : i32 to index
    %c0_1 = arith.constant 0 : index
    %c0_2 = arith.constant 0 : index
    %c0_3 = arith.constant 0 : index
    %6 = vector.load %arg3[%c0, %5, %c0_1, %c0_2, %c0_3] : memref<1x24x11x16x132xbf16, #tpu.memory_space<vmem>>, vector<1x1x11x16x132xbf16>
    %7 = vector.shape_cast %6 : vector<1x1x11x16x132xbf16> to vector<11x16x132xbf16>
    %8 = vector.extract_strided_slice %7 {offsets = [0, 0, 0], sizes = [9, 16, 132], strides = [1, 1, 1]} : vector<11x16x132xbf16> to vector<9x16x132xbf16>
    %9 = vector.shape_cast %8 : vector<9x16x132xbf16> to vector<144x132xbf16>
    %c0_4 = arith.constant 0 : index
    %c0_5 = arith.constant 0 : index
    %c0_6 = arith.constant 0 : index
    %c0_7 = arith.constant 0 : index
    %10 = vector.load %arg4[%c0_4, %c0_5, %c0_6, %c0_7] : memref<9x3x132x128xbf16, #tpu.memory_space<vmem>>, vector<1x1x132x128xbf16>
    %11 = vector.shape_cast %10 : vector<1x1x132x128xbf16> to vector<132x128xbf16>
    %cst_8 = arith.constant dense<0.000000e+00> : vector<144x128xf32>
    %12 = tpu.matmul %9, %11, %cst_8 {dimension_numbers = #tpu.dot_dimension_numbers<[1], [0], [0], [1], [0, 0, 1, 1], [], []>} : vector<144x132xbf16>, vector<132x128xbf16>, vector<144x128xf32> -> vector<144x128xf32>
    %13 = arith.addf %0, %12 : vector<144x128xf32>
    %14 = vector.extract_strided_slice %7 {offsets = [1, 0, 0], sizes = [9, 16, 132], strides = [1, 1, 1]} : vector<11x16x132xbf16> to vector<9x16x132xbf16>
    %15 = vector.shape_cast %14 : vector<9x16x132xbf16> to vector<144x132xbf16>
    %c0_9 = arith.constant 0 : index
    %c1 = arith.constant 1 : index
    %c0_10 = arith.constant 0 : index
    %c0_11 = arith.constant 0 : index
    %16 = vector.load %arg4[%c0_9, %c1, %c0_10, %c0_11] : memref<9x3x132x128xbf16, #tpu.memory_space<vmem>>, vector<1x1x132x128xbf16>
    %17 = vector.shape_cast %16 : vector<1x1x132x128xbf16> to vector<132x128xbf16>
    %cst_12 = arith.constant dense<0.000000e+00> : vector<144x128xf32>
    %18 = tpu.matmul %15, %17, %cst_12 {dimension_numbers = #tpu.dot_dimension_numbers<[1], [0], [0], [1], [0, 0, 1, 1], [], []>} : vector<144x132xbf16>, vector<132x128xbf16>, vector<144x128xf32> -> vector<144x128xf32>
    %19 = arith.addf %13, %18 : vector<144x128xf32>
    %20 = vector.extract_strided_slice %7 {offsets = [2, 0, 0], sizes = [9, 16, 132], strides = [1, 1, 1]} : vector<11x16x132xbf16> to vector<9x16x132xbf16>
    %21 = vector.shape_cast %20 : vector<9x16x132xbf16> to vector<144x132xbf16>
    %c0_13 = arith.constant 0 : index
    %c2 = arith.constant 2 : index
    %c0_14 = arith.constant 0 : index
    %c0_15 = arith.constant 0 : index
    %22 = vector.load %arg4[%c0_13, %c2, %c0_14, %c0_15] : memref<9x3x132x128xbf16, #tpu.memory_space<vmem>>, vector<1x1x132x128xbf16>
    %23 = vector.shape_cast %22 : vector<1x1x132x128xbf16> to vector<132x128xbf16>
    %cst_16 = arith.constant dense<0.000000e+00> : vector<144x128xf32>
    %24 = tpu.matmul %21, %23, %cst_16 {dimension_numbers = #tpu.dot_dimension_numbers<[1], [0], [0], [1], [0, 0, 1, 1], [], []>} : vector<144x132xbf16>, vector<132x128xbf16>, vector<144x128xf32> -> vector<144x128xf32>
    %25 = arith.addf %19, %24 : vector<144x128xf32>
    %c0_i32_17 = arith.constant 0 : i32
    %26 = arith.addi %arg1, %c0_i32_17 : i32
    %c6_i32_18 = arith.constant 6 : i32
    %27 = arith.muli %26, %c6_i32_18 : i32
    %c1_i32 = arith.constant 1 : i32
    %28 = arith.addi %arg2, %c1_i32 : i32
    %29 = arith.addi %27, %28 : i32
    %c0_19 = arith.constant 0 : index
    %30 = arith.index_cast %29 : i32 to index
    %c0_20 = arith.constant 0 : index
    %c0_21 = arith.constant 0 : index
    %c0_22 = arith.constant 0 : index
    %31 = vector.load %arg3[%c0_19, %30, %c0_20, %c0_21, %c0_22] : memref<1x24x11x16x132xbf16, #tpu.memory_space<vmem>>, vector<1x1x11x16x132xbf16>
    %32 = vector.shape_cast %31 : vector<1x1x11x16x132xbf16> to vector<11x16x132xbf16>
    %33 = vector.extract_strided_slice %32 {offsets = [0, 0, 0], sizes = [9, 16, 132], strides = [1, 1, 1]} : vector<11x16x132xbf16> to vector<9x16x132xbf16>
    %34 = vector.shape_cast %33 : vector<9x16x132xbf16> to vector<144x132xbf16>
    %c1_23 = arith.constant 1 : index
    %c0_24 = arith.constant 0 : index
    %c0_25 = arith.constant 0 : index
    %c0_26 = arith.constant 0 : index
    %35 = vector.load %arg4[%c1_23, %c0_24, %c0_25, %c0_26] : memref<9x3x132x128xbf16, #tpu.memory_space<vmem>>, vector<1x1x132x128xbf16>
    %36 = vector.shape_cast %35 : vector<1x1x132x128xbf16> to vector<132x128xbf16>
    %cst_27 = arith.constant dense<0.000000e+00> : vector<144x128xf32>
    %37 = tpu.matmul %34, %36, %cst_27 {dimension_numbers = #tpu.dot_dimension_numbers<[1], [0], [0], [1], [0, 0, 1, 1], [], []>} : vector<144x132xbf16>, vector<132x128xbf16>, vector<144x128xf32> -> vector<144x128xf32>
    %38 = arith.addf %25, %37 : vector<144x128xf32>
    %39 = vector.extract_strided_slice %32 {offsets = [1, 0, 0], sizes = [9, 16, 132], strides = [1, 1, 1]} : vector<11x16x132xbf16> to vector<9x16x132xbf16>
    %40 = vector.shape_cast %39 : vector<9x16x132xbf16> to vector<144x132xbf16>
    %c1_28 = arith.constant 1 : index
    %c1_29 = arith.constant 1 : index
    %c0_30 = arith.constant 0 : index
    %c0_31 = arith.constant 0 : index
    %41 = vector.load %arg4[%c1_28, %c1_29, %c0_30, %c0_31] : memref<9x3x132x128xbf16, #tpu.memory_space<vmem>>, vector<1x1x132x128xbf16>
    %42 = vector.shape_cast %41 : vector<1x1x132x128xbf16> to vector<132x128xbf16>
    %cst_32 = arith.constant dense<0.000000e+00> : vector<144x128xf32>
    %43 = tpu.matmul %40, %42, %cst_32 {dimension_numbers = #tpu.dot_dimension_numbers<[1], [0], [0], [1], [0, 0, 1, 1], [], []>} : vector<144x132xbf16>, vector<132x128xbf16>, vector<144x128xf32> -> vector<144x128xf32>
    %44 = arith.addf %38, %43 : vector<144x128xf32>
    %45 = vector.extract_strided_slice %32 {offsets = [2, 0, 0], sizes = [9, 16, 132], strides = [1, 1, 1]} : vector<11x16x132xbf16> to vector<9x16x132xbf16>
    %46 = vector.shape_cast %45 : vector<9x16x132xbf16> to vector<144x132xbf16>
    %c1_33 = arith.constant 1 : index
    %c2_34 = arith.constant 2 : index
    %c0_35 = arith.constant 0 : index
    %c0_36 = arith.constant 0 : index
    %47 = vector.load %arg4[%c1_33, %c2_34, %c0_35, %c0_36] : memref<9x3x132x128xbf16, #tpu.memory_space<vmem>>, vector<1x1x132x128xbf16>
    %48 = vector.shape_cast %47 : vector<1x1x132x128xbf16> to vector<132x128xbf16>
    %cst_37 = arith.constant dense<0.000000e+00> : vector<144x128xf32>
    %49 = tpu.matmul %46, %48, %cst_37 {dimension_numbers = #tpu.dot_dimension_numbers<[1], [0], [0], [1], [0, 0, 1, 1], [], []>} : vector<144x132xbf16>, vector<132x128xbf16>, vector<144x128xf32> -> vector<144x128xf32>
    %50 = arith.addf %44, %49 : vector<144x128xf32>
    %c0_i32_38 = arith.constant 0 : i32
    %51 = arith.addi %arg1, %c0_i32_38 : i32
    %c6_i32_39 = arith.constant 6 : i32
    %52 = arith.muli %51, %c6_i32_39 : i32
    %c2_i32 = arith.constant 2 : i32
    %53 = arith.addi %arg2, %c2_i32 : i32
    %54 = arith.addi %52, %53 : i32
    %c0_40 = arith.constant 0 : index
    %55 = arith.index_cast %54 : i32 to index
    %c0_41 = arith.constant 0 : index
    %c0_42 = arith.constant 0 : index
    %c0_43 = arith.constant 0 : index
    %56 = vector.load %arg3[%c0_40, %55, %c0_41, %c0_42, %c0_43] : memref<1x24x11x16x132xbf16, #tpu.memory_space<vmem>>, vector<1x1x11x16x132xbf16>
    %57 = vector.shape_cast %56 : vector<1x1x11x16x132xbf16> to vector<11x16x132xbf16>
    %58 = vector.extract_strided_slice %57 {offsets = [0, 0, 0], sizes = [9, 16, 132], strides = [1, 1, 1]} : vector<11x16x132xbf16> to vector<9x16x132xbf16>
    %59 = vector.shape_cast %58 : vector<9x16x132xbf16> to vector<144x132xbf16>
    %c2_44 = arith.constant 2 : index
    %c0_45 = arith.constant 0 : index
    %c0_46 = arith.constant 0 : index
    %c0_47 = arith.constant 0 : index
    %60 = vector.load %arg4[%c2_44, %c0_45, %c0_46, %c0_47] : memref<9x3x132x128xbf16, #tpu.memory_space<vmem>>, vector<1x1x132x128xbf16>
    %61 = vector.shape_cast %60 : vector<1x1x132x128xbf16> to vector<132x128xbf16>
    %cst_48 = arith.constant dense<0.000000e+00> : vector<144x128xf32>
    %62 = tpu.matmul %59, %61, %cst_48 {dimension_numbers = #tpu.dot_dimension_numbers<[1], [0], [0], [1], [0, 0, 1, 1], [], []>} : vector<144x132xbf16>, vector<132x128xbf16>, vector<144x128xf32> -> vector<144x128xf32>
    %63 = arith.addf %50, %62 : vector<144x128xf32>
    %64 = vector.extract_strided_slice %57 {offsets = [1, 0, 0], sizes = [9, 16, 132], strides = [1, 1, 1]} : vector<11x16x132xbf16> to vector<9x16x132xbf16>
    %65 = vector.shape_cast %64 : vector<9x16x132xbf16> to vector<144x132xbf16>
    %c2_49 = arith.constant 2 : index
    %c1_50 = arith.constant 1 : index
    %c0_51 = arith.constant 0 : index
    %c0_52 = arith.constant 0 : index
    %66 = vector.load %arg4[%c2_49, %c1_50, %c0_51, %c0_52] : memref<9x3x132x128xbf16, #tpu.memory_space<vmem>>, vector<1x1x132x128xbf16>
    %67 = vector.shape_cast %66 : vector<1x1x132x128xbf16> to vector<132x128xbf16>
    %cst_53 = arith.constant dense<0.000000e+00> : vector<144x128xf32>
    %68 = tpu.matmul %65, %67, %cst_53 {dimension_numbers = #tpu.dot_dimension_numbers<[1], [0], [0], [1], [0, 0, 1, 1], [], []>} : vector<144x132xbf16>, vector<132x128xbf16>, vector<144x128xf32> -> vector<144x128xf32>
    %69 = arith.addf %63, %68 : vector<144x128xf32>
    %70 = vector.extract_strided_slice %57 {offsets = [2, 0, 0], sizes = [9, 16, 132], strides = [1, 1, 1]} : vector<11x16x132xbf16> to vector<9x16x132xbf16>
    %71 = vector.shape_cast %70 : vector<9x16x132xbf16> to vector<144x132xbf16>
    %c2_54 = arith.constant 2 : index
    %c2_55 = arith.constant 2 : index
    %c0_56 = arith.constant 0 : index
    %c0_57 = arith.constant 0 : index
    %72 = vector.load %arg4[%c2_54, %c2_55, %c0_56, %c0_57] : memref<9x3x132x128xbf16, #tpu.memory_space<vmem>>, vector<1x1x132x128xbf16>
    %73 = vector.shape_cast %72 : vector<1x1x132x128xbf16> to vector<132x128xbf16>
    %cst_58 = arith.constant dense<0.000000e+00> : vector<144x128xf32>
    %74 = tpu.matmul %71, %73, %cst_58 {dimension_numbers = #tpu.dot_dimension_numbers<[1], [0], [0], [1], [0, 0, 1, 1], [], []>} : vector<144x132xbf16>, vector<132x128xbf16>, vector<144x128xf32> -> vector<144x128xf32>
    %75 = arith.addf %69, %74 : vector<144x128xf32>
    %c1_i32_59 = arith.constant 1 : i32
    %76 = arith.addi %arg1, %c1_i32_59 : i32
    %c6_i32_60 = arith.constant 6 : i32
    %77 = arith.muli %76, %c6_i32_60 : i32
    %c0_i32_61 = arith.constant 0 : i32
    %78 = arith.addi %arg2, %c0_i32_61 : i32
    %79 = arith.addi %77, %78 : i32
    %c0_62 = arith.constant 0 : index
    %80 = arith.index_cast %79 : i32 to index
    %c0_63 = arith.constant 0 : index
    %c0_64 = arith.constant 0 : index
    %c0_65 = arith.constant 0 : index
    %81 = vector.load %arg3[%c0_62, %80, %c0_63, %c0_64, %c0_65] : memref<1x24x11x16x132xbf16, #tpu.memory_space<vmem>>, vector<1x1x11x16x132xbf16>
    %82 = vector.shape_cast %81 : vector<1x1x11x16x132xbf16> to vector<11x16x132xbf16>
    %83 = vector.extract_strided_slice %82 {offsets = [0, 0, 0], sizes = [9, 16, 132], strides = [1, 1, 1]} : vector<11x16x132xbf16> to vector<9x16x132xbf16>
    %84 = vector.shape_cast %83 : vector<9x16x132xbf16> to vector<144x132xbf16>
    %c3 = arith.constant 3 : index
    %c0_66 = arith.constant 0 : index
    %c0_67 = arith.constant 0 : index
    %c0_68 = arith.constant 0 : index
    %85 = vector.load %arg4[%c3, %c0_66, %c0_67, %c0_68] : memref<9x3x132x128xbf16, #tpu.memory_space<vmem>>, vector<1x1x132x128xbf16>
    %86 = vector.shape_cast %85 : vector<1x1x132x128xbf16> to vector<132x128xbf16>
    %cst_69 = arith.constant dense<0.000000e+00> : vector<144x128xf32>
    %87 = tpu.matmul %84, %86, %cst_69 {dimension_numbers = #tpu.dot_dimension_numbers<[1], [0], [0], [1], [0, 0, 1, 1], [], []>} : vector<144x132xbf16>, vector<132x128xbf16>, vector<144x128xf32> -> vector<144x128xf32>
    %88 = arith.addf %75, %87 : vector<144x128xf32>
    %89 = vector.extract_strided_slice %82 {offsets = [1, 0, 0], sizes = [9, 16, 132], strides = [1, 1, 1]} : vector<11x16x132xbf16> to vector<9x16x132xbf16>
    %90 = vector.shape_cast %89 : vector<9x16x132xbf16> to vector<144x132xbf16>
    %c3_70 = arith.constant 3 : index
    %c1_71 = arith.constant 1 : index
    %c0_72 = arith.constant 0 : index
    %c0_73 = arith.constant 0 : index
    %91 = vector.load %arg4[%c3_70, %c1_71, %c0_72, %c0_73] : memref<9x3x132x128xbf16, #tpu.memory_space<vmem>>, vector<1x1x132x128xbf16>
    %92 = vector.shape_cast %91 : vector<1x1x132x128xbf16> to vector<132x128xbf16>
    %cst_74 = arith.constant dense<0.000000e+00> : vector<144x128xf32>
    %93 = tpu.matmul %90, %92, %cst_74 {dimension_numbers = #tpu.dot_dimension_numbers<[1], [0], [0], [1], [0, 0, 1, 1], [], []>} : vector<144x132xbf16>, vector<132x128xbf16>, vector<144x128xf32> -> vector<144x128xf32>
    %94 = arith.addf %88, %93 : vector<144x128xf32>
    %95 = vector.extract_strided_slice %82 {offsets = [2, 0, 0], sizes = [9, 16, 132], strides = [1, 1, 1]} : vector<11x16x132xbf16> to vector<9x16x132xbf16>
    %96 = vector.shape_cast %95 : vector<9x16x132xbf16> to vector<144x132xbf16>
    %c3_75 = arith.constant 3 : index
    %c2_76 = arith.constant 2 : index
    %c0_77 = arith.constant 0 : index
    %c0_78 = arith.constant 0 : index
    %97 = vector.load %arg4[%c3_75, %c2_76, %c0_77, %c0_78] : memref<9x3x132x128xbf16, #tpu.memory_space<vmem>>, vector<1x1x132x128xbf16>
    %98 = vector.shape_cast %97 : vector<1x1x132x128xbf16> to vector<132x128xbf16>
    %cst_79 = arith.constant dense<0.000000e+00> : vector<144x128xf32>
    %99 = tpu.matmul %96, %98, %cst_79 {dimension_numbers = #tpu.dot_dimension_numbers<[1], [0], [0], [1], [0, 0, 1, 1], [], []>} : vector<144x132xbf16>, vector<132x128xbf16>, vector<144x128xf32> -> vector<144x128xf32>
    %100 = arith.addf %94, %99 : vector<144x128xf32>
    %c1_i32_80 = arith.constant 1 : i32
    %101 = arith.addi %arg1, %c1_i32_80 : i32
    %c6_i32_81 = arith.constant 6 : i32
    %102 = arith.muli %101, %c6_i32_81 : i32
    %c1_i32_82 = arith.constant 1 : i32
    %103 = arith.addi %arg2, %c1_i32_82 : i32
    %104 = arith.addi %102, %103 : i32
    %c0_83 = arith.constant 0 : index
    %105 = arith.index_cast %104 : i32 to index
    %c0_84 = arith.constant 0 : index
    %c0_85 = arith.constant 0 : index
    %c0_86 = arith.constant 0 : index
    %106 = vector.load %arg3[%c0_83, %105, %c0_84, %c0_85, %c0_86] : memref<1x24x11x16x132xbf16, #tpu.memory_space<vmem>>, vector<1x1x11x16x132xbf16>
    %107 = vector.shape_cast %106 : vector<1x1x11x16x132xbf16> to vector<11x16x132xbf16>
    %108 = vector.extract_strided_slice %107 {offsets = [0, 0, 0], sizes = [9, 16, 132], strides = [1, 1, 1]} : vector<11x16x132xbf16> to vector<9x16x132xbf16>
    %109 = vector.shape_cast %108 : vector<9x16x132xbf16> to vector<144x132xbf16>
    %c4 = arith.constant 4 : index
    %c0_87 = arith.constant 0 : index
    %c0_88 = arith.constant 0 : index
    %c0_89 = arith.constant 0 : index
    %110 = vector.load %arg4[%c4, %c0_87, %c0_88, %c0_89] : memref<9x3x132x128xbf16, #tpu.memory_space<vmem>>, vector<1x1x132x128xbf16>
    %111 = vector.shape_cast %110 : vector<1x1x132x128xbf16> to vector<132x128xbf16>
    %cst_90 = arith.constant dense<0.000000e+00> : vector<144x128xf32>
    %112 = tpu.matmul %109, %111, %cst_90 {dimension_numbers = #tpu.dot_dimension_numbers<[1], [0], [0], [1], [0, 0, 1, 1], [], []>} : vector<144x132xbf16>, vector<132x128xbf16>, vector<144x128xf32> -> vector<144x128xf32>
    %113 = arith.addf %100, %112 : vector<144x128xf32>
    %114 = vector.extract_strided_slice %107 {offsets = [1, 0, 0], sizes = [9, 16, 132], strides = [1, 1, 1]} : vector<11x16x132xbf16> to vector<9x16x132xbf16>
    %115 = vector.shape_cast %114 : vector<9x16x132xbf16> to vector<144x132xbf16>
    %c4_91 = arith.constant 4 : index
    %c1_92 = arith.constant 1 : index
    %c0_93 = arith.constant 0 : index
    %c0_94 = arith.constant 0 : index
    %116 = vector.load %arg4[%c4_91, %c1_92, %c0_93, %c0_94] : memref<9x3x132x128xbf16, #tpu.memory_space<vmem>>, vector<1x1x132x128xbf16>
    %117 = vector.shape_cast %116 : vector<1x1x132x128xbf16> to vector<132x128xbf16>
    %cst_95 = arith.constant dense<0.000000e+00> : vector<144x128xf32>
    %118 = tpu.matmul %115, %117, %cst_95 {dimension_numbers = #tpu.dot_dimension_numbers<[1], [0], [0], [1], [0, 0, 1, 1], [], []>} : vector<144x132xbf16>, vector<132x128xbf16>, vector<144x128xf32> -> vector<144x128xf32>
    %119 = arith.addf %113, %118 : vector<144x128xf32>
    %120 = vector.extract_strided_slice %107 {offsets = [2, 0, 0], sizes = [9, 16, 132], strides = [1, 1, 1]} : vector<11x16x132xbf16> to vector<9x16x132xbf16>
    %121 = vector.shape_cast %120 : vector<9x16x132xbf16> to vector<144x132xbf16>
    %c4_96 = arith.constant 4 : index
    %c2_97 = arith.constant 2 : index
    %c0_98 = arith.constant 0 : index
    %c0_99 = arith.constant 0 : index
    %122 = vector.load %arg4[%c4_96, %c2_97, %c0_98, %c0_99] : memref<9x3x132x128xbf16, #tpu.memory_space<vmem>>, vector<1x1x132x128xbf16>
    %123 = vector.shape_cast %122 : vector<1x1x132x128xbf16> to vector<132x128xbf16>
    %cst_100 = arith.constant dense<0.000000e+00> : vector<144x128xf32>
    %124 = tpu.matmul %121, %123, %cst_100 {dimension_numbers = #tpu.dot_dimension_numbers<[1], [0], [0], [1], [0, 0, 1, 1], [], []>} : vector<144x132xbf16>, vector<132x128xbf16>, vector<144x128xf32> -> vector<144x128xf32>
    %125 = arith.addf %119, %124 : vector<144x128xf32>
    %c1_i32_101 = arith.constant 1 : i32
    %126 = arith.addi %arg1, %c1_i32_101 : i32
    %c6_i32_102 = arith.constant 6 : i32
    %127 = arith.muli %126, %c6_i32_102 : i32
    %c2_i32_103 = arith.constant 2 : i32
    %128 = arith.addi %arg2, %c2_i32_103 : i32
    %129 = arith.addi %127, %128 : i32
    %c0_104 = arith.constant 0 : index
    %130 = arith.index_cast %129 : i32 to index
    %c0_105 = arith.constant 0 : index
    %c0_106 = arith.constant 0 : index
    %c0_107 = arith.constant 0 : index
    %131 = vector.load %arg3[%c0_104, %130, %c0_105, %c0_106, %c0_107] : memref<1x24x11x16x132xbf16, #tpu.memory_space<vmem>>, vector<1x1x11x16x132xbf16>
    %132 = vector.shape_cast %131 : vector<1x1x11x16x132xbf16> to vector<11x16x132xbf16>
    %133 = vector.extract_strided_slice %132 {offsets = [0, 0, 0], sizes = [9, 16, 132], strides = [1, 1, 1]} : vector<11x16x132xbf16> to vector<9x16x132xbf16>
    %134 = vector.shape_cast %133 : vector<9x16x132xbf16> to vector<144x132xbf16>
    %c5 = arith.constant 5 : index
    %c0_108 = arith.constant 0 : index
    %c0_109 = arith.constant 0 : index
    %c0_110 = arith.constant 0 : index
    %135 = vector.load %arg4[%c5, %c0_108, %c0_109, %c0_110] : memref<9x3x132x128xbf16, #tpu.memory_space<vmem>>, vector<1x1x132x128xbf16>
    %136 = vector.shape_cast %135 : vector<1x1x132x128xbf16> to vector<132x128xbf16>
    %cst_111 = arith.constant dense<0.000000e+00> : vector<144x128xf32>
    %137 = tpu.matmul %134, %136, %cst_111 {dimension_numbers = #tpu.dot_dimension_numbers<[1], [0], [0], [1], [0, 0, 1, 1], [], []>} : vector<144x132xbf16>, vector<132x128xbf16>, vector<144x128xf32> -> vector<144x128xf32>
    %138 = arith.addf %125, %137 : vector<144x128xf32>
    %139 = vector.extract_strided_slice %132 {offsets = [1, 0, 0], sizes = [9, 16, 132], strides = [1, 1, 1]} : vector<11x16x132xbf16> to vector<9x16x132xbf16>
    %140 = vector.shape_cast %139 : vector<9x16x132xbf16> to vector<144x132xbf16>
    %c5_112 = arith.constant 5 : index
    %c1_113 = arith.constant 1 : index
    %c0_114 = arith.constant 0 : index
    %c0_115 = arith.constant 0 : index
    %141 = vector.load %arg4[%c5_112, %c1_113, %c0_114, %c0_115] : memref<9x3x132x128xbf16, #tpu.memory_space<vmem>>, vector<1x1x132x128xbf16>
    %142 = vector.shape_cast %141 : vector<1x1x132x128xbf16> to vector<132x128xbf16>
    %cst_116 = arith.constant dense<0.000000e+00> : vector<144x128xf32>
    %143 = tpu.matmul %140, %142, %cst_116 {dimension_numbers = #tpu.dot_dimension_numbers<[1], [0], [0], [1], [0, 0, 1, 1], [], []>} : vector<144x132xbf16>, vector<132x128xbf16>, vector<144x128xf32> -> vector<144x128xf32>
    %144 = arith.addf %138, %143 : vector<144x128xf32>
    %145 = vector.extract_strided_slice %132 {offsets = [2, 0, 0], sizes = [9, 16, 132], strides = [1, 1, 1]} : vector<11x16x132xbf16> to vector<9x16x132xbf16>
    %146 = vector.shape_cast %145 : vector<9x16x132xbf16> to vector<144x132xbf16>
    %c5_117 = arith.constant 5 : index
    %c2_118 = arith.constant 2 : index
    %c0_119 = arith.constant 0 : index
    %c0_120 = arith.constant 0 : index
    %147 = vector.load %arg4[%c5_117, %c2_118, %c0_119, %c0_120] : memref<9x3x132x128xbf16, #tpu.memory_space<vmem>>, vector<1x1x132x128xbf16>
    %148 = vector.shape_cast %147 : vector<1x1x132x128xbf16> to vector<132x128xbf16>
    %cst_121 = arith.constant dense<0.000000e+00> : vector<144x128xf32>
    %149 = tpu.matmul %146, %148, %cst_121 {dimension_numbers = #tpu.dot_dimension_numbers<[1], [0], [0], [1], [0, 0, 1, 1], [], []>} : vector<144x132xbf16>, vector<132x128xbf16>, vector<144x128xf32> -> vector<144x128xf32>
    %150 = arith.addf %144, %149 : vector<144x128xf32>
    %c2_i32_122 = arith.constant 2 : i32
    %151 = arith.addi %arg1, %c2_i32_122 : i32
    %c6_i32_123 = arith.constant 6 : i32
    %152 = arith.muli %151, %c6_i32_123 : i32
    %c0_i32_124 = arith.constant 0 : i32
    %153 = arith.addi %arg2, %c0_i32_124 : i32
    %154 = arith.addi %152, %153 : i32
    %c0_125 = arith.constant 0 : index
    %155 = arith.index_cast %154 : i32 to index
    %c0_126 = arith.constant 0 : index
    %c0_127 = arith.constant 0 : index
    %c0_128 = arith.constant 0 : index
    %156 = vector.load %arg3[%c0_125, %155, %c0_126, %c0_127, %c0_128] : memref<1x24x11x16x132xbf16, #tpu.memory_space<vmem>>, vector<1x1x11x16x132xbf16>
    %157 = vector.shape_cast %156 : vector<1x1x11x16x132xbf16> to vector<11x16x132xbf16>
    %158 = vector.extract_strided_slice %157 {offsets = [0, 0, 0], sizes = [9, 16, 132], strides = [1, 1, 1]} : vector<11x16x132xbf16> to vector<9x16x132xbf16>
    %159 = vector.shape_cast %158 : vector<9x16x132xbf16> to vector<144x132xbf16>
    %c6 = arith.constant 6 : index
    %c0_129 = arith.constant 0 : index
    %c0_130 = arith.constant 0 : index
    %c0_131 = arith.constant 0 : index
    %160 = vector.load %arg4[%c6, %c0_129, %c0_130, %c0_131] : memref<9x3x132x128xbf16, #tpu.memory_space<vmem>>, vector<1x1x132x128xbf16>
    %161 = vector.shape_cast %160 : vector<1x1x132x128xbf16> to vector<132x128xbf16>
    %cst_132 = arith.constant dense<0.000000e+00> : vector<144x128xf32>
    %162 = tpu.matmul %159, %161, %cst_132 {dimension_numbers = #tpu.dot_dimension_numbers<[1], [0], [0], [1], [0, 0, 1, 1], [], []>} : vector<144x132xbf16>, vector<132x128xbf16>, vector<144x128xf32> -> vector<144x128xf32>
    %163 = arith.addf %150, %162 : vector<144x128xf32>
    %164 = vector.extract_strided_slice %157 {offsets = [1, 0, 0], sizes = [9, 16, 132], strides = [1, 1, 1]} : vector<11x16x132xbf16> to vector<9x16x132xbf16>
    %165 = vector.shape_cast %164 : vector<9x16x132xbf16> to vector<144x132xbf16>
    %c6_133 = arith.constant 6 : index
    %c1_134 = arith.constant 1 : index
    %c0_135 = arith.constant 0 : index
    %c0_136 = arith.constant 0 : index
    %166 = vector.load %arg4[%c6_133, %c1_134, %c0_135, %c0_136] : memref<9x3x132x128xbf16, #tpu.memory_space<vmem>>, vector<1x1x132x128xbf16>
    %167 = vector.shape_cast %166 : vector<1x1x132x128xbf16> to vector<132x128xbf16>
    %cst_137 = arith.constant dense<0.000000e+00> : vector<144x128xf32>
    %168 = tpu.matmul %165, %167, %cst_137 {dimension_numbers = #tpu.dot_dimension_numbers<[1], [0], [0], [1], [0, 0, 1, 1], [], []>} : vector<144x132xbf16>, vector<132x128xbf16>, vector<144x128xf32> -> vector<144x128xf32>
    %169 = arith.addf %163, %168 : vector<144x128xf32>
    %170 = vector.extract_strided_slice %157 {offsets = [2, 0, 0], sizes = [9, 16, 132], strides = [1, 1, 1]} : vector<11x16x132xbf16> to vector<9x16x132xbf16>
    %171 = vector.shape_cast %170 : vector<9x16x132xbf16> to vector<144x132xbf16>
    %c6_138 = arith.constant 6 : index
    %c2_139 = arith.constant 2 : index
    %c0_140 = arith.constant 0 : index
    %c0_141 = arith.constant 0 : index
    %172 = vector.load %arg4[%c6_138, %c2_139, %c0_140, %c0_141] : memref<9x3x132x128xbf16, #tpu.memory_space<vmem>>, vector<1x1x132x128xbf16>
    %173 = vector.shape_cast %172 : vector<1x1x132x128xbf16> to vector<132x128xbf16>
    %cst_142 = arith.constant dense<0.000000e+00> : vector<144x128xf32>
    %174 = tpu.matmul %171, %173, %cst_142 {dimension_numbers = #tpu.dot_dimension_numbers<[1], [0], [0], [1], [0, 0, 1, 1], [], []>} : vector<144x132xbf16>, vector<132x128xbf16>, vector<144x128xf32> -> vector<144x128xf32>
    %175 = arith.addf %169, %174 : vector<144x128xf32>
    %c2_i32_143 = arith.constant 2 : i32
    %176 = arith.addi %arg1, %c2_i32_143 : i32
    %c6_i32_144 = arith.constant 6 : i32
    %177 = arith.muli %176, %c6_i32_144 : i32
    %c1_i32_145 = arith.constant 1 : i32
    %178 = arith.addi %arg2, %c1_i32_145 : i32
    %179 = arith.addi %177, %178 : i32
    %c0_146 = arith.constant 0 : index
    %180 = arith.index_cast %179 : i32 to index
    %c0_147 = arith.constant 0 : index
    %c0_148 = arith.constant 0 : index
    %c0_149 = arith.constant 0 : index
    %181 = vector.load %arg3[%c0_146, %180, %c0_147, %c0_148, %c0_149] : memref<1x24x11x16x132xbf16, #tpu.memory_space<vmem>>, vector<1x1x11x16x132xbf16>
    %182 = vector.shape_cast %181 : vector<1x1x11x16x132xbf16> to vector<11x16x132xbf16>
    %183 = vector.extract_strided_slice %182 {offsets = [0, 0, 0], sizes = [9, 16, 132], strides = [1, 1, 1]} : vector<11x16x132xbf16> to vector<9x16x132xbf16>
    %184 = vector.shape_cast %183 : vector<9x16x132xbf16> to vector<144x132xbf16>
    %c7 = arith.constant 7 : index
    %c0_150 = arith.constant 0 : index
    %c0_151 = arith.constant 0 : index
    %c0_152 = arith.constant 0 : index
    %185 = vector.load %arg4[%c7, %c0_150, %c0_151, %c0_152] : memref<9x3x132x128xbf16, #tpu.memory_space<vmem>>, vector<1x1x132x128xbf16>
    %186 = vector.shape_cast %185 : vector<1x1x132x128xbf16> to vector<132x128xbf16>
    %cst_153 = arith.constant dense<0.000000e+00> : vector<144x128xf32>
    %187 = tpu.matmul %184, %186, %cst_153 {dimension_numbers = #tpu.dot_dimension_numbers<[1], [0], [0], [1], [0, 0, 1, 1], [], []>} : vector<144x132xbf16>, vector<132x128xbf16>, vector<144x128xf32> -> vector<144x128xf32>
    %188 = arith.addf %175, %187 : vector<144x128xf32>
    %189 = vector.extract_strided_slice %182 {offsets = [1, 0, 0], sizes = [9, 16, 132], strides = [1, 1, 1]} : vector<11x16x132xbf16> to vector<9x16x132xbf16>
    %190 = vector.shape_cast %189 : vector<9x16x132xbf16> to vector<144x132xbf16>
    %c7_154 = arith.constant 7 : index
    %c1_155 = arith.constant 1 : index
    %c0_156 = arith.constant 0 : index
    %c0_157 = arith.constant 0 : index
    %191 = vector.load %arg4[%c7_154, %c1_155, %c0_156, %c0_157] : memref<9x3x132x128xbf16, #tpu.memory_space<vmem>>, vector<1x1x132x128xbf16>
    %192 = vector.shape_cast %191 : vector<1x1x132x128xbf16> to vector<132x128xbf16>
    %cst_158 = arith.constant dense<0.000000e+00> : vector<144x128xf32>
    %193 = tpu.matmul %190, %192, %cst_158 {dimension_numbers = #tpu.dot_dimension_numbers<[1], [0], [0], [1], [0, 0, 1, 1], [], []>} : vector<144x132xbf16>, vector<132x128xbf16>, vector<144x128xf32> -> vector<144x128xf32>
    %194 = arith.addf %188, %193 : vector<144x128xf32>
    %195 = vector.extract_strided_slice %182 {offsets = [2, 0, 0], sizes = [9, 16, 132], strides = [1, 1, 1]} : vector<11x16x132xbf16> to vector<9x16x132xbf16>
    %196 = vector.shape_cast %195 : vector<9x16x132xbf16> to vector<144x132xbf16>
    %c7_159 = arith.constant 7 : index
    %c2_160 = arith.constant 2 : index
    %c0_161 = arith.constant 0 : index
    %c0_162 = arith.constant 0 : index
    %197 = vector.load %arg4[%c7_159, %c2_160, %c0_161, %c0_162] : memref<9x3x132x128xbf16, #tpu.memory_space<vmem>>, vector<1x1x132x128xbf16>
    %198 = vector.shape_cast %197 : vector<1x1x132x128xbf16> to vector<132x128xbf16>
    %cst_163 = arith.constant dense<0.000000e+00> : vector<144x128xf32>
    %199 = tpu.matmul %196, %198, %cst_163 {dimension_numbers = #tpu.dot_dimension_numbers<[1], [0], [0], [1], [0, 0, 1, 1], [], []>} : vector<144x132xbf16>, vector<132x128xbf16>, vector<144x128xf32> -> vector<144x128xf32>
    %200 = arith.addf %194, %199 : vector<144x128xf32>
    %c2_i32_164 = arith.constant 2 : i32
    %201 = arith.addi %arg1, %c2_i32_164 : i32
    %c6_i32_165 = arith.constant 6 : i32
    %202 = arith.muli %201, %c6_i32_165 : i32
    %c2_i32_166 = arith.constant 2 : i32
    %203 = arith.addi %arg2, %c2_i32_166 : i32
    %204 = arith.addi %202, %203 : i32
    %c0_167 = arith.constant 0 : index
    %205 = arith.index_cast %204 : i32 to index
    %c0_168 = arith.constant 0 : index
    %c0_169 = arith.constant 0 : index
    %c0_170 = arith.constant 0 : index
    %206 = vector.load %arg3[%c0_167, %205, %c0_168, %c0_169, %c0_170] : memref<1x24x11x16x132xbf16, #tpu.memory_space<vmem>>, vector<1x1x11x16x132xbf16>
    %207 = vector.shape_cast %206 : vector<1x1x11x16x132xbf16> to vector<11x16x132xbf16>
    %208 = vector.extract_strided_slice %207 {offsets = [0, 0, 0], sizes = [9, 16, 132], strides = [1, 1, 1]} : vector<11x16x132xbf16> to vector<9x16x132xbf16>
    %209 = vector.shape_cast %208 : vector<9x16x132xbf16> to vector<144x132xbf16>
    %c8 = arith.constant 8 : index
    %c0_171 = arith.constant 0 : index
    %c0_172 = arith.constant 0 : index
    %c0_173 = arith.constant 0 : index
    %210 = vector.load %arg4[%c8, %c0_171, %c0_172, %c0_173] : memref<9x3x132x128xbf16, #tpu.memory_space<vmem>>, vector<1x1x132x128xbf16>
    %211 = vector.shape_cast %210 : vector<1x1x132x128xbf16> to vector<132x128xbf16>
    %cst_174 = arith.constant dense<0.000000e+00> : vector<144x128xf32>
    %212 = tpu.matmul %209, %211, %cst_174 {dimension_numbers = #tpu.dot_dimension_numbers<[1], [0], [0], [1], [0, 0, 1, 1], [], []>} : vector<144x132xbf16>, vector<132x128xbf16>, vector<144x128xf32> -> vector<144x128xf32>
    %213 = arith.addf %200, %212 : vector<144x128xf32>
    %214 = vector.extract_strided_slice %207 {offsets = [1, 0, 0], sizes = [9, 16, 132], strides = [1, 1, 1]} : vector<11x16x132xbf16> to vector<9x16x132xbf16>
    %215 = vector.shape_cast %214 : vector<9x16x132xbf16> to vector<144x132xbf16>
    %c8_175 = arith.constant 8 : index
    %c1_176 = arith.constant 1 : index
    %c0_177 = arith.constant 0 : index
    %c0_178 = arith.constant 0 : index
    %216 = vector.load %arg4[%c8_175, %c1_176, %c0_177, %c0_178] : memref<9x3x132x128xbf16, #tpu.memory_space<vmem>>, vector<1x1x132x128xbf16>
    %217 = vector.shape_cast %216 : vector<1x1x132x128xbf16> to vector<132x128xbf16>
    %cst_179 = arith.constant dense<0.000000e+00> : vector<144x128xf32>
    %218 = tpu.matmul %215, %217, %cst_179 {dimension_numbers = #tpu.dot_dimension_numbers<[1], [0], [0], [1], [0, 0, 1, 1], [], []>} : vector<144x132xbf16>, vector<132x128xbf16>, vector<144x128xf32> -> vector<144x128xf32>
    %219 = arith.addf %213, %218 : vector<144x128xf32>
    %220 = vector.extract_strided_slice %207 {offsets = [2, 0, 0], sizes = [9, 16, 132], strides = [1, 1, 1]} : vector<11x16x132xbf16> to vector<9x16x132xbf16>
    %221 = vector.shape_cast %220 : vector<9x16x132xbf16> to vector<144x132xbf16>
    %c8_180 = arith.constant 8 : index
    %c2_181 = arith.constant 2 : index
    %c0_182 = arith.constant 0 : index
    %c0_183 = arith.constant 0 : index
    %222 = vector.load %arg4[%c8_180, %c2_181, %c0_182, %c0_183] : memref<9x3x132x128xbf16, #tpu.memory_space<vmem>>, vector<1x1x132x128xbf16>
    %223 = vector.shape_cast %222 : vector<1x1x132x128xbf16> to vector<132x128xbf16>
    %cst_184 = arith.constant dense<0.000000e+00> : vector<144x128xf32>
    %224 = tpu.matmul %221, %223, %cst_184 {dimension_numbers = #tpu.dot_dimension_numbers<[1], [0], [0], [1], [0, 0, 1, 1], [], []>} : vector<144x132xbf16>, vector<132x128xbf16>, vector<144x128xf32> -> vector<144x128xf32>
    %225 = arith.addf %219, %224 : vector<144x128xf32>
    %c0_185 = arith.constant 0 : index
    %c0_186 = arith.constant 0 : index
    %226 = vector.load %arg5[%c0_185, %c0_186] : memref<1x128xf32, #tpu.memory_space<vmem>>, vector<1x128xf32>
    %227 = vector.broadcast %226 : vector<1x128xf32> to vector<144x128xf32>
    %228 = arith.addf %225, %227 : vector<144x128xf32>
    %c0_187 = arith.constant 0 : index
    %c0_188 = arith.constant 0 : index
    %c0_189 = arith.constant 0 : index
    %c0_190 = arith.constant 0 : index
    %c0_191 = arith.constant 0 : index
    %229 = vector.load %arg6[%c0_187, %c0_188, %c0_189, %c0_190, %c0_191] : memref<1x1x1x144x128xf32, #tpu.memory_space<vmem>>, vector<1x1x1x144x128xf32>
    %230 = vector.shape_cast %229 : vector<1x1x1x144x128xf32> to vector<144x128xf32>
    %231 = vector.shape_cast %228 : vector<144x128xf32> to vector<1x1x1x144x128xf32>
    tpu.vector_store %arg6[%c0_187, %c0_188, %c0_189, %c0_190, %c0_191], %231 {strides = array<i32>} : memref<1x1x1x144x128xf32, #tpu.memory_space<vmem>>, vector<1x1x1x144x128xf32>,
    return
  }
  func.func @transform_0(%arg0: i32, %arg1: i32, %arg2: i32) -> (i32, i32, i32, i32, i32) {
    %c0_i32 = arith.constant 0 : i32
    %c0_i32_0 = arith.constant 0 : i32
    %c0_i32_1 = arith.constant 0 : i32
    %c0_i32_2 = arith.constant 0 : i32
    %c0_i32_3 = arith.constant 0 : i32
    return %arg0, %c0_i32, %c0_i32_0, %c0_i32_1, %c0_i32_2 : i32, i32, i32, i32, i32
  }
  func.func @transform_1(%arg0: i32, %arg1: i32, %arg2: i32) -> (i32, i32, i32, i32) {
    %c0_i32 = arith.constant 0 : i32
    %c0_i32_0 = arith.constant 0 : i32
    %c0_i32_1 = arith.constant 0 : i32
    %c0_i32_2 = arith.constant 0 : i32
    %c0_i32_3 = arith.constant 0 : i32
    return %c0_i32, %c0_i32_0, %c0_i32_1, %c0_i32_2 : i32, i32, i32, i32
  }
  func.func @transform_2(%arg0: i32, %arg1: i32, %arg2: i32) -> (i32, i32) {
    %c0_i32 = arith.constant 0 : i32
    %c0_i32_0 = arith.constant 0 : i32
    %c0_i32_1 = arith.constant 0 : i32
    return %c0_i32, %c0_i32_0 : i32, i32
  }
  func.func @transform_3(%arg0: i32, %arg1: i32, %arg2: i32) -> (i32, i32, i32, i32, i32) {
    %c0_i32 = arith.constant 0 : i32
    %c0_i32_0 = arith.constant 0 : i32
    %c0_i32_1 = arith.constant 0 : i32
    return %arg0, %arg1, %arg2, %c0_i32, %c0_i32_0 : i32, i32, i32, i32, i32
  }
}

</mosaic_0001>

<llo_original>
// kernel: tile.8
$region0: #{tile.8}
  #allocation0 [shape = 's32[1]{0}', space=sflag, size = 0x4, scoped, tag = 'scoped memory for tile.8']
  %s0 = inlined_call_operand.vmem [shape: f32[4], index: 0, kind: input, shape index: {}]
  %s1 = inlined_call_operand.vmem [shape: f32[9,4], index: 1, kind: output, shape index: {}]
  // Predicated region
  $region2: #{tile.8} parent=0 // pred_check
    _
  $region3: #{tile.8} parent=0 // pred_check_branch
    %3 = sbr.rel (0) target = $region5
  $region4: #{tile.8} parent=0 // pred_region
    _
  $region5: #{tile.8} parent=0 // pred_fallthru
    _
  %v4 = vld [vmem:[%s0] ss:$0 sm:$0xff]
  %5 = vst [vmem:[%s1] sm:$0xff] %v4
  %s6 = scalar_lea.vmem %s1, 8
  %7 = vst [vmem:[%s6] sm:$0xff] %v4

// kernel: tile.9
$region0: #{tile.9}
  %s0 = inlined_call_operand.vmem [shape: f32[9,4], index: 0, kind: input, shape index: {}]
  %s1 = inlined_call_operand.vmem [shape: f32[36], index: 1, kind: output, shape index: {}]
  $region1: #{tile.9} parent=0
    #allocation0 [shape = 'u8[4096]{0}', space=vmem, size = 0x1000, scoped, tag = 'scoped mem for output reshape']
    %v2 = vld [vmem:[%s0] sm:$0x1]
    %vm3 = vcmask 31744
    %4 = vst.msk [vmem:[#allocation0] sm:$0x1] %vm3, %v2
    %s5 = scalar_lea.vmem %s0, 8
    %v6 = vld [vmem:[%s5] sm:$0x1]
    %7 = vrot.lane.b32.xlu0 %v6, 32
    %v8 = vpop.permute.xlu0 %7
    %vm9 = vcmask 294144
    %10 = vst.msk [vmem:[#allocation0] sm:$0x1] %vm9, %v8
    %s11 = scalar_lea.vmem %s0, 7
    %v12 = vld [vmem:[%s11] sm:$0x1]
    %13 = vrot.lane.b32.xlu0 %v12, 28
    %v14 = vpop.permute.xlu0 %13
    %vm15 = vcmask 261344
    %16 = vst.msk [vmem:[#allocation0] sm:$0x1] %vm15, %v14
    %s17 = scalar_lea.vmem %s0, 6
    %v18 = vld [vmem:[%s17] sm:$0x1]
    %19 = vrot.lane.b32.xlu0 %v18, 24
    %v20 = vpop.permute.xlu0 %19
    %vm21 = vcmask 228544
    %22 = vst.msk [vmem:[#allocation0] sm:$0x1] %vm21, %v20
    %s23 = scalar_lea.vmem %s0, 5
    %v24 = vld [vmem:[%s23] sm:$0x1]
    %25 = vrot.lane.b32.xlu0 %v24, 20
    %v26 = vpop.permute.xlu0 %25
    %vm27 = vcmask 195744
    %28 = vst.msk [vmem:[#allocation0] sm:$0x1] %vm27, %v26
    %s29 = scalar_lea.vmem %s0, 4
    %v30 = vld [vmem:[%s29] sm:$0x1]
    %31 = vrot.lane.b32.xlu0 %v30, 16
    %v32 = vpop.permute.xlu0 %31
    %vm33 = vcmask 162944
    %34 = vst.msk [vmem:[#allocation0] sm:$0x1] %vm33, %v32
    %s35 = scalar_lea.vmem %s0, 3
    %v36 = vld [vmem:[%s35] sm:$0x1]
    %37 = vrot.lane.b32.xlu0 %v36, 12
    %v38 = vpop.permute.xlu0 %37
    %vm39 = vcmask 130144
    %40 = vst.msk [vmem:[#allocation0] sm:$0x1] %vm39, %v38
    %s41 = scalar_lea.vmem %s0, 2
    %v42 = vld [vmem:[%s41] sm:$0x1]
    %43 = vrot.lane.b32.xlu0 %v42, 8
    %v44 = vpop.permute.xlu0 %43
    %vm45 = vcmask 97344
    %46 = vst.msk [vmem:[#allocation0] sm:$0x1] %vm45, %v44
    %s47 = scalar_lea.vmem %s0, 1
    %v48 = vld [vmem:[%s47] sm:$0x1]
    %49 = vrot.lane.b32.xlu0 %v48, 4
    %v50 = vpop.permute.xlu0 %49
    %vm51 = vcmask 64544
    %52 = vst.msk [vmem:[#allocation0] sm:$0x1] %vm51, %v50
    %s54 = sshllo.u32 0, 1
    %v56 = vld [vmem:[#allocation0] sm:%s54]
    %s57 = sshllo.u32 0, 1
    %58 = vst [vmem:[%s1] sm:%s57] %v56

// kernel: conv_transpose5d.1
$region0: #{conv_transpose5d.1}
  #allocation0 [shape = 'u32[]', space=smem, size = 0x4, offset = 0x4, fixed_abs, tag = 'smem constant byte address 0x4 - core index']
  #allocation1 [shape = 'u32[144,128]{1,0:T(1,128)}', space=vmem, size = 0x12000, scoped, tag = 'internal scratch']
  %s0 = inlined_call_operand.vmem [shape: bf16[2,24,11,16,132], index: 0, kind: input, shape index: {}]
  %s1 = inlined_call_operand.vmem [shape: bf16[9,3,132,128], index: 1, kind: input, shape index: {}]
  %s2 = inlined_call_operand.vmem [shape: f32[1,128], index: 2, kind: input, shape index: {}]
  %s3 = inlined_call_operand.vmem [shape: f32[2,2,4,144,128], index: 3, kind: output, shape index: {}]
  %s4 = sld [smem:[#allocation0]]
  $region45: #{conv_transpose5d.1} parent=0
    _
  %s6 = ssub.s32 1, %s4
  %s7 = scalar_select 0, %s6, %s4
  loop: start=0, step=1, limit=18
  $region2: #{conv_transpose5d.1} parent=0 // loop_pre_header
    _
  $region3: #{conv_transpose5d.1} parent=0 // loop_header
    %s9 = sphi 0, %s13
    %p10 = scmp.ge.s32.totalorder %s9, 18
    %s16 = sphi 0, %s35
    %s17 = sphi 0, %s31
    %s18 = sphi 0, %s27
    %s19 = sphi 0, %s16
    %s20 = sphi 0, %s17
    %s21 = sphi 0, %s18
    %s22 = sphi 0, %s19
    %s23 = sphi 0, %s20
    %s24 = sphi 0, %s21
    %s38 = sphi 0, %s40
    %s41 = sphi 0, %s38
    %s42 = sphi 0, %s41
    %s58 = sphi 0, %s42
    %s62 = sphi 0, %s62
    %s64 = sphi 0, %s62
    %s65 = sphi 0, %s64
    %s79 = sphi 0, %s65
    %s83 = sphi 0, %s83
    %s85 = sphi 0, %s83
    %s86 = sphi 0, %s85
    %s100 = sphi 0, %s86
    %s110 = sphi 0, %s112
    %s113 = sphi 0, %s110
    %s114 = sphi 0, %s113
    %s130 = sphi 0, %s114
  $region4: #{conv_transpose5d.1} parent=0 // loop_header_branch
    %12 = sbr.rel (%p10) target = $region8
  $region5: #{conv_transpose5d.1} parent=0 // loop_body
    %s14 = ssub.s32 %s9, 1
    %s15 = ssub.s32 %s9, 2
    %s25 = sadd.s32 1, %s18
    %p26 = scmp.ge.s32.totalorder %s25, 4
    %s27 = scalar_select %p26, 0, %s25
    %s28 = sadd.s32 1, %s17
    %s29 = scalar_select %p26, %s28, %s17
    %p30 = scmp.ge.s32.totalorder %s29, 2
    %s31 = scalar_select %p30, 0, %s29
    %s32 = sadd.s32 1, %s16
    %s33 = scalar_select %p30, %s32, %s16
    %p34 = scmp.ge.s32.totalorder %s33, 2
    %s35 = scalar_select %p34, 0, %s33
    %s36 = ssub.s32 %s16, %s35
    %p37 = scmp.eq.s32.totalorder %s36, 0
    %s39 = sadd.s32 %s38, 1
    %s40 = scalar_select %p37, %s38, %s39
    %p43 = pneg %p37
    %p44 = scmp.eq.s32.totalorder %s9, 15
    %p45 = por %p43, %p44
    %p46 = scmp.ne.s32.totalorder %s38, %s41
    %p47 = scmp.eq.s32.totalorder %s9, 0
    %p48 = por %p46, %p47
    %p49 = scmp.ne.s32.totalorder %s38, %s41
    %p50 = scmp.eq.s32.totalorder %s14, 15
    %p51 = por %p49, %p50
    %p52 = scmp.ne.s32.totalorder %s41, %s42
    %p53 = scmp.eq.s32.totalorder %s14, 0
    %p54 = por %p52, %p53
    %p55 = scmp.ne.s32.totalorder %s41, %s42
    %p56 = scmp.eq.s32.totalorder %s15, 15
    %p57 = por %p55, %p56
    %p59 = scmp.ne.s32.totalorder %s42, %s58
    %p60 = scmp.eq.s32.totalorder %s15, 0
    %p61 = por %p59, %p60
    %s63 = sadd.s32 %s62, 1
    %p66 = scmp.eq.s32.totalorder %s9, 15
    %p67 = scmp.ne.s32.totalorder %s62, %s64
    %p68 = scmp.eq.s32.totalorder %s9, 0
    %p69 = por %p67, %p68
    %p70 = scmp.ne.s32.totalorder %s62, %s64
    %p71 = scmp.eq.s32.totalorder %s14, 15
    %p72 = por %p70, %p71
    %p73 = scmp.ne.s32.totalorder %s64, %s65
    %p74 = scmp.eq.s32.totalorder %s14, 0
    %p75 = por %p73, %p74
    %p76 = scmp.ne.s32.totalorder %s64, %s65
    %p77 = scmp.eq.s32.totalorder %s15, 15
    %p78 = por %p76, %p77
    %p80 = scmp.ne.s32.totalorder %s65, %s79
    %p81 = scmp.eq.s32.totalorder %s15, 0
    %p82 = por %p80, %p81
    %s84 = sadd.s32 %s83, 1
    %p87 = scmp.eq.s32.totalorder %s9, 15
    %p88 = scmp.ne.s32.totalorder %s83, %s85
    %p89 = scmp.eq.s32.totalorder %s9, 0
    %p90 = por %p88, %p89
    %p91 = scmp.ne.s32.totalorder %s83, %s85
    %p92 = scmp.eq.s32.totalorder %s14, 15
    %p93 = por %p91, %p92
    %p94 = scmp.ne.s32.totalorder %s85, %s86
    %p95 = scmp.eq.s32.totalorder %s14, 0
    %p96 = por %p94, %p95
    %p97 = scmp.ne.s32.totalorder %s85, %s86
    %p98 = scmp.eq.s32.totalorder %s15, 15
    %p99 = por %p97, %p98
    %p101 = scmp.ne.s32.totalorder %s86, %s100
    %p102 = scmp.eq.s32.totalorder %s15, 0
    %p103 = por %p101, %p102
    %s104 = ssub.s32 %s16, %s35
    %s105 = ssub.s32 %s17, %s31
    %s106 = sor.u32 %s104, %s105
    %s107 = ssub.s32 %s18, %s27
    %s108 = sor.u32 %s106, %s107
    %p109 = scmp.eq.s32.totalorder %s108, 0
    %s111 = sadd.s32 %s110, 1
    %s112 = scalar_select %p109, %s110, %s111
    %p115 = pneg %p109
    %p116 = scmp.eq.s32.totalorder %s9, 15
    %p117 = por %p115, %p116
    %p118 = scmp.ne.s32.totalorder %s110, %s113
    %p119 = scmp.eq.s32.totalorder %s9, 0
    %p120 = por %p118, %p119
    %p121 = scmp.ne.s32.totalorder %s110, %s113
    %p122 = scmp.eq.s32.totalorder %s14, 15
    %p123 = por %p121, %p122
    %p124 = scmp.ne.s32.totalorder %s113, %s114
    %p125 = scmp.eq.s32.totalorder %s14, 0
    %p126 = por %p124, %p125
    %p127 = scmp.ne.s32.totalorder %s113, %s114
    %p128 = scmp.eq.s32.totalorder %s15, 15
    %p129 = por %p127, %p128
    %p131 = scmp.ne.s32.totalorder %s114, %s130
    %p132 = scmp.eq.s32.totalorder %s15, 0
    %p133 = por %p131, %p132
    %p134 = scmp.le.s32.totalorder 1, %s9
    %p135 = scmp.lt.s32.totalorder %s9, 17
    %p136 = pnand %p134, %p135
    %p137 = pneg %p136
    // Predicated region
    $region9: #{conv_transpose5d.1} parent=5 // pred_check
      _
    $region10: #{conv_transpose5d.1} parent=5 // pred_check_branch
      %139 = sbr.rel (%p136) target = $region12
    $region11: #{conv_transpose5d.1} parent=5 // pred_region
      %s140 = ssub.s32 %s9, 1
      // Predicated region
      $region13: #{conv_transpose5d.1} parent=11 // pred_check
        %p141 = pneg %p75
      $region14: #{conv_transpose5d.1} parent=11 // pred_check_branch
        %143 = sbr.rel (%p141) target = $region16
      $region15: #{conv_transpose5d.1} parent=11 // pred_region
        _
      $region16: #{conv_transpose5d.1} parent=11 // pred_fallthru
        _
      // Predicated region
      $region17: #{conv_transpose5d.1} parent=11 // pred_check
        %p144 = pneg %p96
      $region18: #{conv_transpose5d.1} parent=11 // pred_check_branch
        %146 = sbr.rel (%p144) target = $region20
      $region19: #{conv_transpose5d.1} parent=11 // pred_region
        _
      $region20: #{conv_transpose5d.1} parent=11 // pred_fallthru
        _
    $region12: #{conv_transpose5d.1} parent=5 // pred_fallthru
      _
    %p147 = scmp.lt.s32.totalorder %s9, 16
    // Predicated region
    $region21: #{conv_transpose5d.1} parent=5 // pred_check
      %p148 = pneg %p147
    $region22: #{conv_transpose5d.1} parent=5 // pred_check_branch
      %150 = sbr.rel (%p148) target = $region24
    $region23: #{conv_transpose5d.1} parent=5 // pred_region
      // Predicated region
      $region25: #{conv_transpose5d.1} parent=23 // pred_check
        %p151 = pneg %p48
      $region26: #{conv_transpose5d.1} parent=23 // pred_check_branch
        %153 = sbr.rel (%p151) target = $region28
      $region27: #{conv_transpose5d.1} parent=23 // pred_region
        %p154 = scmp.lt.s32.totalorder %s16, 1
        %s155 = scalar_select %p154, %s16, 1
        %s156 = smul.addr %s155, 1056
        %s157 = smul.addr %s156, 4
        %s158 = scalar_lea.vmem %s0, %s157
      $region28: #{conv_transpose5d.1} parent=23 // pred_fallthru
        _
    $region24: #{conv_transpose5d.1} parent=5 // pred_fallthru
      _
    %p159 = scmp.le.s32.totalorder 1, %s9
    %p160 = scmp.lt.s32.totalorder %s9, 17
    %p161 = pnand %p159, %p160
    %p162 = pneg %p161
    // Predicated region
    $region29: #{conv_transpose5d.1} parent=5 // pred_check
      _
    $region30: #{conv_transpose5d.1} parent=5 // pred_check_branch
      %164 = sbr.rel (%p161) target = $region32
    $region31: #{conv_transpose5d.1} parent=5 // pred_region
      %s165 = ssub.s32 %s9, 1
      %p166 = scmp.lt.s32.totalorder %s19, 1
      %s167 = scalar_select %p166, %s19, 1
      %s168 = smul.addr %s167, 1056
      %s169 = smul.addr %s168, 4
      %s170 = scalar_lea.vmem %s0, %s169
      %p171 = pneg %p54
      %p172 = pneg %p51
      %p173 = pneg %p75
      %p174 = pneg %p72
      %p175 = pneg %p96
      %p176 = pneg %p93
      %p177 = pneg %p126
      %p178 = pneg %p123
      %p179 = scmp.lt.s32.totalorder %s19, 1
      %s180 = scalar_select %p179, %s19, 1
      %p181 = scmp.lt.s32.totalorder %s20, 1
      %s182 = scalar_select %p181, %s20, 1
      %p183 = scmp.lt.s32.totalorder %s21, 3
      %s184 = scalar_select %p183, %s21, 3
      %s185 = smul.addr %s184, 18
      %s186 = smul.addr %s182, 72
      %s187 = sadd.s32 %s185, %s186
      %s188 = smul.addr %s180, 144
      %s189 = sadd.s32 %s187, %s188
      %s190 = smul.addr %s189, 8
      %s191 = scalar_lea.vmem %s3, %s190
      %p192 = scmp.lt.s32.totalorder %s19, 1
      %s193 = scalar_select %p192, %s19, 1
      %s194 = smul.addr %s193, 1056
      %s195 = smul.addr %s194, 4
      %s196 = scalar_lea.vmem %s0, %s195
      %p197 = scmp.lt.s32.totalorder %s19, 1
      %s198 = scalar_select %p197, %s19, 1
      %p199 = scmp.lt.s32.totalorder %s20, 1
      %s200 = scalar_select %p199, %s20, 1
      %p201 = scmp.lt.s32.totalorder %s21, 3
      %s202 = scalar_select %p201, %s21, 3
      %s203 = smul.addr %s202, 18
      %s204 = smul.addr %s200, 72
      %s205 = sadd.s32 %s203, %s204
      %s206 = smul.addr %s198, 144
      %s207 = sadd.s32 %s205, %s206
      %s208 = smul.addr %s207, 8
      %s209 = scalar_lea.vmem %s3, %s208
      %s211 = smul.u32 %s20, 6
      %s212 = sadd.s32 %s211, %s21
      %s213 = smul.u32 %s212, 44
      %s214 = smul.addr %s213, 4
      %s215 = scalar_lea.vmem %s196, %s214
      %v216 = vld [vmem:[%s215] sm:$0xff]
      %v217 = vld [vmem:[%s215 + $0x8] sm:$0xff]
      %v218 = vld [vmem:[%s215 + $0x10] sm:$0xff]
      %v219 = vld [vmem:[%s215 + $0x18] sm:$0xff]
      %v220 = vld [vmem:[%s215 + $0x20] sm:$0xff]
      %v221 = vld [vmem:[%s215 + $0x28] sm:$0xff]
      %v222 = vld [vmem:[%s215 + $0x30] sm:$0xff]
      %v223 = vld [vmem:[%s215 + $0x38] sm:$0xff]
      %v224 = vld [vmem:[%s215 + $0x40] sm:$0xff]
      %v225 = vld [vmem:[%s215 + $0x48] sm:$0xff]
      %v226 = vld [vmem:[%s215 + $0x50] sm:$0xff]
      %v227 = vld [vmem:[%s215 + $0x58] sm:$0xff]
      %v228 = vld [vmem:[%s215 + $0x60] sm:$0xff]
      %v229 = vld [vmem:[%s215 + $0x68] sm:$0xff]
      %v230 = vld [vmem:[%s215 + $0x70] sm:$0xff]
      %v231 = vld [vmem:[%s215 + $0x78] sm:$0xff]
      %v232 = vld [vmem:[%s215 + $0x80] sm:$0xff]
      %v233 = vld [vmem:[%s215 + $0x88] sm:$0xff]
      %v234 = vld [vmem:[%s215 + $0x90] sm:$0xff]
      %v235 = vld [vmem:[%s215 + $0x98] sm:$0xff]
      %v236 = vld [vmem:[%s215 + $0xa0] sm:$0xff]
      %v237 = vld [vmem:[%s215 + $0xa8] sm:$0xff]
      %v238 = vld [vmem:[%s1] sm:$0xf]
      %v239 = vld [vmem:[%s1 + $0x4] sm:$0xf]
      %v240 = vld [vmem:[%s1 + $0x8] sm:$0xf]
      %v241 = vld [vmem:[%s1 + $0xc] sm:$0xf]
      %v242 = vld [vmem:[%s1 + $0x10] sm:$0xf]
      %v243 = vld [vmem:[%s1 + $0x14] sm:$0xf]
      %v244 = vld [vmem:[%s1 + $0x18] sm:$0xf]
      %v245 = vld [vmem:[%s1 + $0x1c] sm:$0xf]
      %v246 = vld [vmem:[%s1 + $0x20] sm:$0xf]
      %v247 = vld [vmem:[%s1 + $0x24] sm:$0xf]
      %v248 = vld [vmem:[%s1 + $0x28] sm:$0xf]
      %v249 = vld [vmem:[%s1 + $0x2c] sm:$0xf]
      %v250 = vld [vmem:[%s1 + $0x30] sm:$0xf]
      %v251 = vld [vmem:[%s1 + $0x34] sm:$0xf]
      %v252 = vld [vmem:[%s1 + $0x38] sm:$0xf]
      %v253 = vld [vmem:[%s1 + $0x3c] sm:$0xf]
      %v254 = vld [vmem:[%s1 + $0x40] sm:$0x3]
      %s255 = scalar_lea.vmem %s1, 68
      %v256 = vld [vmem:[%s255] sm:$0xf]
      %v257 = vld [vmem:[%s255 + $0x4] sm:$0xf]
      %v258 = vld [vmem:[%s255 + $0x8] sm:$0xf]
      %v259 = vld [vmem:[%s255 + $0xc] sm:$0xf]
      %v260 = vld [vmem:[%s255 + $0x10] sm:$0xf]
      %v261 = vld [vmem:[%s255 + $0x14] sm:$0xf]
      %v262 = vld [vmem:[%s255 + $0x18] sm:$0xf]
      %v263 = vld [vmem:[%s255 + $0x1c] sm:$0xf]
      %v264 = vld [vmem:[%s255 + $0x20] sm:$0xf]
      %v265 = vld [vmem:[%s255 + $0x24] sm:$0xf]
      %v266 = vld [vmem:[%s255 + $0x28] sm:$0xf]
      %v267 = vld [vmem:[%s255 + $0x2c] sm:$0xf]
      %v268 = vld [vmem:[%s255 + $0x30] sm:$0xf]
      %v269 = vld [vmem:[%s255 + $0x34] sm:$0xf]
      %v270 = vld [vmem:[%s255 + $0x38] sm:$0xf]
      %v271 = vld [vmem:[%s255 + $0x3c] sm:$0xf]
      %v272 = vld [vmem:[%s255 + $0x40] sm:$0x3]
      %v291 = vunpack.c.l.b16 %v218
      %v292 = vunpack.c.h.b16 %v218
      %v293 = vunpack.c.l.b16 %v219
      %v294 = vunpack.c.h.b16 %v219
      %v295 = vunpack.c.l.b16 %v220
      %v296 = vunpack.c.h.b16 %v220
      %v297 = vunpack.c.l.b16 %v221
      %v298 = vunpack.c.h.b16 %v221
      %v299 = vunpack.c.l.b16 %v222
      %v300 = vunpack.c.h.b16 %v222
      %v301 = vunpack.c.l.b16 %v223
      %v302 = vunpack.c.h.b16 %v223
      %v303 = vunpack.c.l.b16 %v224
      %v304 = vunpack.c.h.b16 %v224
      %v305 = vunpack.c.l.b16 %v225
      %v306 = vunpack.c.h.b16 %v225
      %v307 = vunpack.c.l.b16 %v226
      %v308 = vunpack.c.h.b16 %v226
      %v309 = vunpack.c.l.b16 %v227
      %v310 = vunpack.c.h.b16 %v227
      %v311 = vunpack.c.l.b16 %v228
      %v312 = vunpack.c.h.b16 %v228
      %v313 = vunpack.c.l.b16 %v229
      %v314 = vunpack.c.h.b16 %v229
      %v315 = vunpack.c.l.b16 %v230
      %v316 = vunpack.c.h.b16 %v230
      %v317 = vunpack.c.l.b16 %v231
      %v318 = vunpack.c.h.b16 %v231
      %v319 = vunpack.c.l.b16 %v232
      %v320 = vunpack.c.h.b16 %v232
      %v321 = vunpack.c.l.b16 %v233
      %v322 = vunpack.c.h.b16 %v233
      %v323 = vunpack.c.l.b16 %v234
      %v324 = vunpack.c.h.b16 %v234
      %v325 = vunpack.c.l.b16 %v235
      %v326 = vunpack.c.h.b16 %v235
      %v327 = vpack.c.b16 %v293, %v291
      %v328 = vpack.c.b16 %v294, %v292
      %v329 = vpack.c.b16 %v297, %v295
      %v330 = vpack.c.b16 %v298, %v296
      %v331 = vpack.c.b16 %v301, %v299
      %v332 = vpack.c.b16 %v302, %v300
      %v333 = vpack.c.b16 %v305, %v303
      %v334 = vpack.c.b16 %v306, %v304
      %v335 = vpack.c.b16 %v309, %v307
      %v336 = vpack.c.b16 %v310, %v308
      %v337 = vpack.c.b16 %v313, %v311
      %v338 = vpack.c.b16 %v314, %v312
      %v339 = vpack.c.b16 %v317, %v315
      %v340 = vpack.c.b16 %v318, %v316
      %v341 = vpack.c.b16 %v321, %v319
      %v342 = vpack.c.b16 %v322, %v320
      %v343 = vpack.c.b16 %v325, %v323
      %v344 = vpack.c.b16 %v326, %v324
      %v371 = vunpack.c.l.b16 %v256
      %v372 = vunpack.c.l.b16 %v257
      %v373 = vunpack.c.l.b16 %v258
      %v374 = vunpack.c.l.b16 %v259
      %v375 = vunpack.c.l.b16 %v260
      %v376 = vunpack.c.l.b16 %v261
      %v377 = vunpack.c.l.b16 %v262
      %v378 = vunpack.c.l.b16 %v263
      %v379 = vunpack.c.l.b16 %v264
      %v380 = vunpack.c.l.b16 %v265
      %v381 = vunpack.c.l.b16 %v266
      %v382 = vunpack.c.l.b16 %v267
      %v383 = vunpack.c.l.b16 %v268
      %v384 = vunpack.c.l.b16 %v269
      %v385 = vunpack.c.l.b16 %v270
      %v386 = vunpack.c.l.b16 %v271
      %v387 = vunpack.c.l.b16 %v272
      %v388 = vpack.c.b16 %v372, %v371
      %v389 = vpack.c.b16 %v374, %v373
      %v390 = vpack.c.b16 %v376, %v375
      %v391 = vpack.c.b16 %v378, %v377
      %v392 = vpack.c.b16 %v380, %v379
      %v393 = vpack.c.b16 %v382, %v381
      %v394 = vpack.c.b16 %v384, %v383
      %v395 = vpack.c.b16 %v386, %v385
      %v396 = vpack.c.b16 %v387, %v387
      %vm405 = vcmask 31744
      %v407 = vsel %vm405, %v328, 0
      %v410 = vsel %vm405, %v330, 0
      %v413 = vsel %vm405, %v332, 0
      %v416 = vsel %vm405, %v334, 0
      %v419 = vsel %vm405, %v336, 0
      %v422 = vsel %vm405, %v338, 0
      %v425 = vsel %vm405, %v340, 0
      %v428 = vsel %vm405, %v342, 0
      %v431 = vsel %vm405, %v344, 0
      %vm433 = vcmask 1041408
      %v435 = vsel %vm433, %v396, 0
      %437 = vmatprep.subr.bf16.mxu0 0
      %438 = vmatpush1.bf16.msra.mxu0 %v388
      %439 = vmatprep.subr.bf16.mxu0 0
      %440 = vmatpush1.bf16.msra.mxu0 %v389
      %441 = vmatprep.subr.bf16.mxu0 0
      %442 = vmatpush1.bf16.msra.mxu0 %v390
      %443 = vmatprep.subr.bf16.mxu0 0
      %444 = vmatpush1.bf16.msra.mxu0 %v391
      %445 = vmatprep.subr.bf16.mxu0 0
      %446 = vmatpush1.bf16.msra.mxu0 %v392
      %447 = vmatprep.subr.bf16.mxu0 0
      %448 = vmatpush1.bf16.msra.mxu0 %v393
      %449 = vmatprep.subr.bf16.mxu0 0
      %450 = vmatpush1.bf16.msra.mxu0 %v394
      %451 = vmatprep.subr.bf16.mxu0 0
      %452 = vmatpush1.bf16.msra.mxu0 %v395
      %453 = vmatprep.subr.bf16.mxu0 0
      %454 = vmatpush1.bf16.msra.mxu0 %v435
      %455 = vmatprep.subr.bf16.mxu0 0
      %456 = vmatpush1.bf16.msra.mxu0 0
      %457 = vmatprep.subr.bf16.mxu0 0
      %458 = vmatpush1.bf16.msra.mxu0 0
      %459 = vmatprep.subr.bf16.mxu0 0
      %460 = vmatpush1.bf16.msra.mxu0 0
      %461 = vmatprep.subr.bf16.mxu0 0
      %462 = vmatpush1.bf16.msra.mxu0 0
      %463 = vmatprep.subr.bf16.mxu0 0
      %464 = vmatpush1.bf16.msra.mxu0 0
      %465 = vmatprep.subr.bf16.mxu0 0
      %466 = vmatpush1.bf16.msra.mxu0 0
      %467 = vmatprep.subr.bf16.mxu0 0
      %468 = vmatpush1.bf16.msra.mxu0 0
      %469 = vmatprep.mubr.bf16.mxu0 %v407
      %470 = vmatmul.mubr.bf16.gmra.mrb[0].mxu0 %v327
      %v471 = vpop.f32.mrb[0].mxu0
      %v472 = vadd.f32 0.0, %v471
      %v473 = vpop.f32.mrb[0].mxu0
      %v474 = vpop.f32.mrb[0].mxu0
      %v475 = vadd.f32 0.0, %v474
      %v476 = vpop.f32.mrb[0].mxu0
      %477 = vmatprep.mubr.bf16.mxu0 %v410
      %478 = vmatmul.mubr.bf16.gmra.mrb[0].mxu0 %v329
      %v479 = vpop.f32.mrb[0].mxu0
      %v480 = vadd.f32 0.0, %v479
      %v481 = vpop.f32.mrb[0].mxu0
      %v482 = vpop.f32.mrb[0].mxu0
      %v483 = vadd.f32 0.0, %v482
      %v484 = vpop.f32.mrb[0].mxu0
      %485 = vmatprep.mubr.bf16.mxu0 %v413
      %486 = vmatmul.mubr.bf16.gmra.mrb[0].mxu0 %v331
      %v487 = vpop.f32.mrb[0].mxu0
      %v488 = vadd.f32 0.0, %v487
      %v489 = vpop.f32.mrb[0].mxu0
      %v490 = vpop.f32.mrb[0].mxu0
      %v491 = vadd.f32 0.0, %v490
      %v492 = vpop.f32.mrb[0].mxu0
      %493 = vmatprep.mubr.bf16.mxu0 %v416
      %494 = vmatmul.mubr.bf16.gmra.mrb[0].mxu0 %v333
      %v495 = vpop.f32.mrb[0].mxu0
      %v496 = vadd.f32 0.0, %v495
      %v497 = vpop.f32.mrb[0].mxu0
      %v498 = vpop.f32.mrb[0].mxu0
      %v499 = vadd.f32 0.0, %v498
      %v500 = vpop.f32.mrb[0].mxu0
      %501 = vmatprep.mubr.bf16.mxu0 %v419
      %502 = vmatmul.mubr.bf16.gmra.mrb[0].mxu0 %v335
      %v503 = vpop.f32.mrb[0].mxu0
      %v504 = vadd.f32 0.0, %v503
      %v505 = vpop.f32.mrb[0].mxu0
      %v506 = vpop.f32.mrb[0].mxu0
      %v507 = vadd.f32 0.0, %v506
      %v508 = vpop.f32.mrb[0].mxu0
      %509 = vmatprep.mubr.bf16.mxu0 %v422
      %510 = vmatmul.mubr.bf16.gmra.mrb[0].mxu0 %v337
      %v511 = vpop.f32.mrb[0].mxu0
      %v512 = vadd.f32 0.0, %v511
      %v513 = vpop.f32.mrb[0].mxu0
      %v514 = vpop.f32.mrb[0].mxu0
      %v515 = vadd.f32 0.0, %v514
      %v516 = vpop.f32.mrb[0].mxu0
      %517 = vmatprep.mubr.bf16.mxu0 %v425
      %518 = vmatmul.mubr.bf16.gmra.mrb[0].mxu0 %v339
      %v519 = vpop.f32.mrb[0].mxu0
      %v520 = vadd.f32 0.0, %v519
      %v521 = vpop.f32.mrb[0].mxu0
      %v522 = vpop.f32.mrb[0].mxu0
      %v523 = vadd.f32 0.0, %v522
      %v524 = vpop.f32.mrb[0].mxu0
      %525 = vmatprep.mubr.bf16.mxu0 %v428
      %526 = vmatmul.mubr.bf16.gmra.mrb[0].mxu0 %v341
      %v527 = vpop.f32.mrb[0].mxu0
      %v528 = vadd.f32 0.0, %v527
      %v529 = vpop.f32.mrb[0].mxu0
      %v530 = vpop.f32.mrb[0].mxu0
      %v531 = vadd.f32 0.0, %v530
      %v532 = vpop.f32.mrb[0].mxu0
      %533 = vmatprep.mubr.bf16.mxu0 %v431
      %534 = vmatmul.mubr.bf16.gmra.mrb[0].mxu0 %v343
      %v535 = vpop.f32.mrb[0].mxu0
      %v536 = vadd.f32 0.0, %v535
      %v537 = vpop.f32.mrb[0].mxu0
      %v538 = vpop.f32.mrb[0].mxu0
      %v539 = vadd.f32 0.0, %v538
      %v540 = vpop.f32.mrb[0].mxu0
      %541 = vdwg.mxu0
      %v544 = vunpack.c.l.b16 %v216
      %v545 = vunpack.c.h.b16 %v216
      %v546 = vunpack.c.l.b16 %v217
      %v547 = vunpack.c.h.b16 %v217
      %v548 = vpack.c.b16 %v546, %v544
      %v549 = vpack.c.b16 %v547, %v545
      %v568 = vunpack.c.l.b16 %v238
      %v569 = vunpack.c.l.b16 %v239
      %v570 = vunpack.c.l.b16 %v240
      %v571 = vunpack.c.l.b16 %v241
      %v572 = vunpack.c.l.b16 %v242
      %v573 = vunpack.c.l.b16 %v243
      %v574 = vunpack.c.l.b16 %v244
      %v575 = vunpack.c.l.b16 %v245
      %v576 = vunpack.c.l.b16 %v246
      %v577 = vunpack.c.l.b16 %v247
      %v578 = vunpack.c.l.b16 %v248
      %v579 = vunpack.c.l.b16 %v249
      %v580 = vunpack.c.l.b16 %v250
      %v581 = vunpack.c.l.b16 %v251
      %v582 = vunpack.c.l.b16 %v252
      %v583 = vunpack.c.l.b16 %v253
      %v584 = vunpack.c.l.b16 %v254
      %v585 = vpack.c.b16 %v569, %v568
      %v586 = vpack.c.b16 %v571, %v570
      %v587 = vpack.c.b16 %v573, %v572
      %v588 = vpack.c.b16 %v575, %v574
      %v589 = vpack.c.b16 %v577, %v576
      %v590 = vpack.c.b16 %v579, %v578
      %v591 = vpack.c.b16 %v581, %v580
      %v592 = vpack.c.b16 %v583, %v582
      %v593 = vpack.c.b16 %v584, %v584
      %v603 = vsel %vm405, %v549, 0
      %v606 = vsel %vm433, %v593, 0
      %608 = vmatprep.subr.bf16.mxu0 0
      %609 = vmatpush1.bf16.msra.mxu0 %v585
      %610 = vmatprep.subr.bf16.mxu0 0
      %611 = vmatpush1.bf16.msra.mxu0 %v586
      %612 = vmatprep.subr.bf16.mxu0 0
      %613 = vmatpush1.bf16.msra.mxu0 %v587
      %614 = vmatprep.subr.bf16.mxu0 0
      %615 = vmatpush1.bf16.msra.mxu0 %v588
      %616 = vmatprep.subr.bf16.mxu0 0
      %617 = vmatpush1.bf16.msra.mxu0 %v589
      %618 = vmatprep.subr.bf16.mxu0 0
      %619 = vmatpush1.bf16.msra.mxu0 %v590
      %620 = vmatprep.subr.bf16.mxu0 0
      %621 = vmatpush1.bf16.msra.mxu0 %v591
      %622 = vmatprep.subr.bf16.mxu0 0
      %623 = vmatpush1.bf16.msra.mxu0 %v592
      %624 = vmatprep.subr.bf16.mxu0 0
      %625 = vmatpush1.bf16.msra.mxu0 %v606
      %626 = vmatprep.subr.bf16.mxu0 0
      %627 = vmatpush1.bf16.msra.mxu0 0
      %628 = vmatprep.subr.bf16.mxu0 0
      %629 = vmatpush1.bf16.msra.mxu0 0
      %630 = vmatprep.subr.bf16.mxu0 0
      %631 = vmatpush1.bf16.msra.mxu0 0
      %632 = vmatprep.subr.bf16.mxu0 0
      %633 = vmatpush1.bf16.msra.mxu0 0
      %634 = vmatprep.subr.bf16.mxu0 0
      %635 = vmatpush1.bf16.msra.mxu0 0
      %636 = vmatprep.subr.bf16.mxu0 0
      %637 = vmatpush1.bf16.msra.mxu0 0
      %638 = vmatprep.subr.bf16.mxu0 0
      %639 = vmatpush1.bf16.msra.mxu0 0
      %640 = vmatprep.mubr.bf16.mxu0 %v603
      %641 = vmatmul.mubr.bf16.gmra.mrb[0].mxu0 %v548
      %v642 = vpop.f32.mrb[0].mxu0
      %v643 = vadd.f32 %v472, %v642
      %v644 = vpop.f32.mrb[0].mxu0
      %v645 = vpop.f32.mrb[0].mxu0
      %v646 = vadd.f32 %v475, %v645
      %v647 = vpop.f32.mrb[0].mxu0
      %648 = vmatprep.mubr.bf16.mxu0 %v407
      %649 = vmatmul.mubr.bf16.gmra.mrb[0].mxu0 %v327
      %v650 = vpop.f32.mrb[0].mxu0
      %v651 = vadd.f32 %v480, %v650
      %v652 = vpop.f32.mrb[0].mxu0
      %v653 = vpop.f32.mrb[0].mxu0
      %v654 = vadd.f32 %v483, %v653
      %v655 = vpop.f32.mrb[0].mxu0
      %656 = vmatprep.mubr.bf16.mxu0 %v410
      %657 = vmatmul.mubr.bf16.gmra.mrb[0].mxu0 %v329
      %v658 = vpop.f32.mrb[0].mxu0
      %v659 = vadd.f32 %v488, %v658
      %v660 = vpop.f32.mrb[0].mxu0
      %v661 = vpop.f32.mrb[0].mxu0
      %v662 = vadd.f32 %v491, %v661
      %v663 = vpop.f32.mrb[0].mxu0
      %664 = vmatprep.mubr.bf16.mxu0 %v413
      %665 = vmatmul.mubr.bf16.gmra.mrb[0].mxu0 %v331
      %v666 = vpop.f32.mrb[0].mxu0
      %v667 = vadd.f32 %v496, %v666
      %v668 = vpop.f32.mrb[0].mxu0
      %v669 = vpop.f32.mrb[0].mxu0
      %v670 = vadd.f32 %v499, %v669
      %v671 = vpop.f32.mrb[0].mxu0
      %672 = vmatprep.mubr.bf16.mxu0 %v416
      %673 = vmatmul.mubr.bf16.gmra.mrb[0].mxu0 %v333
      %v674 = vpop.f32.mrb[0].mxu0
      %v675 = vadd.f32 %v504, %v674
      %v676 = vpop.f32.mrb[0].mxu0
      %v677 = vpop.f32.mrb[0].mxu0
      %v678 = vadd.f32 %v507, %v677
      %v679 = vpop.f32.mrb[0].mxu0
      %680 = vmatprep.mubr.bf16.mxu0 %v419
      %681 = vmatmul.mubr.bf16.gmra.mrb[0].mxu0 %v335
      %v682 = vpop.f32.mrb[0].mxu0
      %v683 = vadd.f32 %v512, %v682
      %v684 = vpop.f32.mrb[0].mxu0
      %v685 = vpop.f32.mrb[0].mxu0
      %v686 = vadd.f32 %v515, %v685
      %v687 = vpop.f32.mrb[0].mxu0
      %688 = vmatprep.mubr.bf16.mxu0 %v422
      %689 = vmatmul.mubr.bf16.gmra.mrb[0].mxu0 %v337
      %v690 = vpop.f32.mrb[0].mxu0
      %v691 = vadd.f32 %v520, %v690
      %v692 = vpop.f32.mrb[0].mxu0
      %v693 = vpop.f32.mrb[0].mxu0
      %v694 = vadd.f32 %v523, %v693
      %v695 = vpop.f32.mrb[0].mxu0
      %696 = vmatprep.mubr.bf16.mxu0 %v425
      %697 = vmatmul.mubr.bf16.gmra.mrb[0].mxu0 %v339
      %v698 = vpop.f32.mrb[0].mxu0
      %v699 = vadd.f32 %v528, %v698
      %v700 = vpop.f32.mrb[0].mxu0
      %v701 = vpop.f32.mrb[0].mxu0
      %v702 = vadd.f32 %v531, %v701
      %v703 = vpop.f32.mrb[0].mxu0
      %704 = vmatprep.mubr.bf16.mxu0 %v428
      %705 = vmatmul.mubr.bf16.gmra.mrb[0].mxu0 %v341
      %v706 = vpop.f32.mrb[0].mxu0
      %v707 = vadd.f32 %v536, %v706
      %v708 = vpop.f32.mrb[0].mxu0
      %v709 = vpop.f32.mrb[0].mxu0
      %v710 = vadd.f32 %v539, %v709
      %v711 = vpop.f32.mrb[0].mxu0
      %712 = vdwg.mxu0
      %s713 = scalar_lea.vmem %s1, 136
      %v714 = vld [vmem:[%s713] sm:$0xf]
      %v715 = vld [vmem:[%s713 + $0x4] sm:$0xf]
      %v716 = vld [vmem:[%s713 + $0x8] sm:$0xf]
      %v717 = vld [vmem:[%s713 + $0xc] sm:$0xf]
      %v718 = vld [vmem:[%s713 + $0x10] sm:$0xf]
      %v719 = vld [vmem:[%s713 + $0x14] sm:$0xf]
      %v720 = vld [vmem:[%s713 + $0x18] sm:$0xf]
      %v721 = vld [vmem:[%s713 + $0x1c] sm:$0xf]
      %v722 = vld [vmem:[%s713 + $0x20] sm:$0xf]
      %v723 = vld [vmem:[%s713 + $0x24] sm:$0xf]
      %v724 = vld [vmem:[%s713 + $0x28] sm:$0xf]
      %v725 = vld [vmem:[%s713 + $0x2c] sm:$0xf]
      %v726 = vld [vmem:[%s713 + $0x30] sm:$0xf]
      %v727 = vld [vmem:[%s713 + $0x34] sm:$0xf]
      %v728 = vld [vmem:[%s713 + $0x38] sm:$0xf]
      %v729 = vld [vmem:[%s713 + $0x3c] sm:$0xf]
      %v730 = vld [vmem:[%s713 + $0x40] sm:$0x3]
      %v733 = vunpack.c.l.b16 %v236
      %v734 = vunpack.c.h.b16 %v236
      %v735 = vunpack.c.l.b16 %v237
      %v736 = vunpack.c.h.b16 %v237
      %v737 = vpack.c.b16 %v735, %v733
      %v738 = vpack.c.b16 %v736, %v734
      %v757 = vunpack.c.l.b16 %v714
      %v758 = vunpack.c.l.b16 %v715
      %v759 = vunpack.c.l.b16 %v716
      %v760 = vunpack.c.l.b16 %v717
      %v761 = vunpack.c.l.b16 %v718
      %v762 = vunpack.c.l.b16 %v719
      %v763 = vunpack.c.l.b16 %v720
      %v764 = vunpack.c.l.b16 %v721
      %v765 = vunpack.c.l.b16 %v722
      %v766 = vunpack.c.l.b16 %v723
      %v767 = vunpack.c.l.b16 %v724
      %v768 = vunpack.c.l.b16 %v725
      %v769 = vunpack.c.l.b16 %v726
      %v770 = vunpack.c.l.b16 %v727
      %v771 = vunpack.c.l.b16 %v728
      %v772 = vunpack.c.l.b16 %v729
      %v773 = vunpack.c.l.b16 %v730
      %v774 = vpack.c.b16 %v758, %v757
      %v775 = vpack.c.b16 %v760, %v759
      %v776 = vpack.c.b16 %v762, %v761
      %v777 = vpack.c.b16 %v764, %v763
      %v778 = vpack.c.b16 %v766, %v765
      %v779 = vpack.c.b16 %v768, %v767
      %v780 = vpack.c.b16 %v770, %v769
      %v781 = vpack.c.b16 %v772, %v771
      %v782 = vpack.c.b16 %v773, %v773
      %v792 = vsel %vm405, %v738, 0
      %v795 = vsel %vm433, %v782, 0
      %797 = vmatprep.subr.bf16.mxu0 0
      %798 = vmatpush1.bf16.msra.mxu0 %v774
      %799 = vmatprep.subr.bf16.mxu0 0
      %800 = vmatpush1.bf16.msra.mxu0 %v775
      %801 = vmatprep.subr.bf16.mxu0 0
      %802 = vmatpush1.bf16.msra.mxu0 %v776
      %803 = vmatprep.subr.bf16.mxu0 0
      %804 = vmatpush1.bf16.msra.mxu0 %v777
      %805 = vmatprep.subr.bf16.mxu0 0
      %806 = vmatpush1.bf16.msra.mxu0 %v778
      %807 = vmatprep.subr.bf16.mxu0 0
      %808 = vmatpush1.bf16.msra.mxu0 %v779
      %809 = vmatprep.subr.bf16.mxu0 0
      %810 = vmatpush1.bf16.msra.mxu0 %v780
      %811 = vmatprep.subr.bf16.mxu0 0
      %812 = vmatpush1.bf16.msra.mxu0 %v781
      %813 = vmatprep.subr.bf16.mxu0 0
      %814 = vmatpush1.bf16.msra.mxu0 %v795
      %815 = vmatprep.subr.bf16.mxu0 0
      %816 = vmatpush1.bf16.msra.mxu0 0
      %817 = vmatprep.subr.bf16.mxu0 0
      %818 = vmatpush1.bf16.msra.mxu0 0
      %819 = vmatprep.subr.bf16.mxu0 0
      %820 = vmatpush1.bf16.msra.mxu0 0
      %821 = vmatprep.subr.bf16.mxu0 0
      %822 = vmatpush1.bf16.msra.mxu0 0
      %823 = vmatprep.subr.bf16.mxu0 0
      %824 = vmatpush1.bf16.msra.mxu0 0
      %825 = vmatprep.subr.bf16.mxu0 0
      %826 = vmatpush1.bf16.msra.mxu0 0
      %827 = vmatprep.subr.bf16.mxu0 0
      %828 = vmatpush1.bf16.msra.mxu0 0
      %829 = vmatprep.mubr.bf16.mxu0 %v410
      %830 = vmatmul.mubr.bf16.gmra.mrb[0].mxu0 %v329
      %v831 = vpop.f32.mrb[0].mxu0
      %v832 = vadd.f32 0.0, %v831
      %v833 = vpop.f32.mrb[0].mxu0
      %v834 = vpop.f32.mrb[0].mxu0
      %v835 = vadd.f32 0.0, %v834
      %v836 = vpop.f32.mrb[0].mxu0
      %837 = vmatprep.mubr.bf16.mxu0 %v413
      %838 = vmatmul.mubr.bf16.gmra.mrb[0].mxu0 %v331
      %v839 = vpop.f32.mrb[0].mxu0
      %v840 = vadd.f32 0.0, %v839
      %v841 = vpop.f32.mrb[0].mxu0
      %v842 = vpop.f32.mrb[0].mxu0
      %v843 = vadd.f32 0.0, %v842
      %v844 = vpop.f32.mrb[0].mxu0
      %845 = vmatprep.mubr.bf16.mxu0 %v416
      %846 = vmatmul.mubr.bf16.gmra.mrb[0].mxu0 %v333
      %v847 = vpop.f32.mrb[0].mxu0
      %v848 = vadd.f32 0.0, %v847
      %v849 = vpop.f32.mrb[0].mxu0
      %v850 = vpop.f32.mrb[0].mxu0
      %v851 = vadd.f32 0.0, %v850
      %v852 = vpop.f32.mrb[0].mxu0
      %853 = vmatprep.mubr.bf16.mxu0 %v419
      %854 = vmatmul.mubr.bf16.gmra.mrb[0].mxu0 %v335
      %v855 = vpop.f32.mrb[0].mxu0
      %v856 = vadd.f32 0.0, %v855
      %v857 = vpop.f32.mrb[0].mxu0
      %v858 = vpop.f32.mrb[0].mxu0
      %v859 = vadd.f32 0.0, %v858
      %v860 = vpop.f32.mrb[0].mxu0
      %861 = vmatprep.mubr.bf16.mxu0 %v422
      %862 = vmatmul.mubr.bf16.gmra.mrb[0].mxu0 %v337
      %v863 = vpop.f32.mrb[0].mxu0
      %v864 = vadd.f32 0.0, %v863
      %v865 = vpop.f32.mrb[0].mxu0
      %v866 = vpop.f32.mrb[0].mxu0
      %v867 = vadd.f32 0.0, %v866
      %v868 = vpop.f32.mrb[0].mxu0
      %869 = vmatprep.mubr.bf16.mxu0 %v425
      %870 = vmatmul.mubr.bf16.gmra.mrb[0].mxu0 %v339
      %v871 = vpop.f32.mrb[0].mxu0
      %v872 = vadd.f32 0.0, %v871
      %v873 = vpop.f32.mrb[0].mxu0
      %v874 = vpop.f32.mrb[0].mxu0
      %v875 = vadd.f32 0.0, %v874
      %v876 = vpop.f32.mrb[0].mxu0
      %877 = vmatprep.mubr.bf16.mxu0 %v428
      %878 = vmatmul.mubr.bf16.gmra.mrb[0].mxu0 %v341
      %v879 = vpop.f32.mrb[0].mxu0
      %v880 = vadd.f32 0.0, %v879
      %v881 = vpop.f32.mrb[0].mxu0
      %v882 = vpop.f32.mrb[0].mxu0
      %v883 = vadd.f32 0.0, %v882
      %v884 = vpop.f32.mrb[0].mxu0
      %885 = vmatprep.mubr.bf16.mxu0 %v431
      %886 = vmatmul.mubr.bf16.gmra.mrb[0].mxu0 %v343
      %v887 = vpop.f32.mrb[0].mxu0
      %v888 = vadd.f32 0.0, %v887
      %v889 = vpop.f32.mrb[0].mxu0
      %v890 = vpop.f32.mrb[0].mxu0
      %v891 = vadd.f32 0.0, %v890
      %v892 = vpop.f32.mrb[0].mxu0
      %893 = vmatprep.mubr.bf16.mxu0 %v792
      %894 = vmatmul.mubr.bf16.gmra.mrb[0].mxu0 %v737
      %v895 = vpop.f32.mrb[0].mxu0
      %v896 = vadd.f32 0.0, %v895
      %v897 = vpop.f32.mrb[0].mxu0
      %v898 = vpop.f32.mrb[0].mxu0
      %v899 = vadd.f32 0.0, %v898
      %v900 = vpop.f32.mrb[0].mxu0
      %901 = vdwg.mxu0
      %v902 = vadd.f32 %v643, %v832
      %v903 = vadd.f32 %v646, %v835
      %v904 = vadd.f32 %v651, %v840
      %v905 = vadd.f32 %v654, %v843
      %v906 = vadd.f32 %v659, %v848
      %v907 = vadd.f32 %v662, %v851
      %v908 = vadd.f32 %v667, %v856
      %v909 = vadd.f32 %v670, %v859
      %v910 = vadd.f32 %v675, %v864
      %v911 = vadd.f32 %v678, %v867
      %v912 = vadd.f32 %v683, %v872
      %v913 = vadd.f32 %v686, %v875
      %v914 = vadd.f32 %v691, %v880
      %v915 = vadd.f32 %v694, %v883
      %v916 = vadd.f32 %v699, %v888
      %v917 = vadd.f32 %v702, %v891
      %v918 = vadd.f32 %v707, %v896
      %v919 = vadd.f32 %v710, %v899
      %s920 = sadd.s32 %s21, 1
      %s921 = sadd.s32 %s211, %s920
      %s922 = smul.u32 %s921, 44
      %s923 = smul.addr %s922, 4
      %s924 = scalar_lea.vmem %s196, %s923
      %v925 = vld [vmem:[%s924] sm:$0xff]
      %v926 = vld [vmem:[%s924 + $0x8] sm:$0xff]
      %v927 = vld [vmem:[%s924 + $0x10] sm:$0xff]
      %v928 = vld [vmem:[%s924 + $0x18] sm:$0xff]
      %v929 = vld [vmem:[%s924 + $0x20] sm:$0xff]
      %v930 = vld [vmem:[%s924 + $0x28] sm:$0xff]
      %v931 = vld [vmem:[%s924 + $0x30] sm:$0xff]
      %v932 = vld [vmem:[%s924 + $0x38] sm:$0xff]
      %v933 = vld [vmem:[%s924 + $0x40] sm:$0xff]
      %v934 = vld [vmem:[%s924 + $0x48] sm:$0xff]
      %v935 = vld [vmem:[%s924 + $0x50] sm:$0xff]
      %v936 = vld [vmem:[%s924 + $0x58] sm:$0xff]
      %v937 = vld [vmem:[%s924 + $0x60] sm:$0xff]
      %v938 = vld [vmem:[%s924 + $0x68] sm:$0xff]
      %v939 = vld [vmem:[%s924 + $0x70] sm:$0xff]
      %v940 = vld [vmem:[%s924 + $0x78] sm:$0xff]
      %v941 = vld [vmem:[%s924 + $0x80] sm:$0xff]
      %v942 = vld [vmem:[%s924 + $0x88] sm:$0xff]
      %v943 = vld [vmem:[%s924 + $0x90] sm:$0xff]
      %v944 = vld [vmem:[%s924 + $0x98] sm:$0xff]
      %v945 = vld [vmem:[%s924 + $0xa0] sm:$0xff]
      %v946 = vld [vmem:[%s924 + $0xa8] sm:$0xff]
      %s947 = scalar_lea.vmem %s1, 204
      %v948 = vld [vmem:[%s947] sm:$0xf]
      %v949 = vld [vmem:[%s947 + $0x4] sm:$0xf]
      %v950 = vld [vmem:[%s947 + $0x8] sm:$0xf]
      %v951 = vld [vmem:[%s947 + $0xc] sm:$0xf]
      %v952 = vld [vmem:[%s947 + $0x10] sm:$0xf]
      %v953 = vld [vmem:[%s947 + $0x14] sm:$0xf]
      %v954 = vld [vmem:[%s947 + $0x18] sm:$0xf]
      %v955 = vld [vmem:[%s947 + $0x1c] sm:$0xf]
      %v956 = vld [vmem:[%s947 + $0x20] sm:$0xf]
      %v957 = vld [vmem:[%s947 + $0x24] sm:$0xf]
      %v958 = vld [vmem:[%s947 + $0x28] sm:$0xf]
      %v959 = vld [vmem:[%s947 + $0x2c] sm:$0xf]
      %v960 = vld [vmem:[%s947 + $0x30] sm:$0xf]
      %v961 = vld [vmem:[%s947 + $0x34] sm:$0xf]
      %v962 = vld [vmem:[%s947 + $0x38] sm:$0xf]
      %v963 = vld [vmem:[%s947 + $0x3c] sm:$0xf]
      %v964 = vld [vmem:[%s947 + $0x40] sm:$0x3]
      %v983 = vunpack.c.l.b16 %v925
      %v984 = vunpack.c.h.b16 %v925
      %v985 = vunpack.c.l.b16 %v926
      %v986 = vunpack.c.h.b16 %v926
      %v987 = vunpack.c.l.b16 %v927
      %v988 = vunpack.c.h.b16 %v927
      %v989 = vunpack.c.l.b16 %v928
      %v990 = vunpack.c.h.b16 %v928
      %v991 = vunpack.c.l.b16 %v929
      %v992 = vunpack.c.h.b16 %v929
      %v993 = vunpack.c.l.b16 %v930
      %v994 = vunpack.c.h.b16 %v930
      %v995 = vunpack.c.l.b16 %v931
      %v996 = vunpack.c.h.b16 %v931
      %v997 = vunpack.c.l.b16 %v932
      %v998 = vunpack.c.h.b16 %v932
      %v999 = vunpack.c.l.b16 %v933
      %v1000 = vunpack.c.h.b16 %v933
      %v1001 = vunpack.c.l.b16 %v934
      %v1002 = vunpack.c.h.b16 %v934
      %v1003 = vunpack.c.l.b16 %v935
      %v1004 = vunpack.c.h.b16 %v935
      %v1005 = vunpack.c.l.b16 %v936
      %v1006 = vunpack.c.h.b16 %v936
      %v1007 = vunpack.c.l.b16 %v937
      %v1008 = vunpack.c.h.b16 %v937
      %v1009 = vunpack.c.l.b16 %v938
      %v1010 = vunpack.c.h.b16 %v938
      %v1011 = vunpack.c.l.b16 %v939
      %v1012 = vunpack.c.h.b16 %v939
      %v1013 = vunpack.c.l.b16 %v940
      %v1014 = vunpack.c.h.b16 %v940
      %v1015 = vunpack.c.l.b16 %v941
      %v1016 = vunpack.c.h.b16 %v941
      %v1017 = vunpack.c.l.b16 %v942
      %v1018 = vunpack.c.h.b16 %v942
      %v1019 = vpack.c.b16 %v985, %v983
      %v1020 = vpack.c.b16 %v986, %v984
      %v1021 = vpack.c.b16 %v989, %v987
      %v1022 = vpack.c.b16 %v990, %v988
      %v1023 = vpack.c.b16 %v993, %v991
      %v1024 = vpack.c.b16 %v994, %v992
      %v1025 = vpack.c.b16 %v997, %v995
      %v1026 = vpack.c.b16 %v998, %v996
      %v1027 = vpack.c.b16 %v1001, %v999
      %v1028 = vpack.c.b16 %v1002, %v1000
      %v1029 = vpack.c.b16 %v1005, %v1003
      %v1030 = vpack.c.b16 %v1006, %v1004
      %v1031 = vpack.c.b16 %v1009, %v1007
      %v1032 = vpack.c.b16 %v1010, %v1008
      %v1033 = vpack.c.b16 %v1013, %v1011
      %v1034 = vpack.c.b16 %v1014, %v1012
      %v1035 = vpack.c.b16 %v1017, %v1015
      %v1036 = vpack.c.b16 %v1018, %v1016
      %v1063 = vunpack.c.l.b16 %v948
      %v1064 = vunpack.c.l.b16 %v949
      %v1065 = vunpack.c.l.b16 %v950
      %v1066 = vunpack.c.l.b16 %v951
      %v1067 = vunpack.c.l.b16 %v952
      %v1068 = vunpack.c.l.b16 %v953
      %v1069 = vunpack.c.l.b16 %v954
      %v1070 = vunpack.c.l.b16 %v955
      %v1071 = vunpack.c.l.b16 %v956
      %v1072 = vunpack.c.l.b16 %v957
      %v1073 = vunpack.c.l.b16 %v958
      %v1074 = vunpack.c.l.b16 %v959
      %v1075 = vunpack.c.l.b16 %v960
      %v1076 = vunpack.c.l.b16 %v961
      %v1077 = vunpack.c.l.b16 %v962
      %v1078 = vunpack.c.l.b16 %v963
      %v1079 = vunpack.c.l.b16 %v964
      %v1080 = vpack.c.b16 %v1064, %v1063
      %v1081 = vpack.c.b16 %v1066, %v1065
      %v1082 = vpack.c.b16 %v1068, %v1067
      %v1083 = vpack.c.b16 %v1070, %v1069
      %v1084 = vpack.c.b16 %v1072, %v1071
      %v1085 = vpack.c.b16 %v1074, %v1073
      %v1086 = vpack.c.b16 %v1076, %v1075
      %v1087 = vpack.c.b16 %v1078, %v1077
      %v1088 = vpack.c.b16 %v1079, %v1079
      %v1098 = vsel %vm405, %v1020, 0
      %v1101 = vsel %vm405, %v1022, 0
      %v1104 = vsel %vm405, %v1024, 0
      %v1107 = vsel %vm405, %v1026, 0
      %v1110 = vsel %vm405, %v1028, 0
      %v1113 = vsel %vm405, %v1030, 0
      %v1116 = vsel %vm405, %v1032, 0
      %v1119 = vsel %vm405, %v1034, 0
      %v1122 = vsel %vm405, %v1036, 0
      %v1125 = vsel %vm433, %v1088, 0
      %1127 = vmatprep.subr.bf16.mxu0 0
      %1128 = vmatpush1.bf16.msra.mxu0 %v1080
      %1129 = vmatprep.subr.bf16.mxu0 0
      %1130 = vmatpush1.bf16.msra.mxu0 %v1081
      %1131 = vmatprep.subr.bf16.mxu0 0
      %1132 = vmatpush1.bf16.msra.mxu0 %v1082
      %1133 = vmatprep.subr.bf16.mxu0 0
      %1134 = vmatpush1.bf16.msra.mxu0 %v1083
      %1135 = vmatprep.subr.bf16.mxu0 0
      %1136 = vmatpush1.bf16.msra.mxu0 %v1084
      %1137 = vmatprep.subr.bf16.mxu0 0
      %1138 = vmatpush1.bf16.msra.mxu0 %v1085
      %1139 = vmatprep.subr.bf16.mxu0 0
      %1140 = vmatpush1.bf16.msra.mxu0 %v1086
      %1141 = vmatprep.subr.bf16.mxu0 0
      %1142 = vmatpush1.bf16.msra.mxu0 %v1087
      %1143 = vmatprep.subr.bf16.mxu0 0
      %1144 = vmatpush1.bf16.msra.mxu0 %v1125
      %1145 = vmatprep.subr.bf16.mxu0 0
      %1146 = vmatpush1.bf16.msra.mxu0 0
      %1147 = vmatprep.subr.bf16.mxu0 0
      %1148 = vmatpush1.bf16.msra.mxu0 0
      %1149 = vmatprep.subr.bf16.mxu0 0
      %1150 = vmatpush1.bf16.msra.mxu0 0
      %1151 = vmatprep.subr.bf16.mxu0 0
      %1152 = vmatpush1.bf16.msra.mxu0 0
      %1153 = vmatprep.subr.bf16.mxu0 0
      %1154 = vmatpush1.bf16.msra.mxu0 0
      %1155 = vmatprep.subr.bf16.mxu0 0
      %1156 = vmatpush1.bf16.msra.mxu0 0
      %1157 = vmatprep.subr.bf16.mxu0 0
      %1158 = vmatpush1.bf16.msra.mxu0 0
      %1159 = vmatprep.mubr.bf16.mxu0 %v1098
      %1160 = vmatmul.mubr.bf16.gmra.mrb[0].mxu0 %v1019
      %v1161 = vpop.f32.mrb[0].mxu0
      %v1162 = vadd.f32 0.0, %v1161
      %v1163 = vpop.f32.mrb[0].mxu0
      %v1164 = vpop.f32.mrb[0].mxu0
      %v1165 = vadd.f32 0.0, %v1164
      %v1166 = vpop.f32.mrb[0].mxu0
      %1167 = vmatprep.mubr.bf16.mxu0 %v1101
      %1168 = vmatmul.mubr.bf16.gmra.mrb[0].mxu0 %v1021
      %v1169 = vpop.f32.mrb[0].mxu0
      %v1170 = vadd.f32 0.0, %v1169
      %v1171 = vpop.f32.mrb[0].mxu0
      %v1172 = vpop.f32.mrb[0].mxu0
      %v1173 = vadd.f32 0.0, %v1172
      %v1174 = vpop.f32.mrb[0].mxu0
      %1175 = vmatprep.mubr.bf16.mxu0 %v1104
      %1176 = vmatmul.mubr.bf16.gmra.mrb[0].mxu0 %v1023
      %v1177 = vpop.f32.mrb[0].mxu0
      %v1178 = vadd.f32 0.0, %v1177
      %v1179 = vpop.f32.mrb[0].mxu0
      %v1180 = vpop.f32.mrb[0].mxu0
      %v1181 = vadd.f32 0.0, %v1180
      %v1182 = vpop.f32.mrb[0].mxu0
      %1183 = vmatprep.mubr.bf16.mxu0 %v1107
      %1184 = vmatmul.mubr.bf16.gmra.mrb[0].mxu0 %v1025
      %v1185 = vpop.f32.mrb[0].mxu0
      %v1186 = vadd.f32 0.0, %v1185
      %v1187 = vpop.f32.mrb[0].mxu0
      %v1188 = vpop.f32.mrb[0].mxu0
      %v1189 = vadd.f32 0.0, %v1188
      %v1190 = vpop.f32.mrb[0].mxu0
      %1191 = vmatprep.mubr.bf16.mxu0 %v1110
      %1192 = vmatmul.mubr.bf16.gmra.mrb[0].mxu0 %v1027
      %v1193 = vpop.f32.mrb[0].mxu0
      %v1194 = vadd.f32 0.0, %v1193
      %v1195 = vpop.f32.mrb[0].mxu0
      %v1196 = vpop.f32.mrb[0].mxu0
      %v1197 = vadd.f32 0.0, %v1196
      %v1198 = vpop.f32.mrb[0].mxu0
      %1199 = vmatprep.mubr.bf16.mxu0 %v1113
      %1200 = vmatmul.mubr.bf16.gmra.mrb[0].mxu0 %v1029
      %v1201 = vpop.f32.mrb[0].mxu0
      %v1202 = vadd.f32 0.0, %v1201
      %v1203 = vpop.f32.mrb[0].mxu0
      %v1204 = vpop.f32.mrb[0].mxu0
      %v1205 = vadd.f32 0.0, %v1204
      %v1206 = vpop.f32.mrb[0].mxu0
      %1207 = vmatprep.mubr.bf16.mxu0 %v1116
      %1208 = vmatmul.mubr.bf16.gmra.mrb[0].mxu0 %v1031
      %v1209 = vpop.f32.mrb[0].mxu0
      %v1210 = vadd.f32 0.0, %v1209
      %v1211 = vpop.f32.mrb[0].mxu0
      %v1212 = vpop.f32.mrb[0].mxu0
      %v1213 = vadd.f32 0.0, %v1212
      %v1214 = vpop.f32.mrb[0].mxu0
      %1215 = vmatprep.mubr.bf16.mxu0 %v1119
      %1216 = vmatmul.mubr.bf16.gmra.mrb[0].mxu0 %v1033
      %v1217 = vpop.f32.mrb[0].mxu0
      %v1218 = vadd.f32 0.0, %v1217
      %v1219 = vpop.f32.mrb[0].mxu0
      %v1220 = vpop.f32.mrb[0].mxu0
      %v1221 = vadd.f32 0.0, %v1220
      %v1222 = vpop.f32.mrb[0].mxu0
      %1223 = vmatprep.mubr.bf16.mxu0 %v1122
      %1224 = vmatmul.mubr.bf16.gmra.mrb[0].mxu0 %v1035
      %v1225 = vpop.f32.mrb[0].mxu0
      %v1226 = vadd.f32 0.0, %v1225
      %v1227 = vpop.f32.mrb[0].mxu0
      %v1228 = vpop.f32.mrb[0].mxu0
      %v1229 = vadd.f32 0.0, %v1228
      %v1230 = vpop.f32.mrb[0].mxu0
      %1231 = vdwg.mxu0
      %v1232 = vadd.f32 %v902, %v1162
      %v1233 = vadd.f32 %v903, %v1165
      %v1234 = vadd.f32 %v904, %v1170
      %v1235 = vadd.f32 %v905, %v1173
      %v1236 = vadd.f32 %v906, %v1178
      %v1237 = vadd.f32 %v907, %v1181
      %v1238 = vadd.f32 %v908, %v1186
      %v1239 = vadd.f32 %v909, %v1189
      %v1240 = vadd.f32 %v910, %v1194
      %v1241 = vadd.f32 %v911, %v1197
      %v1242 = vadd.f32 %v912, %v1202
      %v1243 = vadd.f32 %v913, %v1205
      %v1244 = vadd.f32 %v914, %v1210
      %v1245 = vadd.f32 %v915, %v1213
      %v1246 = vadd.f32 %v916, %v1218
      %v1247 = vadd.f32 %v917, %v1221
      %v1248 = vadd.f32 %v918, %v1226
      %v1249 = vadd.f32 %v919, %v1229
      %s1250 = scalar_lea.vmem %s1, 272
      %v1251 = vld [vmem:[%s1250] sm:$0xf]
      %v1252 = vld [vmem:[%s1250 + $0x4] sm:$0xf]
      %v1253 = vld [vmem:[%s1250 + $0x8] sm:$0xf]
      %v1254 = vld [vmem:[%s1250 + $0xc] sm:$0xf]
      %v1255 = vld [vmem:[%s1250 + $0x10] sm:$0xf]
      %v1256 = vld [vmem:[%s1250 + $0x14] sm:$0xf]
      %v1257 = vld [vmem:[%s1250 + $0x18] sm:$0xf]
      %v1258 = vld [vmem:[%s1250 + $0x1c] sm:$0xf]
      %v1259 = vld [vmem:[%s1250 + $0x20] sm:$0xf]
      %v1260 = vld [vmem:[%s1250 + $0x24] sm:$0xf]
      %v1261 = vld [vmem:[%s1250 + $0x28] sm:$0xf]
      %v1262 = vld [vmem:[%s1250 + $0x2c] sm:$0xf]
      %v1263 = vld [vmem:[%s1250 + $0x30] sm:$0xf]
      %v1264 = vld [vmem:[%s1250 + $0x34] sm:$0xf]
      %v1265 = vld [vmem:[%s1250 + $0x38] sm:$0xf]
      %v1266 = vld [vmem:[%s1250 + $0x3c] sm:$0xf]
      %v1267 = vld [vmem:[%s1250 + $0x40] sm:$0x3]
      %v1270 = vunpack.c.l.b16 %v943
      %v1271 = vunpack.c.h.b16 %v943
      %v1272 = vunpack.c.l.b16 %v944
      %v1273 = vunpack.c.h.b16 %v944
      %v1274 = vpack.c.b16 %v1272, %v1270
      %v1275 = vpack.c.b16 %v1273, %v1271
      %v1294 = vunpack.c.l.b16 %v1251
      %v1295 = vunpack.c.l.b16 %v1252
      %v1296 = vunpack.c.l.b16 %v1253
      %v1297 = vunpack.c.l.b16 %v1254
      %v1298 = vunpack.c.l.b16 %v1255
      %v1299 = vunpack.c.l.b16 %v1256
      %v1300 = vunpack.c.l.b16 %v1257
      %v1301 = vunpack.c.l.b16 %v1258
      %v1302 = vunpack.c.l.b16 %v1259
      %v1303 = vunpack.c.l.b16 %v1260
      %v1304 = vunpack.c.l.b16 %v1261
      %v1305 = vunpack.c.l.b16 %v1262
      %v1306 = vunpack.c.l.b16 %v1263
      %v1307 = vunpack.c.l.b16 %v1264
      %v1308 = vunpack.c.l.b16 %v1265
      %v1309 = vunpack.c.l.b16 %v1266
      %v1310 = vunpack.c.l.b16 %v1267
      %v1311 = vpack.c.b16 %v1295, %v1294
      %v1312 = vpack.c.b16 %v1297, %v1296
      %v1313 = vpack.c.b16 %v1299, %v1298
      %v1314 = vpack.c.b16 %v1301, %v1300
      %v1315 = vpack.c.b16 %v1303, %v1302
      %v1316 = vpack.c.b16 %v1305, %v1304
      %v1317 = vpack.c.b16 %v1307, %v1306
      %v1318 = vpack.c.b16 %v1309, %v1308
      %v1319 = vpack.c.b16 %v1310, %v1310
      %v1329 = vsel %vm405, %v1275, 0
      %v1332 = vsel %vm433, %v1319, 0
      %1334 = vmatprep.subr.bf16.mxu0 0
      %1335 = vmatpush1.bf16.msra.mxu0 %v1311
      %1336 = vmatprep.subr.bf16.mxu0 0
      %1337 = vmatpush1.bf16.msra.mxu0 %v1312
      %1338 = vmatprep.subr.bf16.mxu0 0
      %1339 = vmatpush1.bf16.msra.mxu0 %v1313
      %1340 = vmatprep.subr.bf16.mxu0 0
      %1341 = vmatpush1.bf16.msra.mxu0 %v1314
      %1342 = vmatprep.subr.bf16.mxu0 0
      %1343 = vmatpush1.bf16.msra.mxu0 %v1315
      %1344 = vmatprep.subr.bf16.mxu0 0
      %1345 = vmatpush1.bf16.msra.mxu0 %v1316
      %1346 = vmatprep.subr.bf16.mxu0 0
      %1347 = vmatpush1.bf16.msra.mxu0 %v1317
      %1348 = vmatprep.subr.bf16.mxu0 0
      %1349 = vmatpush1.bf16.msra.mxu0 %v1318
      %1350 = vmatprep.subr.bf16.mxu0 0
      %1351 = vmatpush1.bf16.msra.mxu0 %v1332
      %1352 = vmatprep.subr.bf16.mxu0 0
      %1353 = vmatpush1.bf16.msra.mxu0 0
      %1354 = vmatprep.subr.bf16.mxu0 0
      %1355 = vmatpush1.bf16.msra.mxu0 0
      %1356 = vmatprep.subr.bf16.mxu0 0
      %1357 = vmatpush1.bf16.msra.mxu0 0
      %1358 = vmatprep.subr.bf16.mxu0 0
      %1359 = vmatpush1.bf16.msra.mxu0 0
      %1360 = vmatprep.subr.bf16.mxu0 0
      %1361 = vmatpush1.bf16.msra.mxu0 0
      %1362 = vmatprep.subr.bf16.mxu0 0
      %1363 = vmatpush1.bf16.msra.mxu0 0
      %1364 = vmatprep.subr.bf16.mxu0 0
      %1365 = vmatpush1.bf16.msra.mxu0 0
      %1366 = vmatprep.mubr.bf16.mxu0 %v1101
      %1367 = vmatmul.mubr.bf16.gmra.mrb[0].mxu0 %v1021
      %v1368 = vpop.f32.mrb[0].mxu0
      %v1369 = vadd.f32 0.0, %v1368
      %v1370 = vpop.f32.mrb[0].mxu0
      %v1371 = vpop.f32.mrb[0].mxu0
      %v1372 = vadd.f32 0.0, %v1371
      %v1373 = vpop.f32.mrb[0].mxu0
      %1374 = vmatprep.mubr.bf16.mxu0 %v1104
      %1375 = vmatmul.mubr.bf16.gmra.mrb[0].mxu0 %v1023
      %v1376 = vpop.f32.mrb[0].mxu0
      %v1377 = vadd.f32 0.0, %v1376
      %v1378 = vpop.f32.mrb[0].mxu0
      %v1379 = vpop.f32.mrb[0].mxu0
      %v1380 = vadd.f32 0.0, %v1379
      %v1381 = vpop.f32.mrb[0].mxu0
      %1382 = vmatprep.mubr.bf16.mxu0 %v1107
      %1383 = vmatmul.mubr.bf16.gmra.mrb[0].mxu0 %v1025
      %v1384 = vpop.f32.mrb[0].mxu0
      %v1385 = vadd.f32 0.0, %v1384
      %v1386 = vpop.f32.mrb[0].mxu0
      %v1387 = vpop.f32.mrb[0].mxu0
      %v1388 = vadd.f32 0.0, %v1387
      %v1389 = vpop.f32.mrb[0].mxu0
      %1390 = vmatprep.mubr.bf16.mxu0 %v1110
      %1391 = vmatmul.mubr.bf16.gmra.mrb[0].mxu0 %v1027
      %v1392 = vpop.f32.mrb[0].mxu0
      %v1393 = vadd.f32 0.0, %v1392
      %v1394 = vpop.f32.mrb[0].mxu0
      %v1395 = vpop.f32.mrb[0].mxu0
      %v1396 = vadd.f32 0.0, %v1395
      %v1397 = vpop.f32.mrb[0].mxu0
      %1398 = vmatprep.mubr.bf16.mxu0 %v1113
      %1399 = vmatmul.mubr.bf16.gmra.mrb[0].mxu0 %v1029
      %v1400 = vpop.f32.mrb[0].mxu0
      %v1401 = vadd.f32 0.0, %v1400
      %v1402 = vpop.f32.mrb[0].mxu0
      %v1403 = vpop.f32.mrb[0].mxu0
      %v1404 = vadd.f32 0.0, %v1403
      %v1405 = vpop.f32.mrb[0].mxu0
      %1406 = vmatprep.mubr.bf16.mxu0 %v1116
      %1407 = vmatmul.mubr.bf16.gmra.mrb[0].mxu0 %v1031
      %v1408 = vpop.f32.mrb[0].mxu0
      %v1409 = vadd.f32 0.0, %v1408
      %v1410 = vpop.f32.mrb[0].mxu0
      %v1411 = vpop.f32.mrb[0].mxu0
      %v1412 = vadd.f32 0.0, %v1411
      %v1413 = vpop.f32.mrb[0].mxu0
      %1414 = vmatprep.mubr.bf16.mxu0 %v1119
      %1415 = vmatmul.mubr.bf16.gmra.mrb[0].mxu0 %v1033
      %v1416 = vpop.f32.mrb[0].mxu0
      %v1417 = vadd.f32 0.0, %v1416
      %v1418 = vpop.f32.mrb[0].mxu0
      %v1419 = vpop.f32.mrb[0].mxu0
      %v1420 = vadd.f32 0.0, %v1419
      %v1421 = vpop.f32.mrb[0].mxu0
      %1422 = vmatprep.mubr.bf16.mxu0 %v1122
      %1423 = vmatmul.mubr.bf16.gmra.mrb[0].mxu0 %v1035
      %v1424 = vpop.f32.mrb[0].mxu0
      %v1425 = vadd.f32 0.0, %v1424
      %v1426 = vpop.f32.mrb[0].mxu0
      %v1427 = vpop.f32.mrb[0].mxu0
      %v1428 = vadd.f32 0.0, %v1427
      %v1429 = vpop.f32.mrb[0].mxu0
      %1430 = vmatprep.mubr.bf16.mxu0 %v1329
      %1431 = vmatmul.mubr.bf16.gmra.mrb[0].mxu0 %v1274
      %v1432 = vpop.f32.mrb[0].mxu0
      %v1433 = vadd.f32 0.0, %v1432
      %v1434 = vpop.f32.mrb[0].mxu0
      %v1435 = vpop.f32.mrb[0].mxu0
      %v1436 = vadd.f32 0.0, %v1435
      %v1437 = vpop.f32.mrb[0].mxu0
      %1438 = vdwg.mxu0
      %v1439 = vadd.f32 %v1232, %v1369
      %v1440 = vadd.f32 %v1233, %v1372
      %v1441 = vadd.f32 %v1234, %v1377
      %v1442 = vadd.f32 %v1235, %v1380
      %v1443 = vadd.f32 %v1236, %v1385
      %v1444 = vadd.f32 %v1237, %v1388
      %v1445 = vadd.f32 %v1238, %v1393
      %v1446 = vadd.f32 %v1239, %v1396
      %v1447 = vadd.f32 %v1240, %v1401
      %v1448 = vadd.f32 %v1241, %v1404
      %v1449 = vadd.f32 %v1242, %v1409
      %v1450 = vadd.f32 %v1243, %v1412
      %v1451 = vadd.f32 %v1244, %v1417
      %v1452 = vadd.f32 %v1245, %v1420
      %v1453 = vadd.f32 %v1246, %v1425
      %v1454 = vadd.f32 %v1247, %v1428
      %v1455 = vadd.f32 %v1248, %v1433
      %v1456 = vadd.f32 %v1249, %v1436
      %s1457 = scalar_lea.vmem %s1, 340
      %v1458 = vld [vmem:[%s1457] sm:$0xf]
      %v1459 = vld [vmem:[%s1457 + $0x4] sm:$0xf]
      %v1460 = vld [vmem:[%s1457 + $0x8] sm:$0xf]
      %v1461 = vld [vmem:[%s1457 + $0xc] sm:$0xf]
      %v1462 = vld [vmem:[%s1457 + $0x10] sm:$0xf]
      %v1463 = vld [vmem:[%s1457 + $0x14] sm:$0xf]
      %v1464 = vld [vmem:[%s1457 + $0x18] sm:$0xf]
      %v1465 = vld [vmem:[%s1457 + $0x1c] sm:$0xf]
      %v1466 = vld [vmem:[%s1457 + $0x20] sm:$0xf]
      %v1467 = vld [vmem:[%s1457 + $0x24] sm:$0xf]
      %v1468 = vld [vmem:[%s1457 + $0x28] sm:$0xf]
      %v1469 = vld [vmem:[%s1457 + $0x2c] sm:$0xf]
      %v1470 = vld [vmem:[%s1457 + $0x30] sm:$0xf]
      %v1471 = vld [vmem:[%s1457 + $0x34] sm:$0xf]
      %v1472 = vld [vmem:[%s1457 + $0x38] sm:$0xf]
      %v1473 = vld [vmem:[%s1457 + $0x3c] sm:$0xf]
      %v1474 = vld [vmem:[%s1457 + $0x40] sm:$0x3]
      %v1477 = vunpack.c.l.b16 %v945
      %v1478 = vunpack.c.h.b16 %v945
      %v1479 = vunpack.c.l.b16 %v946
      %v1480 = vunpack.c.h.b16 %v946
      %v1481 = vpack.c.b16 %v1479, %v1477
      %v1482 = vpack.c.b16 %v1480, %v1478
      %v1501 = vunpack.c.l.b16 %v1458
      %v1502 = vunpack.c.l.b16 %v1459
      %v1503 = vunpack.c.l.b16 %v1460
      %v1504 = vunpack.c.l.b16 %v1461
      %v1505 = vunpack.c.l.b16 %v1462
      %v1506 = vunpack.c.l.b16 %v1463
      %v1507 = vunpack.c.l.b16 %v1464
      %v1508 = vunpack.c.l.b16 %v1465
      %v1509 = vunpack.c.l.b16 %v1466
      %v1510 = vunpack.c.l.b16 %v1467
      %v1511 = vunpack.c.l.b16 %v1468
      %v1512 = vunpack.c.l.b16 %v1469
      %v1513 = vunpack.c.l.b16 %v1470
      %v1514 = vunpack.c.l.b16 %v1471
      %v1515 = vunpack.c.l.b16 %v1472
      %v1516 = vunpack.c.l.b16 %v1473
      %v1517 = vunpack.c.l.b16 %v1474
      %v1518 = vpack.c.b16 %v1502, %v1501
      %v1519 = vpack.c.b16 %v1504, %v1503
      %v1520 = vpack.c.b16 %v1506, %v1505
      %v1521 = vpack.c.b16 %v1508, %v1507
      %v1522 = vpack.c.b16 %v1510, %v1509
      %v1523 = vpack.c.b16 %v1512, %v1511
      %v1524 = vpack.c.b16 %v1514, %v1513
      %v1525 = vpack.c.b16 %v1516, %v1515
      %v1526 = vpack.c.b16 %v1517, %v1517
      %v1536 = vsel %vm405, %v1482, 0
      %v1539 = vsel %vm433, %v1526, 0
      %1541 = vmatprep.subr.bf16.mxu0 0
      %1542 = vmatpush1.bf16.msra.mxu0 %v1518
      %1543 = vmatprep.subr.bf16.mxu0 0
      %1544 = vmatpush1.bf16.msra.mxu0 %v1519
      %1545 = vmatprep.subr.bf16.mxu0 0
      %1546 = vmatpush1.bf16.msra.mxu0 %v1520
      %1547 = vmatprep.subr.bf16.mxu0 0
      %1548 = vmatpush1.bf16.msra.mxu0 %v1521
      %1549 = vmatprep.subr.bf16.mxu0 0
      %1550 = vmatpush1.bf16.msra.mxu0 %v1522
      %1551 = vmatprep.subr.bf16.mxu0 0
      %1552 = vmatpush1.bf16.msra.mxu0 %v1523
      %1553 = vmatprep.subr.bf16.mxu0 0
      %1554 = vmatpush1.bf16.msra.mxu0 %v1524
      %1555 = vmatprep.subr.bf16.mxu0 0
      %1556 = vmatpush1.bf16.msra.mxu0 %v1525
      %1557 = vmatprep.subr.bf16.mxu0 0
      %1558 = vmatpush1.bf16.msra.mxu0 %v1539
      %1559 = vmatprep.subr.bf16.mxu0 0
      %1560 = vmatpush1.bf16.msra.mxu0 0
      %1561 = vmatprep.subr.bf16.mxu0 0
      %1562 = vmatpush1.bf16.msra.mxu0 0
      %1563 = vmatprep.subr.bf16.mxu0 0
      %1564 = vmatpush1.bf16.msra.mxu0 0
      %1565 = vmatprep.subr.bf16.mxu0 0
      %1566 = vmatpush1.bf16.msra.mxu0 0
      %1567 = vmatprep.subr.bf16.mxu0 0
      %1568 = vmatpush1.bf16.msra.mxu0 0
      %1569 = vmatprep.subr.bf16.mxu0 0
      %1570 = vmatpush1.bf16.msra.mxu0 0
      %1571 = vmatprep.subr.bf16.mxu0 0
      %1572 = vmatpush1.bf16.msra.mxu0 0
      %1573 = vmatprep.mubr.bf16.mxu0 %v1104
      %1574 = vmatmul.mubr.bf16.gmra.mrb[0].mxu0 %v1023
      %v1575 = vpop.f32.mrb[0].mxu0
      %v1576 = vadd.f32 0.0, %v1575
      %v1577 = vpop.f32.mrb[0].mxu0
      %v1578 = vpop.f32.mrb[0].mxu0
      %v1579 = vadd.f32 0.0, %v1578
      %v1580 = vpop.f32.mrb[0].mxu0
      %1581 = vmatprep.mubr.bf16.mxu0 %v1107
      %1582 = vmatmul.mubr.bf16.gmra.mrb[0].mxu0 %v1025
      %v1583 = vpop.f32.mrb[0].mxu0
      %v1584 = vadd.f32 0.0, %v1583
      %v1585 = vpop.f32.mrb[0].mxu0
      %v1586 = vpop.f32.mrb[0].mxu0
      %v1587 = vadd.f32 0.0, %v1586
      %v1588 = vpop.f32.mrb[0].mxu0
      %1589 = vmatprep.mubr.bf16.mxu0 %v1110
      %1590 = vmatmul.mubr.bf16.gmra.mrb[0].mxu0 %v1027
      %v1591 = vpop.f32.mrb[0].mxu0
      %v1592 = vadd.f32 0.0, %v1591
      %v1593 = vpop.f32.mrb[0].mxu0
      %v1594 = vpop.f32.mrb[0].mxu0
      %v1595 = vadd.f32 0.0, %v1594
      %v1596 = vpop.f32.mrb[0].mxu0
      %1597 = vmatprep.mubr.bf16.mxu0 %v1113
      %1598 = vmatmul.mubr.bf16.gmra.mrb[0].mxu0 %v1029
      %v1599 = vpop.f32.mrb[0].mxu0
      %v1600 = vadd.f32 0.0, %v1599
      %v1601 = vpop.f32.mrb[0].mxu0
      %v1602 = vpop.f32.mrb[0].mxu0
      %v1603 = vadd.f32 0.0, %v1602
      %v1604 = vpop.f32.mrb[0].mxu0
      %1605 = vmatprep.mubr.bf16.mxu0 %v1116
      %1606 = vmatmul.mubr.bf16.gmra.mrb[0].mxu0 %v1031
      %v1607 = vpop.f32.mrb[0].mxu0
      %v1608 = vadd.f32 0.0, %v1607
      %v1609 = vpop.f32.mrb[0].mxu0
      %v1610 = vpop.f32.mrb[0].mxu0
      %v1611 = vadd.f32 0.0, %v1610
      %v1612 = vpop.f32.mrb[0].mxu0
      %1613 = vmatprep.mubr.bf16.mxu0 %v1119
      %1614 = vmatmul.mubr.bf16.gmra.mrb[0].mxu0 %v1033
      %v1615 = vpop.f32.mrb[0].mxu0
      %v1616 = vadd.f32 0.0, %v1615
      %v1617 = vpop.f32.mrb[0].mxu0
      %v1618 = vpop.f32.mrb[0].mxu0
      %v1619 = vadd.f32 0.0, %v1618
      %v1620 = vpop.f32.mrb[0].mxu0
      %1621 = vmatprep.mubr.bf16.mxu0 %v1122
      %1622 = vmatmul.mubr.bf16.gmra.mrb[0].mxu0 %v1035
      %v1623 = vpop.f32.mrb[0].mxu0
      %v1624 = vadd.f32 0.0, %v1623
      %v1625 = vpop.f32.mrb[0].mxu0
      %v1626 = vpop.f32.mrb[0].mxu0
      %v1627 = vadd.f32 0.0, %v1626
      %v1628 = vpop.f32.mrb[0].mxu0
      %1629 = vmatprep.mubr.bf16.mxu0 %v1329
      %1630 = vmatmul.mubr.bf16.gmra.mrb[0].mxu0 %v1274
      %v1631 = vpop.f32.mrb[0].mxu0
      %v1632 = vadd.f32 0.0, %v1631
      %v1633 = vpop.f32.mrb[0].mxu0
      %v1634 = vpop.f32.mrb[0].mxu0
      %v1635 = vadd.f32 0.0, %v1634
      %v1636 = vpop.f32.mrb[0].mxu0
      %1637 = vmatprep.mubr.bf16.mxu0 %v1536
      %1638 = vmatmul.mubr.bf16.gmra.mrb[0].mxu0 %v1481
      %v1639 = vpop.f32.mrb[0].mxu0
      %v1640 = vadd.f32 0.0, %v1639
      %v1641 = vpop.f32.mrb[0].mxu0
      %v1642 = vpop.f32.mrb[0].mxu0
      %v1643 = vadd.f32 0.0, %v1642
      %v1644 = vpop.f32.mrb[0].mxu0
      %1645 = vdwg.mxu0
      %v1646 = vadd.f32 %v1439, %v1576
      %v1647 = vadd.f32 %v1440, %v1579
      %v1648 = vadd.f32 %v1441, %v1584
      %v1649 = vadd.f32 %v1442, %v1587
      %v1650 = vadd.f32 %v1443, %v1592
      %v1651 = vadd.f32 %v1444, %v1595
      %v1652 = vadd.f32 %v1445, %v1600
      %v1653 = vadd.f32 %v1446, %v1603
      %v1654 = vadd.f32 %v1447, %v1608
      %v1655 = vadd.f32 %v1448, %v1611
      %v1656 = vadd.f32 %v1449, %v1616
      %v1657 = vadd.f32 %v1450, %v1619
      %v1658 = vadd.f32 %v1451, %v1624
      %v1659 = vadd.f32 %v1452, %v1627
      %v1660 = vadd.f32 %v1453, %v1632
      %v1661 = vadd.f32 %v1454, %v1635
      %v1662 = vadd.f32 %v1455, %v1640
      %v1663 = vadd.f32 %v1456, %v1643
      %s1664 = sadd.s32 %s21, 2
      %s1665 = sadd.s32 %s211, %s1664
      %s1666 = smul.u32 %s1665, 44
      %s1667 = smul.addr %s1666, 4
      %s1668 = scalar_lea.vmem %s196, %s1667
      %v1669 = vld [vmem:[%s1668] sm:$0xff]
      %v1670 = vld [vmem:[%s1668 + $0x8] sm:$0xff]
      %v1671 = vld [vmem:[%s1668 + $0x10] sm:$0xff]
      %v1672 = vld [vmem:[%s1668 + $0x18] sm:$0xff]
      %v1673 = vld [vmem:[%s1668 + $0x20] sm:$0xff]
      %v1674 = vld [vmem:[%s1668 + $0x28] sm:$0xff]
      %v1675 = vld [vmem:[%s1668 + $0x30] sm:$0xff]
      %v1676 = vld [vmem:[%s1668 + $0x38] sm:$0xff]
      %v1677 = vld [vmem:[%s1668 + $0x40] sm:$0xff]
      %v1678 = vld [vmem:[%s1668 + $0x48] sm:$0xff]
      %v1679 = vld [vmem:[%s1668 + $0x50] sm:$0xff]
      %v1680 = vld [vmem:[%s1668 + $0x58] sm:$0xff]
      %v1681 = vld [vmem:[%s1668 + $0x60] sm:$0xff]
      %v1682 = vld [vmem:[%s1668 + $0x68] sm:$0xff]
      %v1683 = vld [vmem:[%s1668 + $0x70] sm:$0xff]
      %v1684 = vld [vmem:[%s1668 + $0x78] sm:$0xff]
      %v1685 = vld [vmem:[%s1668 + $0x80] sm:$0xff]
      %v1686 = vld [vmem:[%s1668 + $0x88] sm:$0xff]
      %v1687 = vld [vmem:[%s1668 + $0x90] sm:$0xff]
      %v1688 = vld [vmem:[%s1668 + $0x98] sm:$0xff]
      %v1689 = vld [vmem:[%s1668 + $0xa0] sm:$0xff]
      %v1690 = vld [vmem:[%s1668 + $0xa8] sm:$0xff]
      %s1691 = scalar_lea.vmem %s1, 408
      %v1692 = vld [vmem:[%s1691] sm:$0xf]
      %v1693 = vld [vmem:[%s1691 + $0x4] sm:$0xf]
      %v1694 = vld [vmem:[%s1691 + $0x8] sm:$0xf]
      %v1695 = vld [vmem:[%s1691 + $0xc] sm:$0xf]
      %v1696 = vld [vmem:[%s1691 + $0x10] sm:$0xf]
      %v1697 = vld [vmem:[%s1691 + $0x14] sm:$0xf]
      %v1698 = vld [vmem:[%s1691 + $0x18] sm:$0xf]
      %v1699 = vld [vmem:[%s1691 + $0x1c] sm:$0xf]
      %v1700 = vld [vmem:[%s1691 + $0x20] sm:$0xf]
      %v1701 = vld [vmem:[%s1691 + $0x24] sm:$0xf]
      %v1702 = vld [vmem:[%s1691 + $0x28] sm:$0xf]
      %v1703 = vld [vmem:[%s1691 + $0x2c] sm:$0xf]
      %v1704 = vld [vmem:[%s1691 + $0x30] sm:$0xf]
      %v1705 = vld [vmem:[%s1691 + $0x34] sm:$0xf]
      %v1706 = vld [vmem:[%s1691 + $0x38] sm:$0xf]
      %v1707 = vld [vmem:[%s1691 + $0x3c] sm:$0xf]
      %v1708 = vld [vmem:[%s1691 + $0x40] sm:$0x3]
      %v1727 = vunpack.c.l.b16 %v1669
      %v1728 = vunpack.c.h.b16 %v1669
      %v1729 = vunpack.c.l.b16 %v1670
      %v1730 = vunpack.c.h.b16 %v1670
      %v1731 = vunpack.c.l.b16 %v1671
      %v1732 = vunpack.c.h.b16 %v1671
      %v1733 = vunpack.c.l.b16 %v1672
      %v1734 = vunpack.c.h.b16 %v1672
      %v1735 = vunpack.c.l.b16 %v1673
      %v1736 = vunpack.c.h.b16 %v1673
      %v1737 = vunpack.c.l.b16 %v1674
      %v1738 = vunpack.c.h.b16 %v1674
      %v1739 = vunpack.c.l.b16 %v1675
      %v1740 = vunpack.c.h.b16 %v1675
      %v1741 = vunpack.c.l.b16 %v1676
      %v1742 = vunpack.c.h.b16 %v1676
      %v1743 = vunpack.c.l.b16 %v1677
      %v1744 = vunpack.c.h.b16 %v1677
      %v1745 = vunpack.c.l.b16 %v1678
      %v1746 = vunpack.c.h.b16 %v1678
      %v1747 = vunpack.c.l.b16 %v1679
      %v1748 = vunpack.c.h.b16 %v1679
      %v1749 = vunpack.c.l.b16 %v1680
      %v1750 = vunpack.c.h.b16 %v1680
      %v1751 = vunpack.c.l.b16 %v1681
      %v1752 = vunpack.c.h.b16 %v1681
      %v1753 = vunpack.c.l.b16 %v1682
      %v1754 = vunpack.c.h.b16 %v1682
      %v1755 = vunpack.c.l.b16 %v1683
      %v1756 = vunpack.c.h.b16 %v1683
      %v1757 = vunpack.c.l.b16 %v1684
      %v1758 = vunpack.c.h.b16 %v1684
      %v1759 = vunpack.c.l.b16 %v1685
      %v1760 = vunpack.c.h.b16 %v1685
      %v1761 = vunpack.c.l.b16 %v1686
      %v1762 = vunpack.c.h.b16 %v1686
      %v1763 = vpack.c.b16 %v1729, %v1727
      %v1764 = vpack.c.b16 %v1730, %v1728
      %v1765 = vpack.c.b16 %v1733, %v1731
      %v1766 = vpack.c.b16 %v1734, %v1732
      %v1767 = vpack.c.b16 %v1737, %v1735
      %v1768 = vpack.c.b16 %v1738, %v1736
      %v1769 = vpack.c.b16 %v1741, %v1739
      %v1770 = vpack.c.b16 %v1742, %v1740
      %v1771 = vpack.c.b16 %v1745, %v1743
      %v1772 = vpack.c.b16 %v1746, %v1744
      %v1773 = vpack.c.b16 %v1749, %v1747
      %v1774 = vpack.c.b16 %v1750, %v1748
      %v1775 = vpack.c.b16 %v1753, %v1751
      %v1776 = vpack.c.b16 %v1754, %v1752
      %v1777 = vpack.c.b16 %v1757, %v1755
      %v1778 = vpack.c.b16 %v1758, %v1756
      %v1779 = vpack.c.b16 %v1761, %v1759
      %v1780 = vpack.c.b16 %v1762, %v1760
      %v1807 = vunpack.c.l.b16 %v1692
      %v1808 = vunpack.c.l.b16 %v1693
      %v1809 = vunpack.c.l.b16 %v1694
      %v1810 = vunpack.c.l.b16 %v1695
      %v1811 = vunpack.c.l.b16 %v1696
      %v1812 = vunpack.c.l.b16 %v1697
      %v1813 = vunpack.c.l.b16 %v1698
      %v1814 = vunpack.c.l.b16 %v1699
      %v1815 = vunpack.c.l.b16 %v1700
      %v1816 = vunpack.c.l.b16 %v1701
      %v1817 = vunpack.c.l.b16 %v1702
      %v1818 = vunpack.c.l.b16 %v1703
      %v1819 = vunpack.c.l.b16 %v1704
      %v1820 = vunpack.c.l.b16 %v1705
      %v1821 = vunpack.c.l.b16 %v1706
      %v1822 = vunpack.c.l.b16 %v1707
      %v1823 = vunpack.c.l.b16 %v1708
      %v1824 = vpack.c.b16 %v1808, %v1807
      %v1825 = vpack.c.b16 %v1810, %v1809
      %v1826 = vpack.c.b16 %v1812, %v1811
      %v1827 = vpack.c.b16 %v1814, %v1813
      %v1828 = vpack.c.b16 %v1816, %v1815
      %v1829 = vpack.c.b16 %v1818, %v1817
      %v1830 = vpack.c.b16 %v1820, %v1819
      %v1831 = vpack.c.b16 %v1822, %v1821
      %v1832 = vpack.c.b16 %v1823, %v1823
      %v1842 = vsel %vm405, %v1764, 0
      %v1845 = vsel %vm405, %v1766, 0
      %v1848 = vsel %vm405, %v1768, 0
      %v1851 = vsel %vm405, %v1770, 0
      %v1854 = vsel %vm405, %v1772, 0
      %v1857 = vsel %vm405, %v1774, 0
      %v1860 = vsel %vm405, %v1776, 0
      %v1863 = vsel %vm405, %v1778, 0
      %v1866 = vsel %vm405, %v1780, 0
      %v1869 = vsel %vm433, %v1832, 0
      %1871 = vmatprep.subr.bf16.mxu0 0
      %1872 = vmatpush1.bf16.msra.mxu0 %v1824
      %1873 = vmatprep.subr.bf16.mxu0 0
      %1874 = vmatpush1.bf16.msra.mxu0 %v1825
      %1875 = vmatprep.subr.bf16.mxu0 0
      %1876 = vmatpush1.bf16.msra.mxu0 %v1826
      %1877 = vmatprep.subr.bf16.mxu0 0
      %1878 = vmatpush1.bf16.msra.mxu0 %v1827
      %1879 = vmatprep.subr.bf16.mxu0 0
      %1880 = vmatpush1.bf16.msra.mxu0 %v1828
      %1881 = vmatprep.subr.bf16.mxu0 0
      %1882 = vmatpush1.bf16.msra.mxu0 %v1829
      %1883 = vmatprep.subr.bf16.mxu0 0
      %1884 = vmatpush1.bf16.msra.mxu0 %v1830
      %1885 = vmatprep.subr.bf16.mxu0 0
      %1886 = vmatpush1.bf16.msra.mxu0 %v1831
      %1887 = vmatprep.subr.bf16.mxu0 0
      %1888 = vmatpush1.bf16.msra.mxu0 %v1869
      %1889 = vmatprep.subr.bf16.mxu0 0
      %1890 = vmatpush1.bf16.msra.mxu0 0
      %1891 = vmatprep.subr.bf16.mxu0 0
      %1892 = vmatpush1.bf16.msra.mxu0 0
      %1893 = vmatprep.subr.bf16.mxu0 0
      %1894 = vmatpush1.bf16.msra.mxu0 0
      %1895 = vmatprep.subr.bf16.mxu0 0
      %1896 = vmatpush1.bf16.msra.mxu0 0
      %1897 = vmatprep.subr.bf16.mxu0 0
      %1898 = vmatpush1.bf16.msra.mxu0 0
      %1899 = vmatprep.subr.bf16.mxu0 0
      %1900 = vmatpush1.bf16.msra.mxu0 0
      %1901 = vmatprep.subr.bf16.mxu0 0
      %1902 = vmatpush1.bf16.msra.mxu0 0
      %1903 = vmatprep.mubr.bf16.mxu0 %v1842
      %1904 = vmatmul.mubr.bf16.gmra.mrb[0].mxu0 %v1763
      %v1905 = vpop.f32.mrb[0].mxu0
      %v1906 = vadd.f32 0.0, %v1905
      %v1907 = vpop.f32.mrb[0].mxu0
      %v1908 = vpop.f32.mrb[0].mxu0
      %v1909 = vadd.f32 0.0, %v1908
      %v1910 = vpop.f32.mrb[0].mxu0
      %1911 = vmatprep.mubr.bf16.mxu0 %v1845
      %1912 = vmatmul.mubr.bf16.gmra.mrb[0].mxu0 %v1765
      %v1913 = vpop.f32.mrb[0].mxu0
      %v1914 = vadd.f32 0.0, %v1913
      %v1915 = vpop.f32.mrb[0].mxu0
      %v1916 = vpop.f32.mrb[0].mxu0
      %v1917 = vadd.f32 0.0, %v1916
      %v1918 = vpop.f32.mrb[0].mxu0
      %1919 = vmatprep.mubr.bf16.mxu0 %v1848
      %1920 = vmatmul.mubr.bf16.gmra.mrb[0].mxu0 %v1767
      %v1921 = vpop.f32.mrb[0].mxu0
      %v1922 = vadd.f32 0.0, %v1921
      %v1923 = vpop.f32.mrb[0].mxu0
      %v1924 = vpop.f32.mrb[0].mxu0
      %v1925 = vadd.f32 0.0, %v1924
      %v1926 = vpop.f32.mrb[0].mxu0
      %1927 = vmatprep.mubr.bf16.mxu0 %v1851
      %1928 = vmatmul.mubr.bf16.gmra.mrb[0].mxu0 %v1769
      %v1929 = vpop.f32.mrb[0].mxu0
      %v1930 = vadd.f32 0.0, %v1929
      %v1931 = vpop.f32.mrb[0].mxu0
      %v1932 = vpop.f32.mrb[0].mxu0
      %v1933 = vadd.f32 0.0, %v1932
      %v1934 = vpop.f32.mrb[0].mxu0
      %1935 = vmatprep.mubr.bf16.mxu0 %v1854
      %1936 = vmatmul.mubr.bf16.gmra.mrb[0].mxu0 %v1771
      %v1937 = vpop.f32.mrb[0].mxu0
      %v1938 = vadd.f32 0.0, %v1937
      %v1939 = vpop.f32.mrb[0].mxu0
      %v1940 = vpop.f32.mrb[0].mxu0
      %v1941 = vadd.f32 0.0, %v1940
      %v1942 = vpop.f32.mrb[0].mxu0
      %1943 = vmatprep.mubr.bf16.mxu0 %v1857
      %1944 = vmatmul.mubr.bf16.gmra.mrb[0].mxu0 %v1773
      %v1945 = vpop.f32.mrb[0].mxu0
      %v1946 = vadd.f32 0.0, %v1945
      %v1947 = vpop.f32.mrb[0].mxu0
      %v1948 = vpop.f32.mrb[0].mxu0
      %v1949 = vadd.f32 0.0, %v1948
      %v1950 = vpop.f32.mrb[0].mxu0
      %1951 = vmatprep.mubr.bf16.mxu0 %v1860
      %1952 = vmatmul.mubr.bf16.gmra.mrb[0].mxu0 %v1775
      %v1953 = vpop.f32.mrb[0].mxu0
      %v1954 = vadd.f32 0.0, %v1953
      %v1955 = vpop.f32.mrb[0].mxu0
      %v1956 = vpop.f32.mrb[0].mxu0
      %v1957 = vadd.f32 0.0, %v1956
      %v1958 = vpop.f32.mrb[0].mxu0
      %1959 = vmatprep.mubr.bf16.mxu0 %v1863
      %1960 = vmatmul.mubr.bf16.gmra.mrb[0].mxu0 %v1777
      %v1961 = vpop.f32.mrb[0].mxu0
      %v1962 = vadd.f32 0.0, %v1961
      %v1963 = vpop.f32.mrb[0].mxu0
      %v1964 = vpop.f32.mrb[0].mxu0
      %v1965 = vadd.f32 0.0, %v1964
      %v1966 = vpop.f32.mrb[0].mxu0
      %1967 = vmatprep.mubr.bf16.mxu0 %v1866
      %1968 = vmatmul.mubr.bf16.gmra.mrb[0].mxu0 %v1779
      %v1969 = vpop.f32.mrb[0].mxu0
      %v1970 = vadd.f32 0.0, %v1969
      %v1971 = vpop.f32.mrb[0].mxu0
      %v1972 = vpop.f32.mrb[0].mxu0
      %v1973 = vadd.f32 0.0, %v1972
      %v1974 = vpop.f32.mrb[0].mxu0
      %1975 = vdwg.mxu0
      %v1976 = vadd.f32 %v1646, %v1906
      %v1977 = vadd.f32 %v1647, %v1909
      %v1978 = vadd.f32 %v1648, %v1914
      %v1979 = vadd.f32 %v1649, %v1917
      %v1980 = vadd.f32 %v1650, %v1922
      %v1981 = vadd.f32 %v1651, %v1925
      %v1982 = vadd.f32 %v1652, %v1930
      %v1983 = vadd.f32 %v1653, %v1933
      %v1984 = vadd.f32 %v1654, %v1938
      %v1985 = vadd.f32 %v1655, %v1941
      %v1986 = vadd.f32 %v1656, %v1946
      %v1987 = vadd.f32 %v1657, %v1949
      %v1988 = vadd.f32 %v1658, %v1954
      %v1989 = vadd.f32 %v1659, %v1957
      %v1990 = vadd.f32 %v1660, %v1962
      %v1991 = vadd.f32 %v1661, %v1965
      %v1992 = vadd.f32 %v1662, %v1970
      %v1993 = vadd.f32 %v1663, %v1973
      %s1994 = scalar_lea.vmem %s1, 476
      %v1995 = vld [vmem:[%s1994] sm:$0xf]
      %v1996 = vld [vmem:[%s1994 + $0x4] sm:$0xf]
      %v1997 = vld [vmem:[%s1994 + $0x8] sm:$0xf]
      %v1998 = vld [vmem:[%s1994 + $0xc] sm:$0xf]
      %v1999 = vld [vmem:[%s1994 + $0x10] sm:$0xf]
      %v2000 = vld [vmem:[%s1994 + $0x14] sm:$0xf]
      %v2001 = vld [vmem:[%s1994 + $0x18] sm:$0xf]
      %v2002 = vld [vmem:[%s1994 + $0x1c] sm:$0xf]
      %v2003 = vld [vmem:[%s1994 + $0x20] sm:$0xf]
      %v2004 = vld [vmem:[%s1994 + $0x24] sm:$0xf]
      %v2005 = vld [vmem:[%s1994 + $0x28] sm:$0xf]
      %v2006 = vld [vmem:[%s1994 + $0x2c] sm:$0xf]
      %v2007 = vld [vmem:[%s1994 + $0x30] sm:$0xf]
      %v2008 = vld [vmem:[%s1994 + $0x34] sm:$0xf]
      %v2009 = vld [vmem:[%s1994 + $0x38] sm:$0xf]
      %v2010 = vld [vmem:[%s1994 + $0x3c] sm:$0xf]
      %v2011 = vld [vmem:[%s1994 + $0x40] sm:$0x3]
      %v2014 = vunpack.c.l.b16 %v1687
      %v2015 = vunpack.c.h.b16 %v1687
      %v2016 = vunpack.c.l.b16 %v1688
      %v2017 = vunpack.c.h.b16 %v1688
      %v2018 = vpack.c.b16 %v2016, %v2014
      %v2019 = vpack.c.b16 %v2017, %v2015
      %v2038 = vunpack.c.l.b16 %v1995
      %v2039 = vunpack.c.l.b16 %v1996
      %v2040 = vunpack.c.l.b16 %v1997
      %v2041 = vunpack.c.l.b16 %v1998
      %v2042 = vunpack.c.l.b16 %v1999
      %v2043 = vunpack.c.l.b16 %v2000
      %v2044 = vunpack.c.l.b16 %v2001
      %v2045 = vunpack.c.l.b16 %v2002
      %v2046 = vunpack.c.l.b16 %v2003
      %v2047 = vunpack.c.l.b16 %v2004
      %v2048 = vunpack.c.l.b16 %v2005
      %v2049 = vunpack.c.l.b16 %v2006
      %v2050 = vunpack.c.l.b16 %v2007
      %v2051 = vunpack.c.l.b16 %v2008
      %v2052 = vunpack.c.l.b16 %v2009
      %v2053 = vunpack.c.l.b16 %v2010
      %v2054 = vunpack.c.l.b16 %v2011
      %v2055 = vpack.c.b16 %v2039, %v2038
      %v2056 = vpack.c.b16 %v2041, %v2040
      %v2057 = vpack.c.b16 %v2043, %v2042
      %v2058 = vpack.c.b16 %v2045, %v2044
      %v2059 = vpack.c.b16 %v2047, %v2046
      %v2060 = vpack.c.b16 %v2049, %v2048
      %v2061 = vpack.c.b16 %v2051, %v2050
      %v2062 = vpack.c.b16 %v2053, %v2052
      %v2063 = vpack.c.b16 %v2054, %v2054
      %v2073 = vsel %vm405, %v2019, 0
      %v2076 = vsel %vm433, %v2063, 0
      %2078 = vmatprep.subr.bf16.mxu0 0
      %2079 = vmatpush1.bf16.msra.mxu0 %v2055
      %2080 = vmatprep.subr.bf16.mxu0 0
      %2081 = vmatpush1.bf16.msra.mxu0 %v2056
      %2082 = vmatprep.subr.bf16.mxu0 0
      %2083 = vmatpush1.bf16.msra.mxu0 %v2057
      %2084 = vmatprep.subr.bf16.mxu0 0
      %2085 = vmatpush1.bf16.msra.mxu0 %v2058
      %2086 = vmatprep.subr.bf16.mxu0 0
      %2087 = vmatpush1.bf16.msra.mxu0 %v2059
      %2088 = vmatprep.subr.bf16.mxu0 0
      %2089 = vmatpush1.bf16.msra.mxu0 %v2060
      %2090 = vmatprep.subr.bf16.mxu0 0
      %2091 = vmatpush1.bf16.msra.mxu0 %v2061
      %2092 = vmatprep.subr.bf16.mxu0 0
      %2093 = vmatpush1.bf16.msra.mxu0 %v2062
      %2094 = vmatprep.subr.bf16.mxu0 0
      %2095 = vmatpush1.bf16.msra.mxu0 %v2076
      %2096 = vmatprep.subr.bf16.mxu0 0
      %2097 = vmatpush1.bf16.msra.mxu0 0
      %2098 = vmatprep.subr.bf16.mxu0 0
      %2099 = vmatpush1.bf16.msra.mxu0 0
      %2100 = vmatprep.subr.bf16.mxu0 0
      %2101 = vmatpush1.bf16.msra.mxu0 0
      %2102 = vmatprep.subr.bf16.mxu0 0
      %2103 = vmatpush1.bf16.msra.mxu0 0
      %2104 = vmatprep.subr.bf16.mxu0 0
      %2105 = vmatpush1.bf16.msra.mxu0 0
      %2106 = vmatprep.subr.bf16.mxu0 0
      %2107 = vmatpush1.bf16.msra.mxu0 0
      %2108 = vmatprep.subr.bf16.mxu0 0
      %2109 = vmatpush1.bf16.msra.mxu0 0
      %2110 = vmatprep.mubr.bf16.mxu0 %v1845
      %2111 = vmatmul.mubr.bf16.gmra.mrb[0].mxu0 %v1765
      %v2112 = vpop.f32.mrb[0].mxu0
      %v2113 = vadd.f32 0.0, %v2112
      %v2114 = vpop.f32.mrb[0].mxu0
      %v2115 = vpop.f32.mrb[0].mxu0
      %v2116 = vadd.f32 0.0, %v2115
      %v2117 = vpop.f32.mrb[0].mxu0
      %2118 = vmatprep.mubr.bf16.mxu0 %v1848
      %2119 = vmatmul.mubr.bf16.gmra.mrb[0].mxu0 %v1767
      %v2120 = vpop.f32.mrb[0].mxu0
      %v2121 = vadd.f32 0.0, %v2120
      %v2122 = vpop.f32.mrb[0].mxu0
      %v2123 = vpop.f32.mrb[0].mxu0
      %v2124 = vadd.f32 0.0, %v2123
      %v2125 = vpop.f32.mrb[0].mxu0
      %2126 = vmatprep.mubr.bf16.mxu0 %v1851
      %2127 = vmatmul.mubr.bf16.gmra.mrb[0].mxu0 %v1769
      %v2128 = vpop.f32.mrb[0].mxu0
      %v2129 = vadd.f32 0.0, %v2128
      %v2130 = vpop.f32.mrb[0].mxu0
      %v2131 = vpop.f32.mrb[0].mxu0
      %v2132 = vadd.f32 0.0, %v2131
      %v2133 = vpop.f32.mrb[0].mxu0
      %2134 = vmatprep.mubr.bf16.mxu0 %v1854
      %2135 = vmatmul.mubr.bf16.gmra.mrb[0].mxu0 %v1771
      %v2136 = vpop.f32.mrb[0].mxu0
      %v2137 = vadd.f32 0.0, %v2136
      %v2138 = vpop.f32.mrb[0].mxu0
      %v2139 = vpop.f32.mrb[0].mxu0
      %v2140 = vadd.f32 0.0, %v2139
      %v2141 = vpop.f32.mrb[0].mxu0
      %2142 = vmatprep.mubr.bf16.mxu0 %v1857
      %2143 = vmatmul.mubr.bf16.gmra.mrb[0].mxu0 %v1773
      %v2144 = vpop.f32.mrb[0].mxu0
      %v2145 = vadd.f32 0.0, %v2144
      %v2146 = vpop.f32.mrb[0].mxu0
      %v2147 = vpop.f32.mrb[0].mxu0
      %v2148 = vadd.f32 0.0, %v2147
      %v2149 = vpop.f32.mrb[0].mxu0
      %2150 = vmatprep.mubr.bf16.mxu0 %v1860
      %2151 = vmatmul.mubr.bf16.gmra.mrb[0].mxu0 %v1775
      %v2152 = vpop.f32.mrb[0].mxu0
      %v2153 = vadd.f32 0.0, %v2152
      %v2154 = vpop.f32.mrb[0].mxu0
      %v2155 = vpop.f32.mrb[0].mxu0
      %v2156 = vadd.f32 0.0, %v2155
      %v2157 = vpop.f32.mrb[0].mxu0
      %2158 = vmatprep.mubr.bf16.mxu0 %v1863
      %2159 = vmatmul.mubr.bf16.gmra.mrb[0].mxu0 %v1777
      %v2160 = vpop.f32.mrb[0].mxu0
      %v2161 = vadd.f32 0.0, %v2160
      %v2162 = vpop.f32.mrb[0].mxu0
      %v2163 = vpop.f32.mrb[0].mxu0
      %v2164 = vadd.f32 0.0, %v2163
      %v2165 = vpop.f32.mrb[0].mxu0
      %2166 = vmatprep.mubr.bf16.mxu0 %v1866
      %2167 = vmatmul.mubr.bf16.gmra.mrb[0].mxu0 %v1779
      %v2168 = vpop.f32.mrb[0].mxu0
      %v2169 = vadd.f32 0.0, %v2168
      %v2170 = vpop.f32.mrb[0].mxu0
      %v2171 = vpop.f32.mrb[0].mxu0
      %v2172 = vadd.f32 0.0, %v2171
      %v2173 = vpop.f32.mrb[0].mxu0
      %2174 = vmatprep.mubr.bf16.mxu0 %v2073
      %2175 = vmatmul.mubr.bf16.gmra.mrb[0].mxu0 %v2018
      %v2176 = vpop.f32.mrb[0].mxu0
      %v2177 = vadd.f32 0.0, %v2176
      %v2178 = vpop.f32.mrb[0].mxu0
      %v2179 = vpop.f32.mrb[0].mxu0
      %v2180 = vadd.f32 0.0, %v2179
      %v2181 = vpop.f32.mrb[0].mxu0
      %2182 = vdwg.mxu0
      %v2183 = vadd.f32 %v1976, %v2113
      %v2184 = vadd.f32 %v1977, %v2116
      %v2185 = vadd.f32 %v1978, %v2121
      %v2186 = vadd.f32 %v1979, %v2124
      %v2187 = vadd.f32 %v1980, %v2129
      %v2188 = vadd.f32 %v1981, %v2132
      %v2189 = vadd.f32 %v1982, %v2137
      %v2190 = vadd.f32 %v1983, %v2140
      %v2191 = vadd.f32 %v1984, %v2145
      %v2192 = vadd.f32 %v1985, %v2148
      %v2193 = vadd.f32 %v1986, %v2153
      %v2194 = vadd.f32 %v1987, %v2156
      %v2195 = vadd.f32 %v1988, %v2161
      %v2196 = vadd.f32 %v1989, %v2164
      %v2197 = vadd.f32 %v1990, %v2169
      %v2198 = vadd.f32 %v1991, %v2172
      %v2199 = vadd.f32 %v1992, %v2177
      %v2200 = vadd.f32 %v1993, %v2180
      %s2201 = scalar_lea.vmem %s1, 544
      %v2202 = vld [vmem:[%s2201] sm:$0xf]
      %v2203 = vld [vmem:[%s2201 + $0x4] sm:$0xf]
      %v2204 = vld [vmem:[%s2201 + $0x8] sm:$0xf]
      %v2205 = vld [vmem:[%s2201 + $0xc] sm:$0xf]
      %v2206 = vld [vmem:[%s2201 + $0x10] sm:$0xf]
      %v2207 = vld [vmem:[%s2201 + $0x14] sm:$0xf]
      %v2208 = vld [vmem:[%s2201 + $0x18] sm:$0xf]
      %v2209 = vld [vmem:[%s2201 + $0x1c] sm:$0xf]
      %v2210 = vld [vmem:[%s2201 + $0x20] sm:$0xf]
      %v2211 = vld [vmem:[%s2201 + $0x24] sm:$0xf]
      %v2212 = vld [vmem:[%s2201 + $0x28] sm:$0xf]
      %v2213 = vld [vmem:[%s2201 + $0x2c] sm:$0xf]
      %v2214 = vld [vmem:[%s2201 + $0x30] sm:$0xf]
      %v2215 = vld [vmem:[%s2201 + $0x34] sm:$0xf]
      %v2216 = vld [vmem:[%s2201 + $0x38] sm:$0xf]
      %v2217 = vld [vmem:[%s2201 + $0x3c] sm:$0xf]
      %v2218 = vld [vmem:[%s2201 + $0x40] sm:$0x3]
      %v2221 = vunpack.c.l.b16 %v1689
      %v2222 = vunpack.c.h.b16 %v1689
      %v2223 = vunpack.c.l.b16 %v1690
      %v2224 = vunpack.c.h.b16 %v1690
      %v2225 = vpack.c.b16 %v2223, %v2221
      %v2226 = vpack.c.b16 %v2224, %v2222
      %v2245 = vunpack.c.l.b16 %v2202
      %v2246 = vunpack.c.l.b16 %v2203
      %v2247 = vunpack.c.l.b16 %v2204
      %v2248 = vunpack.c.l.b16 %v2205
      %v2249 = vunpack.c.l.b16 %v2206
      %v2250 = vunpack.c.l.b16 %v2207
      %v2251 = vunpack.c.l.b16 %v2208
      %v2252 = vunpack.c.l.b16 %v2209
      %v2253 = vunpack.c.l.b16 %v2210
      %v2254 = vunpack.c.l.b16 %v2211
      %v2255 = vunpack.c.l.b16 %v2212
      %v2256 = vunpack.c.l.b16 %v2213
      %v2257 = vunpack.c.l.b16 %v2214
      %v2258 = vunpack.c.l.b16 %v2215
      %v2259 = vunpack.c.l.b16 %v2216
      %v2260 = vunpack.c.l.b16 %v2217
      %v2261 = vunpack.c.l.b16 %v2218
      %v2262 = vpack.c.b16 %v2246, %v2245
      %v2263 = vpack.c.b16 %v2248, %v2247
      %v2264 = vpack.c.b16 %v2250, %v2249
      %v2265 = vpack.c.b16 %v2252, %v2251
      %v2266 = vpack.c.b16 %v2254, %v2253
      %v2267 = vpack.c.b16 %v2256, %v2255
      %v2268 = vpack.c.b16 %v2258, %v2257
      %v2269 = vpack.c.b16 %v2260, %v2259
      %v2270 = vpack.c.b16 %v2261, %v2261
      %v2280 = vsel %vm405, %v2226, 0
      %v2283 = vsel %vm433, %v2270, 0
      %2285 = vmatprep.subr.bf16.mxu0 0
      %2286 = vmatpush1.bf16.msra.mxu0 %v2262
      %2287 = vmatprep.subr.bf16.mxu0 0
      %2288 = vmatpush1.bf16.msra.mxu0 %v2263
      %2289 = vmatprep.subr.bf16.mxu0 0
      %2290 = vmatpush1.bf16.msra.mxu0 %v2264
      %2291 = vmatprep.subr.bf16.mxu0 0
      %2292 = vmatpush1.bf16.msra.mxu0 %v2265
      %2293 = vmatprep.subr.bf16.mxu0 0
      %2294 = vmatpush1.bf16.msra.mxu0 %v2266
      %2295 = vmatprep.subr.bf16.mxu0 0
      %2296 = vmatpush1.bf16.msra.mxu0 %v2267
      %2297 = vmatprep.subr.bf16.mxu0 0
      %2298 = vmatpush1.bf16.msra.mxu0 %v2268
      %2299 = vmatprep.subr.bf16.mxu0 0
      %2300 = vmatpush1.bf16.msra.mxu0 %v2269
      %2301 = vmatprep.subr.bf16.mxu0 0
      %2302 = vmatpush1.bf16.msra.mxu0 %v2283
      %2303 = vmatprep.subr.bf16.mxu0 0
      %2304 = vmatpush1.bf16.msra.mxu0 0
      %2305 = vmatprep.subr.bf16.mxu0 0
      %2306 = vmatpush1.bf16.msra.mxu0 0
      %2307 = vmatprep.subr.bf16.mxu0 0
      %2308 = vmatpush1.bf16.msra.mxu0 0
      %2309 = vmatprep.subr.bf16.mxu0 0
      %2310 = vmatpush1.bf16.msra.mxu0 0
      %2311 = vmatprep.subr.bf16.mxu0 0
      %2312 = vmatpush1.bf16.msra.mxu0 0
      %2313 = vmatprep.subr.bf16.mxu0 0
      %2314 = vmatpush1.bf16.msra.mxu0 0
      %2315 = vmatprep.subr.bf16.mxu0 0
      %2316 = vmatpush1.bf16.msra.mxu0 0
      %2317 = vmatprep.mubr.bf16.mxu0 %v1848
      %2318 = vmatmul.mubr.bf16.gmra.mrb[0].mxu0 %v1767
      %v2319 = vpop.f32.mrb[0].mxu0
      %v2320 = vadd.f32 0.0, %v2319
      %v2321 = vpop.f32.mrb[0].mxu0
      %v2322 = vpop.f32.mrb[0].mxu0
      %v2323 = vadd.f32 0.0, %v2322
      %v2324 = vpop.f32.mrb[0].mxu0
      %2325 = vmatprep.mubr.bf16.mxu0 %v1851
      %2326 = vmatmul.mubr.bf16.gmra.mrb[0].mxu0 %v1769
      %v2327 = vpop.f32.mrb[0].mxu0
      %v2328 = vadd.f32 0.0, %v2327
      %v2329 = vpop.f32.mrb[0].mxu0
      %v2330 = vpop.f32.mrb[0].mxu0
      %v2331 = vadd.f32 0.0, %v2330
      %v2332 = vpop.f32.mrb[0].mxu0
      %2333 = vmatprep.mubr.bf16.mxu0 %v1854
      %2334 = vmatmul.mubr.bf16.gmra.mrb[0].mxu0 %v1771
      %v2335 = vpop.f32.mrb[0].mxu0
      %v2336 = vadd.f32 0.0, %v2335
      %v2337 = vpop.f32.mrb[0].mxu0
      %v2338 = vpop.f32.mrb[0].mxu0
      %v2339 = vadd.f32 0.0, %v2338
      %v2340 = vpop.f32.mrb[0].mxu0
      %2341 = vmatprep.mubr.bf16.mxu0 %v1857
      %2342 = vmatmul.mubr.bf16.gmra.mrb[0].mxu0 %v1773
      %v2343 = vpop.f32.mrb[0].mxu0
      %v2344 = vadd.f32 0.0, %v2343
      %v2345 = vpop.f32.mrb[0].mxu0
      %v2346 = vpop.f32.mrb[0].mxu0
      %v2347 = vadd.f32 0.0, %v2346
      %v2348 = vpop.f32.mrb[0].mxu0
      %2349 = vmatprep.mubr.bf16.mxu0 %v1860
      %2350 = vmatmul.mubr.bf16.gmra.mrb[0].mxu0 %v1775
      %v2351 = vpop.f32.mrb[0].mxu0
      %v2352 = vadd.f32 0.0, %v2351
      %v2353 = vpop.f32.mrb[0].mxu0
      %v2354 = vpop.f32.mrb[0].mxu0
      %v2355 = vadd.f32 0.0, %v2354
      %v2356 = vpop.f32.mrb[0].mxu0
      %2357 = vmatprep.mubr.bf16.mxu0 %v1863
      %2358 = vmatmul.mubr.bf16.gmra.mrb[0].mxu0 %v1777
      %v2359 = vpop.f32.mrb[0].mxu0
      %v2360 = vadd.f32 0.0, %v2359
      %v2361 = vpop.f32.mrb[0].mxu0
      %v2362 = vpop.f32.mrb[0].mxu0
      %v2363 = vadd.f32 0.0, %v2362
      %v2364 = vpop.f32.mrb[0].mxu0
      %2365 = vmatprep.mubr.bf16.mxu0 %v1866
      %2366 = vmatmul.mubr.bf16.gmra.mrb[0].mxu0 %v1779
      %v2367 = vpop.f32.mrb[0].mxu0
      %v2368 = vadd.f32 0.0, %v2367
      %v2369 = vpop.f32.mrb[0].mxu0
      %v2370 = vpop.f32.mrb[0].mxu0
      %v2371 = vadd.f32 0.0, %v2370
      %v2372 = vpop.f32.mrb[0].mxu0
      %2373 = vmatprep.mubr.bf16.mxu0 %v2073
      %2374 = vmatmul.mubr.bf16.gmra.mrb[0].mxu0 %v2018
      %v2375 = vpop.f32.mrb[0].mxu0
      %v2376 = vadd.f32 0.0, %v2375
      %v2377 = vpop.f32.mrb[0].mxu0
      %v2378 = vpop.f32.mrb[0].mxu0
      %v2379 = vadd.f32 0.0, %v2378
      %v2380 = vpop.f32.mrb[0].mxu0
      %2381 = vmatprep.mubr.bf16.mxu0 %v2280
      %2382 = vmatmul.mubr.bf16.gmra.mrb[0].mxu0 %v2225
      %v2383 = vpop.f32.mrb[0].mxu0
      %v2384 = vadd.f32 0.0, %v2383
      %v2385 = vpop.f32.mrb[0].mxu0
      %v2386 = vpop.f32.mrb[0].mxu0
      %v2387 = vadd.f32 0.0, %v2386
      %v2388 = vpop.f32.mrb[0].mxu0
      %2389 = vdwg.mxu0
      %v2390 = vadd.f32 %v2183, %v2320
      %v2391 = vadd.f32 %v2184, %v2323
      %v2392 = vadd.f32 %v2185, %v2328
      %v2393 = vadd.f32 %v2186, %v2331
      %v2394 = vadd.f32 %v2187, %v2336
      %v2395 = vadd.f32 %v2188, %v2339
      %v2396 = vadd.f32 %v2189, %v2344
      %v2397 = vadd.f32 %v2190, %v2347
      %v2398 = vadd.f32 %v2191, %v2352
      %v2399 = vadd.f32 %v2192, %v2355
      %v2400 = vadd.f32 %v2193, %v2360
      %v2401 = vadd.f32 %v2194, %v2363
      %v2402 = vadd.f32 %v2195, %v2368
      %v2403 = vadd.f32 %v2196, %v2371
      %v2404 = vadd.f32 %v2197, %v2376
      %v2405 = vadd.f32 %v2198, %v2379
      %v2406 = vadd.f32 %v2199, %v2384
      %v2407 = vadd.f32 %v2200, %v2387
      %s2408 = sadd.s32 %s20, 1
      %s2409 = smul.u32 %s2408, 6
      %s2410 = sadd.s32 %s2409, %s21
      %s2411 = smul.u32 %s2410, 44
      %s2412 = smul.addr %s2411, 4
      %s2413 = scalar_lea.vmem %s196, %s2412
      %v2414 = vld [vmem:[%s2413] sm:$0xff]
      %v2415 = vld [vmem:[%s2413 + $0x8] sm:$0xff]
      %v2416 = vld [vmem:[%s2413 + $0x10] sm:$0xff]
      %v2417 = vld [vmem:[%s2413 + $0x18] sm:$0xff]
      %v2418 = vld [vmem:[%s2413 + $0x20] sm:$0xff]
      %v2419 = vld [vmem:[%s2413 + $0x28] sm:$0xff]
      %v2420 = vld [vmem:[%s2413 + $0x30] sm:$0xff]
      %v2421 = vld [vmem:[%s2413 + $0x38] sm:$0xff]
      %v2422 = vld [vmem:[%s2413 + $0x40] sm:$0xff]
      %v2423 = vld [vmem:[%s2413 + $0x48] sm:$0xff]
      %v2424 = vld [vmem:[%s2413 + $0x50] sm:$0xff]
      %v2425 = vld [vmem:[%s2413 + $0x58] sm:$0xff]
      %v2426 = vld [vmem:[%s2413 + $0x60] sm:$0xff]
      %v2427 = vld [vmem:[%s2413 + $0x68] sm:$0xff]
      %v2428 = vld [vmem:[%s2413 + $0x70] sm:$0xff]
      %v2429 = vld [vmem:[%s2413 + $0x78] sm:$0xff]
      %v2430 = vld [vmem:[%s2413 + $0x80] sm:$0xff]
      %v2431 = vld [vmem:[%s2413 + $0x88] sm:$0xff]
      %v2432 = vld [vmem:[%s2413 + $0x90] sm:$0xff]
      %v2433 = vld [vmem:[%s2413 + $0x98] sm:$0xff]
      %v2434 = vld [vmem:[%s2413 + $0xa0] sm:$0xff]
      %v2435 = vld [vmem:[%s2413 + $0xa8] sm:$0xff]
      %s2436 = scalar_lea.vmem %s1, 612
      %v2437 = vld [vmem:[%s2436] sm:$0xf]
      %v2438 = vld [vmem:[%s2436 + $0x4] sm:$0xf]
      %v2439 = vld [vmem:[%s2436 + $0x8] sm:$0xf]
      %v2440 = vld [vmem:[%s2436 + $0xc] sm:$0xf]
      %v2441 = vld [vmem:[%s2436 + $0x10] sm:$0xf]
      %v2442 = vld [vmem:[%s2436 + $0x14] sm:$0xf]
      %v2443 = vld [vmem:[%s2436 + $0x18] sm:$0xf]
      %v2444 = vld [vmem:[%s2436 + $0x1c] sm:$0xf]
      %v2445 = vld [vmem:[%s2436 + $0x20] sm:$0xf]
      %v2446 = vld [vmem:[%s2436 + $0x24] sm:$0xf]
      %v2447 = vld [vmem:[%s2436 + $0x28] sm:$0xf]
      %v2448 = vld [vmem:[%s2436 + $0x2c] sm:$0xf]
      %v2449 = vld [vmem:[%s2436 + $0x30] sm:$0xf]
      %v2450 = vld [vmem:[%s2436 + $0x34] sm:$0xf]
      %v2451 = vld [vmem:[%s2436 + $0x38] sm:$0xf]
      %v2452 = vld [vmem:[%s2436 + $0x3c] sm:$0xf]
      %v2453 = vld [vmem:[%s2436 + $0x40] sm:$0x3]
      %v2472 = vunpack.c.l.b16 %v2414
      %v2473 = vunpack.c.h.b16 %v2414
      %v2474 = vunpack.c.l.b16 %v2415
      %v2475 = vunpack.c.h.b16 %v2415
      %v2476 = vunpack.c.l.b16 %v2416
      %v2477 = vunpack.c.h.b16 %v2416
      %v2478 = vunpack.c.l.b16 %v2417
      %v2479 = vunpack.c.h.b16 %v2417
      %v2480 = vunpack.c.l.b16 %v2418
      %v2481 = vunpack.c.h.b16 %v2418
      %v2482 = vunpack.c.l.b16 %v2419
      %v2483 = vunpack.c.h.b16 %v2419
      %v2484 = vunpack.c.l.b16 %v2420
      %v2485 = vunpack.c.h.b16 %v2420
      %v2486 = vunpack.c.l.b16 %v2421
      %v2487 = vunpack.c.h.b16 %v2421
      %v2488 = vunpack.c.l.b16 %v2422
      %v2489 = vunpack.c.h.b16 %v2422
      %v2490 = vunpack.c.l.b16 %v2423
      %v2491 = vunpack.c.h.b16 %v2423
      %v2492 = vunpack.c.l.b16 %v2424
      %v2493 = vunpack.c.h.b16 %v2424
      %v2494 = vunpack.c.l.b16 %v2425
      %v2495 = vunpack.c.h.b16 %v2425
      %v2496 = vunpack.c.l.b16 %v2426
      %v2497 = vunpack.c.h.b16 %v2426
      %v2498 = vunpack.c.l.b16 %v2427
      %v2499 = vunpack.c.h.b16 %v2427
      %v2500 = vunpack.c.l.b16 %v2428
      %v2501 = vunpack.c.h.b16 %v2428
      %v2502 = vunpack.c.l.b16 %v2429
      %v2503 = vunpack.c.h.b16 %v2429
      %v2504 = vunpack.c.l.b16 %v2430
      %v2505 = vunpack.c.h.b16 %v2430
      %v2506 = vunpack.c.l.b16 %v2431
      %v2507 = vunpack.c.h.b16 %v2431
      %v2508 = vpack.c.b16 %v2474, %v2472
      %v2509 = vpack.c.b16 %v2475, %v2473
      %v2510 = vpack.c.b16 %v2478, %v2476
      %v2511 = vpack.c.b16 %v2479, %v2477
      %v2512 = vpack.c.b16 %v2482, %v2480
      %v2513 = vpack.c.b16 %v2483, %v2481
      %v2514 = vpack.c.b16 %v2486, %v2484
      %v2515 = vpack.c.b16 %v2487, %v2485
      %v2516 = vpack.c.b16 %v2490, %v2488
      %v2517 = vpack.c.b16 %v2491, %v2489
      %v2518 = vpack.c.b16 %v2494, %v2492
      %v2519 = vpack.c.b16 %v2495, %v2493
      %v2520 = vpack.c.b16 %v2498, %v2496
      %v2521 = vpack.c.b16 %v2499, %v2497
      %v2522 = vpack.c.b16 %v2502, %v2500
      %v2523 = vpack.c.b16 %v2503, %v2501
      %v2524 = vpack.c.b16 %v2506, %v2504
      %v2525 = vpack.c.b16 %v2507, %v2505
      %v2552 = vunpack.c.l.b16 %v2437
      %v2553 = vunpack.c.l.b16 %v2438
      %v2554 = vunpack.c.l.b16 %v2439
      %v2555 = vunpack.c.l.b16 %v2440
      %v2556 = vunpack.c.l.b16 %v2441
      %v2557 = vunpack.c.l.b16 %v2442
      %v2558 = vunpack.c.l.b16 %v2443
      %v2559 = vunpack.c.l.b16 %v2444
      %v2560 = vunpack.c.l.b16 %v2445
      %v2561 = vunpack.c.l.b16 %v2446
      %v2562 = vunpack.c.l.b16 %v2447
      %v2563 = vunpack.c.l.b16 %v2448
      %v2564 = vunpack.c.l.b16 %v2449
      %v2565 = vunpack.c.l.b16 %v2450
      %v2566 = vunpack.c.l.b16 %v2451
      %v2567 = vunpack.c.l.b16 %v2452
      %v2568 = vunpack.c.l.b16 %v2453
      %v2569 = vpack.c.b16 %v2553, %v2552
      %v2570 = vpack.c.b16 %v2555, %v2554
      %v2571 = vpack.c.b16 %v2557, %v2556
      %v2572 = vpack.c.b16 %v2559, %v2558
      %v2573 = vpack.c.b16 %v2561, %v2560
      %v2574 = vpack.c.b16 %v2563, %v2562
      %v2575 = vpack.c.b16 %v2565, %v2564
      %v2576 = vpack.c.b16 %v2567, %v2566
      %v2577 = vpack.c.b16 %v2568, %v2568
      %v2587 = vsel %vm405, %v2509, 0
      %v2590 = vsel %vm405, %v2511, 0
      %v2593 = vsel %vm405, %v2513, 0
      %v2596 = vsel %vm405, %v2515, 0
      %v2599 = vsel %vm405, %v2517, 0
      %v2602 = vsel %vm405, %v2519, 0
      %v2605 = vsel %vm405, %v2521, 0
      %v2608 = vsel %vm405, %v2523, 0
      %v2611 = vsel %vm405, %v2525, 0
      %v2614 = vsel %vm433, %v2577, 0
      %2616 = vmatprep.subr.bf16.mxu0 0
      %2617 = vmatpush1.bf16.msra.mxu0 %v2569
      %2618 = vmatprep.subr.bf16.mxu0 0
      %2619 = vmatpush1.bf16.msra.mxu0 %v2570
      %2620 = vmatprep.subr.bf16.mxu0 0
      %2621 = vmatpush1.bf16.msra.mxu0 %v2571
      %2622 = vmatprep.subr.bf16.mxu0 0
      %2623 = vmatpush1.bf16.msra.mxu0 %v2572
      %2624 = vmatprep.subr.bf16.mxu0 0
      %2625 = vmatpush1.bf16.msra.mxu0 %v2573
      %2626 = vmatprep.subr.bf16.mxu0 0
      %2627 = vmatpush1.bf16.msra.mxu0 %v2574
      %2628 = vmatprep.subr.bf16.mxu0 0
      %2629 = vmatpush1.bf16.msra.mxu0 %v2575
      %2630 = vmatprep.subr.bf16.mxu0 0
      %2631 = vmatpush1.bf16.msra.mxu0 %v2576
      %2632 = vmatprep.subr.bf16.mxu0 0
      %2633 = vmatpush1.bf16.msra.mxu0 %v2614
      %2634 = vmatprep.subr.bf16.mxu0 0
      %2635 = vmatpush1.bf16.msra.mxu0 0
      %2636 = vmatprep.subr.bf16.mxu0 0
      %2637 = vmatpush1.bf16.msra.mxu0 0
      %2638 = vmatprep.subr.bf16.mxu0 0
      %2639 = vmatpush1.bf16.msra.mxu0 0
      %2640 = vmatprep.subr.bf16.mxu0 0
      %2641 = vmatpush1.bf16.msra.mxu0 0
      %2642 = vmatprep.subr.bf16.mxu0 0
      %2643 = vmatpush1.bf16.msra.mxu0 0
      %2644 = vmatprep.subr.bf16.mxu0 0
      %2645 = vmatpush1.bf16.msra.mxu0 0
      %2646 = vmatprep.subr.bf16.mxu0 0
      %2647 = vmatpush1.bf16.msra.mxu0 0
      %2648 = vmatprep.mubr.bf16.mxu0 %v2587
      %2649 = vmatmul.mubr.bf16.gmra.mrb[0].mxu0 %v2508
      %v2650 = vpop.f32.mrb[0].mxu0
      %v2651 = vadd.f32 0.0, %v2650
      %v2652 = vpop.f32.mrb[0].mxu0
      %v2653 = vpop.f32.mrb[0].mxu0
      %v2654 = vadd.f32 0.0, %v2653
      %v2655 = vpop.f32.mrb[0].mxu0
      %2656 = vmatprep.mubr.bf16.mxu0 %v2590
      %2657 = vmatmul.mubr.bf16.gmra.mrb[0].mxu0 %v2510
      %v2658 = vpop.f32.mrb[0].mxu0
      %v2659 = vadd.f32 0.0, %v2658
      %v2660 = vpop.f32.mrb[0].mxu0
      %v2661 = vpop.f32.mrb[0].mxu0
      %v2662 = vadd.f32 0.0, %v2661
      %v2663 = vpop.f32.mrb[0].mxu0
      %2664 = vmatprep.mubr.bf16.mxu0 %v2593
      %2665 = vmatmul.mubr.bf16.gmra.mrb[0].mxu0 %v2512
      %v2666 = vpop.f32.mrb[0].mxu0
      %v2667 = vadd.f32 0.0, %v2666
      %v2668 = vpop.f32.mrb[0].mxu0
      %v2669 = vpop.f32.mrb[0].mxu0
      %v2670 = vadd.f32 0.0, %v2669
      %v2671 = vpop.f32.mrb[0].mxu0
      %2672 = vmatprep.mubr.bf16.mxu0 %v2596
      %2673 = vmatmul.mubr.bf16.gmra.mrb[0].mxu0 %v2514
      %v2674 = vpop.f32.mrb[0].mxu0
      %v2675 = vadd.f32 0.0, %v2674
      %v2676 = vpop.f32.mrb[0].mxu0
      %v2677 = vpop.f32.mrb[0].mxu0
      %v2678 = vadd.f32 0.0, %v2677
      %v2679 = vpop.f32.mrb[0].mxu0
      %2680 = vmatprep.mubr.bf16.mxu0 %v2599
      %2681 = vmatmul.mubr.bf16.gmra.mrb[0].mxu0 %v2516
      %v2682 = vpop.f32.mrb[0].mxu0
      %v2683 = vadd.f32 0.0, %v2682
      %v2684 = vpop.f32.mrb[0].mxu0
      %v2685 = vpop.f32.mrb[0].mxu0
      %v2686 = vadd.f32 0.0, %v2685
      %v2687 = vpop.f32.mrb[0].mxu0
      %2688 = vmatprep.mubr.bf16.mxu0 %v2602
      %2689 = vmatmul.mubr.bf16.gmra.mrb[0].mxu0 %v2518
      %v2690 = vpop.f32.mrb[0].mxu0
      %v2691 = vadd.f32 0.0, %v2690
      %v2692 = vpop.f32.mrb[0].mxu0
      %v2693 = vpop.f32.mrb[0].mxu0
      %v2694 = vadd.f32 0.0, %v2693
      %v2695 = vpop.f32.mrb[0].mxu0
      %2696 = vmatprep.mubr.bf16.mxu0 %v2605
      %2697 = vmatmul.mubr.bf16.gmra.mrb[0].mxu0 %v2520
      %v2698 = vpop.f32.mrb[0].mxu0
      %v2699 = vadd.f32 0.0, %v2698
      %v2700 = vpop.f32.mrb[0].mxu0
      %v2701 = vpop.f32.mrb[0].mxu0
      %v2702 = vadd.f32 0.0, %v2701
      %v2703 = vpop.f32.mrb[0].mxu0
      %2704 = vmatprep.mubr.bf16.mxu0 %v2608
      %2705 = vmatmul.mubr.bf16.gmra.mrb[0].mxu0 %v2522
      %v2706 = vpop.f32.mrb[0].mxu0
      %v2707 = vadd.f32 0.0, %v2706
      %v2708 = vpop.f32.mrb[0].mxu0
      %v2709 = vpop.f32.mrb[0].mxu0
      %v2710 = vadd.f32 0.0, %v2709
      %v2711 = vpop.f32.mrb[0].mxu0
      %2712 = vmatprep.mubr.bf16.mxu0 %v2611
      %2713 = vmatmul.mubr.bf16.gmra.mrb[0].mxu0 %v2524
      %v2714 = vpop.f32.mrb[0].mxu0
      %v2715 = vadd.f32 0.0, %v2714
      %v2716 = vpop.f32.mrb[0].mxu0
      %v2717 = vpop.f32.mrb[0].mxu0
      %v2718 = vadd.f32 0.0, %v2717
      %v2719 = vpop.f32.mrb[0].mxu0
      %2720 = vdwg.mxu0
      %v2721 = vadd.f32 %v2390, %v2651
      %v2722 = vadd.f32 %v2391, %v2654
      %v2723 = vadd.f32 %v2392, %v2659
      %v2724 = vadd.f32 %v2393, %v2662
      %v2725 = vadd.f32 %v2394, %v2667
      %v2726 = vadd.f32 %v2395, %v2670
      %v2727 = vadd.f32 %v2396, %v2675
      %v2728 = vadd.f32 %v2397, %v2678
      %v2729 = vadd.f32 %v2398, %v2683
      %v2730 = vadd.f32 %v2399, %v2686
      %v2731 = vadd.f32 %v2400, %v2691
      %v2732 = vadd.f32 %v2401, %v2694
      %v2733 = vadd.f32 %v2402, %v2699
      %v2734 = vadd.f32 %v2403, %v2702
      %v2735 = vadd.f32 %v2404, %v2707
      %v2736 = vadd.f32 %v2405, %v2710
      %v2737 = vadd.f32 %v2406, %v2715
      %v2738 = vadd.f32 %v2407, %v2718
      %s2739 = scalar_lea.vmem %s1, 680
      %v2740 = vld [vmem:[%s2739] sm:$0xf]
      %v2741 = vld [vmem:[%s2739 + $0x4] sm:$0xf]
      %v2742 = vld [vmem:[%s2739 + $0x8] sm:$0xf]
      %v2743 = vld [vmem:[%s2739 + $0xc] sm:$0xf]
      %v2744 = vld [vmem:[%s2739 + $0x10] sm:$0xf]
      %v2745 = vld [vmem:[%s2739 + $0x14] sm:$0xf]
      %v2746 = vld [vmem:[%s2739 + $0x18] sm:$0xf]
      %v2747 = vld [vmem:[%s2739 + $0x1c] sm:$0xf]
      %v2748 = vld [vmem:[%s2739 + $0x20] sm:$0xf]
      %v2749 = vld [vmem:[%s2739 + $0x24] sm:$0xf]
      %v2750 = vld [vmem:[%s2739 + $0x28] sm:$0xf]
      %v2751 = vld [vmem:[%s2739 + $0x2c] sm:$0xf]
      %v2752 = vld [vmem:[%s2739 + $0x30] sm:$0xf]
      %v2753 = vld [vmem:[%s2739 + $0x34] sm:$0xf]
      %v2754 = vld [vmem:[%s2739 + $0x38] sm:$0xf]
      %v2755 = vld [vmem:[%s2739 + $0x3c] sm:$0xf]
      %v2756 = vld [vmem:[%s2739 + $0x40] sm:$0x3]
      %v2759 = vunpack.c.l.b16 %v2432
      %v2760 = vunpack.c.h.b16 %v2432
      %v2761 = vunpack.c.l.b16 %v2433
      %v2762 = vunpack.c.h.b16 %v2433
      %v2763 = vpack.c.b16 %v2761, %v2759
      %v2764 = vpack.c.b16 %v2762, %v2760
      %v2783 = vunpack.c.l.b16 %v2740
      %v2784 = vunpack.c.l.b16 %v2741
      %v2785 = vunpack.c.l.b16 %v2742
      %v2786 = vunpack.c.l.b16 %v2743
      %v2787 = vunpack.c.l.b16 %v2744
      %v2788 = vunpack.c.l.b16 %v2745
      %v2789 = vunpack.c.l.b16 %v2746
      %v2790 = vunpack.c.l.b16 %v2747
      %v2791 = vunpack.c.l.b16 %v2748
      %v2792 = vunpack.c.l.b16 %v2749
      %v2793 = vunpack.c.l.b16 %v2750
      %v2794 = vunpack.c.l.b16 %v2751
      %v2795 = vunpack.c.l.b16 %v2752
      %v2796 = vunpack.c.l.b16 %v2753
      %v2797 = vunpack.c.l.b16 %v2754
      %v2798 = vunpack.c.l.b16 %v2755
      %v2799 = vunpack.c.l.b16 %v2756
      %v2800 = vpack.c.b16 %v2784, %v2783
      %v2801 = vpack.c.b16 %v2786, %v2785
      %v2802 = vpack.c.b16 %v2788, %v2787
      %v2803 = vpack.c.b16 %v2790, %v2789
      %v2804 = vpack.c.b16 %v2792, %v2791
      %v2805 = vpack.c.b16 %v2794, %v2793
      %v2806 = vpack.c.b16 %v2796, %v2795
      %v2807 = vpack.c.b16 %v2798, %v2797
      %v2808 = vpack.c.b16 %v2799, %v2799
      %v2818 = vsel %vm405, %v2764, 0
      %v2821 = vsel %vm433, %v2808, 0
      %2823 = vmatprep.subr.bf16.mxu0 0
      %2824 = vmatpush1.bf16.msra.mxu0 %v2800
      %2825 = vmatprep.subr.bf16.mxu0 0
      %2826 = vmatpush1.bf16.msra.mxu0 %v2801
      %2827 = vmatprep.subr.bf16.mxu0 0
      %2828 = vmatpush1.bf16.msra.mxu0 %v2802
      %2829 = vmatprep.subr.bf16.mxu0 0
      %2830 = vmatpush1.bf16.msra.mxu0 %v2803
      %2831 = vmatprep.subr.bf16.mxu0 0
      %2832 = vmatpush1.bf16.msra.mxu0 %v2804
      %2833 = vmatprep.subr.bf16.mxu0 0
      %2834 = vmatpush1.bf16.msra.mxu0 %v2805
      %2835 = vmatprep.subr.bf16.mxu0 0
      %2836 = vmatpush1.bf16.msra.mxu0 %v2806
      %2837 = vmatprep.subr.bf16.mxu0 0
      %2838 = vmatpush1.bf16.msra.mxu0 %v2807
      %2839 = vmatprep.subr.bf16.mxu0 0
      %2840 = vmatpush1.bf16.msra.mxu0 %v2821
      %2841 = vmatprep.subr.bf16.mxu0 0
      %2842 = vmatpush1.bf16.msra.mxu0 0
      %2843 = vmatprep.subr.bf16.mxu0 0
      %2844 = vmatpush1.bf16.msra.mxu0 0
      %2845 = vmatprep.subr.bf16.mxu0 0
      %2846 = vmatpush1.bf16.msra.mxu0 0
      %2847 = vmatprep.subr.bf16.mxu0 0
      %2848 = vmatpush1.bf16.msra.mxu0 0
      %2849 = vmatprep.subr.bf16.mxu0 0
      %2850 = vmatpush1.bf16.msra.mxu0 0
      %2851 = vmatprep.subr.bf16.mxu0 0
      %2852 = vmatpush1.bf16.msra.mxu0 0
      %2853 = vmatprep.subr.bf16.mxu0 0
      %2854 = vmatpush1.bf16.msra.mxu0 0
      %2855 = vmatprep.mubr.bf16.mxu0 %v2590
      %2856 = vmatmul.mubr.bf16.gmra.mrb[0].mxu0 %v2510
      %v2857 = vpop.f32.mrb[0].mxu0
      %v2858 = vadd.f32 0.0, %v2857
      %v2859 = vpop.f32.mrb[0].mxu0
      %v2860 = vpop.f32.mrb[0].mxu0
      %v2861 = vadd.f32 0.0, %v2860
      %v2862 = vpop.f32.mrb[0].mxu0
      %2863 = vmatprep.mubr.bf16.mxu0 %v2593
      %2864 = vmatmul.mubr.bf16.gmra.mrb[0].mxu0 %v2512
      %v2865 = vpop.f32.mrb[0].mxu0
      %v2866 = vadd.f32 0.0, %v2865
      %v2867 = vpop.f32.mrb[0].mxu0
      %v2868 = vpop.f32.mrb[0].mxu0
      %v2869 = vadd.f32 0.0, %v2868
      %v2870 = vpop.f32.mrb[0].mxu0
      %2871 = vmatprep.mubr.bf16.mxu0 %v2596
      %2872 = vmatmul.mubr.bf16.gmra.mrb[0].mxu0 %v2514
      %v2873 = vpop.f32.mrb[0].mxu0
      %v2874 = vadd.f32 0.0, %v2873
      %v2875 = vpop.f32.mrb[0].mxu0
      %v2876 = vpop.f32.mrb[0].mxu0
      %v2877 = vadd.f32 0.0, %v2876
      %v2878 = vpop.f32.mrb[0].mxu0
      %2879 = vmatprep.mubr.bf16.mxu0 %v2599
      %2880 = vmatmul.mubr.bf16.gmra.mrb[0].mxu0 %v2516
      %v2881 = vpop.f32.mrb[0].mxu0
      %v2882 = vadd.f32 0.0, %v2881
      %v2883 = vpop.f32.mrb[0].mxu0
      %v2884 = vpop.f32.mrb[0].mxu0
      %v2885 = vadd.f32 0.0, %v2884
      %v2886 = vpop.f32.mrb[0].mxu0
      %2887 = vmatprep.mubr.bf16.mxu0 %v2602
      %2888 = vmatmul.mubr.bf16.gmra.mrb[0].mxu0 %v2518
      %v2889 = vpop.f32.mrb[0].mxu0
      %v2890 = vadd.f32 0.0, %v2889
      %v2891 = vpop.f32.mrb[0].mxu0
      %v2892 = vpop.f32.mrb[0].mxu0
      %v2893 = vadd.f32 0.0, %v2892
      %v2894 = vpop.f32.mrb[0].mxu0
      %2895 = vmatprep.mubr.bf16.mxu0 %v2605
      %2896 = vmatmul.mubr.bf16.gmra.mrb[0].mxu0 %v2520
      %v2897 = vpop.f32.mrb[0].mxu0
      %v2898 = vadd.f32 0.0, %v2897
      %v2899 = vpop.f32.mrb[0].mxu0
      %v2900 = vpop.f32.mrb[0].mxu0
      %v2901 = vadd.f32 0.0, %v2900
      %v2902 = vpop.f32.mrb[0].mxu0
      %2903 = vmatprep.mubr.bf16.mxu0 %v2608
      %2904 = vmatmul.mubr.bf16.gmra.mrb[0].mxu0 %v2522
      %v2905 = vpop.f32.mrb[0].mxu0
      %v2906 = vadd.f32 0.0, %v2905
      %v2907 = vpop.f32.mrb[0].mxu0
      %v2908 = vpop.f32.mrb[0].mxu0
      %v2909 = vadd.f32 0.0, %v2908
      %v2910 = vpop.f32.mrb[0].mxu0
      %2911 = vmatprep.mubr.bf16.mxu0 %v2611
      %2912 = vmatmul.mubr.bf16.gmra.mrb[0].mxu0 %v2524
      %v2913 = vpop.f32.mrb[0].mxu0
      %v2914 = vadd.f32 0.0, %v2913
      %v2915 = vpop.f32.mrb[0].mxu0
      %v2916 = vpop.f32.mrb[0].mxu0
      %v2917 = vadd.f32 0.0, %v2916
      %v2918 = vpop.f32.mrb[0].mxu0
      %2919 = vmatprep.mubr.bf16.mxu0 %v2818
      %2920 = vmatmul.mubr.bf16.gmra.mrb[0].mxu0 %v2763
      %v2921 = vpop.f32.mrb[0].mxu0
      %v2922 = vadd.f32 0.0, %v2921
      %v2923 = vpop.f32.mrb[0].mxu0
      %v2924 = vpop.f32.mrb[0].mxu0
      %v2925 = vadd.f32 0.0, %v2924
      %v2926 = vpop.f32.mrb[0].mxu0
      %2927 = vdwg.mxu0
      %v2928 = vadd.f32 %v2721, %v2858
      %v2929 = vadd.f32 %v2722, %v2861
      %v2930 = vadd.f32 %v2723, %v2866
      %v2931 = vadd.f32 %v2724, %v2869
      %v2932 = vadd.f32 %v2725, %v2874
      %v2933 = vadd.f32 %v2726, %v2877
      %v2934 = vadd.f32 %v2727, %v2882
      %v2935 = vadd.f32 %v2728, %v2885
      %v2936 = vadd.f32 %v2729, %v2890
      %v2937 = vadd.f32 %v2730, %v2893
      %v2938 = vadd.f32 %v2731, %v2898
      %v2939 = vadd.f32 %v2732, %v2901
      %v2940 = vadd.f32 %v2733, %v2906
      %v2941 = vadd.f32 %v2734, %v2909
      %v2942 = vadd.f32 %v2735, %v2914
      %v2943 = vadd.f32 %v2736, %v2917
      %v2944 = vadd.f32 %v2737, %v2922
      %v2945 = vadd.f32 %v2738, %v2925
      %s2946 = scalar_lea.vmem %s1, 748
      %v2947 = vld [vmem:[%s2946] sm:$0xf]
      %v2948 = vld [vmem:[%s2946 + $0x4] sm:$0xf]
      %v2949 = vld [vmem:[%s2946 + $0x8] sm:$0xf]
      %v2950 = vld [vmem:[%s2946 + $0xc] sm:$0xf]
      %v2951 = vld [vmem:[%s2946 + $0x10] sm:$0xf]
      %v2952 = vld [vmem:[%s2946 + $0x14] sm:$0xf]
      %v2953 = vld [vmem:[%s2946 + $0x18] sm:$0xf]
      %v2954 = vld [vmem:[%s2946 + $0x1c] sm:$0xf]
      %v2955 = vld [vmem:[%s2946 + $0x20] sm:$0xf]
      %v2956 = vld [vmem:[%s2946 + $0x24] sm:$0xf]
      %v2957 = vld [vmem:[%s2946 + $0x28] sm:$0xf]
      %v2958 = vld [vmem:[%s2946 + $0x2c] sm:$0xf]
      %v2959 = vld [vmem:[%s2946 + $0x30] sm:$0xf]
      %v2960 = vld [vmem:[%s2946 + $0x34] sm:$0xf]
      %v2961 = vld [vmem:[%s2946 + $0x38] sm:$0xf]
      %v2962 = vld [vmem:[%s2946 + $0x3c] sm:$0xf]
      %v2963 = vld [vmem:[%s2946 + $0x40] sm:$0x3]
      %v2966 = vunpack.c.l.b16 %v2434
      %v2967 = vunpack.c.h.b16 %v2434
      %v2968 = vunpack.c.l.b16 %v2435
      %v2969 = vunpack.c.h.b16 %v2435
      %v2970 = vpack.c.b16 %v2968, %v2966
      %v2971 = vpack.c.b16 %v2969, %v2967
      %v2990 = vunpack.c.l.b16 %v2947
      %v2991 = vunpack.c.l.b16 %v2948
      %v2992 = vunpack.c.l.b16 %v2949
      %v2993 = vunpack.c.l.b16 %v2950
      %v2994 = vunpack.c.l.b16 %v2951
      %v2995 = vunpack.c.l.b16 %v2952
      %v2996 = vunpack.c.l.b16 %v2953
      %v2997 = vunpack.c.l.b16 %v2954
      %v2998 = vunpack.c.l.b16 %v2955
      %v2999 = vunpack.c.l.b16 %v2956
      %v3000 = vunpack.c.l.b16 %v2957
      %v3001 = vunpack.c.l.b16 %v2958
      %v3002 = vunpack.c.l.b16 %v2959
      %v3003 = vunpack.c.l.b16 %v2960
      %v3004 = vunpack.c.l.b16 %v2961
      %v3005 = vunpack.c.l.b16 %v2962
      %v3006 = vunpack.c.l.b16 %v2963
      %v3007 = vpack.c.b16 %v2991, %v2990
      %v3008 = vpack.c.b16 %v2993, %v2992
      %v3009 = vpack.c.b16 %v2995, %v2994
      %v3010 = vpack.c.b16 %v2997, %v2996
      %v3011 = vpack.c.b16 %v2999, %v2998
      %v3012 = vpack.c.b16 %v3001, %v3000
      %v3013 = vpack.c.b16 %v3003, %v3002
      %v3014 = vpack.c.b16 %v3005, %v3004
      %v3015 = vpack.c.b16 %v3006, %v3006
      %v3025 = vsel %vm405, %v2971, 0
      %v3028 = vsel %vm433, %v3015, 0
      %3030 = vmatprep.subr.bf16.mxu0 0
      %3031 = vmatpush1.bf16.msra.mxu0 %v3007
      %3032 = vmatprep.subr.bf16.mxu0 0
      %3033 = vmatpush1.bf16.msra.mxu0 %v3008
      %3034 = vmatprep.subr.bf16.mxu0 0
      %3035 = vmatpush1.bf16.msra.mxu0 %v3009
      %3036 = vmatprep.subr.bf16.mxu0 0
      %3037 = vmatpush1.bf16.msra.mxu0 %v3010
      %3038 = vmatprep.subr.bf16.mxu0 0
      %3039 = vmatpush1.bf16.msra.mxu0 %v3011
      %3040 = vmatprep.subr.bf16.mxu0 0
      %3041 = vmatpush1.bf16.msra.mxu0 %v3012
      %3042 = vmatprep.subr.bf16.mxu0 0
      %3043 = vmatpush1.bf16.msra.mxu0 %v3013
      %3044 = vmatprep.subr.bf16.mxu0 0
      %3045 = vmatpush1.bf16.msra.mxu0 %v3014
      %3046 = vmatprep.subr.bf16.mxu0 0
      %3047 = vmatpush1.bf16.msra.mxu0 %v3028
      %3048 = vmatprep.subr.bf16.mxu0 0
      %3049 = vmatpush1.bf16.msra.mxu0 0
      %3050 = vmatprep.subr.bf16.mxu0 0
      %3051 = vmatpush1.bf16.msra.mxu0 0
      %3052 = vmatprep.subr.bf16.mxu0 0
      %3053 = vmatpush1.bf16.msra.mxu0 0
      %3054 = vmatprep.subr.bf16.mxu0 0
      %3055 = vmatpush1.bf16.msra.mxu0 0
      %3056 = vmatprep.subr.bf16.mxu0 0
      %3057 = vmatpush1.bf16.msra.mxu0 0
      %3058 = vmatprep.subr.bf16.mxu0 0
      %3059 = vmatpush1.bf16.msra.mxu0 0
      %3060 = vmatprep.subr.bf16.mxu0 0
      %3061 = vmatpush1.bf16.msra.mxu0 0
      %3062 = vmatprep.mubr.bf16.mxu0 %v2593
      %3063 = vmatmul.mubr.bf16.gmra.mrb[0].mxu0 %v2512
      %v3064 = vpop.f32.mrb[0].mxu0
      %v3065 = vadd.f32 0.0, %v3064
      %v3066 = vpop.f32.mrb[0].mxu0
      %v3067 = vpop.f32.mrb[0].mxu0
      %v3068 = vadd.f32 0.0, %v3067
      %v3069 = vpop.f32.mrb[0].mxu0
      %3070 = vmatprep.mubr.bf16.mxu0 %v2596
      %3071 = vmatmul.mubr.bf16.gmra.mrb[0].mxu0 %v2514
      %v3072 = vpop.f32.mrb[0].mxu0
      %v3073 = vadd.f32 0.0, %v3072
      %v3074 = vpop.f32.mrb[0].mxu0
      %v3075 = vpop.f32.mrb[0].mxu0
      %v3076 = vadd.f32 0.0, %v3075
      %v3077 = vpop.f32.mrb[0].mxu0
      %3078 = vmatprep.mubr.bf16.mxu0 %v2599
      %3079 = vmatmul.mubr.bf16.gmra.mrb[0].mxu0 %v2516
      %v3080 = vpop.f32.mrb[0].mxu0
      %v3081 = vadd.f32 0.0, %v3080
      %v3082 = vpop.f32.mrb[0].mxu0
      %v3083 = vpop.f32.mrb[0].mxu0
      %v3084 = vadd.f32 0.0, %v3083
      %v3085 = vpop.f32.mrb[0].mxu0
      %3086 = vmatprep.mubr.bf16.mxu0 %v2602
      %3087 = vmatmul.mubr.bf16.gmra.mrb[0].mxu0 %v2518
      %v3088 = vpop.f32.mrb[0].mxu0
      %v3089 = vadd.f32 0.0, %v3088
      %v3090 = vpop.f32.mrb[0].mxu0
      %v3091 = vpop.f32.mrb[0].mxu0
      %v3092 = vadd.f32 0.0, %v3091
      %v3093 = vpop.f32.mrb[0].mxu0
      %3094 = vmatprep.mubr.bf16.mxu0 %v2605
      %3095 = vmatmul.mubr.bf16.gmra.mrb[0].mxu0 %v2520
      %v3096 = vpop.f32.mrb[0].mxu0
      %v3097 = vadd.f32 0.0, %v3096
      %v3098 = vpop.f32.mrb[0].mxu0
      %v3099 = vpop.f32.mrb[0].mxu0
      %v3100 = vadd.f32 0.0, %v3099
      %v3101 = vpop.f32.mrb[0].mxu0
      %3102 = vmatprep.mubr.bf16.mxu0 %v2608
      %3103 = vmatmul.mubr.bf16.gmra.mrb[0].mxu0 %v2522
      %v3104 = vpop.f32.mrb[0].mxu0
      %v3105 = vadd.f32 0.0, %v3104
      %v3106 = vpop.f32.mrb[0].mxu0
      %v3107 = vpop.f32.mrb[0].mxu0
      %v3108 = vadd.f32 0.0, %v3107
      %v3109 = vpop.f32.mrb[0].mxu0
      %3110 = vmatprep.mubr.bf16.mxu0 %v2611
      %3111 = vmatmul.mubr.bf16.gmra.mrb[0].mxu0 %v2524
      %v3112 = vpop.f32.mrb[0].mxu0
      %v3113 = vadd.f32 0.0, %v3112
      %v3114 = vpop.f32.mrb[0].mxu0
      %v3115 = vpop.f32.mrb[0].mxu0
      %v3116 = vadd.f32 0.0, %v3115
      %v3117 = vpop.f32.mrb[0].mxu0
      %3118 = vmatprep.mubr.bf16.mxu0 %v2818
      %3119 = vmatmul.mubr.bf16.gmra.mrb[0].mxu0 %v2763
      %v3120 = vpop.f32.mrb[0].mxu0
      %v3121 = vadd.f32 0.0, %v3120
      %v3122 = vpop.f32.mrb[0].mxu0
      %v3123 = vpop.f32.mrb[0].mxu0
      %v3124 = vadd.f32 0.0, %v3123
      %v3125 = vpop.f32.mrb[0].mxu0
      %3126 = vmatprep.mubr.bf16.mxu0 %v3025
      %3127 = vmatmul.mubr.bf16.gmra.mrb[0].mxu0 %v2970
      %v3128 = vpop.f32.mrb[0].mxu0
      %v3129 = vadd.f32 0.0, %v3128
      %v3130 = vpop.f32.mrb[0].mxu0
      %v3131 = vpop.f32.mrb[0].mxu0
      %v3132 = vadd.f32 0.0, %v3131
      %v3133 = vpop.f32.mrb[0].mxu0
      %3134 = vdwg.mxu0
      %v3135 = vadd.f32 %v2928, %v3065
      %v3136 = vadd.f32 %v2929, %v3068
      %v3137 = vadd.f32 %v2930, %v3073
      %v3138 = vadd.f32 %v2931, %v3076
      %v3139 = vadd.f32 %v2932, %v3081
      %v3140 = vadd.f32 %v2933, %v3084
      %v3141 = vadd.f32 %v2934, %v3089
      %v3142 = vadd.f32 %v2935, %v3092
      %v3143 = vadd.f32 %v2936, %v3097
      %v3144 = vadd.f32 %v2937, %v3100
      %v3145 = vadd.f32 %v2938, %v3105
      %v3146 = vadd.f32 %v2939, %v3108
      %v3147 = vadd.f32 %v2940, %v3113
      %v3148 = vadd.f32 %v2941, %v3116
      %v3149 = vadd.f32 %v2942, %v3121
      %v3150 = vadd.f32 %v2943, %v3124
      %v3151 = vadd.f32 %v2944, %v3129
      %v3152 = vadd.f32 %v2945, %v3132
      %s3153 = sadd.s32 %s2409, %s920
      %s3154 = smul.u32 %s3153, 44
      %s3155 = smul.addr %s3154, 4
      %s3156 = scalar_lea.vmem %s196, %s3155
      %v3157 = vld [vmem:[%s3156] sm:$0xff]
      %v3158 = vld [vmem:[%s3156 + $0x8] sm:$0xff]
      %v3159 = vld [vmem:[%s3156 + $0x10] sm:$0xff]
      %v3160 = vld [vmem:[%s3156 + $0x18] sm:$0xff]
      %v3161 = vld [vmem:[%s3156 + $0x20] sm:$0xff]
      %v3162 = vld [vmem:[%s3156 + $0x28] sm:$0xff]
      %v3163 = vld [vmem:[%s3156 + $0x30] sm:$0xff]
      %v3164 = vld [vmem:[%s3156 + $0x38] sm:$0xff]
      %v3165 = vld [vmem:[%s3156 + $0x40] sm:$0xff]
      %v3166 = vld [vmem:[%s3156 + $0x48] sm:$0xff]
      %v3167 = vld [vmem:[%s3156 + $0x50] sm:$0xff]
      %v3168 = vld [vmem:[%s3156 + $0x58] sm:$0xff]
      %v3169 = vld [vmem:[%s3156 + $0x60] sm:$0xff]
      %v3170 = vld [vmem:[%s3156 + $0x68] sm:$0xff]
      %v3171 = vld [vmem:[%s3156 + $0x70] sm:$0xff]
      %v3172 = vld [vmem:[%s3156 + $0x78] sm:$0xff]
      %v3173 = vld [vmem:[%s3156 + $0x80] sm:$0xff]
      %v3174 = vld [vmem:[%s3156 + $0x88] sm:$0xff]
      %v3175 = vld [vmem:[%s3156 + $0x90] sm:$0xff]
      %v3176 = vld [vmem:[%s3156 + $0x98] sm:$0xff]
      %v3177 = vld [vmem:[%s3156 + $0xa0] sm:$0xff]
      %v3178 = vld [vmem:[%s3156 + $0xa8] sm:$0xff]
      %s3179 = scalar_lea.vmem %s1, 816
      %v3180 = vld [vmem:[%s3179] sm:$0xf]
      %v3181 = vld [vmem:[%s3179 + $0x4] sm:$0xf]
      %v3182 = vld [vmem:[%s3179 + $0x8] sm:$0xf]
      %v3183 = vld [vmem:[%s3179 + $0xc] sm:$0xf]
      %v3184 = vld [vmem:[%s3179 + $0x10] sm:$0xf]
      %v3185 = vld [vmem:[%s3179 + $0x14] sm:$0xf]
      %v3186 = vld [vmem:[%s3179 + $0x18] sm:$0xf]
      %v3187 = vld [vmem:[%s3179 + $0x1c] sm:$0xf]
      %v3188 = vld [vmem:[%s3179 + $0x20] sm:$0xf]
      %v3189 = vld [vmem:[%s3179 + $0x24] sm:$0xf]
      %v3190 = vld [vmem:[%s3179 + $0x28] sm:$0xf]
      %v3191 = vld [vmem:[%s3179 + $0x2c] sm:$0xf]
      %v3192 = vld [vmem:[%s3179 + $0x30] sm:$0xf]
      %v3193 = vld [vmem:[%s3179 + $0x34] sm:$0xf]
      %v3194 = vld [vmem:[%s3179 + $0x38] sm:$0xf]
      %v3195 = vld [vmem:[%s3179 + $0x3c] sm:$0xf]
      %v3196 = vld [vmem:[%s3179 + $0x40] sm:$0x3]
      %v3215 = vunpack.c.l.b16 %v3157
      %v3216 = vunpack.c.h.b16 %v3157
      %v3217 = vunpack.c.l.b16 %v3158
      %v3218 = vunpack.c.h.b16 %v3158
      %v3219 = vunpack.c.l.b16 %v3159
      %v3220 = vunpack.c.h.b16 %v3159
      %v3221 = vunpack.c.l.b16 %v3160
      %v3222 = vunpack.c.h.b16 %v3160
      %v3223 = vunpack.c.l.b16 %v3161
      %v3224 = vunpack.c.h.b16 %v3161
      %v3225 = vunpack.c.l.b16 %v3162
      %v3226 = vunpack.c.h.b16 %v3162
      %v3227 = vunpack.c.l.b16 %v3163
      %v3228 = vunpack.c.h.b16 %v3163
      %v3229 = vunpack.c.l.b16 %v3164
      %v3230 = vunpack.c.h.b16 %v3164
      %v3231 = vunpack.c.l.b16 %v3165
      %v3232 = vunpack.c.h.b16 %v3165
      %v3233 = vunpack.c.l.b16 %v3166
      %v3234 = vunpack.c.h.b16 %v3166
      %v3235 = vunpack.c.l.b16 %v3167
      %v3236 = vunpack.c.h.b16 %v3167
      %v3237 = vunpack.c.l.b16 %v3168
      %v3238 = vunpack.c.h.b16 %v3168
      %v3239 = vunpack.c.l.b16 %v3169
      %v3240 = vunpack.c.h.b16 %v3169
      %v3241 = vunpack.c.l.b16 %v3170
      %v3242 = vunpack.c.h.b16 %v3170
      %v3243 = vunpack.c.l.b16 %v3171
      %v3244 = vunpack.c.h.b16 %v3171
      %v3245 = vunpack.c.l.b16 %v3172
      %v3246 = vunpack.c.h.b16 %v3172
      %v3247 = vunpack.c.l.b16 %v3173
      %v3248 = vunpack.c.h.b16 %v3173
      %v3249 = vunpack.c.l.b16 %v3174
      %v3250 = vunpack.c.h.b16 %v3174
      %v3251 = vpack.c.b16 %v3217, %v3215
      %v3252 = vpack.c.b16 %v3218, %v3216
      %v3253 = vpack.c.b16 %v3221, %v3219
      %v3254 = vpack.c.b16 %v3222, %v3220
      %v3255 = vpack.c.b16 %v3225, %v3223
      %v3256 = vpack.c.b16 %v3226, %v3224
      %v3257 = vpack.c.b16 %v3229, %v3227
      %v3258 = vpack.c.b16 %v3230, %v3228
      %v3259 = vpack.c.b16 %v3233, %v3231
      %v3260 = vpack.c.b16 %v3234, %v3232
      %v3261 = vpack.c.b16 %v3237, %v3235
      %v3262 = vpack.c.b16 %v3238, %v3236
      %v3263 = vpack.c.b16 %v3241, %v3239
      %v3264 = vpack.c.b16 %v3242, %v3240
      %v3265 = vpack.c.b16 %v3245, %v3243
      %v3266 = vpack.c.b16 %v3246, %v3244
      %v3267 = vpack.c.b16 %v3249, %v3247
      %v3268 = vpack.c.b16 %v3250, %v3248
      %v3295 = vunpack.c.l.b16 %v3180
      %v3296 = vunpack.c.l.b16 %v3181
      %v3297 = vunpack.c.l.b16 %v3182
      %v3298 = vunpack.c.l.b16 %v3183
      %v3299 = vunpack.c.l.b16 %v3184
      %v3300 = vunpack.c.l.b16 %v3185
      %v3301 = vunpack.c.l.b16 %v3186
      %v3302 = vunpack.c.l.b16 %v3187
      %v3303 = vunpack.c.l.b16 %v3188
      %v3304 = vunpack.c.l.b16 %v3189
      %v3305 = vunpack.c.l.b16 %v3190
      %v3306 = vunpack.c.l.b16 %v3191
      %v3307 = vunpack.c.l.b16 %v3192
      %v3308 = vunpack.c.l.b16 %v3193
      %v3309 = vunpack.c.l.b16 %v3194
      %v3310 = vunpack.c.l.b16 %v3195
      %v3311 = vunpack.c.l.b16 %v3196
      %v3312 = vpack.c.b16 %v3296, %v3295
      %v3313 = vpack.c.b16 %v3298, %v3297
      %v3314 = vpack.c.b16 %v3300, %v3299
      %v3315 = vpack.c.b16 %v3302, %v3301
      %v3316 = vpack.c.b16 %v3304, %v3303
      %v3317 = vpack.c.b16 %v3306, %v3305
      %v3318 = vpack.c.b16 %v3308, %v3307
      %v3319 = vpack.c.b16 %v3310, %v3309
      %v3320 = vpack.c.b16 %v3311, %v3311
      %v3330 = vsel %vm405, %v3252, 0
      %v3333 = vsel %vm405, %v3254, 0
      %v3336 = vsel %vm405, %v3256, 0
      %v3339 = vsel %vm405, %v3258, 0
      %v3342 = vsel %vm405, %v3260, 0
      %v3345 = vsel %vm405, %v3262, 0
      %v3348 = vsel %vm405, %v3264, 0
      %v3351 = vsel %vm405, %v3266, 0
      %v3354 = vsel %vm405, %v3268, 0
      %v3357 = vsel %vm433, %v3320, 0
      %3359 = vmatprep.subr.bf16.mxu0 0
      %3360 = vmatpush1.bf16.msra.mxu0 %v3312
      %3361 = vmatprep.subr.bf16.mxu0 0
      %3362 = vmatpush1.bf16.msra.mxu0 %v3313
      %3363 = vmatprep.subr.bf16.mxu0 0
      %3364 = vmatpush1.bf16.msra.mxu0 %v3314
      %3365 = vmatprep.subr.bf16.mxu0 0
      %3366 = vmatpush1.bf16.msra.mxu0 %v3315
      %3367 = vmatprep.subr.bf16.mxu0 0
      %3368 = vmatpush1.bf16.msra.mxu0 %v3316
      %3369 = vmatprep.subr.bf16.mxu0 0
      %3370 = vmatpush1.bf16.msra.mxu0 %v3317
      %3371 = vmatprep.subr.bf16.mxu0 0
      %3372 = vmatpush1.bf16.msra.mxu0 %v3318
      %3373 = vmatprep.subr.bf16.mxu0 0
      %3374 = vmatpush1.bf16.msra.mxu0 %v3319
      %3375 = vmatprep.subr.bf16.mxu0 0
      %3376 = vmatpush1.bf16.msra.mxu0 %v3357
      %3377 = vmatprep.subr.bf16.mxu0 0
      %3378 = vmatpush1.bf16.msra.mxu0 0
      %3379 = vmatprep.subr.bf16.mxu0 0
      %3380 = vmatpush1.bf16.msra.mxu0 0
      %3381 = vmatprep.subr.bf16.mxu0 0
      %3382 = vmatpush1.bf16.msra.mxu0 0
      %3383 = vmatprep.subr.bf16.mxu0 0
      %3384 = vmatpush1.bf16.msra.mxu0 0
      %3385 = vmatprep.subr.bf16.mxu0 0
      %3386 = vmatpush1.bf16.msra.mxu0 0
      %3387 = vmatprep.subr.bf16.mxu0 0
      %3388 = vmatpush1.bf16.msra.mxu0 0
      %3389 = vmatprep.subr.bf16.mxu0 0
      %3390 = vmatpush1.bf16.msra.mxu0 0
      %3391 = vmatprep.mubr.bf16.mxu0 %v3330
      %3392 = vmatmul.mubr.bf16.gmra.mrb[0].mxu0 %v3251
      %v3393 = vpop.f32.mrb[0].mxu0
      %v3394 = vadd.f32 0.0, %v3393
      %v3395 = vpop.f32.mrb[0].mxu0
      %v3396 = vpop.f32.mrb[0].mxu0
      %v3397 = vadd.f32 0.0, %v3396
      %v3398 = vpop.f32.mrb[0].mxu0
      %3399 = vmatprep.mubr.bf16.mxu0 %v3333
      %3400 = vmatmul.mubr.bf16.gmra.mrb[0].mxu0 %v3253
      %v3401 = vpop.f32.mrb[0].mxu0
      %v3402 = vadd.f32 0.0, %v3401
      %v3403 = vpop.f32.mrb[0].mxu0
      %v3404 = vpop.f32.mrb[0].mxu0
      %v3405 = vadd.f32 0.0, %v3404
      %v3406 = vpop.f32.mrb[0].mxu0
      %3407 = vmatprep.mubr.bf16.mxu0 %v3336
      %3408 = vmatmul.mubr.bf16.gmra.mrb[0].mxu0 %v3255
      %v3409 = vpop.f32.mrb[0].mxu0
      %v3410 = vadd.f32 0.0, %v3409
      %v3411 = vpop.f32.mrb[0].mxu0
      %v3412 = vpop.f32.mrb[0].mxu0
      %v3413 = vadd.f32 0.0, %v3412
      %v3414 = vpop.f32.mrb[0].mxu0
      %3415 = vmatprep.mubr.bf16.mxu0 %v3339
      %3416 = vmatmul.mubr.bf16.gmra.mrb[0].mxu0 %v3257
      %v3417 = vpop.f32.mrb[0].mxu0
      %v3418 = vadd.f32 0.0, %v3417
      %v3419 = vpop.f32.mrb[0].mxu0
      %v3420 = vpop.f32.mrb[0].mxu0
      %v3421 = vadd.f32 0.0, %v3420
      %v3422 = vpop.f32.mrb[0].mxu0
      %3423 = vmatprep.mubr.bf16.mxu0 %v3342
      %3424 = vmatmul.mubr.bf16.gmra.mrb[0].mxu0 %v3259
      %v3425 = vpop.f32.mrb[0].mxu0
      %v3426 = vadd.f32 0.0, %v3425
      %v3427 = vpop.f32.mrb[0].mxu0
      %v3428 = vpop.f32.mrb[0].mxu0
      %v3429 = vadd.f32 0.0, %v3428
      %v3430 = vpop.f32.mrb[0].mxu0
      %3431 = vmatprep.mubr.bf16.mxu0 %v3345
      %3432 = vmatmul.mubr.bf16.gmra.mrb[0].mxu0 %v3261
      %v3433 = vpop.f32.mrb[0].mxu0
      %v3434 = vadd.f32 0.0, %v3433
      %v3435 = vpop.f32.mrb[0].mxu0
      %v3436 = vpop.f32.mrb[0].mxu0
      %v3437 = vadd.f32 0.0, %v3436
      %v3438 = vpop.f32.mrb[0].mxu0
      %3439 = vmatprep.mubr.bf16.mxu0 %v3348
      %3440 = vmatmul.mubr.bf16.gmra.mrb[0].mxu0 %v3263
      %v3441 = vpop.f32.mrb[0].mxu0
      %v3442 = vadd.f32 0.0, %v3441
      %v3443 = vpop.f32.mrb[0].mxu0
      %v3444 = vpop.f32.mrb[0].mxu0
      %v3445 = vadd.f32 0.0, %v3444
      %v3446 = vpop.f32.mrb[0].mxu0
      %3447 = vmatprep.mubr.bf16.mxu0 %v3351
      %3448 = vmatmul.mubr.bf16.gmra.mrb[0].mxu0 %v3265
      %v3449 = vpop.f32.mrb[0].mxu0
      %v3450 = vadd.f32 0.0, %v3449
      %v3451 = vpop.f32.mrb[0].mxu0
      %v3452 = vpop.f32.mrb[0].mxu0
      %v3453 = vadd.f32 0.0, %v3452
      %v3454 = vpop.f32.mrb[0].mxu0
      %3455 = vmatprep.mubr.bf16.mxu0 %v3354
      %3456 = vmatmul.mubr.bf16.gmra.mrb[0].mxu0 %v3267
      %v3457 = vpop.f32.mrb[0].mxu0
      %v3458 = vadd.f32 0.0, %v3457
      %v3459 = vpop.f32.mrb[0].mxu0
      %v3460 = vpop.f32.mrb[0].mxu0
      %v3461 = vadd.f32 0.0, %v3460
      %v3462 = vpop.f32.mrb[0].mxu0
      %3463 = vdwg.mxu0
      %v3464 = vadd.f32 %v3135, %v3394
      %v3465 = vadd.f32 %v3136, %v3397
      %v3466 = vadd.f32 %v3137, %v3402
      %v3467 = vadd.f32 %v3138, %v3405
      %v3468 = vadd.f32 %v3139, %v3410
      %v3469 = vadd.f32 %v3140, %v3413
      %v3470 = vadd.f32 %v3141, %v3418
      %v3471 = vadd.f32 %v3142, %v3421
      %v3472 = vadd.f32 %v3143, %v3426
      %v3473 = vadd.f32 %v3144, %v3429
      %v3474 = vadd.f32 %v3145, %v3434
      %v3475 = vadd.f32 %v3146, %v3437
      %v3476 = vadd.f32 %v3147, %v3442
      %v3477 = vadd.f32 %v3148, %v3445
      %v3478 = vadd.f32 %v3149, %v3450
      %v3479 = vadd.f32 %v3150, %v3453
      %v3480 = vadd.f32 %v3151, %v3458
      %v3481 = vadd.f32 %v3152, %v3461
      %s3482 = scalar_lea.vmem %s1, 884
      %v3483 = vld [vmem:[%s3482] sm:$0xf]
      %v3484 = vld [vmem:[%s3482 + $0x4] sm:$0xf]
      %v3485 = vld [vmem:[%s3482 + $0x8] sm:$0xf]
      %v3486 = vld [vmem:[%s3482 + $0xc] sm:$0xf]
      %v3487 = vld [vmem:[%s3482 + $0x10] sm:$0xf]
      %v3488 = vld [vmem:[%s3482 + $0x14] sm:$0xf]
      %v3489 = vld [vmem:[%s3482 + $0x18] sm:$0xf]
      %v3490 = vld [vmem:[%s3482 + $0x1c] sm:$0xf]
      %v3491 = vld [vmem:[%s3482 + $0x20] sm:$0xf]
      %v3492 = vld [vmem:[%s3482 + $0x24] sm:$0xf]
      %v3493 = vld [vmem:[%s3482 + $0x28] sm:$0xf]
      %v3494 = vld [vmem:[%s3482 + $0x2c] sm:$0xf]
      %v3495 = vld [vmem:[%s3482 + $0x30] sm:$0xf]
      %v3496 = vld [vmem:[%s3482 + $0x34] sm:$0xf]
      %v3497 = vld [vmem:[%s3482 + $0x38] sm:$0xf]
      %v3498 = vld [vmem:[%s3482 + $0x3c] sm:$0xf]
      %v3499 = vld [vmem:[%s3482 + $0x40] sm:$0x3]
      %v3502 = vunpack.c.l.b16 %v3175
      %v3503 = vunpack.c.h.b16 %v3175
      %v3504 = vunpack.c.l.b16 %v3176
      %v3505 = vunpack.c.h.b16 %v3176
      %v3506 = vpack.c.b16 %v3504, %v3502
      %v3507 = vpack.c.b16 %v3505, %v3503
      %v3526 = vunpack.c.l.b16 %v3483
      %v3527 = vunpack.c.l.b16 %v3484
      %v3528 = vunpack.c.l.b16 %v3485
      %v3529 = vunpack.c.l.b16 %v3486
      %v3530 = vunpack.c.l.b16 %v3487
      %v3531 = vunpack.c.l.b16 %v3488
      %v3532 = vunpack.c.l.b16 %v3489
      %v3533 = vunpack.c.l.b16 %v3490
      %v3534 = vunpack.c.l.b16 %v3491
      %v3535 = vunpack.c.l.b16 %v3492
      %v3536 = vunpack.c.l.b16 %v3493
      %v3537 = vunpack.c.l.b16 %v3494
      %v3538 = vunpack.c.l.b16 %v3495
      %v3539 = vunpack.c.l.b16 %v3496
      %v3540 = vunpack.c.l.b16 %v3497
      %v3541 = vunpack.c.l.b16 %v3498
      %v3542 = vunpack.c.l.b16 %v3499
      %v3543 = vpack.c.b16 %v3527, %v3526
      %v3544 = vpack.c.b16 %v3529, %v3528
      %v3545 = vpack.c.b16 %v3531, %v3530
      %v3546 = vpack.c.b16 %v3533, %v3532
      %v3547 = vpack.c.b16 %v3535, %v3534
      %v3548 = vpack.c.b16 %v3537, %v3536
      %v3549 = vpack.c.b16 %v3539, %v3538
      %v3550 = vpack.c.b16 %v3541, %v3540
      %v3551 = vpack.c.b16 %v3542, %v3542
      %v3561 = vsel %vm405, %v3507, 0
      %v3564 = vsel %vm433, %v3551, 0
      %3566 = vmatprep.subr.bf16.mxu0 0
      %3567 = vmatpush1.bf16.msra.mxu0 %v3543
      %3568 = vmatprep.subr.bf16.mxu0 0
      %3569 = vmatpush1.bf16.msra.mxu0 %v3544
      %3570 = vmatprep.subr.bf16.mxu0 0
      %3571 = vmatpush1.bf16.msra.mxu0 %v3545
      %3572 = vmatprep.subr.bf16.mxu0 0
      %3573 = vmatpush1.bf16.msra.mxu0 %v3546
      %3574 = vmatprep.subr.bf16.mxu0 0
      %3575 = vmatpush1.bf16.msra.mxu0 %v3547
      %3576 = vmatprep.subr.bf16.mxu0 0
      %3577 = vmatpush1.bf16.msra.mxu0 %v3548
      %3578 = vmatprep.subr.bf16.mxu0 0
      %3579 = vmatpush1.bf16.msra.mxu0 %v3549
      %3580 = vmatprep.subr.bf16.mxu0 0
      %3581 = vmatpush1.bf16.msra.mxu0 %v3550
      %3582 = vmatprep.subr.bf16.mxu0 0
      %3583 = vmatpush1.bf16.msra.mxu0 %v3564
      %3584 = vmatprep.subr.bf16.mxu0 0
      %3585 = vmatpush1.bf16.msra.mxu0 0
      %3586 = vmatprep.subr.bf16.mxu0 0
      %3587 = vmatpush1.bf16.msra.mxu0 0
      %3588 = vmatprep.subr.bf16.mxu0 0
      %3589 = vmatpush1.bf16.msra.mxu0 0
      %3590 = vmatprep.subr.bf16.mxu0 0
      %3591 = vmatpush1.bf16.msra.mxu0 0
      %3592 = vmatprep.subr.bf16.mxu0 0
      %3593 = vmatpush1.bf16.msra.mxu0 0
      %3594 = vmatprep.subr.bf16.mxu0 0
      %3595 = vmatpush1.bf16.msra.mxu0 0
      %3596 = vmatprep.subr.bf16.mxu0 0
      %3597 = vmatpush1.bf16.msra.mxu0 0
      %3598 = vmatprep.mubr.bf16.mxu0 %v3333
      %3599 = vmatmul.mubr.bf16.gmra.mrb[0].mxu0 %v3253
      %v3600 = vpop.f32.mrb[0].mxu0
      %v3601 = vadd.f32 0.0, %v3600
      %v3602 = vpop.f32.mrb[0].mxu0
      %v3603 = vpop.f32.mrb[0].mxu0
      %v3604 = vadd.f32 0.0, %v3603
      %v3605 = vpop.f32.mrb[0].mxu0
      %3606 = vmatprep.mubr.bf16.mxu0 %v3336
      %3607 = vmatmul.mubr.bf16.gmra.mrb[0].mxu0 %v3255
      %v3608 = vpop.f32.mrb[0].mxu0
      %v3609 = vadd.f32 0.0, %v3608
      %v3610 = vpop.f32.mrb[0].mxu0
      %v3611 = vpop.f32.mrb[0].mxu0
      %v3612 = vadd.f32 0.0, %v3611
      %v3613 = vpop.f32.mrb[0].mxu0
      %3614 = vmatprep.mubr.bf16.mxu0 %v3339
      %3615 = vmatmul.mubr.bf16.gmra.mrb[0].mxu0 %v3257
      %v3616 = vpop.f32.mrb[0].mxu0
      %v3617 = vadd.f32 0.0, %v3616
      %v3618 = vpop.f32.mrb[0].mxu0
      %v3619 = vpop.f32.mrb[0].mxu0
      %v3620 = vadd.f32 0.0, %v3619
      %v3621 = vpop.f32.mrb[0].mxu0
      %3622 = vmatprep.mubr.bf16.mxu0 %v3342
      %3623 = vmatmul.mubr.bf16.gmra.mrb[0].mxu0 %v3259
      %v3624 = vpop.f32.mrb[0].mxu0
      %v3625 = vadd.f32 0.0, %v3624
      %v3626 = vpop.f32.mrb[0].mxu0
      %v3627 = vpop.f32.mrb[0].mxu0
      %v3628 = vadd.f32 0.0, %v3627
      %v3629 = vpop.f32.mrb[0].mxu0
      %3630 = vmatprep.mubr.bf16.mxu0 %v3345
      %3631 = vmatmul.mubr.bf16.gmra.mrb[0].mxu0 %v3261
      %v3632 = vpop.f32.mrb[0].mxu0
      %v3633 = vadd.f32 0.0, %v3632
      %v3634 = vpop.f32.mrb[0].mxu0
      %v3635 = vpop.f32.mrb[0].mxu0
      %v3636 = vadd.f32 0.0, %v3635
      %v3637 = vpop.f32.mrb[0].mxu0
      %3638 = vmatprep.mubr.bf16.mxu0 %v3348
      %3639 = vmatmul.mubr.bf16.gmra.mrb[0].mxu0 %v3263
      %v3640 = vpop.f32.mrb[0].mxu0
      %v3641 = vadd.f32 0.0, %v3640
      %v3642 = vpop.f32.mrb[0].mxu0
      %v3643 = vpop.f32.mrb[0].mxu0
      %v3644 = vadd.f32 0.0, %v3643
      %v3645 = vpop.f32.mrb[0].mxu0
      %3646 = vmatprep.mubr.bf16.mxu0 %v3351
      %3647 = vmatmul.mubr.bf16.gmra.mrb[0].mxu0 %v3265
      %v3648 = vpop.f32.mrb[0].mxu0
      %v3649 = vadd.f32 0.0, %v3648
      %v3650 = vpop.f32.mrb[0].mxu0
      %v3651 = vpop.f32.mrb[0].mxu0
      %v3652 = vadd.f32 0.0, %v3651
      %v3653 = vpop.f32.mrb[0].mxu0
      %3654 = vmatprep.mubr.bf16.mxu0 %v3354
      %3655 = vmatmul.mubr.bf16.gmra.mrb[0].mxu0 %v3267
      %v3656 = vpop.f32.mrb[0].mxu0
      %v3657 = vadd.f32 0.0, %v3656
      %v3658 = vpop.f32.mrb[0].mxu0
      %v3659 = vpop.f32.mrb[0].mxu0
      %v3660 = vadd.f32 0.0, %v3659
      %v3661 = vpop.f32.mrb[0].mxu0
      %3662 = vmatprep.mubr.bf16.mxu0 %v3561
      %3663 = vmatmul.mubr.bf16.gmra.mrb[0].mxu0 %v3506
      %v3664 = vpop.f32.mrb[0].mxu0
      %v3665 = vadd.f32 0.0, %v3664
      %v3666 = vpop.f32.mrb[0].mxu0
      %v3667 = vpop.f32.mrb[0].mxu0
      %v3668 = vadd.f32 0.0, %v3667
      %v3669 = vpop.f32.mrb[0].mxu0
      %3670 = vdwg.mxu0
      %v3671 = vadd.f32 %v3464, %v3601
      %v3672 = vadd.f32 %v3465, %v3604
      %v3673 = vadd.f32 %v3466, %v3609
      %v3674 = vadd.f32 %v3467, %v3612
      %v3675 = vadd.f32 %v3468, %v3617
      %v3676 = vadd.f32 %v3469, %v3620
      %v3677 = vadd.f32 %v3470, %v3625
      %v3678 = vadd.f32 %v3471, %v3628
      %v3679 = vadd.f32 %v3472, %v3633
      %v3680 = vadd.f32 %v3473, %v3636
      %v3681 = vadd.f32 %v3474, %v3641
      %v3682 = vadd.f32 %v3475, %v3644
      %v3683 = vadd.f32 %v3476, %v3649
      %v3684 = vadd.f32 %v3477, %v3652
      %v3685 = vadd.f32 %v3478, %v3657
      %v3686 = vadd.f32 %v3479, %v3660
      %v3687 = vadd.f32 %v3480, %v3665
      %v3688 = vadd.f32 %v3481, %v3668
      %s3689 = scalar_lea.vmem %s1, 952
      %v3690 = vld [vmem:[%s3689] sm:$0xf]
      %v3691 = vld [vmem:[%s3689 + $0x4] sm:$0xf]
      %v3692 = vld [vmem:[%s3689 + $0x8] sm:$0xf]
      %v3693 = vld [vmem:[%s3689 + $0xc] sm:$0xf]
      %v3694 = vld [vmem:[%s3689 + $0x10] sm:$0xf]
      %v3695 = vld [vmem:[%s3689 + $0x14] sm:$0xf]
      %v3696 = vld [vmem:[%s3689 + $0x18] sm:$0xf]
      %v3697 = vld [vmem:[%s3689 + $0x1c] sm:$0xf]
      %v3698 = vld [vmem:[%s3689 + $0x20] sm:$0xf]
      %v3699 = vld [vmem:[%s3689 + $0x24] sm:$0xf]
      %v3700 = vld [vmem:[%s3689 + $0x28] sm:$0xf]
      %v3701 = vld [vmem:[%s3689 + $0x2c] sm:$0xf]
      %v3702 = vld [vmem:[%s3689 + $0x30] sm:$0xf]
      %v3703 = vld [vmem:[%s3689 + $0x34] sm:$0xf]
      %v3704 = vld [vmem:[%s3689 + $0x38] sm:$0xf]
      %v3705 = vld [vmem:[%s3689 + $0x3c] sm:$0xf]
      %v3706 = vld [vmem:[%s3689 + $0x40] sm:$0x3]
      %v3709 = vunpack.c.l.b16 %v3177
      %v3710 = vunpack.c.h.b16 %v3177
      %v3711 = vunpack.c.l.b16 %v3178
      %v3712 = vunpack.c.h.b16 %v3178
      %v3713 = vpack.c.b16 %v3711, %v3709
      %v3714 = vpack.c.b16 %v3712, %v3710
      %v3733 = vunpack.c.l.b16 %v3690
      %v3734 = vunpack.c.l.b16 %v3691
      %v3735 = vunpack.c.l.b16 %v3692
      %v3736 = vunpack.c.l.b16 %v3693
      %v3737 = vunpack.c.l.b16 %v3694
      %v3738 = vunpack.c.l.b16 %v3695
      %v3739 = vunpack.c.l.b16 %v3696
      %v3740 = vunpack.c.l.b16 %v3697
      %v3741 = vunpack.c.l.b16 %v3698
      %v3742 = vunpack.c.l.b16 %v3699
      %v3743 = vunpack.c.l.b16 %v3700
      %v3744 = vunpack.c.l.b16 %v3701
      %v3745 = vunpack.c.l.b16 %v3702
      %v3746 = vunpack.c.l.b16 %v3703
      %v3747 = vunpack.c.l.b16 %v3704
      %v3748 = vunpack.c.l.b16 %v3705
      %v3749 = vunpack.c.l.b16 %v3706
      %v3750 = vpack.c.b16 %v3734, %v3733
      %v3751 = vpack.c.b16 %v3736, %v3735
      %v3752 = vpack.c.b16 %v3738, %v3737
      %v3753 = vpack.c.b16 %v3740, %v3739
      %v3754 = vpack.c.b16 %v3742, %v3741
      %v3755 = vpack.c.b16 %v3744, %v3743
      %v3756 = vpack.c.b16 %v3746, %v3745
      %v3757 = vpack.c.b16 %v3748, %v3747
      %v3758 = vpack.c.b16 %v3749, %v3749
      %v3768 = vsel %vm405, %v3714, 0
      %v3771 = vsel %vm433, %v3758, 0
      %3773 = vmatprep.subr.bf16.mxu0 0
      %3774 = vmatpush1.bf16.msra.mxu0 %v3750
      %3775 = vmatprep.subr.bf16.mxu0 0
      %3776 = vmatpush1.bf16.msra.mxu0 %v3751
      %3777 = vmatprep.subr.bf16.mxu0 0
      %3778 = vmatpush1.bf16.msra.mxu0 %v3752
      %3779 = vmatprep.subr.bf16.mxu0 0
      %3780 = vmatpush1.bf16.msra.mxu0 %v3753
      %3781 = vmatprep.subr.bf16.mxu0 0
      %3782 = vmatpush1.bf16.msra.mxu0 %v3754
      %3783 = vmatprep.subr.bf16.mxu0 0
      %3784 = vmatpush1.bf16.msra.mxu0 %v3755
      %3785 = vmatprep.subr.bf16.mxu0 0
      %3786 = vmatpush1.bf16.msra.mxu0 %v3756
      %3787 = vmatprep.subr.bf16.mxu0 0
      %3788 = vmatpush1.bf16.msra.mxu0 %v3757
      %3789 = vmatprep.subr.bf16.mxu0 0
      %3790 = vmatpush1.bf16.msra.mxu0 %v3771
      %3791 = vmatprep.subr.bf16.mxu0 0
      %3792 = vmatpush1.bf16.msra.mxu0 0
      %3793 = vmatprep.subr.bf16.mxu0 0
      %3794 = vmatpush1.bf16.msra.mxu0 0
      %3795 = vmatprep.subr.bf16.mxu0 0
      %3796 = vmatpush1.bf16.msra.mxu0 0
      %3797 = vmatprep.subr.bf16.mxu0 0
      %3798 = vmatpush1.bf16.msra.mxu0 0
      %3799 = vmatprep.subr.bf16.mxu0 0
      %3800 = vmatpush1.bf16.msra.mxu0 0
      %3801 = vmatprep.subr.bf16.mxu0 0
      %3802 = vmatpush1.bf16.msra.mxu0 0
      %3803 = vmatprep.subr.bf16.mxu0 0
      %3804 = vmatpush1.bf16.msra.mxu0 0
      %3805 = vmatprep.mubr.bf16.mxu0 %v3336
      %3806 = vmatmul.mubr.bf16.gmra.mrb[0].mxu0 %v3255
      %v3807 = vpop.f32.mrb[0].mxu0
      %v3808 = vadd.f32 0.0, %v3807
      %v3809 = vpop.f32.mrb[0].mxu0
      %v3810 = vpop.f32.mrb[0].mxu0
      %v3811 = vadd.f32 0.0, %v3810
      %v3812 = vpop.f32.mrb[0].mxu0
      %3813 = vmatprep.mubr.bf16.mxu0 %v3339
      %3814 = vmatmul.mubr.bf16.gmra.mrb[0].mxu0 %v3257
      %v3815 = vpop.f32.mrb[0].mxu0
      %v3816 = vadd.f32 0.0, %v3815
      %v3817 = vpop.f32.mrb[0].mxu0
      %v3818 = vpop.f32.mrb[0].mxu0
      %v3819 = vadd.f32 0.0, %v3818
      %v3820 = vpop.f32.mrb[0].mxu0
      %3821 = vmatprep.mubr.bf16.mxu0 %v3342
      %3822 = vmatmul.mubr.bf16.gmra.mrb[0].mxu0 %v3259
      %v3823 = vpop.f32.mrb[0].mxu0
      %v3824 = vadd.f32 0.0, %v3823
      %v3825 = vpop.f32.mrb[0].mxu0
      %v3826 = vpop.f32.mrb[0].mxu0
      %v3827 = vadd.f32 0.0, %v3826
      %v3828 = vpop.f32.mrb[0].mxu0
      %3829 = vmatprep.mubr.bf16.mxu0 %v3345
      %3830 = vmatmul.mubr.bf16.gmra.mrb[0].mxu0 %v3261
      %v3831 = vpop.f32.mrb[0].mxu0
      %v3832 = vadd.f32 0.0, %v3831
      %v3833 = vpop.f32.mrb[0].mxu0
      %v3834 = vpop.f32.mrb[0].mxu0
      %v3835 = vadd.f32 0.0, %v3834
      %v3836 = vpop.f32.mrb[0].mxu0
      %3837 = vmatprep.mubr.bf16.mxu0 %v3348
      %3838 = vmatmul.mubr.bf16.gmra.mrb[0].mxu0 %v3263
      %v3839 = vpop.f32.mrb[0].mxu0
      %v3840 = vadd.f32 0.0, %v3839
      %v3841 = vpop.f32.mrb[0].mxu0
      %v3842 = vpop.f32.mrb[0].mxu0
      %v3843 = vadd.f32 0.0, %v3842
      %v3844 = vpop.f32.mrb[0].mxu0
      %3845 = vmatprep.mubr.bf16.mxu0 %v3351
      %3846 = vmatmul.mubr.bf16.gmra.mrb[0].mxu0 %v3265
      %v3847 = vpop.f32.mrb[0].mxu0
      %v3848 = vadd.f32 0.0, %v3847
      %v3849 = vpop.f32.mrb[0].mxu0
      %v3850 = vpop.f32.mrb[0].mxu0
      %v3851 = vadd.f32 0.0, %v3850
      %v3852 = vpop.f32.mrb[0].mxu0
      %3853 = vmatprep.mubr.bf16.mxu0 %v3354
      %3854 = vmatmul.mubr.bf16.gmra.mrb[0].mxu0 %v3267
      %v3855 = vpop.f32.mrb[0].mxu0
      %v3856 = vadd.f32 0.0, %v3855
      %v3857 = vpop.f32.mrb[0].mxu0
      %v3858 = vpop.f32.mrb[0].mxu0
      %v3859 = vadd.f32 0.0, %v3858
      %v3860 = vpop.f32.mrb[0].mxu0
      %3861 = vmatprep.mubr.bf16.mxu0 %v3561
      %3862 = vmatmul.mubr.bf16.gmra.mrb[0].mxu0 %v3506
      %v3863 = vpop.f32.mrb[0].mxu0
      %v3864 = vadd.f32 0.0, %v3863
      %v3865 = vpop.f32.mrb[0].mxu0
      %v3866 = vpop.f32.mrb[0].mxu0
      %v3867 = vadd.f32 0.0, %v3866
      %v3868 = vpop.f32.mrb[0].mxu0
      %3869 = vmatprep.mubr.bf16.mxu0 %v3768
      %3870 = vmatmul.mubr.bf16.gmra.mrb[0].mxu0 %v3713
      %v3871 = vpop.f32.mrb[0].mxu0
      %v3872 = vadd.f32 0.0, %v3871
      %v3873 = vpop.f32.mrb[0].mxu0
      %v3874 = vpop.f32.mrb[0].mxu0
      %v3875 = vadd.f32 0.0, %v3874
      %v3876 = vpop.f32.mrb[0].mxu0
      %3877 = vdwg.mxu0
      %v3878 = vadd.f32 %v3671, %v3808
      %v3879 = vadd.f32 %v3672, %v3811
      %v3880 = vadd.f32 %v3673, %v3816
      %v3881 = vadd.f32 %v3674, %v3819
      %v3882 = vadd.f32 %v3675, %v3824
      %v3883 = vadd.f32 %v3676, %v3827
      %v3884 = vadd.f32 %v3677, %v3832
      %v3885 = vadd.f32 %v3678, %v3835
      %v3886 = vadd.f32 %v3679, %v3840
      %v3887 = vadd.f32 %v3680, %v3843
      %v3888 = vadd.f32 %v3681, %v3848
      %v3889 = vadd.f32 %v3682, %v3851
      %v3890 = vadd.f32 %v3683, %v3856
      %v3891 = vadd.f32 %v3684, %v3859
      %v3892 = vadd.f32 %v3685, %v3864
      %v3893 = vadd.f32 %v3686, %v3867
      %v3894 = vadd.f32 %v3687, %v3872
      %v3895 = vadd.f32 %v3688, %v3875
      %s3896 = sadd.s32 %s2409, %s1664
      %s3897 = smul.u32 %s3896, 44
      %s3898 = smul.addr %s3897, 4
      %s3899 = scalar_lea.vmem %s196, %s3898
      %v3900 = vld [vmem:[%s3899] sm:$0xff]
      %v3901 = vld [vmem:[%s3899 + $0x8] sm:$0xff]
      %v3902 = vld [vmem:[%s3899 + $0x10] sm:$0xff]
      %v3903 = vld [vmem:[%s3899 + $0x18] sm:$0xff]
      %v3904 = vld [vmem:[%s3899 + $0x20] sm:$0xff]
      %v3905 = vld [vmem:[%s3899 + $0x28] sm:$0xff]
      %v3906 = vld [vmem:[%s3899 + $0x30] sm:$0xff]
      %v3907 = vld [vmem:[%s3899 + $0x38] sm:$0xff]
      %v3908 = vld [vmem:[%s3899 + $0x40] sm:$0xff]
      %v3909 = vld [vmem:[%s3899 + $0x48] sm:$0xff]
      %v3910 = vld [vmem:[%s3899 + $0x50] sm:$0xff]
      %v3911 = vld [vmem:[%s3899 + $0x58] sm:$0xff]
      %v3912 = vld [vmem:[%s3899 + $0x60] sm:$0xff]
      %v3913 = vld [vmem:[%s3899 + $0x68] sm:$0xff]
      %v3914 = vld [vmem:[%s3899 + $0x70] sm:$0xff]
      %v3915 = vld [vmem:[%s3899 + $0x78] sm:$0xff]
      %v3916 = vld [vmem:[%s3899 + $0x80] sm:$0xff]
      %v3917 = vld [vmem:[%s3899 + $0x88] sm:$0xff]
      %v3918 = vld [vmem:[%s3899 + $0x90] sm:$0xff]
      %v3919 = vld [vmem:[%s3899 + $0x98] sm:$0xff]
      %v3920 = vld [vmem:[%s3899 + $0xa0] sm:$0xff]
      %v3921 = vld [vmem:[%s3899 + $0xa8] sm:$0xff]
      %s3922 = scalar_lea.vmem %s1, 1020
      %v3923 = vld [vmem:[%s3922] sm:$0xf]
      %v3924 = vld [vmem:[%s3922 + $0x4] sm:$0xf]
      %v3925 = vld [vmem:[%s3922 + $0x8] sm:$0xf]
      %v3926 = vld [vmem:[%s3922 + $0xc] sm:$0xf]
      %v3927 = vld [vmem:[%s3922 + $0x10] sm:$0xf]
      %v3928 = vld [vmem:[%s3922 + $0x14] sm:$0xf]
      %v3929 = vld [vmem:[%s3922 + $0x18] sm:$0xf]
      %v3930 = vld [vmem:[%s3922 + $0x1c] sm:$0xf]
      %v3931 = vld [vmem:[%s3922 + $0x20] sm:$0xf]
      %v3932 = vld [vmem:[%s3922 + $0x24] sm:$0xf]
      %v3933 = vld [vmem:[%s3922 + $0x28] sm:$0xf]
      %v3934 = vld [vmem:[%s3922 + $0x2c] sm:$0xf]
      %v3935 = vld [vmem:[%s3922 + $0x30] sm:$0xf]
      %v3936 = vld [vmem:[%s3922 + $0x34] sm:$0xf]
      %v3937 = vld [vmem:[%s3922 + $0x38] sm:$0xf]
      %v3938 = vld [vmem:[%s3922 + $0x3c] sm:$0xf]
      %v3939 = vld [vmem:[%s3922 + $0x40] sm:$0x3]
      %v3958 = vunpack.c.l.b16 %v3900
      %v3959 = vunpack.c.h.b16 %v3900
      %v3960 = vunpack.c.l.b16 %v3901
      %v3961 = vunpack.c.h.b16 %v3901
      %v3962 = vunpack.c.l.b16 %v3902
      %v3963 = vunpack.c.h.b16 %v3902
      %v3964 = vunpack.c.l.b16 %v3903
      %v3965 = vunpack.c.h.b16 %v3903
      %v3966 = vunpack.c.l.b16 %v3904
      %v3967 = vunpack.c.h.b16 %v3904
      %v3968 = vunpack.c.l.b16 %v3905
      %v3969 = vunpack.c.h.b16 %v3905
      %v3970 = vunpack.c.l.b16 %v3906
      %v3971 = vunpack.c.h.b16 %v3906
      %v3972 = vunpack.c.l.b16 %v3907
      %v3973 = vunpack.c.h.b16 %v3907
      %v3974 = vunpack.c.l.b16 %v3908
      %v3975 = vunpack.c.h.b16 %v3908
      %v3976 = vunpack.c.l.b16 %v3909
      %v3977 = vunpack.c.h.b16 %v3909
      %v3978 = vunpack.c.l.b16 %v3910
      %v3979 = vunpack.c.h.b16 %v3910
      %v3980 = vunpack.c.l.b16 %v3911
      %v3981 = vunpack.c.h.b16 %v3911
      %v3982 = vunpack.c.l.b16 %v3912
      %v3983 = vunpack.c.h.b16 %v3912
      %v3984 = vunpack.c.l.b16 %v3913
      %v3985 = vunpack.c.h.b16 %v3913
      %v3986 = vunpack.c.l.b16 %v3914
      %v3987 = vunpack.c.h.b16 %v3914
      %v3988 = vunpack.c.l.b16 %v3915
      %v3989 = vunpack.c.h.b16 %v3915
      %v3990 = vunpack.c.l.b16 %v3916
      %v3991 = vunpack.c.h.b16 %v3916
      %v3992 = vunpack.c.l.b16 %v3917
      %v3993 = vunpack.c.h.b16 %v3917
      %v3994 = vpack.c.b16 %v3960, %v3958
      %v3995 = vpack.c.b16 %v3961, %v3959
      %v3996 = vpack.c.b16 %v3964, %v3962
      %v3997 = vpack.c.b16 %v3965, %v3963
      %v3998 = vpack.c.b16 %v3968, %v3966
      %v3999 = vpack.c.b16 %v3969, %v3967
      %v4000 = vpack.c.b16 %v3972, %v3970
      %v4001 = vpack.c.b16 %v3973, %v3971
      %v4002 = vpack.c.b16 %v3976, %v3974
      %v4003 = vpack.c.b16 %v3977, %v3975
      %v4004 = vpack.c.b16 %v3980, %v3978
      %v4005 = vpack.c.b16 %v3981, %v3979
      %v4006 = vpack.c.b16 %v3984, %v3982
      %v4007 = vpack.c.b16 %v3985, %v3983
      %v4008 = vpack.c.b16 %v3988, %v3986
      %v4009 = vpack.c.b16 %v3989, %v3987
      %v4010 = vpack.c.b16 %v3992, %v3990
      %v4011 = vpack.c.b16 %v3993, %v3991
      %v4038 = vunpack.c.l.b16 %v3923
      %v4039 = vunpack.c.l.b16 %v3924
      %v4040 = vunpack.c.l.b16 %v3925
      %v4041 = vunpack.c.l.b16 %v3926
      %v4042 = vunpack.c.l.b16 %v3927
      %v4043 = vunpack.c.l.b16 %v3928
      %v4044 = vunpack.c.l.b16 %v3929
      %v4045 = vunpack.c.l.b16 %v3930
      %v4046 = vunpack.c.l.b16 %v3931
      %v4047 = vunpack.c.l.b16 %v3932
      %v4048 = vunpack.c.l.b16 %v3933
      %v4049 = vunpack.c.l.b16 %v3934
      %v4050 = vunpack.c.l.b16 %v3935
      %v4051 = vunpack.c.l.b16 %v3936
      %v4052 = vunpack.c.l.b16 %v3937
      %v4053 = vunpack.c.l.b16 %v3938
      %v4054 = vunpack.c.l.b16 %v3939
      %v4055 = vpack.c.b16 %v4039, %v4038
      %v4056 = vpack.c.b16 %v4041, %v4040
      %v4057 = vpack.c.b16 %v4043, %v4042
      %v4058 = vpack.c.b16 %v4045, %v4044
      %v4059 = vpack.c.b16 %v4047, %v4046
      %v4060 = vpack.c.b16 %v4049, %v4048
      %v4061 = vpack.c.b16 %v4051, %v4050
      %v4062 = vpack.c.b16 %v4053, %v4052
      %v4063 = vpack.c.b16 %v4054, %v4054
      %v4073 = vsel %vm405, %v3995, 0
      %v4076 = vsel %vm405, %v3997, 0
      %v4079 = vsel %vm405, %v3999, 0
      %v4082 = vsel %vm405, %v4001, 0
      %v4085 = vsel %vm405, %v4003, 0
      %v4088 = vsel %vm405, %v4005, 0
      %v4091 = vsel %vm405, %v4007, 0
      %v4094 = vsel %vm405, %v4009, 0
      %v4097 = vsel %vm405, %v4011, 0
      %v4100 = vsel %vm433, %v4063, 0
      %4102 = vmatprep.subr.bf16.mxu0 0
      %4103 = vmatpush1.bf16.msra.mxu0 %v4055
      %4104 = vmatprep.subr.bf16.mxu0 0
      %4105 = vmatpush1.bf16.msra.mxu0 %v4056
      %4106 = vmatprep.subr.bf16.mxu0 0
      %4107 = vmatpush1.bf16.msra.mxu0 %v4057
      %4108 = vmatprep.subr.bf16.mxu0 0
      %4109 = vmatpush1.bf16.msra.mxu0 %v4058
      %4110 = vmatprep.subr.bf16.mxu0 0
      %4111 = vmatpush1.bf16.msra.mxu0 %v4059
      %4112 = vmatprep.subr.bf16.mxu0 0
      %4113 = vmatpush1.bf16.msra.mxu0 %v4060
      %4114 = vmatprep.subr.bf16.mxu0 0
      %4115 = vmatpush1.bf16.msra.mxu0 %v4061
      %4116 = vmatprep.subr.bf16.mxu0 0
      %4117 = vmatpush1.bf16.msra.mxu0 %v4062
      %4118 = vmatprep.subr.bf16.mxu0 0
      %4119 = vmatpush1.bf16.msra.mxu0 %v4100
      %4120 = vmatprep.subr.bf16.mxu0 0
      %4121 = vmatpush1.bf16.msra.mxu0 0
      %4122 = vmatprep.subr.bf16.mxu0 0
      %4123 = vmatpush1.bf16.msra.mxu0 0
      %4124 = vmatprep.subr.bf16.mxu0 0
      %4125 = vmatpush1.bf16.msra.mxu0 0
      %4126 = vmatprep.subr.bf16.mxu0 0
      %4127 = vmatpush1.bf16.msra.mxu0 0
      %4128 = vmatprep.subr.bf16.mxu0 0
      %4129 = vmatpush1.bf16.msra.mxu0 0
      %4130 = vmatprep.subr.bf16.mxu0 0
      %4131 = vmatpush1.bf16.msra.mxu0 0
      %4132 = vmatprep.subr.bf16.mxu0 0
      %4133 = vmatpush1.bf16.msra.mxu0 0
      %4134 = vmatprep.mubr.bf16.mxu0 %v4073
      %4135 = vmatmul.mubr.bf16.gmra.mrb[0].mxu0 %v3994
      %v4136 = vpop.f32.mrb[0].mxu0
      %v4137 = vadd.f32 0.0, %v4136
      %v4138 = vpop.f32.mrb[0].mxu0
      %v4139 = vpop.f32.mrb[0].mxu0
      %v4140 = vadd.f32 0.0, %v4139
      %v4141 = vpop.f32.mrb[0].mxu0
      %4142 = vmatprep.mubr.bf16.mxu0 %v4076
      %4143 = vmatmul.mubr.bf16.gmra.mrb[0].mxu0 %v3996
      %v4144 = vpop.f32.mrb[0].mxu0
      %v4145 = vadd.f32 0.0, %v4144
      %v4146 = vpop.f32.mrb[0].mxu0
      %v4147 = vpop.f32.mrb[0].mxu0
      %v4148 = vadd.f32 0.0, %v4147
      %v4149 = vpop.f32.mrb[0].mxu0
      %4150 = vmatprep.mubr.bf16.mxu0 %v4079
      %4151 = vmatmul.mubr.bf16.gmra.mrb[0].mxu0 %v3998
      %v4152 = vpop.f32.mrb[0].mxu0
      %v4153 = vadd.f32 0.0, %v4152
      %v4154 = vpop.f32.mrb[0].mxu0
      %v4155 = vpop.f32.mrb[0].mxu0
      %v4156 = vadd.f32 0.0, %v4155
      %v4157 = vpop.f32.mrb[0].mxu0
      %4158 = vmatprep.mubr.bf16.mxu0 %v4082
      %4159 = vmatmul.mubr.bf16.gmra.mrb[0].mxu0 %v4000
      %v4160 = vpop.f32.mrb[0].mxu0
      %v4161 = vadd.f32 0.0, %v4160
      %v4162 = vpop.f32.mrb[0].mxu0
      %v4163 = vpop.f32.mrb[0].mxu0
      %v4164 = vadd.f32 0.0, %v4163
      %v4165 = vpop.f32.mrb[0].mxu0
      %4166 = vmatprep.mubr.bf16.mxu0 %v4085
      %4167 = vmatmul.mubr.bf16.gmra.mrb[0].mxu0 %v4002
      %v4168 = vpop.f32.mrb[0].mxu0
      %v4169 = vadd.f32 0.0, %v4168
      %v4170 = vpop.f32.mrb[0].mxu0
      %v4171 = vpop.f32.mrb[0].mxu0
      %v4172 = vadd.f32 0.0, %v4171
      %v4173 = vpop.f32.mrb[0].mxu0
      %4174 = vmatprep.mubr.bf16.mxu0 %v4088
      %4175 = vmatmul.mubr.bf16.gmra.mrb[0].mxu0 %v4004
      %v4176 = vpop.f32.mrb[0].mxu0
      %v4177 = vadd.f32 0.0, %v4176
      %v4178 = vpop.f32.mrb[0].mxu0
      %v4179 = vpop.f32.mrb[0].mxu0
      %v4180 = vadd.f32 0.0, %v4179
      %v4181 = vpop.f32.mrb[0].mxu0
      %4182 = vmatprep.mubr.bf16.mxu0 %v4091
      %4183 = vmatmul.mubr.bf16.gmra.mrb[0].mxu0 %v4006
      %v4184 = vpop.f32.mrb[0].mxu0
      %v4185 = vadd.f32 0.0, %v4184
      %v4186 = vpop.f32.mrb[0].mxu0
      %v4187 = vpop.f32.mrb[0].mxu0
      %v4188 = vadd.f32 0.0, %v4187
      %v4189 = vpop.f32.mrb[0].mxu0
      %4190 = vmatprep.mubr.bf16.mxu0 %v4094
      %4191 = vmatmul.mubr.bf16.gmra.mrb[0].mxu0 %v4008
      %v4192 = vpop.f32.mrb[0].mxu0
      %v4193 = vadd.f32 0.0, %v4192
      %v4194 = vpop.f32.mrb[0].mxu0
      %v4195 = vpop.f32.mrb[0].mxu0
      %v4196 = vadd.f32 0.0, %v4195
      %v4197 = vpop.f32.mrb[0].mxu0
      %4198 = vmatprep.mubr.bf16.mxu0 %v4097
      %4199 = vmatmul.mubr.bf16.gmra.mrb[0].mxu0 %v4010
      %v4200 = vpop.f32.mrb[0].mxu0
      %v4201 = vadd.f32 0.0, %v4200
      %v4202 = vpop.f32.mrb[0].mxu0
      %v4203 = vpop.f32.mrb[0].mxu0
      %v4204 = vadd.f32 0.0, %v4203
      %v4205 = vpop.f32.mrb[0].mxu0
      %4206 = vdwg.mxu0
      %v4207 = vadd.f32 %v3878, %v4137
      %v4208 = vadd.f32 %v3879, %v4140
      %v4209 = vadd.f32 %v3880, %v4145
      %v4210 = vadd.f32 %v3881, %v4148
      %v4211 = vadd.f32 %v3882, %v4153
      %v4212 = vadd.f32 %v3883, %v4156
      %v4213 = vadd.f32 %v3884, %v4161
      %v4214 = vadd.f32 %v3885, %v4164
      %v4215 = vadd.f32 %v3886, %v4169
      %v4216 = vadd.f32 %v3887, %v4172
      %v4217 = vadd.f32 %v3888, %v4177
      %v4218 = vadd.f32 %v3889, %v4180
      %v4219 = vadd.f32 %v3890, %v4185
      %v4220 = vadd.f32 %v3891, %v4188
      %v4221 = vadd.f32 %v3892, %v4193
      %v4222 = vadd.f32 %v3893, %v4196
      %v4223 = vadd.f32 %v3894, %v4201
      %v4224 = vadd.f32 %v3895, %v4204
      %s4225 = scalar_lea.vmem %s1, 1088
      %v4226 = vld [vmem:[%s4225] sm:$0xf]
      %v4227 = vld [vmem:[%s4225 + $0x4] sm:$0xf]
      %v4228 = vld [vmem:[%s4225 + $0x8] sm:$0xf]
      %v4229 = vld [vmem:[%s4225 + $0xc] sm:$0xf]
      %v4230 = vld [vmem:[%s4225 + $0x10] sm:$0xf]
      %v4231 = vld [vmem:[%s4225 + $0x14] sm:$0xf]
      %v4232 = vld [vmem:[%s4225 + $0x18] sm:$0xf]
      %v4233 = vld [vmem:[%s4225 + $0x1c] sm:$0xf]
      %v4234 = vld [vmem:[%s4225 + $0x20] sm:$0xf]
      %v4235 = vld [vmem:[%s4225 + $0x24] sm:$0xf]
      %v4236 = vld [vmem:[%s4225 + $0x28] sm:$0xf]
      %v4237 = vld [vmem:[%s4225 + $0x2c] sm:$0xf]
      %v4238 = vld [vmem:[%s4225 + $0x30] sm:$0xf]
      %v4239 = vld [vmem:[%s4225 + $0x34] sm:$0xf]
      %v4240 = vld [vmem:[%s4225 + $0x38] sm:$0xf]
      %v4241 = vld [vmem:[%s4225 + $0x3c] sm:$0xf]
      %v4242 = vld [vmem:[%s4225 + $0x40] sm:$0x3]
      %v4245 = vunpack.c.l.b16 %v3918
      %v4246 = vunpack.c.h.b16 %v3918
      %v4247 = vunpack.c.l.b16 %v3919
      %v4248 = vunpack.c.h.b16 %v3919
      %v4249 = vpack.c.b16 %v4247, %v4245
      %v4250 = vpack.c.b16 %v4248, %v4246
      %v4269 = vunpack.c.l.b16 %v4226
      %v4270 = vunpack.c.l.b16 %v4227
      %v4271 = vunpack.c.l.b16 %v4228
      %v4272 = vunpack.c.l.b16 %v4229
      %v4273 = vunpack.c.l.b16 %v4230
      %v4274 = vunpack.c.l.b16 %v4231
      %v4275 = vunpack.c.l.b16 %v4232
      %v4276 = vunpack.c.l.b16 %v4233
      %v4277 = vunpack.c.l.b16 %v4234
      %v4278 = vunpack.c.l.b16 %v4235
      %v4279 = vunpack.c.l.b16 %v4236
      %v4280 = vunpack.c.l.b16 %v4237
      %v4281 = vunpack.c.l.b16 %v4238
      %v4282 = vunpack.c.l.b16 %v4239
      %v4283 = vunpack.c.l.b16 %v4240
      %v4284 = vunpack.c.l.b16 %v4241
      %v4285 = vunpack.c.l.b16 %v4242
      %v4286 = vpack.c.b16 %v4270, %v4269
      %v4287 = vpack.c.b16 %v4272, %v4271
      %v4288 = vpack.c.b16 %v4274, %v4273
      %v4289 = vpack.c.b16 %v4276, %v4275
      %v4290 = vpack.c.b16 %v4278, %v4277
      %v4291 = vpack.c.b16 %v4280, %v4279
      %v4292 = vpack.c.b16 %v4282, %v4281
      %v4293 = vpack.c.b16 %v4284, %v4283
      %v4294 = vpack.c.b16 %v4285, %v4285
      %v4304 = vsel %vm405, %v4250, 0
      %v4307 = vsel %vm433, %v4294, 0
      %4309 = vmatprep.subr.bf16.mxu0 0
      %4310 = vmatpush1.bf16.msra.mxu0 %v4286
      %4311 = vmatprep.subr.bf16.mxu0 0
      %4312 = vmatpush1.bf16.msra.mxu0 %v4287
      %4313 = vmatprep.subr.bf16.mxu0 0
      %4314 = vmatpush1.bf16.msra.mxu0 %v4288
      %4315 = vmatprep.subr.bf16.mxu0 0
      %4316 = vmatpush1.bf16.msra.mxu0 %v4289
      %4317 = vmatprep.subr.bf16.mxu0 0
      %4318 = vmatpush1.bf16.msra.mxu0 %v4290
      %4319 = vmatprep.subr.bf16.mxu0 0
      %4320 = vmatpush1.bf16.msra.mxu0 %v4291
      %4321 = vmatprep.subr.bf16.mxu0 0
      %4322 = vmatpush1.bf16.msra.mxu0 %v4292
      %4323 = vmatprep.subr.bf16.mxu0 0
      %4324 = vmatpush1.bf16.msra.mxu0 %v4293
      %4325 = vmatprep.subr.bf16.mxu0 0
      %4326 = vmatpush1.bf16.msra.mxu0 %v4307
      %4327 = vmatprep.subr.bf16.mxu0 0
      %4328 = vmatpush1.bf16.msra.mxu0 0
      %4329 = vmatprep.subr.bf16.mxu0 0
      %4330 = vmatpush1.bf16.msra.mxu0 0
      %4331 = vmatprep.subr.bf16.mxu0 0
      %4332 = vmatpush1.bf16.msra.mxu0 0
      %4333 = vmatprep.subr.bf16.mxu0 0
      %4334 = vmatpush1.bf16.msra.mxu0 0
      %4335 = vmatprep.subr.bf16.mxu0 0
      %4336 = vmatpush1.bf16.msra.mxu0 0
      %4337 = vmatprep.subr.bf16.mxu0 0
      %4338 = vmatpush1.bf16.msra.mxu0 0
      %4339 = vmatprep.subr.bf16.mxu0 0
      %4340 = vmatpush1.bf16.msra.mxu0 0
      %4341 = vmatprep.mubr.bf16.mxu0 %v4076
      %4342 = vmatmul.mubr.bf16.gmra.mrb[0].mxu0 %v3996
      %v4343 = vpop.f32.mrb[0].mxu0
      %v4344 = vadd.f32 0.0, %v4343
      %v4345 = vpop.f32.mrb[0].mxu0
      %v4346 = vpop.f32.mrb[0].mxu0
      %v4347 = vadd.f32 0.0, %v4346
      %v4348 = vpop.f32.mrb[0].mxu0
      %4349 = vmatprep.mubr.bf16.mxu0 %v4079
      %4350 = vmatmul.mubr.bf16.gmra.mrb[0].mxu0 %v3998
      %v4351 = vpop.f32.mrb[0].mxu0
      %v4352 = vadd.f32 0.0, %v4351
      %v4353 = vpop.f32.mrb[0].mxu0
      %v4354 = vpop.f32.mrb[0].mxu0
      %v4355 = vadd.f32 0.0, %v4354
      %v4356 = vpop.f32.mrb[0].mxu0
      %4357 = vmatprep.mubr.bf16.mxu0 %v4082
      %4358 = vmatmul.mubr.bf16.gmra.mrb[0].mxu0 %v4000
      %v4359 = vpop.f32.mrb[0].mxu0
      %v4360 = vadd.f32 0.0, %v4359
      %v4361 = vpop.f32.mrb[0].mxu0
      %v4362 = vpop.f32.mrb[0].mxu0
      %v4363 = vadd.f32 0.0, %v4362
      %v4364 = vpop.f32.mrb[0].mxu0
      %4365 = vmatprep.mubr.bf16.mxu0 %v4085
      %4366 = vmatmul.mubr.bf16.gmra.mrb[0].mxu0 %v4002
      %v4367 = vpop.f32.mrb[0].mxu0
      %v4368 = vadd.f32 0.0, %v4367
      %v4369 = vpop.f32.mrb[0].mxu0
      %v4370 = vpop.f32.mrb[0].mxu0
      %v4371 = vadd.f32 0.0, %v4370
      %v4372 = vpop.f32.mrb[0].mxu0
      %4373 = vmatprep.mubr.bf16.mxu0 %v4088
      %4374 = vmatmul.mubr.bf16.gmra.mrb[0].mxu0 %v4004
      %v4375 = vpop.f32.mrb[0].mxu0
      %v4376 = vadd.f32 0.0, %v4375
      %v4377 = vpop.f32.mrb[0].mxu0
      %v4378 = vpop.f32.mrb[0].mxu0
      %v4379 = vadd.f32 0.0, %v4378
      %v4380 = vpop.f32.mrb[0].mxu0
      %4381 = vmatprep.mubr.bf16.mxu0 %v4091
      %4382 = vmatmul.mubr.bf16.gmra.mrb[0].mxu0 %v4006
      %v4383 = vpop.f32.mrb[0].mxu0
      %v4384 = vadd.f32 0.0, %v4383
      %v4385 = vpop.f32.mrb[0].mxu0
      %v4386 = vpop.f32.mrb[0].mxu0
      %v4387 = vadd.f32 0.0, %v4386
      %v4388 = vpop.f32.mrb[0].mxu0
      %4389 = vmatprep.mubr.bf16.mxu0 %v4094
      %4390 = vmatmul.mubr.bf16.gmra.mrb[0].mxu0 %v4008
      %v4391 = vpop.f32.mrb[0].mxu0
      %v4392 = vadd.f32 0.0, %v4391
      %v4393 = vpop.f32.mrb[0].mxu0
      %v4394 = vpop.f32.mrb[0].mxu0
      %v4395 = vadd.f32 0.0, %v4394
      %v4396 = vpop.f32.mrb[0].mxu0
      %4397 = vmatprep.mubr.bf16.mxu0 %v4097
      %4398 = vmatmul.mubr.bf16.gmra.mrb[0].mxu0 %v4010
      %v4399 = vpop.f32.mrb[0].mxu0
      %v4400 = vadd.f32 0.0, %v4399
      %v4401 = vpop.f32.mrb[0].mxu0
      %v4402 = vpop.f32.mrb[0].mxu0
      %v4403 = vadd.f32 0.0, %v4402
      %v4404 = vpop.f32.mrb[0].mxu0
      %4405 = vmatprep.mubr.bf16.mxu0 %v4304
      %4406 = vmatmul.mubr.bf16.gmra.mrb[0].mxu0 %v4249
      %v4407 = vpop.f32.mrb[0].mxu0
      %v4408 = vadd.f32 0.0, %v4407
      %v4409 = vpop.f32.mrb[0].mxu0
      %v4410 = vpop.f32.mrb[0].mxu0
      %v4411 = vadd.f32 0.0, %v4410
      %v4412 = vpop.f32.mrb[0].mxu0
      %4413 = vdwg.mxu0
      %v4414 = vadd.f32 %v4207, %v4344
      %v4415 = vadd.f32 %v4208, %v4347
      %v4416 = vadd.f32 %v4209, %v4352
      %v4417 = vadd.f32 %v4210, %v4355
      %v4418 = vadd.f32 %v4211, %v4360
      %v4419 = vadd.f32 %v4212, %v4363
      %v4420 = vadd.f32 %v4213, %v4368
      %v4421 = vadd.f32 %v4214, %v4371
      %v4422 = vadd.f32 %v4215, %v4376
      %v4423 = vadd.f32 %v4216, %v4379
      %v4424 = vadd.f32 %v4217, %v4384
      %v4425 = vadd.f32 %v4218, %v4387
      %v4426 = vadd.f32 %v4219, %v4392
      %v4427 = vadd.f32 %v4220, %v4395
      %v4428 = vadd.f32 %v4221, %v4400
      %v4429 = vadd.f32 %v4222, %v4403
      %v4430 = vadd.f32 %v4223, %v4408
      %v4431 = vadd.f32 %v4224, %v4411
      %s4432 = scalar_lea.vmem %s1, 1156
      %v4433 = vld [vmem:[%s4432] sm:$0xf]
      %v4434 = vld [vmem:[%s4432 + $0x4] sm:$0xf]
      %v4435 = vld [vmem:[%s4432 + $0x8] sm:$0xf]
      %v4436 = vld [vmem:[%s4432 + $0xc] sm:$0xf]
      %v4437 = vld [vmem:[%s4432 + $0x10] sm:$0xf]
      %v4438 = vld [vmem:[%s4432 + $0x14] sm:$0xf]
      %v4439 = vld [vmem:[%s4432 + $0x18] sm:$0xf]
      %v4440 = vld [vmem:[%s4432 + $0x1c] sm:$0xf]
      %v4441 = vld [vmem:[%s4432 + $0x20] sm:$0xf]
      %v4442 = vld [vmem:[%s4432 + $0x24] sm:$0xf]
      %v4443 = vld [vmem:[%s4432 + $0x28] sm:$0xf]
      %v4444 = vld [vmem:[%s4432 + $0x2c] sm:$0xf]
      %v4445 = vld [vmem:[%s4432 + $0x30] sm:$0xf]
      %v4446 = vld [vmem:[%s4432 + $0x34] sm:$0xf]
      %v4447 = vld [vmem:[%s4432 + $0x38] sm:$0xf]
      %v4448 = vld [vmem:[%s4432 + $0x3c] sm:$0xf]
      %v4449 = vld [vmem:[%s4432 + $0x40] sm:$0x3]
      %v4452 = vunpack.c.l.b16 %v3920
      %v4453 = vunpack.c.h.b16 %v3920
      %v4454 = vunpack.c.l.b16 %v3921
      %v4455 = vunpack.c.h.b16 %v3921
      %v4456 = vpack.c.b16 %v4454, %v4452
      %v4457 = vpack.c.b16 %v4455, %v4453
      %v4476 = vunpack.c.l.b16 %v4433
      %v4477 = vunpack.c.l.b16 %v4434
      %v4478 = vunpack.c.l.b16 %v4435
      %v4479 = vunpack.c.l.b16 %v4436
      %v4480 = vunpack.c.l.b16 %v4437
      %v4481 = vunpack.c.l.b16 %v4438
      %v4482 = vunpack.c.l.b16 %v4439
      %v4483 = vunpack.c.l.b16 %v4440
      %v4484 = vunpack.c.l.b16 %v4441
      %v4485 = vunpack.c.l.b16 %v4442
      %v4486 = vunpack.c.l.b16 %v4443
      %v4487 = vunpack.c.l.b16 %v4444
      %v4488 = vunpack.c.l.b16 %v4445
      %v4489 = vunpack.c.l.b16 %v4446
      %v4490 = vunpack.c.l.b16 %v4447
      %v4491 = vunpack.c.l.b16 %v4448
      %v4492 = vunpack.c.l.b16 %v4449
      %v4493 = vpack.c.b16 %v4477, %v4476
      %v4494 = vpack.c.b16 %v4479, %v4478
      %v4495 = vpack.c.b16 %v4481, %v4480
      %v4496 = vpack.c.b16 %v4483, %v4482
      %v4497 = vpack.c.b16 %v4485, %v4484
      %v4498 = vpack.c.b16 %v4487, %v4486
      %v4499 = vpack.c.b16 %v4489, %v4488
      %v4500 = vpack.c.b16 %v4491, %v4490
      %v4501 = vpack.c.b16 %v4492, %v4492
      %v4511 = vsel %vm405, %v4457, 0
      %v4514 = vsel %vm433, %v4501, 0
      %4516 = vmatprep.subr.bf16.mxu0 0
      %4517 = vmatpush1.bf16.msra.mxu0 %v4493
      %4518 = vmatprep.subr.bf16.mxu0 0
      %4519 = vmatpush1.bf16.msra.mxu0 %v4494
      %4520 = vmatprep.subr.bf16.mxu0 0
      %4521 = vmatpush1.bf16.msra.mxu0 %v4495
      %4522 = vmatprep.subr.bf16.mxu0 0
      %4523 = vmatpush1.bf16.msra.mxu0 %v4496
      %4524 = vmatprep.subr.bf16.mxu0 0
      %4525 = vmatpush1.bf16.msra.mxu0 %v4497
      %4526 = vmatprep.subr.bf16.mxu0 0
      %4527 = vmatpush1.bf16.msra.mxu0 %v4498
      %4528 = vmatprep.subr.bf16.mxu0 0
      %4529 = vmatpush1.bf16.msra.mxu0 %v4499
      %4530 = vmatprep.subr.bf16.mxu0 0
      %4531 = vmatpush1.bf16.msra.mxu0 %v4500
      %4532 = vmatprep.subr.bf16.mxu0 0
      %4533 = vmatpush1.bf16.msra.mxu0 %v4514
      %4534 = vmatprep.subr.bf16.mxu0 0
      %4535 = vmatpush1.bf16.msra.mxu0 0
      %4536 = vmatprep.subr.bf16.mxu0 0
      %4537 = vmatpush1.bf16.msra.mxu0 0
      %4538 = vmatprep.subr.bf16.mxu0 0
      %4539 = vmatpush1.bf16.msra.mxu0 0
      %4540 = vmatprep.subr.bf16.mxu0 0
      %4541 = vmatpush1.bf16.msra.mxu0 0
      %4542 = vmatprep.subr.bf16.mxu0 0
      %4543 = vmatpush1.bf16.msra.mxu0 0
      %4544 = vmatprep.subr.bf16.mxu0 0
      %4545 = vmatpush1.bf16.msra.mxu0 0
      %4546 = vmatprep.subr.bf16.mxu0 0
      %4547 = vmatpush1.bf16.msra.mxu0 0
      %4548 = vmatprep.mubr.bf16.mxu0 %v4079
      %4549 = vmatmul.mubr.bf16.gmra.mrb[0].mxu0 %v3998
      %v4550 = vpop.f32.mrb[0].mxu0
      %v4551 = vadd.f32 0.0, %v4550
      %v4552 = vpop.f32.mrb[0].mxu0
      %v4553 = vpop.f32.mrb[0].mxu0
      %v4554 = vadd.f32 0.0, %v4553
      %v4555 = vpop.f32.mrb[0].mxu0
      %4556 = vmatprep.mubr.bf16.mxu0 %v4082
      %4557 = vmatmul.mubr.bf16.gmra.mrb[0].mxu0 %v4000
      %v4558 = vpop.f32.mrb[0].mxu0
      %v4559 = vadd.f32 0.0, %v4558
      %v4560 = vpop.f32.mrb[0].mxu0
      %v4561 = vpop.f32.mrb[0].mxu0
      %v4562 = vadd.f32 0.0, %v4561
      %v4563 = vpop.f32.mrb[0].mxu0
      %4564 = vmatprep.mubr.bf16.mxu0 %v4085
      %4565 = vmatmul.mubr.bf16.gmra.mrb[0].mxu0 %v4002
      %v4566 = vpop.f32.mrb[0].mxu0
      %v4567 = vadd.f32 0.0, %v4566
      %v4568 = vpop.f32.mrb[0].mxu0
      %v4569 = vpop.f32.mrb[0].mxu0
      %v4570 = vadd.f32 0.0, %v4569
      %v4571 = vpop.f32.mrb[0].mxu0
      %4572 = vmatprep.mubr.bf16.mxu0 %v4088
      %4573 = vmatmul.mubr.bf16.gmra.mrb[0].mxu0 %v4004
      %v4574 = vpop.f32.mrb[0].mxu0
      %v4575 = vadd.f32 0.0, %v4574
      %v4576 = vpop.f32.mrb[0].mxu0
      %v4577 = vpop.f32.mrb[0].mxu0
      %v4578 = vadd.f32 0.0, %v4577
      %v4579 = vpop.f32.mrb[0].mxu0
      %4580 = vmatprep.mubr.bf16.mxu0 %v4091
      %4581 = vmatmul.mubr.bf16.gmra.mrb[0].mxu0 %v4006
      %v4582 = vpop.f32.mrb[0].mxu0
      %v4583 = vadd.f32 0.0, %v4582
      %v4584 = vpop.f32.mrb[0].mxu0
      %v4585 = vpop.f32.mrb[0].mxu0
      %v4586 = vadd.f32 0.0, %v4585
      %v4587 = vpop.f32.mrb[0].mxu0
      %4588 = vmatprep.mubr.bf16.mxu0 %v4094
      %4589 = vmatmul.mubr.bf16.gmra.mrb[0].mxu0 %v4008
      %v4590 = vpop.f32.mrb[0].mxu0
      %v4591 = vadd.f32 0.0, %v4590
      %v4592 = vpop.f32.mrb[0].mxu0
      %v4593 = vpop.f32.mrb[0].mxu0
      %v4594 = vadd.f32 0.0, %v4593
      %v4595 = vpop.f32.mrb[0].mxu0
      %4596 = vmatprep.mubr.bf16.mxu0 %v4097
      %4597 = vmatmul.mubr.bf16.gmra.mrb[0].mxu0 %v4010
      %v4598 = vpop.f32.mrb[0].mxu0
      %v4599 = vadd.f32 0.0, %v4598
      %v4600 = vpop.f32.mrb[0].mxu0
      %v4601 = vpop.f32.mrb[0].mxu0
      %v4602 = vadd.f32 0.0, %v4601
      %v4603 = vpop.f32.mrb[0].mxu0
      %4604 = vmatprep.mubr.bf16.mxu0 %v4304
      %4605 = vmatmul.mubr.bf16.gmra.mrb[0].mxu0 %v4249
      %v4606 = vpop.f32.mrb[0].mxu0
      %v4607 = vadd.f32 0.0, %v4606
      %v4608 = vpop.f32.mrb[0].mxu0
      %v4609 = vpop.f32.mrb[0].mxu0
      %v4610 = vadd.f32 0.0, %v4609
      %v4611 = vpop.f32.mrb[0].mxu0
      %4612 = vmatprep.mubr.bf16.mxu0 %v4511
      %4613 = vmatmul.mubr.bf16.gmra.mrb[0].mxu0 %v4456
      %v4614 = vpop.f32.mrb[0].mxu0
      %v4615 = vadd.f32 0.0, %v4614
      %v4616 = vpop.f32.mrb[0].mxu0
      %v4617 = vpop.f32.mrb[0].mxu0
      %v4618 = vadd.f32 0.0, %v4617
      %v4619 = vpop.f32.mrb[0].mxu0
      %4620 = vdwg.mxu0
      %v4621 = vadd.f32 %v4414, %v4551
      %v4622 = vadd.f32 %v4415, %v4554
      %v4623 = vadd.f32 %v4416, %v4559
      %v4624 = vadd.f32 %v4417, %v4562
      %v4625 = vadd.f32 %v4418, %v4567
      %v4626 = vadd.f32 %v4419, %v4570
      %v4627 = vadd.f32 %v4420, %v4575
      %v4628 = vadd.f32 %v4421, %v4578
      %v4629 = vadd.f32 %v4422, %v4583
      %v4630 = vadd.f32 %v4423, %v4586
      %v4631 = vadd.f32 %v4424, %v4591
      %v4632 = vadd.f32 %v4425, %v4594
      %v4633 = vadd.f32 %v4426, %v4599
      %v4634 = vadd.f32 %v4427, %v4602
      %v4635 = vadd.f32 %v4428, %v4607
      %v4636 = vadd.f32 %v4429, %v4610
      %v4637 = vadd.f32 %v4430, %v4615
      %v4638 = vadd.f32 %v4431, %v4618
      %s4639 = sadd.s32 %s20, 2
      %s4640 = smul.u32 %s4639, 6
      %s4641 = sadd.s32 %s4640, %s21
      %s4642 = smul.u32 %s4641, 44
      %s4643 = smul.addr %s4642, 4
      %s4644 = scalar_lea.vmem %s196, %s4643
      %v4645 = vld [vmem:[%s4644] sm:$0xff]
      %v4646 = vld [vmem:[%s4644 + $0x8] sm:$0xff]
      %v4647 = vld [vmem:[%s4644 + $0x10] sm:$0xff]
      %v4648 = vld [vmem:[%s4644 + $0x18] sm:$0xff]
      %v4649 = vld [vmem:[%s4644 + $0x20] sm:$0xff]
      %v4650 = vld [vmem:[%s4644 + $0x28] sm:$0xff]
      %v4651 = vld [vmem:[%s4644 + $0x30] sm:$0xff]
      %v4652 = vld [vmem:[%s4644 + $0x38] sm:$0xff]
      %v4653 = vld [vmem:[%s4644 + $0x40] sm:$0xff]
      %v4654 = vld [vmem:[%s4644 + $0x48] sm:$0xff]
      %v4655 = vld [vmem:[%s4644 + $0x50] sm:$0xff]
      %v4656 = vld [vmem:[%s4644 + $0x58] sm:$0xff]
      %v4657 = vld [vmem:[%s4644 + $0x60] sm:$0xff]
      %v4658 = vld [vmem:[%s4644 + $0x68] sm:$0xff]
      %v4659 = vld [vmem:[%s4644 + $0x70] sm:$0xff]
      %v4660 = vld [vmem:[%s4644 + $0x78] sm:$0xff]
      %v4661 = vld [vmem:[%s4644 + $0x80] sm:$0xff]
      %v4662 = vld [vmem:[%s4644 + $0x88] sm:$0xff]
      %v4663 = vld [vmem:[%s4644 + $0x90] sm:$0xff]
      %v4664 = vld [vmem:[%s4644 + $0x98] sm:$0xff]
      %v4665 = vld [vmem:[%s4644 + $0xa0] sm:$0xff]
      %v4666 = vld [vmem:[%s4644 + $0xa8] sm:$0xff]
      %s4667 = scalar_lea.vmem %s1, 1224
      %v4668 = vld [vmem:[%s4667] sm:$0xf]
      %v4669 = vld [vmem:[%s4667 + $0x4] sm:$0xf]
      %v4670 = vld [vmem:[%s4667 + $0x8] sm:$0xf]
      %v4671 = vld [vmem:[%s4667 + $0xc] sm:$0xf]
      %v4672 = vld [vmem:[%s4667 + $0x10] sm:$0xf]
      %v4673 = vld [vmem:[%s4667 + $0x14] sm:$0xf]
      %v4674 = vld [vmem:[%s4667 + $0x18] sm:$0xf]
      %v4675 = vld [vmem:[%s4667 + $0x1c] sm:$0xf]
      %v4676 = vld [vmem:[%s4667 + $0x20] sm:$0xf]
      %v4677 = vld [vmem:[%s4667 + $0x24] sm:$0xf]
      %v4678 = vld [vmem:[%s4667 + $0x28] sm:$0xf]
      %v4679 = vld [vmem:[%s4667 + $0x2c] sm:$0xf]
      %v4680 = vld [vmem:[%s4667 + $0x30] sm:$0xf]
      %v4681 = vld [vmem:[%s4667 + $0x34] sm:$0xf]
      %v4682 = vld [vmem:[%s4667 + $0x38] sm:$0xf]
      %v4683 = vld [vmem:[%s4667 + $0x3c] sm:$0xf]
      %v4684 = vld [vmem:[%s4667 + $0x40] sm:$0x3]
      %v4703 = vunpack.c.l.b16 %v4645
      %v4704 = vunpack.c.h.b16 %v4645
      %v4705 = vunpack.c.l.b16 %v4646
      %v4706 = vunpack.c.h.b16 %v4646
      %v4707 = vunpack.c.l.b16 %v4647
      %v4708 = vunpack.c.h.b16 %v4647
      %v4709 = vunpack.c.l.b16 %v4648
      %v4710 = vunpack.c.h.b16 %v4648
      %v4711 = vunpack.c.l.b16 %v4649
      %v4712 = vunpack.c.h.b16 %v4649
      %v4713 = vunpack.c.l.b16 %v4650
      %v4714 = vunpack.c.h.b16 %v4650
      %v4715 = vunpack.c.l.b16 %v4651
      %v4716 = vunpack.c.h.b16 %v4651
      %v4717 = vunpack.c.l.b16 %v4652
      %v4718 = vunpack.c.h.b16 %v4652
      %v4719 = vunpack.c.l.b16 %v4653
      %v4720 = vunpack.c.h.b16 %v4653
      %v4721 = vunpack.c.l.b16 %v4654
      %v4722 = vunpack.c.h.b16 %v4654
      %v4723 = vunpack.c.l.b16 %v4655
      %v4724 = vunpack.c.h.b16 %v4655
      %v4725 = vunpack.c.l.b16 %v4656
      %v4726 = vunpack.c.h.b16 %v4656
      %v4727 = vunpack.c.l.b16 %v4657
      %v4728 = vunpack.c.h.b16 %v4657
      %v4729 = vunpack.c.l.b16 %v4658
      %v4730 = vunpack.c.h.b16 %v4658
      %v4731 = vunpack.c.l.b16 %v4659
      %v4732 = vunpack.c.h.b16 %v4659
      %v4733 = vunpack.c.l.b16 %v4660
      %v4734 = vunpack.c.h.b16 %v4660
      %v4735 = vunpack.c.l.b16 %v4661
      %v4736 = vunpack.c.h.b16 %v4661
      %v4737 = vunpack.c.l.b16 %v4662
      %v4738 = vunpack.c.h.b16 %v4662
      %v4739 = vpack.c.b16 %v4705, %v4703
      %v4740 = vpack.c.b16 %v4706, %v4704
      %v4741 = vpack.c.b16 %v4709, %v4707
      %v4742 = vpack.c.b16 %v4710, %v4708
      %v4743 = vpack.c.b16 %v4713, %v4711
      %v4744 = vpack.c.b16 %v4714, %v4712
      %v4745 = vpack.c.b16 %v4717, %v4715
      %v4746 = vpack.c.b16 %v4718, %v4716
      %v4747 = vpack.c.b16 %v4721, %v4719
      %v4748 = vpack.c.b16 %v4722, %v4720
      %v4749 = vpack.c.b16 %v4725, %v4723
      %v4750 = vpack.c.b16 %v4726, %v4724
      %v4751 = vpack.c.b16 %v4729, %v4727
      %v4752 = vpack.c.b16 %v4730, %v4728
      %v4753 = vpack.c.b16 %v4733, %v4731
      %v4754 = vpack.c.b16 %v4734, %v4732
      %v4755 = vpack.c.b16 %v4737, %v4735
      %v4756 = vpack.c.b16 %v4738, %v4736
      %v4783 = vunpack.c.l.b16 %v4668
      %v4784 = vunpack.c.l.b16 %v4669
      %v4785 = vunpack.c.l.b16 %v4670
      %v4786 = vunpack.c.l.b16 %v4671
      %v4787 = vunpack.c.l.b16 %v4672
      %v4788 = vunpack.c.l.b16 %v4673
      %v4789 = vunpack.c.l.b16 %v4674
      %v4790 = vunpack.c.l.b16 %v4675
      %v4791 = vunpack.c.l.b16 %v4676
      %v4792 = vunpack.c.l.b16 %v4677
      %v4793 = vunpack.c.l.b16 %v4678
      %v4794 = vunpack.c.l.b16 %v4679
      %v4795 = vunpack.c.l.b16 %v4680
      %v4796 = vunpack.c.l.b16 %v4681
      %v4797 = vunpack.c.l.b16 %v4682
      %v4798 = vunpack.c.l.b16 %v4683
      %v4799 = vunpack.c.l.b16 %v4684
      %v4800 = vpack.c.b16 %v4784, %v4783
      %v4801 = vpack.c.b16 %v4786, %v4785
      %v4802 = vpack.c.b16 %v4788, %v4787
      %v4803 = vpack.c.b16 %v4790, %v4789
      %v4804 = vpack.c.b16 %v4792, %v4791
      %v4805 = vpack.c.b16 %v4794, %v4793
      %v4806 = vpack.c.b16 %v4796, %v4795
      %v4807 = vpack.c.b16 %v4798, %v4797
      %v4808 = vpack.c.b16 %v4799, %v4799
      %v4818 = vsel %vm405, %v4740, 0
      %v4821 = vsel %vm405, %v4742, 0
      %v4824 = vsel %vm405, %v4744, 0
      %v4827 = vsel %vm405, %v4746, 0
      %v4830 = vsel %vm405, %v4748, 0
      %v4833 = vsel %vm405, %v4750, 0
      %v4836 = vsel %vm405, %v4752, 0
      %v4839 = vsel %vm405, %v4754, 0
      %v4842 = vsel %vm405, %v4756, 0
      %v4845 = vsel %vm433, %v4808, 0
      %4847 = vmatprep.subr.bf16.mxu0 0
      %4848 = vmatpush1.bf16.msra.mxu0 %v4800
      %4849 = vmatprep.subr.bf16.mxu0 0
      %4850 = vmatpush1.bf16.msra.mxu0 %v4801
      %4851 = vmatprep.subr.bf16.mxu0 0
      %4852 = vmatpush1.bf16.msra.mxu0 %v4802
      %4853 = vmatprep.subr.bf16.mxu0 0
      %4854 = vmatpush1.bf16.msra.mxu0 %v4803
      %4855 = vmatprep.subr.bf16.mxu0 0
      %4856 = vmatpush1.bf16.msra.mxu0 %v4804
      %4857 = vmatprep.subr.bf16.mxu0 0
      %4858 = vmatpush1.bf16.msra.mxu0 %v4805
      %4859 = vmatprep.subr.bf16.mxu0 0
      %4860 = vmatpush1.bf16.msra.mxu0 %v4806
      %4861 = vmatprep.subr.bf16.mxu0 0
      %4862 = vmatpush1.bf16.msra.mxu0 %v4807
      %4863 = vmatprep.subr.bf16.mxu0 0
      %4864 = vmatpush1.bf16.msra.mxu0 %v4845
      %4865 = vmatprep.subr.bf16.mxu0 0
      %4866 = vmatpush1.bf16.msra.mxu0 0
      %4867 = vmatprep.subr.bf16.mxu0 0
      %4868 = vmatpush1.bf16.msra.mxu0 0
      %4869 = vmatprep.subr.bf16.mxu0 0
      %4870 = vmatpush1.bf16.msra.mxu0 0
      %4871 = vmatprep.subr.bf16.mxu0 0
      %4872 = vmatpush1.bf16.msra.mxu0 0
      %4873 = vmatprep.subr.bf16.mxu0 0
      %4874 = vmatpush1.bf16.msra.mxu0 0
      %4875 = vmatprep.subr.bf16.mxu0 0
      %4876 = vmatpush1.bf16.msra.mxu0 0
      %4877 = vmatprep.subr.bf16.mxu0 0
      %4878 = vmatpush1.bf16.msra.mxu0 0
      %4879 = vmatprep.mubr.bf16.mxu0 %v4818
      %4880 = vmatmul.mubr.bf16.gmra.mrb[0].mxu0 %v4739
      %v4881 = vpop.f32.mrb[0].mxu0
      %v4882 = vadd.f32 0.0, %v4881
      %v4883 = vpop.f32.mrb[0].mxu0
      %v4884 = vpop.f32.mrb[0].mxu0
      %v4885 = vadd.f32 0.0, %v4884
      %v4886 = vpop.f32.mrb[0].mxu0
      %4887 = vmatprep.mubr.bf16.mxu0 %v4821
      %4888 = vmatmul.mubr.bf16.gmra.mrb[0].mxu0 %v4741
      %v4889 = vpop.f32.mrb[0].mxu0
      %v4890 = vadd.f32 0.0, %v4889
      %v4891 = vpop.f32.mrb[0].mxu0
      %v4892 = vpop.f32.mrb[0].mxu0
      %v4893 = vadd.f32 0.0, %v4892
      %v4894 = vpop.f32.mrb[0].mxu0
      %4895 = vmatprep.mubr.bf16.mxu0 %v4824
      %4896 = vmatmul.mubr.bf16.gmra.mrb[0].mxu0 %v4743
      %v4897 = vpop.f32.mrb[0].mxu0
      %v4898 = vadd.f32 0.0, %v4897
      %v4899 = vpop.f32.mrb[0].mxu0
      %v4900 = vpop.f32.mrb[0].mxu0
      %v4901 = vadd.f32 0.0, %v4900
      %v4902 = vpop.f32.mrb[0].mxu0
      %4903 = vmatprep.mubr.bf16.mxu0 %v4827
      %4904 = vmatmul.mubr.bf16.gmra.mrb[0].mxu0 %v4745
      %v4905 = vpop.f32.mrb[0].mxu0
      %v4906 = vadd.f32 0.0, %v4905
      %v4907 = vpop.f32.mrb[0].mxu0
      %v4908 = vpop.f32.mrb[0].mxu0
      %v4909 = vadd.f32 0.0, %v4908
      %v4910 = vpop.f32.mrb[0].mxu0
      %4911 = vmatprep.mubr.bf16.mxu0 %v4830
      %4912 = vmatmul.mubr.bf16.gmra.mrb[0].mxu0 %v4747
      %v4913 = vpop.f32.mrb[0].mxu0
      %v4914 = vadd.f32 0.0, %v4913
      %v4915 = vpop.f32.mrb[0].mxu0
      %v4916 = vpop.f32.mrb[0].mxu0
      %v4917 = vadd.f32 0.0, %v4916
      %v4918 = vpop.f32.mrb[0].mxu0
      %4919 = vmatprep.mubr.bf16.mxu0 %v4833
      %4920 = vmatmul.mubr.bf16.gmra.mrb[0].mxu0 %v4749
      %v4921 = vpop.f32.mrb[0].mxu0
      %v4922 = vadd.f32 0.0, %v4921
      %v4923 = vpop.f32.mrb[0].mxu0
      %v4924 = vpop.f32.mrb[0].mxu0
      %v4925 = vadd.f32 0.0, %v4924
      %v4926 = vpop.f32.mrb[0].mxu0
      %4927 = vmatprep.mubr.bf16.mxu0 %v4836
      %4928 = vmatmul.mubr.bf16.gmra.mrb[0].mxu0 %v4751
      %v4929 = vpop.f32.mrb[0].mxu0
      %v4930 = vadd.f32 0.0, %v4929
      %v4931 = vpop.f32.mrb[0].mxu0
      %v4932 = vpop.f32.mrb[0].mxu0
      %v4933 = vadd.f32 0.0, %v4932
      %v4934 = vpop.f32.mrb[0].mxu0
      %4935 = vmatprep.mubr.bf16.mxu0 %v4839
      %4936 = vmatmul.mubr.bf16.gmra.mrb[0].mxu0 %v4753
      %v4937 = vpop.f32.mrb[0].mxu0
      %v4938 = vadd.f32 0.0, %v4937
      %v4939 = vpop.f32.mrb[0].mxu0
      %v4940 = vpop.f32.mrb[0].mxu0
      %v4941 = vadd.f32 0.0, %v4940
      %v4942 = vpop.f32.mrb[0].mxu0
      %4943 = vmatprep.mubr.bf16.mxu0 %v4842
      %4944 = vmatmul.mubr.bf16.gmra.mrb[0].mxu0 %v4755
      %v4945 = vpop.f32.mrb[0].mxu0
      %v4946 = vadd.f32 0.0, %v4945
      %v4947 = vpop.f32.mrb[0].mxu0
      %v4948 = vpop.f32.mrb[0].mxu0
      %v4949 = vadd.f32 0.0, %v4948
      %v4950 = vpop.f32.mrb[0].mxu0
      %4951 = vdwg.mxu0
      %v4952 = vadd.f32 %v4621, %v4882
      %v4953 = vadd.f32 %v4622, %v4885
      %v4954 = vadd.f32 %v4623, %v4890
      %v4955 = vadd.f32 %v4624, %v4893
      %v4956 = vadd.f32 %v4625, %v4898
      %v4957 = vadd.f32 %v4626, %v4901
      %v4958 = vadd.f32 %v4627, %v4906
      %v4959 = vadd.f32 %v4628, %v4909
      %v4960 = vadd.f32 %v4629, %v4914
      %v4961 = vadd.f32 %v4630, %v4917
      %v4962 = vadd.f32 %v4631, %v4922
      %v4963 = vadd.f32 %v4632, %v4925
      %v4964 = vadd.f32 %v4633, %v4930
      %v4965 = vadd.f32 %v4634, %v4933
      %v4966 = vadd.f32 %v4635, %v4938
      %v4967 = vadd.f32 %v4636, %v4941
      %v4968 = vadd.f32 %v4637, %v4946
      %v4969 = vadd.f32 %v4638, %v4949
      %s4970 = scalar_lea.vmem %s1, 1292
      %v4971 = vld [vmem:[%s4970] sm:$0xf]
      %v4972 = vld [vmem:[%s4970 + $0x4] sm:$0xf]
      %v4973 = vld [vmem:[%s4970 + $0x8] sm:$0xf]
      %v4974 = vld [vmem:[%s4970 + $0xc] sm:$0xf]
      %v4975 = vld [vmem:[%s4970 + $0x10] sm:$0xf]
      %v4976 = vld [vmem:[%s4970 + $0x14] sm:$0xf]
      %v4977 = vld [vmem:[%s4970 + $0x18] sm:$0xf]
      %v4978 = vld [vmem:[%s4970 + $0x1c] sm:$0xf]
      %v4979 = vld [vmem:[%s4970 + $0x20] sm:$0xf]
      %v4980 = vld [vmem:[%s4970 + $0x24] sm:$0xf]
      %v4981 = vld [vmem:[%s4970 + $0x28] sm:$0xf]
      %v4982 = vld [vmem:[%s4970 + $0x2c] sm:$0xf]
      %v4983 = vld [vmem:[%s4970 + $0x30] sm:$0xf]
      %v4984 = vld [vmem:[%s4970 + $0x34] sm:$0xf]
      %v4985 = vld [vmem:[%s4970 + $0x38] sm:$0xf]
      %v4986 = vld [vmem:[%s4970 + $0x3c] sm:$0xf]
      %v4987 = vld [vmem:[%s4970 + $0x40] sm:$0x3]
      %v4990 = vunpack.c.l.b16 %v4663
      %v4991 = vunpack.c.h.b16 %v4663
      %v4992 = vunpack.c.l.b16 %v4664
      %v4993 = vunpack.c.h.b16 %v4664
      %v4994 = vpack.c.b16 %v4992, %v4990
      %v4995 = vpack.c.b16 %v4993, %v4991
      %v5014 = vunpack.c.l.b16 %v4971
      %v5015 = vunpack.c.l.b16 %v4972
      %v5016 = vunpack.c.l.b16 %v4973
      %v5017 = vunpack.c.l.b16 %v4974
      %v5018 = vunpack.c.l.b16 %v4975
      %v5019 = vunpack.c.l.b16 %v4976
      %v5020 = vunpack.c.l.b16 %v4977
      %v5021 = vunpack.c.l.b16 %v4978
      %v5022 = vunpack.c.l.b16 %v4979
      %v5023 = vunpack.c.l.b16 %v4980
      %v5024 = vunpack.c.l.b16 %v4981
      %v5025 = vunpack.c.l.b16 %v4982
      %v5026 = vunpack.c.l.b16 %v4983
      %v5027 = vunpack.c.l.b16 %v4984
      %v5028 = vunpack.c.l.b16 %v4985
      %v5029 = vunpack.c.l.b16 %v4986
      %v5030 = vunpack.c.l.b16 %v4987
      %v5031 = vpack.c.b16 %v5015, %v5014
      %v5032 = vpack.c.b16 %v5017, %v5016
      %v5033 = vpack.c.b16 %v5019, %v5018
      %v5034 = vpack.c.b16 %v5021, %v5020
      %v5035 = vpack.c.b16 %v5023, %v5022
      %v5036 = vpack.c.b16 %v5025, %v5024
      %v5037 = vpack.c.b16 %v5027, %v5026
      %v5038 = vpack.c.b16 %v5029, %v5028
      %v5039 = vpack.c.b16 %v5030, %v5030
      %v5049 = vsel %vm405, %v4995, 0
      %v5052 = vsel %vm433, %v5039, 0
      %5054 = vmatprep.subr.bf16.mxu0 0
      %5055 = vmatpush1.bf16.msra.mxu0 %v5031
      %5056 = vmatprep.subr.bf16.mxu0 0
      %5057 = vmatpush1.bf16.msra.mxu0 %v5032
      %5058 = vmatprep.subr.bf16.mxu0 0
      %5059 = vmatpush1.bf16.msra.mxu0 %v5033
      %5060 = vmatprep.subr.bf16.mxu0 0
      %5061 = vmatpush1.bf16.msra.mxu0 %v5034
      %5062 = vmatprep.subr.bf16.mxu0 0
      %5063 = vmatpush1.bf16.msra.mxu0 %v5035
      %5064 = vmatprep.subr.bf16.mxu0 0
      %5065 = vmatpush1.bf16.msra.mxu0 %v5036
      %5066 = vmatprep.subr.bf16.mxu0 0
      %5067 = vmatpush1.bf16.msra.mxu0 %v5037
      %5068 = vmatprep.subr.bf16.mxu0 0
      %5069 = vmatpush1.bf16.msra.mxu0 %v5038
      %5070 = vmatprep.subr.bf16.mxu0 0
      %5071 = vmatpush1.bf16.msra.mxu0 %v5052
      %5072 = vmatprep.subr.bf16.mxu0 0
      %5073 = vmatpush1.bf16.msra.mxu0 0
      %5074 = vmatprep.subr.bf16.mxu0 0
      %5075 = vmatpush1.bf16.msra.mxu0 0
      %5076 = vmatprep.subr.bf16.mxu0 0
      %5077 = vmatpush1.bf16.msra.mxu0 0
      %5078 = vmatprep.subr.bf16.mxu0 0
      %5079 = vmatpush1.bf16.msra.mxu0 0
      %5080 = vmatprep.subr.bf16.mxu0 0
      %5081 = vmatpush1.bf16.msra.mxu0 0
      %5082 = vmatprep.subr.bf16.mxu0 0
      %5083 = vmatpush1.bf16.msra.mxu0 0
      %5084 = vmatprep.subr.bf16.mxu0 0
      %5085 = vmatpush1.bf16.msra.mxu0 0
      %5086 = vmatprep.mubr.bf16.mxu0 %v4821
      %5087 = vmatmul.mubr.bf16.gmra.mrb[0].mxu0 %v4741
      %v5088 = vpop.f32.mrb[0].mxu0
      %v5089 = vadd.f32 0.0, %v5088
      %v5090 = vpop.f32.mrb[0].mxu0
      %v5091 = vpop.f32.mrb[0].mxu0
      %v5092 = vadd.f32 0.0, %v5091
      %v5093 = vpop.f32.mrb[0].mxu0
      %5094 = vmatprep.mubr.bf16.mxu0 %v4824
      %5095 = vmatmul.mubr.bf16.gmra.mrb[0].mxu0 %v4743
      %v5096 = vpop.f32.mrb[0].mxu0
      %v5097 = vadd.f32 0.0, %v5096
      %v5098 = vpop.f32.mrb[0].mxu0
      %v5099 = vpop.f32.mrb[0].mxu0
      %v5100 = vadd.f32 0.0, %v5099
      %v5101 = vpop.f32.mrb[0].mxu0
      %5102 = vmatprep.mubr.bf16.mxu0 %v4827
      %5103 = vmatmul.mubr.bf16.gmra.mrb[0].mxu0 %v4745
      %v5104 = vpop.f32.mrb[0].mxu0
      %v5105 = vadd.f32 0.0, %v5104
      %v5106 = vpop.f32.mrb[0].mxu0
      %v5107 = vpop.f32.mrb[0].mxu0
      %v5108 = vadd.f32 0.0, %v5107
      %v5109 = vpop.f32.mrb[0].mxu0
      %5110 = vmatprep.mubr.bf16.mxu0 %v4830
      %5111 = vmatmul.mubr.bf16.gmra.mrb[0].mxu0 %v4747
      %v5112 = vpop.f32.mrb[0].mxu0
      %v5113 = vadd.f32 0.0, %v5112
      %v5114 = vpop.f32.mrb[0].mxu0
      %v5115 = vpop.f32.mrb[0].mxu0
      %v5116 = vadd.f32 0.0, %v5115
      %v5117 = vpop.f32.mrb[0].mxu0
      %5118 = vmatprep.mubr.bf16.mxu0 %v4833
      %5119 = vmatmul.mubr.bf16.gmra.mrb[0].mxu0 %v4749
      %v5120 = vpop.f32.mrb[0].mxu0
      %v5121 = vadd.f32 0.0, %v5120
      %v5122 = vpop.f32.mrb[0].mxu0
      %v5123 = vpop.f32.mrb[0].mxu0
      %v5124 = vadd.f32 0.0, %v5123
      %v5125 = vpop.f32.mrb[0].mxu0
      %5126 = vmatprep.mubr.bf16.mxu0 %v4836
      %5127 = vmatmul.mubr.bf16.gmra.mrb[0].mxu0 %v4751
      %v5128 = vpop.f32.mrb[0].mxu0
      %v5129 = vadd.f32 0.0, %v5128
      %v5130 = vpop.f32.mrb[0].mxu0
      %v5131 = vpop.f32.mrb[0].mxu0
      %v5132 = vadd.f32 0.0, %v5131
      %v5133 = vpop.f32.mrb[0].mxu0
      %5134 = vmatprep.mubr.bf16.mxu0 %v4839
      %5135 = vmatmul.mubr.bf16.gmra.mrb[0].mxu0 %v4753
      %v5136 = vpop.f32.mrb[0].mxu0
      %v5137 = vadd.f32 0.0, %v5136
      %v5138 = vpop.f32.mrb[0].mxu0
      %v5139 = vpop.f32.mrb[0].mxu0
      %v5140 = vadd.f32 0.0, %v5139
      %v5141 = vpop.f32.mrb[0].mxu0
      %5142 = vmatprep.mubr.bf16.mxu0 %v4842
      %5143 = vmatmul.mubr.bf16.gmra.mrb[0].mxu0 %v4755
      %v5144 = vpop.f32.mrb[0].mxu0
      %v5145 = vadd.f32 0.0, %v5144
      %v5146 = vpop.f32.mrb[0].mxu0
      %v5147 = vpop.f32.mrb[0].mxu0
      %v5148 = vadd.f32 0.0, %v5147
      %v5149 = vpop.f32.mrb[0].mxu0
      %5150 = vmatprep.mubr.bf16.mxu0 %v5049
      %5151 = vmatmul.mubr.bf16.gmra.mrb[0].mxu0 %v4994
      %v5152 = vpop.f32.mrb[0].mxu0
      %v5153 = vadd.f32 0.0, %v5152
      %v5154 = vpop.f32.mrb[0].mxu0
      %v5155 = vpop.f32.mrb[0].mxu0
      %v5156 = vadd.f32 0.0, %v5155
      %v5157 = vpop.f32.mrb[0].mxu0
      %5158 = vdwg.mxu0
      %v5159 = vadd.f32 %v4952, %v5089
      %v5160 = vadd.f32 %v4953, %v5092
      %v5161 = vadd.f32 %v4954, %v5097
      %v5162 = vadd.f32 %v4955, %v5100
      %v5163 = vadd.f32 %v4956, %v5105
      %v5164 = vadd.f32 %v4957, %v5108
      %v5165 = vadd.f32 %v4958, %v5113
      %v5166 = vadd.f32 %v4959, %v5116
      %v5167 = vadd.f32 %v4960, %v5121
      %v5168 = vadd.f32 %v4961, %v5124
      %v5169 = vadd.f32 %v4962, %v5129
      %v5170 = vadd.f32 %v4963, %v5132
      %v5171 = vadd.f32 %v4964, %v5137
      %v5172 = vadd.f32 %v4965, %v5140
      %v5173 = vadd.f32 %v4966, %v5145
      %v5174 = vadd.f32 %v4967, %v5148
      %v5175 = vadd.f32 %v4968, %v5153
      %v5176 = vadd.f32 %v4969, %v5156
      %s5177 = scalar_lea.vmem %s1, 1360
      %v5178 = vld [vmem:[%s5177] sm:$0xf]
      %v5179 = vld [vmem:[%s5177 + $0x4] sm:$0xf]
      %v5180 = vld [vmem:[%s5177 + $0x8] sm:$0xf]
      %v5181 = vld [vmem:[%s5177 + $0xc] sm:$0xf]
      %v5182 = vld [vmem:[%s5177 + $0x10] sm:$0xf]
      %v5183 = vld [vmem:[%s5177 + $0x14] sm:$0xf]
      %v5184 = vld [vmem:[%s5177 + $0x18] sm:$0xf]
      %v5185 = vld [vmem:[%s5177 + $0x1c] sm:$0xf]
      %v5186 = vld [vmem:[%s5177 + $0x20] sm:$0xf]
      %v5187 = vld [vmem:[%s5177 + $0x24] sm:$0xf]
      %v5188 = vld [vmem:[%s5177 + $0x28] sm:$0xf]
      %v5189 = vld [vmem:[%s5177 + $0x2c] sm:$0xf]
      %v5190 = vld [vmem:[%s5177 + $0x30] sm:$0xf]
      %v5191 = vld [vmem:[%s5177 + $0x34] sm:$0xf]
      %v5192 = vld [vmem:[%s5177 + $0x38] sm:$0xf]
      %v5193 = vld [vmem:[%s5177 + $0x3c] sm:$0xf]
      %v5194 = vld [vmem:[%s5177 + $0x40] sm:$0x3]
      %v5197 = vunpack.c.l.b16 %v4665
      %v5198 = vunpack.c.h.b16 %v4665
      %v5199 = vunpack.c.l.b16 %v4666
      %v5200 = vunpack.c.h.b16 %v4666
      %v5201 = vpack.c.b16 %v5199, %v5197
      %v5202 = vpack.c.b16 %v5200, %v5198
      %v5221 = vunpack.c.l.b16 %v5178
      %v5222 = vunpack.c.l.b16 %v5179
      %v5223 = vunpack.c.l.b16 %v5180
      %v5224 = vunpack.c.l.b16 %v5181
      %v5225 = vunpack.c.l.b16 %v5182
      %v5226 = vunpack.c.l.b16 %v5183
      %v5227 = vunpack.c.l.b16 %v5184
      %v5228 = vunpack.c.l.b16 %v5185
      %v5229 = vunpack.c.l.b16 %v5186
      %v5230 = vunpack.c.l.b16 %v5187
      %v5231 = vunpack.c.l.b16 %v5188
      %v5232 = vunpack.c.l.b16 %v5189
      %v5233 = vunpack.c.l.b16 %v5190
      %v5234 = vunpack.c.l.b16 %v5191
      %v5235 = vunpack.c.l.b16 %v5192
      %v5236 = vunpack.c.l.b16 %v5193
      %v5237 = vunpack.c.l.b16 %v5194
      %v5238 = vpack.c.b16 %v5222, %v5221
      %v5239 = vpack.c.b16 %v5224, %v5223
      %v5240 = vpack.c.b16 %v5226, %v5225
      %v5241 = vpack.c.b16 %v5228, %v5227
      %v5242 = vpack.c.b16 %v5230, %v5229
      %v5243 = vpack.c.b16 %v5232, %v5231
      %v5244 = vpack.c.b16 %v5234, %v5233
      %v5245 = vpack.c.b16 %v5236, %v5235
      %v5246 = vpack.c.b16 %v5237, %v5237
      %v5256 = vsel %vm405, %v5202, 0
      %v5259 = vsel %vm433, %v5246, 0
      %5261 = vmatprep.subr.bf16.mxu0 0
      %5262 = vmatpush1.bf16.msra.mxu0 %v5238
      %5263 = vmatprep.subr.bf16.mxu0 0
      %5264 = vmatpush1.bf16.msra.mxu0 %v5239
      %5265 = vmatprep.subr.bf16.mxu0 0
      %5266 = vmatpush1.bf16.msra.mxu0 %v5240
      %5267 = vmatprep.subr.bf16.mxu0 0
      %5268 = vmatpush1.bf16.msra.mxu0 %v5241
      %5269 = vmatprep.subr.bf16.mxu0 0
      %5270 = vmatpush1.bf16.msra.mxu0 %v5242
      %5271 = vmatprep.subr.bf16.mxu0 0
      %5272 = vmatpush1.bf16.msra.mxu0 %v5243
      %5273 = vmatprep.subr.bf16.mxu0 0
      %5274 = vmatpush1.bf16.msra.mxu0 %v5244
      %5275 = vmatprep.subr.bf16.mxu0 0
      %5276 = vmatpush1.bf16.msra.mxu0 %v5245
      %5277 = vmatprep.subr.bf16.mxu0 0
      %5278 = vmatpush1.bf16.msra.mxu0 %v5259
      %5279 = vmatprep.subr.bf16.mxu0 0
      %5280 = vmatpush1.bf16.msra.mxu0 0
      %5281 = vmatprep.subr.bf16.mxu0 0
      %5282 = vmatpush1.bf16.msra.mxu0 0
      %5283 = vmatprep.subr.bf16.mxu0 0
      %5284 = vmatpush1.bf16.msra.mxu0 0
      %5285 = vmatprep.subr.bf16.mxu0 0
      %5286 = vmatpush1.bf16.msra.mxu0 0
      %5287 = vmatprep.subr.bf16.mxu0 0
      %5288 = vmatpush1.bf16.msra.mxu0 0
      %5289 = vmatprep.subr.bf16.mxu0 0
      %5290 = vmatpush1.bf16.msra.mxu0 0
      %5291 = vmatprep.subr.bf16.mxu0 0
      %5292 = vmatpush1.bf16.msra.mxu0 0
      %5293 = vmatprep.mubr.bf16.mxu0 %v4824
      %5294 = vmatmul.mubr.bf16.gmra.mrb[0].mxu0 %v4743
      %v5295 = vpop.f32.mrb[0].mxu0
      %v5296 = vadd.f32 0.0, %v5295
      %v5297 = vpop.f32.mrb[0].mxu0
      %v5298 = vpop.f32.mrb[0].mxu0
      %v5299 = vadd.f32 0.0, %v5298
      %v5300 = vpop.f32.mrb[0].mxu0
      %5301 = vmatprep.mubr.bf16.mxu0 %v4827
      %5302 = vmatmul.mubr.bf16.gmra.mrb[0].mxu0 %v4745
      %v5303 = vpop.f32.mrb[0].mxu0
      %v5304 = vadd.f32 0.0, %v5303
      %v5305 = vpop.f32.mrb[0].mxu0
      %v5306 = vpop.f32.mrb[0].mxu0
      %v5307 = vadd.f32 0.0, %v5306
      %v5308 = vpop.f32.mrb[0].mxu0
      %5309 = vmatprep.mubr.bf16.mxu0 %v4830
      %5310 = vmatmul.mubr.bf16.gmra.mrb[0].mxu0 %v4747
      %v5311 = vpop.f32.mrb[0].mxu0
      %v5312 = vadd.f32 0.0, %v5311
      %v5313 = vpop.f32.mrb[0].mxu0
      %v5314 = vpop.f32.mrb[0].mxu0
      %v5315 = vadd.f32 0.0, %v5314
      %v5316 = vpop.f32.mrb[0].mxu0
      %5317 = vmatprep.mubr.bf16.mxu0 %v4833
      %5318 = vmatmul.mubr.bf16.gmra.mrb[0].mxu0 %v4749
      %v5319 = vpop.f32.mrb[0].mxu0
      %v5320 = vadd.f32 0.0, %v5319
      %v5321 = vpop.f32.mrb[0].mxu0
      %v5322 = vpop.f32.mrb[0].mxu0
      %v5323 = vadd.f32 0.0, %v5322
      %v5324 = vpop.f32.mrb[0].mxu0
      %5325 = vmatprep.mubr.bf16.mxu0 %v4836
      %5326 = vmatmul.mubr.bf16.gmra.mrb[0].mxu0 %v4751
      %v5327 = vpop.f32.mrb[0].mxu0
      %v5328 = vadd.f32 0.0, %v5327
      %v5329 = vpop.f32.mrb[0].mxu0
      %v5330 = vpop.f32.mrb[0].mxu0
      %v5331 = vadd.f32 0.0, %v5330
      %v5332 = vpop.f32.mrb[0].mxu0
      %5333 = vmatprep.mubr.bf16.mxu0 %v4839
      %5334 = vmatmul.mubr.bf16.gmra.mrb[0].mxu0 %v4753
      %v5335 = vpop.f32.mrb[0].mxu0
      %v5336 = vadd.f32 0.0, %v5335
      %v5337 = vpop.f32.mrb[0].mxu0
      %v5338 = vpop.f32.mrb[0].mxu0
      %v5339 = vadd.f32 0.0, %v5338
      %v5340 = vpop.f32.mrb[0].mxu0
      %5341 = vmatprep.mubr.bf16.mxu0 %v4842
      %5342 = vmatmul.mubr.bf16.gmra.mrb[0].mxu0 %v4755
      %v5343 = vpop.f32.mrb[0].mxu0
      %v5344 = vadd.f32 0.0, %v5343
      %v5345 = vpop.f32.mrb[0].mxu0
      %v5346 = vpop.f32.mrb[0].mxu0
      %v5347 = vadd.f32 0.0, %v5346
      %v5348 = vpop.f32.mrb[0].mxu0
      %5349 = vmatprep.mubr.bf16.mxu0 %v5049
      %5350 = vmatmul.mubr.bf16.gmra.mrb[0].mxu0 %v4994
      %v5351 = vpop.f32.mrb[0].mxu0
      %v5352 = vadd.f32 0.0, %v5351
      %v5353 = vpop.f32.mrb[0].mxu0
      %v5354 = vpop.f32.mrb[0].mxu0
      %v5355 = vadd.f32 0.0, %v5354
      %v5356 = vpop.f32.mrb[0].mxu0
      %5357 = vmatprep.mubr.bf16.mxu0 %v5256
      %5358 = vmatmul.mubr.bf16.gmra.mrb[0].mxu0 %v5201
      %v5359 = vpop.f32.mrb[0].mxu0
      %v5360 = vadd.f32 0.0, %v5359
      %v5361 = vpop.f32.mrb[0].mxu0
      %v5362 = vpop.f32.mrb[0].mxu0
      %v5363 = vadd.f32 0.0, %v5362
      %v5364 = vpop.f32.mrb[0].mxu0
      %5365 = vdwg.mxu0
      %v5366 = vadd.f32 %v5159, %v5296
      %v5367 = vadd.f32 %v5160, %v5299
      %v5368 = vadd.f32 %v5161, %v5304
      %v5369 = vadd.f32 %v5162, %v5307
      %v5370 = vadd.f32 %v5163, %v5312
      %v5371 = vadd.f32 %v5164, %v5315
      %v5372 = vadd.f32 %v5165, %v5320
      %v5373 = vadd.f32 %v5166, %v5323
      %v5374 = vadd.f32 %v5167, %v5328
      %v5375 = vadd.f32 %v5168, %v5331
      %v5376 = vadd.f32 %v5169, %v5336
      %v5377 = vadd.f32 %v5170, %v5339
      %v5378 = vadd.f32 %v5171, %v5344
      %v5379 = vadd.f32 %v5172, %v5347
      %v5380 = vadd.f32 %v5173, %v5352
      %v5381 = vadd.f32 %v5174, %v5355
      %v5382 = vadd.f32 %v5175, %v5360
      %v5383 = vadd.f32 %v5176, %v5363
      %s5384 = sadd.s32 %s4640, %s920
      %s5385 = smul.u32 %s5384, 44
      %s5386 = smul.addr %s5385, 4
      %s5387 = scalar_lea.vmem %s196, %s5386
      %v5388 = vld [vmem:[%s5387] sm:$0xff]
      %v5389 = vld [vmem:[%s5387 + $0x8] sm:$0xff]
      %v5390 = vld [vmem:[%s5387 + $0x10] sm:$0xff]
      %v5391 = vld [vmem:[%s5387 + $0x18] sm:$0xff]
      %v5392 = vld [vmem:[%s5387 + $0x20] sm:$0xff]
      %v5393 = vld [vmem:[%s5387 + $0x28] sm:$0xff]
      %v5394 = vld [vmem:[%s5387 + $0x30] sm:$0xff]
      %v5395 = vld [vmem:[%s5387 + $0x38] sm:$0xff]
      %v5396 = vld [vmem:[%s5387 + $0x40] sm:$0xff]
      %v5397 = vld [vmem:[%s5387 + $0x48] sm:$0xff]
      %v5398 = vld [vmem:[%s5387 + $0x50] sm:$0xff]
      %v5399 = vld [vmem:[%s5387 + $0x58] sm:$0xff]
      %v5400 = vld [vmem:[%s5387 + $0x60] sm:$0xff]
      %v5401 = vld [vmem:[%s5387 + $0x68] sm:$0xff]
      %v5402 = vld [vmem:[%s5387 + $0x70] sm:$0xff]
      %v5403 = vld [vmem:[%s5387 + $0x78] sm:$0xff]
      %v5404 = vld [vmem:[%s5387 + $0x80] sm:$0xff]
      %v5405 = vld [vmem:[%s5387 + $0x88] sm:$0xff]
      %v5406 = vld [vmem:[%s5387 + $0x90] sm:$0xff]
      %v5407 = vld [vmem:[%s5387 + $0x98] sm:$0xff]
      %v5408 = vld [vmem:[%s5387 + $0xa0] sm:$0xff]
      %v5409 = vld [vmem:[%s5387 + $0xa8] sm:$0xff]
      %s5410 = scalar_lea.vmem %s1, 1428
      %v5411 = vld [vmem:[%s5410] sm:$0xf]
      %v5412 = vld [vmem:[%s5410 + $0x4] sm:$0xf]
      %v5413 = vld [vmem:[%s5410 + $0x8] sm:$0xf]
      %v5414 = vld [vmem:[%s5410 + $0xc] sm:$0xf]
      %v5415 = vld [vmem:[%s5410 + $0x10] sm:$0xf]
      %v5416 = vld [vmem:[%s5410 + $0x14] sm:$0xf]
      %v5417 = vld [vmem:[%s5410 + $0x18] sm:$0xf]
      %v5418 = vld [vmem:[%s5410 + $0x1c] sm:$0xf]
      %v5419 = vld [vmem:[%s5410 + $0x20] sm:$0xf]
      %v5420 = vld [vmem:[%s5410 + $0x24] sm:$0xf]
      %v5421 = vld [vmem:[%s5410 + $0x28] sm:$0xf]
      %v5422 = vld [vmem:[%s5410 + $0x2c] sm:$0xf]
      %v5423 = vld [vmem:[%s5410 + $0x30] sm:$0xf]
      %v5424 = vld [vmem:[%s5410 + $0x34] sm:$0xf]
      %v5425 = vld [vmem:[%s5410 + $0x38] sm:$0xf]
      %v5426 = vld [vmem:[%s5410 + $0x3c] sm:$0xf]
      %v5427 = vld [vmem:[%s5410 + $0x40] sm:$0x3]
      %v5446 = vunpack.c.l.b16 %v5388
      %v5447 = vunpack.c.h.b16 %v5388
      %v5448 = vunpack.c.l.b16 %v5389
      %v5449 = vunpack.c.h.b16 %v5389
      %v5450 = vunpack.c.l.b16 %v5390
      %v5451 = vunpack.c.h.b16 %v5390
      %v5452 = vunpack.c.l.b16 %v5391
      %v5453 = vunpack.c.h.b16 %v5391
      %v5454 = vunpack.c.l.b16 %v5392
      %v5455 = vunpack.c.h.b16 %v5392
      %v5456 = vunpack.c.l.b16 %v5393
      %v5457 = vunpack.c.h.b16 %v5393
      %v5458 = vunpack.c.l.b16 %v5394
      %v5459 = vunpack.c.h.b16 %v5394
      %v5460 = vunpack.c.l.b16 %v5395
      %v5461 = vunpack.c.h.b16 %v5395
      %v5462 = vunpack.c.l.b16 %v5396
      %v5463 = vunpack.c.h.b16 %v5396
      %v5464 = vunpack.c.l.b16 %v5397
      %v5465 = vunpack.c.h.b16 %v5397
      %v5466 = vunpack.c.l.b16 %v5398
      %v5467 = vunpack.c.h.b16 %v5398
      %v5468 = vunpack.c.l.b16 %v5399
      %v5469 = vunpack.c.h.b16 %v5399
      %v5470 = vunpack.c.l.b16 %v5400
      %v5471 = vunpack.c.h.b16 %v5400
      %v5472 = vunpack.c.l.b16 %v5401
      %v5473 = vunpack.c.h.b16 %v5401
      %v5474 = vunpack.c.l.b16 %v5402
      %v5475 = vunpack.c.h.b16 %v5402
      %v5476 = vunpack.c.l.b16 %v5403
      %v5477 = vunpack.c.h.b16 %v5403
      %v5478 = vunpack.c.l.b16 %v5404
      %v5479 = vunpack.c.h.b16 %v5404
      %v5480 = vunpack.c.l.b16 %v5405
      %v5481 = vunpack.c.h.b16 %v5405
      %v5482 = vpack.c.b16 %v5448, %v5446
      %v5483 = vpack.c.b16 %v5449, %v5447
      %v5484 = vpack.c.b16 %v5452, %v5450
      %v5485 = vpack.c.b16 %v5453, %v5451
      %v5486 = vpack.c.b16 %v5456, %v5454
      %v5487 = vpack.c.b16 %v5457, %v5455
      %v5488 = vpack.c.b16 %v5460, %v5458
      %v5489 = vpack.c.b16 %v5461, %v5459
      %v5490 = vpack.c.b16 %v5464, %v5462
      %v5491 = vpack.c.b16 %v5465, %v5463
      %v5492 = vpack.c.b16 %v5468, %v5466
      %v5493 = vpack.c.b16 %v5469, %v5467
      %v5494 = vpack.c.b16 %v5472, %v5470
      %v5495 = vpack.c.b16 %v5473, %v5471
      %v5496 = vpack.c.b16 %v5476, %v5474
      %v5497 = vpack.c.b16 %v5477, %v5475
      %v5498 = vpack.c.b16 %v5480, %v5478
      %v5499 = vpack.c.b16 %v5481, %v5479
      %v5526 = vunpack.c.l.b16 %v5411
      %v5527 = vunpack.c.l.b16 %v5412
      %v5528 = vunpack.c.l.b16 %v5413
      %v5529 = vunpack.c.l.b16 %v5414
      %v5530 = vunpack.c.l.b16 %v5415
      %v5531 = vunpack.c.l.b16 %v5416
      %v5532 = vunpack.c.l.b16 %v5417
      %v5533 = vunpack.c.l.b16 %v5418
      %v5534 = vunpack.c.l.b16 %v5419
      %v5535 = vunpack.c.l.b16 %v5420
      %v5536 = vunpack.c.l.b16 %v5421
      %v5537 = vunpack.c.l.b16 %v5422
      %v5538 = vunpack.c.l.b16 %v5423
      %v5539 = vunpack.c.l.b16 %v5424
      %v5540 = vunpack.c.l.b16 %v5425
      %v5541 = vunpack.c.l.b16 %v5426
      %v5542 = vunpack.c.l.b16 %v5427
      %v5543 = vpack.c.b16 %v5527, %v5526
      %v5544 = vpack.c.b16 %v5529, %v5528
      %v5545 = vpack.c.b16 %v5531, %v5530
      %v5546 = vpack.c.b16 %v5533, %v5532
      %v5547 = vpack.c.b16 %v5535, %v5534
      %v5548 = vpack.c.b16 %v5537, %v5536
      %v5549 = vpack.c.b16 %v5539, %v5538
      %v5550 = vpack.c.b16 %v5541, %v5540
      %v5551 = vpack.c.b16 %v5542, %v5542
      %v5561 = vsel %vm405, %v5483, 0
      %v5564 = vsel %vm405, %v5485, 0
      %v5567 = vsel %vm405, %v5487, 0
      %v5570 = vsel %vm405, %v5489, 0
      %v5573 = vsel %vm405, %v5491, 0
      %v5576 = vsel %vm405, %v5493, 0
      %v5579 = vsel %vm405, %v5495, 0
      %v5582 = vsel %vm405, %v5497, 0
      %v5585 = vsel %vm405, %v5499, 0
      %v5588 = vsel %vm433, %v5551, 0
      %5590 = vmatprep.subr.bf16.mxu0 0
      %5591 = vmatpush1.bf16.msra.mxu0 %v5543
      %5592 = vmatprep.subr.bf16.mxu0 0
      %5593 = vmatpush1.bf16.msra.mxu0 %v5544
      %5594 = vmatprep.subr.bf16.mxu0 0
      %5595 = vmatpush1.bf16.msra.mxu0 %v5545
      %5596 = vmatprep.subr.bf16.mxu0 0
      %5597 = vmatpush1.bf16.msra.mxu0 %v5546
      %5598 = vmatprep.subr.bf16.mxu0 0
      %5599 = vmatpush1.bf16.msra.mxu0 %v5547
      %5600 = vmatprep.subr.bf16.mxu0 0
      %5601 = vmatpush1.bf16.msra.mxu0 %v5548
      %5602 = vmatprep.subr.bf16.mxu0 0
      %5603 = vmatpush1.bf16.msra.mxu0 %v5549
      %5604 = vmatprep.subr.bf16.mxu0 0
      %5605 = vmatpush1.bf16.msra.mxu0 %v5550
      %5606 = vmatprep.subr.bf16.mxu0 0
      %5607 = vmatpush1.bf16.msra.mxu0 %v5588
      %5608 = vmatprep.subr.bf16.mxu0 0
      %5609 = vmatpush1.bf16.msra.mxu0 0
      %5610 = vmatprep.subr.bf16.mxu0 0
      %5611 = vmatpush1.bf16.msra.mxu0 0
      %5612 = vmatprep.subr.bf16.mxu0 0
      %5613 = vmatpush1.bf16.msra.mxu0 0
      %5614 = vmatprep.subr.bf16.mxu0 0
      %5615 = vmatpush1.bf16.msra.mxu0 0
      %5616 = vmatprep.subr.bf16.mxu0 0
      %5617 = vmatpush1.bf16.msra.mxu0 0
      %5618 = vmatprep.subr.bf16.mxu0 0
      %5619 = vmatpush1.bf16.msra.mxu0 0
      %5620 = vmatprep.subr.bf16.mxu0 0
      %5621 = vmatpush1.bf16.msra.mxu0 0
      %5622 = vmatprep.mubr.bf16.mxu0 %v5561
      %5623 = vmatmul.mubr.bf16.gmra.mrb[0].mxu0 %v5482
      %v5624 = vpop.f32.mrb[0].mxu0
      %v5625 = vadd.f32 0.0, %v5624
      %v5626 = vpop.f32.mrb[0].mxu0
      %v5627 = vpop.f32.mrb[0].mxu0
      %v5628 = vadd.f32 0.0, %v5627
      %v5629 = vpop.f32.mrb[0].mxu0
      %5630 = vmatprep.mubr.bf16.mxu0 %v5564
      %5631 = vmatmul.mubr.bf16.gmra.mrb[0].mxu0 %v5484
      %v5632 = vpop.f32.mrb[0].mxu0
      %v5633 = vadd.f32 0.0, %v5632
      %v5634 = vpop.f32.mrb[0].mxu0
      %v5635 = vpop.f32.mrb[0].mxu0
      %v5636 = vadd.f32 0.0, %v5635
      %v5637 = vpop.f32.mrb[0].mxu0
      %5638 = vmatprep.mubr.bf16.mxu0 %v5567
      %5639 = vmatmul.mubr.bf16.gmra.mrb[0].mxu0 %v5486
      %v5640 = vpop.f32.mrb[0].mxu0
      %v5641 = vadd.f32 0.0, %v5640
      %v5642 = vpop.f32.mrb[0].mxu0
      %v5643 = vpop.f32.mrb[0].mxu0
      %v5644 = vadd.f32 0.0, %v5643
      %v5645 = vpop.f32.mrb[0].mxu0
      %5646 = vmatprep.mubr.bf16.mxu0 %v5570
      %5647 = vmatmul.mubr.bf16.gmra.mrb[0].mxu0 %v5488
      %v5648 = vpop.f32.mrb[0].mxu0
      %v5649 = vadd.f32 0.0, %v5648
      %v5650 = vpop.f32.mrb[0].mxu0
      %v5651 = vpop.f32.mrb[0].mxu0
      %v5652 = vadd.f32 0.0, %v5651
      %v5653 = vpop.f32.mrb[0].mxu0
      %5654 = vmatprep.mubr.bf16.mxu0 %v5573
      %5655 = vmatmul.mubr.bf16.gmra.mrb[0].mxu0 %v5490
      %v5656 = vpop.f32.mrb[0].mxu0
      %v5657 = vadd.f32 0.0, %v5656
      %v5658 = vpop.f32.mrb[0].mxu0
      %v5659 = vpop.f32.mrb[0].mxu0
      %v5660 = vadd.f32 0.0, %v5659
      %v5661 = vpop.f32.mrb[0].mxu0
      %5662 = vmatprep.mubr.bf16.mxu0 %v5576
      %5663 = vmatmul.mubr.bf16.gmra.mrb[0].mxu0 %v5492
      %v5664 = vpop.f32.mrb[0].mxu0
      %v5665 = vadd.f32 0.0, %v5664
      %v5666 = vpop.f32.mrb[0].mxu0
      %v5667 = vpop.f32.mrb[0].mxu0
      %v5668 = vadd.f32 0.0, %v5667
      %v5669 = vpop.f32.mrb[0].mxu0
      %5670 = vmatprep.mubr.bf16.mxu0 %v5579
      %5671 = vmatmul.mubr.bf16.gmra.mrb[0].mxu0 %v5494
      %v5672 = vpop.f32.mrb[0].mxu0
      %v5673 = vadd.f32 0.0, %v5672
      %v5674 = vpop.f32.mrb[0].mxu0
      %v5675 = vpop.f32.mrb[0].mxu0
      %v5676 = vadd.f32 0.0, %v5675
      %v5677 = vpop.f32.mrb[0].mxu0
      %5678 = vmatprep.mubr.bf16.mxu0 %v5582
      %5679 = vmatmul.mubr.bf16.gmra.mrb[0].mxu0 %v5496
      %v5680 = vpop.f32.mrb[0].mxu0
      %v5681 = vadd.f32 0.0, %v5680
      %v5682 = vpop.f32.mrb[0].mxu0
      %v5683 = vpop.f32.mrb[0].mxu0
      %v5684 = vadd.f32 0.0, %v5683
      %v5685 = vpop.f32.mrb[0].mxu0
      %5686 = vmatprep.mubr.bf16.mxu0 %v5585
      %5687 = vmatmul.mubr.bf16.gmra.mrb[0].mxu0 %v5498
      %v5688 = vpop.f32.mrb[0].mxu0
      %v5689 = vadd.f32 0.0, %v5688
      %v5690 = vpop.f32.mrb[0].mxu0
      %v5691 = vpop.f32.mrb[0].mxu0
      %v5692 = vadd.f32 0.0, %v5691
      %v5693 = vpop.f32.mrb[0].mxu0
      %5694 = vdwg.mxu0
      %v5695 = vadd.f32 %v5366, %v5625
      %v5696 = vadd.f32 %v5367, %v5628
      %v5697 = vadd.f32 %v5368, %v5633
      %v5698 = vadd.f32 %v5369, %v5636
      %v5699 = vadd.f32 %v5370, %v5641
      %v5700 = vadd.f32 %v5371, %v5644
      %v5701 = vadd.f32 %v5372, %v5649
      %v5702 = vadd.f32 %v5373, %v5652
      %v5703 = vadd.f32 %v5374, %v5657
      %v5704 = vadd.f32 %v5375, %v5660
      %v5705 = vadd.f32 %v5376, %v5665
      %v5706 = vadd.f32 %v5377, %v5668
      %v5707 = vadd.f32 %v5378, %v5673
      %v5708 = vadd.f32 %v5379, %v5676
      %v5709 = vadd.f32 %v5380, %v5681
      %v5710 = vadd.f32 %v5381, %v5684
      %v5711 = vadd.f32 %v5382, %v5689
      %v5712 = vadd.f32 %v5383, %v5692
      %s5713 = scalar_lea.vmem %s1, 1496
      %v5714 = vld [vmem:[%s5713] sm:$0xf]
      %v5715 = vld [vmem:[%s5713 + $0x4] sm:$0xf]
      %v5716 = vld [vmem:[%s5713 + $0x8] sm:$0xf]
      %v5717 = vld [vmem:[%s5713 + $0xc] sm:$0xf]
      %v5718 = vld [vmem:[%s5713 + $0x10] sm:$0xf]
      %v5719 = vld [vmem:[%s5713 + $0x14] sm:$0xf]
      %v5720 = vld [vmem:[%s5713 + $0x18] sm:$0xf]
      %v5721 = vld [vmem:[%s5713 + $0x1c] sm:$0xf]
      %v5722 = vld [vmem:[%s5713 + $0x20] sm:$0xf]
      %v5723 = vld [vmem:[%s5713 + $0x24] sm:$0xf]
      %v5724 = vld [vmem:[%s5713 + $0x28] sm:$0xf]
      %v5725 = vld [vmem:[%s5713 + $0x2c] sm:$0xf]
      %v5726 = vld [vmem:[%s5713 + $0x30] sm:$0xf]
      %v5727 = vld [vmem:[%s5713 + $0x34] sm:$0xf]
      %v5728 = vld [vmem:[%s5713 + $0x38] sm:$0xf]
      %v5729 = vld [vmem:[%s5713 + $0x3c] sm:$0xf]
      %v5730 = vld [vmem:[%s5713 + $0x40] sm:$0x3]
      %v5733 = vunpack.c.l.b16 %v5406
      %v5734 = vunpack.c.h.b16 %v5406
      %v5735 = vunpack.c.l.b16 %v5407
      %v5736 = vunpack.c.h.b16 %v5407
      %v5737 = vpack.c.b16 %v5735, %v5733
      %v5738 = vpack.c.b16 %v5736, %v5734
      %v5757 = vunpack.c.l.b16 %v5714
      %v5758 = vunpack.c.l.b16 %v5715
      %v5759 = vunpack.c.l.b16 %v5716
      %v5760 = vunpack.c.l.b16 %v5717
      %v5761 = vunpack.c.l.b16 %v5718
      %v5762 = vunpack.c.l.b16 %v5719
      %v5763 = vunpack.c.l.b16 %v5720
      %v5764 = vunpack.c.l.b16 %v5721
      %v5765 = vunpack.c.l.b16 %v5722
      %v5766 = vunpack.c.l.b16 %v5723
      %v5767 = vunpack.c.l.b16 %v5724
      %v5768 = vunpack.c.l.b16 %v5725
      %v5769 = vunpack.c.l.b16 %v5726
      %v5770 = vunpack.c.l.b16 %v5727
      %v5771 = vunpack.c.l.b16 %v5728
      %v5772 = vunpack.c.l.b16 %v5729
      %v5773 = vunpack.c.l.b16 %v5730
      %v5774 = vpack.c.b16 %v5758, %v5757
      %v5775 = vpack.c.b16 %v5760, %v5759
      %v5776 = vpack.c.b16 %v5762, %v5761
      %v5777 = vpack.c.b16 %v5764, %v5763
      %v5778 = vpack.c.b16 %v5766, %v5765
      %v5779 = vpack.c.b16 %v5768, %v5767
      %v5780 = vpack.c.b16 %v5770, %v5769
      %v5781 = vpack.c.b16 %v5772, %v5771
      %v5782 = vpack.c.b16 %v5773, %v5773
      %v5792 = vsel %vm405, %v5738, 0
      %v5795 = vsel %vm433, %v5782, 0
      %5797 = vmatprep.subr.bf16.mxu0 0
      %5798 = vmatpush1.bf16.msra.mxu0 %v5774
      %5799 = vmatprep.subr.bf16.mxu0 0
      %5800 = vmatpush1.bf16.msra.mxu0 %v5775
      %5801 = vmatprep.subr.bf16.mxu0 0
      %5802 = vmatpush1.bf16.msra.mxu0 %v5776
      %5803 = vmatprep.subr.bf16.mxu0 0
      %5804 = vmatpush1.bf16.msra.mxu0 %v5777
      %5805 = vmatprep.subr.bf16.mxu0 0
      %5806 = vmatpush1.bf16.msra.mxu0 %v5778
      %5807 = vmatprep.subr.bf16.mxu0 0
      %5808 = vmatpush1.bf16.msra.mxu0 %v5779
      %5809 = vmatprep.subr.bf16.mxu0 0
      %5810 = vmatpush1.bf16.msra.mxu0 %v5780
      %5811 = vmatprep.subr.bf16.mxu0 0
      %5812 = vmatpush1.bf16.msra.mxu0 %v5781
      %5813 = vmatprep.subr.bf16.mxu0 0
      %5814 = vmatpush1.bf16.msra.mxu0 %v5795
      %5815 = vmatprep.subr.bf16.mxu0 0
      %5816 = vmatpush1.bf16.msra.mxu0 0
      %5817 = vmatprep.subr.bf16.mxu0 0
      %5818 = vmatpush1.bf16.msra.mxu0 0
      %5819 = vmatprep.subr.bf16.mxu0 0
      %5820 = vmatpush1.bf16.msra.mxu0 0
      %5821 = vmatprep.subr.bf16.mxu0 0
      %5822 = vmatpush1.bf16.msra.mxu0 0
      %5823 = vmatprep.subr.bf16.mxu0 0
      %5824 = vmatpush1.bf16.msra.mxu0 0
      %5825 = vmatprep.subr.bf16.mxu0 0
      %5826 = vmatpush1.bf16.msra.mxu0 0
      %5827 = vmatprep.subr.bf16.mxu0 0
      %5828 = vmatpush1.bf16.msra.mxu0 0
      %5829 = vmatprep.mubr.bf16.mxu0 %v5564
      %5830 = vmatmul.mubr.bf16.gmra.mrb[0].mxu0 %v5484
      %v5831 = vpop.f32.mrb[0].mxu0
      %v5832 = vadd.f32 0.0, %v5831
      %v5833 = vpop.f32.mrb[0].mxu0
      %v5834 = vpop.f32.mrb[0].mxu0
      %v5835 = vadd.f32 0.0, %v5834
      %v5836 = vpop.f32.mrb[0].mxu0
      %5837 = vmatprep.mubr.bf16.mxu0 %v5567
      %5838 = vmatmul.mubr.bf16.gmra.mrb[0].mxu0 %v5486
      %v5839 = vpop.f32.mrb[0].mxu0
      %v5840 = vadd.f32 0.0, %v5839
      %v5841 = vpop.f32.mrb[0].mxu0
      %v5842 = vpop.f32.mrb[0].mxu0
      %v5843 = vadd.f32 0.0, %v5842
      %v5844 = vpop.f32.mrb[0].mxu0
      %5845 = vmatprep.mubr.bf16.mxu0 %v5570
      %5846 = vmatmul.mubr.bf16.gmra.mrb[0].mxu0 %v5488
      %v5847 = vpop.f32.mrb[0].mxu0
      %v5848 = vadd.f32 0.0, %v5847
      %v5849 = vpop.f32.mrb[0].mxu0
      %v5850 = vpop.f32.mrb[0].mxu0
      %v5851 = vadd.f32 0.0, %v5850
      %v5852 = vpop.f32.mrb[0].mxu0
      %5853 = vmatprep.mubr.bf16.mxu0 %v5573
      %5854 = vmatmul.mubr.bf16.gmra.mrb[0].mxu0 %v5490
      %v5855 = vpop.f32.mrb[0].mxu0
      %v5856 = vadd.f32 0.0, %v5855
      %v5857 = vpop.f32.mrb[0].mxu0
      %v5858 = vpop.f32.mrb[0].mxu0
      %v5859 = vadd.f32 0.0, %v5858
      %v5860 = vpop.f32.mrb[0].mxu0
      %5861 = vmatprep.mubr.bf16.mxu0 %v5576
      %5862 = vmatmul.mubr.bf16.gmra.mrb[0].mxu0 %v5492
      %v5863 = vpop.f32.mrb[0].mxu0
      %v5864 = vadd.f32 0.0, %v5863
      %v5865 = vpop.f32.mrb[0].mxu0
      %v5866 = vpop.f32.mrb[0].mxu0
      %v5867 = vadd.f32 0.0, %v5866
      %v5868 = vpop.f32.mrb[0].mxu0
      %5869 = vmatprep.mubr.bf16.mxu0 %v5579
      %5870 = vmatmul.mubr.bf16.gmra.mrb[0].mxu0 %v5494
      %v5871 = vpop.f32.mrb[0].mxu0
      %v5872 = vadd.f32 0.0, %v5871
      %v5873 = vpop.f32.mrb[0].mxu0
      %v5874 = vpop.f32.mrb[0].mxu0
      %v5875 = vadd.f32 0.0, %v5874
      %v5876 = vpop.f32.mrb[0].mxu0
      %5877 = vmatprep.mubr.bf16.mxu0 %v5582
      %5878 = vmatmul.mubr.bf16.gmra.mrb[0].mxu0 %v5496
      %v5879 = vpop.f32.mrb[0].mxu0
      %v5880 = vadd.f32 0.0, %v5879
      %v5881 = vpop.f32.mrb[0].mxu0
      %v5882 = vpop.f32.mrb[0].mxu0
      %v5883 = vadd.f32 0.0, %v5882
      %v5884 = vpop.f32.mrb[0].mxu0
      %5885 = vmatprep.mubr.bf16.mxu0 %v5585
      %5886 = vmatmul.mubr.bf16.gmra.mrb[0].mxu0 %v5498
      %v5887 = vpop.f32.mrb[0].mxu0
      %v5888 = vadd.f32 0.0, %v5887
      %v5889 = vpop.f32.mrb[0].mxu0
      %v5890 = vpop.f32.mrb[0].mxu0
      %v5891 = vadd.f32 0.0, %v5890
      %v5892 = vpop.f32.mrb[0].mxu0
      %5893 = vmatprep.mubr.bf16.mxu0 %v5792
      %5894 = vmatmul.mubr.bf16.gmra.mrb[0].mxu0 %v5737
      %v5895 = vpop.f32.mrb[0].mxu0
      %v5896 = vadd.f32 0.0, %v5895
      %v5897 = vpop.f32.mrb[0].mxu0
      %v5898 = vpop.f32.mrb[0].mxu0
      %v5899 = vadd.f32 0.0, %v5898
      %v5900 = vpop.f32.mrb[0].mxu0
      %5901 = vdwg.mxu0
      %v5902 = vadd.f32 %v5695, %v5832
      %v5903 = vadd.f32 %v5696, %v5835
      %v5904 = vadd.f32 %v5697, %v5840
      %v5905 = vadd.f32 %v5698, %v5843
      %v5906 = vadd.f32 %v5699, %v5848
      %v5907 = vadd.f32 %v5700, %v5851
      %v5908 = vadd.f32 %v5701, %v5856
      %v5909 = vadd.f32 %v5702, %v5859
      %v5910 = vadd.f32 %v5703, %v5864
      %v5911 = vadd.f32 %v5704, %v5867
      %v5912 = vadd.f32 %v5705, %v5872
      %v5913 = vadd.f32 %v5706, %v5875
      %v5914 = vadd.f32 %v5707, %v5880
      %v5915 = vadd.f32 %v5708, %v5883
      %v5916 = vadd.f32 %v5709, %v5888
      %v5917 = vadd.f32 %v5710, %v5891
      %v5918 = vadd.f32 %v5711, %v5896
      %v5919 = vadd.f32 %v5712, %v5899
      %s5920 = scalar_lea.vmem %s1, 1564
      %v5921 = vld [vmem:[%s5920] sm:$0xf]
      %v5922 = vld [vmem:[%s5920 + $0x4] sm:$0xf]
      %v5923 = vld [vmem:[%s5920 + $0x8] sm:$0xf]
      %v5924 = vld [vmem:[%s5920 + $0xc] sm:$0xf]
      %v5925 = vld [vmem:[%s5920 + $0x10] sm:$0xf]
      %v5926 = vld [vmem:[%s5920 + $0x14] sm:$0xf]
      %v5927 = vld [vmem:[%s5920 + $0x18] sm:$0xf]
      %v5928 = vld [vmem:[%s5920 + $0x1c] sm:$0xf]
      %v5929 = vld [vmem:[%s5920 + $0x20] sm:$0xf]
      %v5930 = vld [vmem:[%s5920 + $0x24] sm:$0xf]
      %v5931 = vld [vmem:[%s5920 + $0x28] sm:$0xf]
      %v5932 = vld [vmem:[%s5920 + $0x2c] sm:$0xf]
      %v5933 = vld [vmem:[%s5920 + $0x30] sm:$0xf]
      %v5934 = vld [vmem:[%s5920 + $0x34] sm:$0xf]
      %v5935 = vld [vmem:[%s5920 + $0x38] sm:$0xf]
      %v5936 = vld [vmem:[%s5920 + $0x3c] sm:$0xf]
      %v5937 = vld [vmem:[%s5920 + $0x40] sm:$0x3]
      %v5940 = vunpack.c.l.b16 %v5408
      %v5941 = vunpack.c.h.b16 %v5408
      %v5942 = vunpack.c.l.b16 %v5409
      %v5943 = vunpack.c.h.b16 %v5409
      %v5944 = vpack.c.b16 %v5942, %v5940
      %v5945 = vpack.c.b16 %v5943, %v5941
      %v5964 = vunpack.c.l.b16 %v5921
      %v5965 = vunpack.c.l.b16 %v5922
      %v5966 = vunpack.c.l.b16 %v5923
      %v5967 = vunpack.c.l.b16 %v5924
      %v5968 = vunpack.c.l.b16 %v5925
      %v5969 = vunpack.c.l.b16 %v5926
      %v5970 = vunpack.c.l.b16 %v5927
      %v5971 = vunpack.c.l.b16 %v5928
      %v5972 = vunpack.c.l.b16 %v5929
      %v5973 = vunpack.c.l.b16 %v5930
      %v5974 = vunpack.c.l.b16 %v5931
      %v5975 = vunpack.c.l.b16 %v5932
      %v5976 = vunpack.c.l.b16 %v5933
      %v5977 = vunpack.c.l.b16 %v5934
      %v5978 = vunpack.c.l.b16 %v5935
      %v5979 = vunpack.c.l.b16 %v5936
      %v5980 = vunpack.c.l.b16 %v5937
      %v5981 = vpack.c.b16 %v5965, %v5964
      %v5982 = vpack.c.b16 %v5967, %v5966
      %v5983 = vpack.c.b16 %v5969, %v5968
      %v5984 = vpack.c.b16 %v5971, %v5970
      %v5985 = vpack.c.b16 %v5973, %v5972
      %v5986 = vpack.c.b16 %v5975, %v5974
      %v5987 = vpack.c.b16 %v5977, %v5976
      %v5988 = vpack.c.b16 %v5979, %v5978
      %v5989 = vpack.c.b16 %v5980, %v5980
      %v5999 = vsel %vm405, %v5945, 0
      %v6002 = vsel %vm433, %v5989, 0
      %6004 = vmatprep.subr.bf16.mxu0 0
      %6005 = vmatpush1.bf16.msra.mxu0 %v5981
      %6006 = vmatprep.subr.bf16.mxu0 0
      %6007 = vmatpush1.bf16.msra.mxu0 %v5982
      %6008 = vmatprep.subr.bf16.mxu0 0
      %6009 = vmatpush1.bf16.msra.mxu0 %v5983
      %6010 = vmatprep.subr.bf16.mxu0 0
      %6011 = vmatpush1.bf16.msra.mxu0 %v5984
      %6012 = vmatprep.subr.bf16.mxu0 0
      %6013 = vmatpush1.bf16.msra.mxu0 %v5985
      %6014 = vmatprep.subr.bf16.mxu0 0
      %6015 = vmatpush1.bf16.msra.mxu0 %v5986
      %6016 = vmatprep.subr.bf16.mxu0 0
      %6017 = vmatpush1.bf16.msra.mxu0 %v5987
      %6018 = vmatprep.subr.bf16.mxu0 0
      %6019 = vmatpush1.bf16.msra.mxu0 %v5988
      %6020 = vmatprep.subr.bf16.mxu0 0
      %6021 = vmatpush1.bf16.msra.mxu0 %v6002
      %6022 = vmatprep.subr.bf16.mxu0 0
      %6023 = vmatpush1.bf16.msra.mxu0 0
      %6024 = vmatprep.subr.bf16.mxu0 0
      %6025 = vmatpush1.bf16.msra.mxu0 0
      %6026 = vmatprep.subr.bf16.mxu0 0
      %6027 = vmatpush1.bf16.msra.mxu0 0
      %6028 = vmatprep.subr.bf16.mxu0 0
      %6029 = vmatpush1.bf16.msra.mxu0 0
      %6030 = vmatprep.subr.bf16.mxu0 0
      %6031 = vmatpush1.bf16.msra.mxu0 0
      %6032 = vmatprep.subr.bf16.mxu0 0
      %6033 = vmatpush1.bf16.msra.mxu0 0
      %6034 = vmatprep.subr.bf16.mxu0 0
      %6035 = vmatpush1.bf16.msra.mxu0 0
      %6036 = vmatprep.mubr.bf16.mxu0 %v5567
      %6037 = vmatmul.mubr.bf16.gmra.mrb[0].mxu0 %v5486
      %v6038 = vpop.f32.mrb[0].mxu0
      %v6039 = vadd.f32 0.0, %v6038
      %v6040 = vpop.f32.mrb[0].mxu0
      %v6041 = vpop.f32.mrb[0].mxu0
      %v6042 = vadd.f32 0.0, %v6041
      %v6043 = vpop.f32.mrb[0].mxu0
      %6044 = vmatprep.mubr.bf16.mxu0 %v5570
      %6045 = vmatmul.mubr.bf16.gmra.mrb[0].mxu0 %v5488
      %v6046 = vpop.f32.mrb[0].mxu0
      %v6047 = vadd.f32 0.0, %v6046
      %v6048 = vpop.f32.mrb[0].mxu0
      %v6049 = vpop.f32.mrb[0].mxu0
      %v6050 = vadd.f32 0.0, %v6049
      %v6051 = vpop.f32.mrb[0].mxu0
      %6052 = vmatprep.mubr.bf16.mxu0 %v5573
      %6053 = vmatmul.mubr.bf16.gmra.mrb[0].mxu0 %v5490
      %v6054 = vpop.f32.mrb[0].mxu0
      %v6055 = vadd.f32 0.0, %v6054
      %v6056 = vpop.f32.mrb[0].mxu0
      %v6057 = vpop.f32.mrb[0].mxu0
      %v6058 = vadd.f32 0.0, %v6057
      %v6059 = vpop.f32.mrb[0].mxu0
      %6060 = vmatprep.mubr.bf16.mxu0 %v5576
      %6061 = vmatmul.mubr.bf16.gmra.mrb[0].mxu0 %v5492
      %v6062 = vpop.f32.mrb[0].mxu0
      %v6063 = vadd.f32 0.0, %v6062
      %v6064 = vpop.f32.mrb[0].mxu0
      %v6065 = vpop.f32.mrb[0].mxu0
      %v6066 = vadd.f32 0.0, %v6065
      %v6067 = vpop.f32.mrb[0].mxu0
      %6068 = vmatprep.mubr.bf16.mxu0 %v5579
      %6069 = vmatmul.mubr.bf16.gmra.mrb[0].mxu0 %v5494
      %v6070 = vpop.f32.mrb[0].mxu0
      %v6071 = vadd.f32 0.0, %v6070
      %v6072 = vpop.f32.mrb[0].mxu0
      %v6073 = vpop.f32.mrb[0].mxu0
      %v6074 = vadd.f32 0.0, %v6073
      %v6075 = vpop.f32.mrb[0].mxu0
      %6076 = vmatprep.mubr.bf16.mxu0 %v5582
      %6077 = vmatmul.mubr.bf16.gmra.mrb[0].mxu0 %v5496
      %v6078 = vpop.f32.mrb[0].mxu0
      %v6079 = vadd.f32 0.0, %v6078
      %v6080 = vpop.f32.mrb[0].mxu0
      %v6081 = vpop.f32.mrb[0].mxu0
      %v6082 = vadd.f32 0.0, %v6081
      %v6083 = vpop.f32.mrb[0].mxu0
      %6084 = vmatprep.mubr.bf16.mxu0 %v5585
      %6085 = vmatmul.mubr.bf16.gmra.mrb[0].mxu0 %v5498
      %v6086 = vpop.f32.mrb[0].mxu0
      %v6087 = vadd.f32 0.0, %v6086
      %v6088 = vpop.f32.mrb[0].mxu0
      %v6089 = vpop.f32.mrb[0].mxu0
      %v6090 = vadd.f32 0.0, %v6089
      %v6091 = vpop.f32.mrb[0].mxu0
      %6092 = vmatprep.mubr.bf16.mxu0 %v5792
      %6093 = vmatmul.mubr.bf16.gmra.mrb[0].mxu0 %v5737
      %v6094 = vpop.f32.mrb[0].mxu0
      %v6095 = vadd.f32 0.0, %v6094
      %v6096 = vpop.f32.mrb[0].mxu0
      %v6097 = vpop.f32.mrb[0].mxu0
      %v6098 = vadd.f32 0.0, %v6097
      %v6099 = vpop.f32.mrb[0].mxu0
      %6100 = vmatprep.mubr.bf16.mxu0 %v5999
      %6101 = vmatmul.mubr.bf16.gmra.mrb[0].mxu0 %v5944
      %v6102 = vpop.f32.mrb[0].mxu0
      %v6103 = vadd.f32 0.0, %v6102
      %v6104 = vpop.f32.mrb[0].mxu0
      %v6105 = vpop.f32.mrb[0].mxu0
      %v6106 = vadd.f32 0.0, %v6105
      %v6107 = vpop.f32.mrb[0].mxu0
      %6108 = vdwg.mxu0
      %v6109 = vadd.f32 %v5902, %v6039
      %v6110 = vadd.f32 %v5903, %v6042
      %v6111 = vadd.f32 %v5904, %v6047
      %v6112 = vadd.f32 %v5905, %v6050
      %v6113 = vadd.f32 %v5906, %v6055
      %v6114 = vadd.f32 %v5907, %v6058
      %v6115 = vadd.f32 %v5908, %v6063
      %v6116 = vadd.f32 %v5909, %v6066
      %v6117 = vadd.f32 %v5910, %v6071
      %v6118 = vadd.f32 %v5911, %v6074
      %v6119 = vadd.f32 %v5912, %v6079
      %v6120 = vadd.f32 %v5913, %v6082
      %v6121 = vadd.f32 %v5914, %v6087
      %v6122 = vadd.f32 %v5915, %v6090
      %v6123 = vadd.f32 %v5916, %v6095
      %v6124 = vadd.f32 %v5917, %v6098
      %v6125 = vadd.f32 %v5918, %v6103
      %v6126 = vadd.f32 %v5919, %v6106
      %s6127 = sadd.s32 %s4640, %s1664
      %s6128 = smul.u32 %s6127, 44
      %s6129 = smul.addr %s6128, 4
      %s6130 = scalar_lea.vmem %s196, %s6129
      %v6131 = vld [vmem:[%s6130] sm:$0xff]
      %v6132 = vld [vmem:[%s6130 + $0x8] sm:$0xff]
      %v6133 = vld [vmem:[%s6130 + $0x10] sm:$0xff]
      %v6134 = vld [vmem:[%s6130 + $0x18] sm:$0xff]
      %v6135 = vld [vmem:[%s6130 + $0x20] sm:$0xff]
      %v6136 = vld [vmem:[%s6130 + $0x28] sm:$0xff]
      %v6137 = vld [vmem:[%s6130 + $0x30] sm:$0xff]
      %v6138 = vld [vmem:[%s6130 + $0x38] sm:$0xff]
      %v6139 = vld [vmem:[%s6130 + $0x40] sm:$0xff]
      %v6140 = vld [vmem:[%s6130 + $0x48] sm:$0xff]
      %v6141 = vld [vmem:[%s6130 + $0x50] sm:$0xff]
      %v6142 = vld [vmem:[%s6130 + $0x58] sm:$0xff]
      %v6143 = vld [vmem:[%s6130 + $0x60] sm:$0xff]
      %v6144 = vld [vmem:[%s6130 + $0x68] sm:$0xff]
      %v6145 = vld [vmem:[%s6130 + $0x70] sm:$0xff]
      %v6146 = vld [vmem:[%s6130 + $0x78] sm:$0xff]
      %v6147 = vld [vmem:[%s6130 + $0x80] sm:$0xff]
      %v6148 = vld [vmem:[%s6130 + $0x88] sm:$0xff]
      %v6149 = vld [vmem:[%s6130 + $0x90] sm:$0xff]
      %v6150 = vld [vmem:[%s6130 + $0x98] sm:$0xff]
      %v6151 = vld [vmem:[%s6130 + $0xa0] sm:$0xff]
      %v6152 = vld [vmem:[%s6130 + $0xa8] sm:$0xff]
      %s6153 = scalar_lea.vmem %s1, 1632
      %v6154 = vld [vmem:[%s6153] sm:$0xf]
      %v6155 = vld [vmem:[%s6153 + $0x4] sm:$0xf]
      %v6156 = vld [vmem:[%s6153 + $0x8] sm:$0xf]
      %v6157 = vld [vmem:[%s6153 + $0xc] sm:$0xf]
      %v6158 = vld [vmem:[%s6153 + $0x10] sm:$0xf]
      %v6159 = vld [vmem:[%s6153 + $0x14] sm:$0xf]
      %v6160 = vld [vmem:[%s6153 + $0x18] sm:$0xf]
      %v6161 = vld [vmem:[%s6153 + $0x1c] sm:$0xf]
      %v6162 = vld [vmem:[%s6153 + $0x20] sm:$0xf]
      %v6163 = vld [vmem:[%s6153 + $0x24] sm:$0xf]
      %v6164 = vld [vmem:[%s6153 + $0x28] sm:$0xf]
      %v6165 = vld [vmem:[%s6153 + $0x2c] sm:$0xf]
      %v6166 = vld [vmem:[%s6153 + $0x30] sm:$0xf]
      %v6167 = vld [vmem:[%s6153 + $0x34] sm:$0xf]
      %v6168 = vld [vmem:[%s6153 + $0x38] sm:$0xf]
      %v6169 = vld [vmem:[%s6153 + $0x3c] sm:$0xf]
      %v6170 = vld [vmem:[%s6153 + $0x40] sm:$0x3]
      %v6189 = vunpack.c.l.b16 %v6131
      %v6190 = vunpack.c.h.b16 %v6131
      %v6191 = vunpack.c.l.b16 %v6132
      %v6192 = vunpack.c.h.b16 %v6132
      %v6193 = vunpack.c.l.b16 %v6133
      %v6194 = vunpack.c.h.b16 %v6133
      %v6195 = vunpack.c.l.b16 %v6134
      %v6196 = vunpack.c.h.b16 %v6134
      %v6197 = vunpack.c.l.b16 %v6135
      %v6198 = vunpack.c.h.b16 %v6135
      %v6199 = vunpack.c.l.b16 %v6136
      %v6200 = vunpack.c.h.b16 %v6136
      %v6201 = vunpack.c.l.b16 %v6137
      %v6202 = vunpack.c.h.b16 %v6137
      %v6203 = vunpack.c.l.b16 %v6138
      %v6204 = vunpack.c.h.b16 %v6138
      %v6205 = vunpack.c.l.b16 %v6139
      %v6206 = vunpack.c.h.b16 %v6139
      %v6207 = vunpack.c.l.b16 %v6140
      %v6208 = vunpack.c.h.b16 %v6140
      %v6209 = vunpack.c.l.b16 %v6141
      %v6210 = vunpack.c.h.b16 %v6141
      %v6211 = vunpack.c.l.b16 %v6142
      %v6212 = vunpack.c.h.b16 %v6142
      %v6213 = vunpack.c.l.b16 %v6143
      %v6214 = vunpack.c.h.b16 %v6143
      %v6215 = vunpack.c.l.b16 %v6144
      %v6216 = vunpack.c.h.b16 %v6144
      %v6217 = vunpack.c.l.b16 %v6145
      %v6218 = vunpack.c.h.b16 %v6145
      %v6219 = vunpack.c.l.b16 %v6146
      %v6220 = vunpack.c.h.b16 %v6146
      %v6221 = vunpack.c.l.b16 %v6147
      %v6222 = vunpack.c.h.b16 %v6147
      %v6223 = vunpack.c.l.b16 %v6148
      %v6224 = vunpack.c.h.b16 %v6148
      %v6225 = vpack.c.b16 %v6191, %v6189
      %v6226 = vpack.c.b16 %v6192, %v6190
      %v6227 = vpack.c.b16 %v6195, %v6193
      %v6228 = vpack.c.b16 %v6196, %v6194
      %v6229 = vpack.c.b16 %v6199, %v6197
      %v6230 = vpack.c.b16 %v6200, %v6198
      %v6231 = vpack.c.b16 %v6203, %v6201
      %v6232 = vpack.c.b16 %v6204, %v6202
      %v6233 = vpack.c.b16 %v6207, %v6205
      %v6234 = vpack.c.b16 %v6208, %v6206
      %v6235 = vpack.c.b16 %v6211, %v6209
      %v6236 = vpack.c.b16 %v6212, %v6210
      %v6237 = vpack.c.b16 %v6215, %v6213
      %v6238 = vpack.c.b16 %v6216, %v6214
      %v6239 = vpack.c.b16 %v6219, %v6217
      %v6240 = vpack.c.b16 %v6220, %v6218
      %v6241 = vpack.c.b16 %v6223, %v6221
      %v6242 = vpack.c.b16 %v6224, %v6222
      %v6269 = vunpack.c.l.b16 %v6154
      %v6270 = vunpack.c.l.b16 %v6155
      %v6271 = vunpack.c.l.b16 %v6156
      %v6272 = vunpack.c.l.b16 %v6157
      %v6273 = vunpack.c.l.b16 %v6158
      %v6274 = vunpack.c.l.b16 %v6159
      %v6275 = vunpack.c.l.b16 %v6160
      %v6276 = vunpack.c.l.b16 %v6161
      %v6277 = vunpack.c.l.b16 %v6162
      %v6278 = vunpack.c.l.b16 %v6163
      %v6279 = vunpack.c.l.b16 %v6164
      %v6280 = vunpack.c.l.b16 %v6165
      %v6281 = vunpack.c.l.b16 %v6166
      %v6282 = vunpack.c.l.b16 %v6167
      %v6283 = vunpack.c.l.b16 %v6168
      %v6284 = vunpack.c.l.b16 %v6169
      %v6285 = vunpack.c.l.b16 %v6170
      %v6286 = vpack.c.b16 %v6270, %v6269
      %v6287 = vpack.c.b16 %v6272, %v6271
      %v6288 = vpack.c.b16 %v6274, %v6273
      %v6289 = vpack.c.b16 %v6276, %v6275
      %v6290 = vpack.c.b16 %v6278, %v6277
      %v6291 = vpack.c.b16 %v6280, %v6279
      %v6292 = vpack.c.b16 %v6282, %v6281
      %v6293 = vpack.c.b16 %v6284, %v6283
      %v6294 = vpack.c.b16 %v6285, %v6285
      %v6304 = vsel %vm405, %v6226, 0
      %v6307 = vsel %vm405, %v6228, 0
      %v6310 = vsel %vm405, %v6230, 0
      %v6313 = vsel %vm405, %v6232, 0
      %v6316 = vsel %vm405, %v6234, 0
      %v6319 = vsel %vm405, %v6236, 0
      %v6322 = vsel %vm405, %v6238, 0
      %v6325 = vsel %vm405, %v6240, 0
      %v6328 = vsel %vm405, %v6242, 0
      %v6331 = vsel %vm433, %v6294, 0
      %6333 = vmatprep.subr.bf16.mxu0 0
      %6334 = vmatpush1.bf16.msra.mxu0 %v6286
      %6335 = vmatprep.subr.bf16.mxu0 0
      %6336 = vmatpush1.bf16.msra.mxu0 %v6287
      %6337 = vmatprep.subr.bf16.mxu0 0
      %6338 = vmatpush1.bf16.msra.mxu0 %v6288
      %6339 = vmatprep.subr.bf16.mxu0 0
      %6340 = vmatpush1.bf16.msra.mxu0 %v6289
      %6341 = vmatprep.subr.bf16.mxu0 0
      %6342 = vmatpush1.bf16.msra.mxu0 %v6290
      %6343 = vmatprep.subr.bf16.mxu0 0
      %6344 = vmatpush1.bf16.msra.mxu0 %v6291
      %6345 = vmatprep.subr.bf16.mxu0 0
      %6346 = vmatpush1.bf16.msra.mxu0 %v6292
      %6347 = vmatprep.subr.bf16.mxu0 0
      %6348 = vmatpush1.bf16.msra.mxu0 %v6293
      %6349 = vmatprep.subr.bf16.mxu0 0
      %6350 = vmatpush1.bf16.msra.mxu0 %v6331
      %6351 = vmatprep.subr.bf16.mxu0 0
      %6352 = vmatpush1.bf16.msra.mxu0 0
      %6353 = vmatprep.subr.bf16.mxu0 0
      %6354 = vmatpush1.bf16.msra.mxu0 0
      %6355 = vmatprep.subr.bf16.mxu0 0
      %6356 = vmatpush1.bf16.msra.mxu0 0
      %6357 = vmatprep.subr.bf16.mxu0 0
      %6358 = vmatpush1.bf16.msra.mxu0 0
      %6359 = vmatprep.subr.bf16.mxu0 0
      %6360 = vmatpush1.bf16.msra.mxu0 0
      %6361 = vmatprep.subr.bf16.mxu0 0
      %6362 = vmatpush1.bf16.msra.mxu0 0
      %6363 = vmatprep.subr.bf16.mxu0 0
      %6364 = vmatpush1.bf16.msra.mxu0 0
      %6365 = vmatprep.mubr.bf16.mxu0 %v6304
      %6366 = vmatmul.mubr.bf16.gmra.mrb[0].mxu0 %v6225
      %v6367 = vpop.f32.mrb[0].mxu0
      %v6368 = vadd.f32 0.0, %v6367
      %v6369 = vpop.f32.mrb[0].mxu0
      %v6370 = vpop.f32.mrb[0].mxu0
      %v6371 = vadd.f32 0.0, %v6370
      %v6372 = vpop.f32.mrb[0].mxu0
      %6373 = vmatprep.mubr.bf16.mxu0 %v6307
      %6374 = vmatmul.mubr.bf16.gmra.mrb[0].mxu0 %v6227
      %v6375 = vpop.f32.mrb[0].mxu0
      %v6376 = vadd.f32 0.0, %v6375
      %v6377 = vpop.f32.mrb[0].mxu0
      %v6378 = vpop.f32.mrb[0].mxu0
      %v6379 = vadd.f32 0.0, %v6378
      %v6380 = vpop.f32.mrb[0].mxu0
      %6381 = vmatprep.mubr.bf16.mxu0 %v6310
      %6382 = vmatmul.mubr.bf16.gmra.mrb[0].mxu0 %v6229
      %v6383 = vpop.f32.mrb[0].mxu0
      %v6384 = vadd.f32 0.0, %v6383
      %v6385 = vpop.f32.mrb[0].mxu0
      %v6386 = vpop.f32.mrb[0].mxu0
      %v6387 = vadd.f32 0.0, %v6386
      %v6388 = vpop.f32.mrb[0].mxu0
      %6389 = vmatprep.mubr.bf16.mxu0 %v6313
      %6390 = vmatmul.mubr.bf16.gmra.mrb[0].mxu0 %v6231
      %v6391 = vpop.f32.mrb[0].mxu0
      %v6392 = vadd.f32 0.0, %v6391
      %v6393 = vpop.f32.mrb[0].mxu0
      %v6394 = vpop.f32.mrb[0].mxu0
      %v6395 = vadd.f32 0.0, %v6394
      %v6396 = vpop.f32.mrb[0].mxu0
      %6397 = vmatprep.mubr.bf16.mxu0 %v6316
      %6398 = vmatmul.mubr.bf16.gmra.mrb[0].mxu0 %v6233
      %v6399 = vpop.f32.mrb[0].mxu0
      %v6400 = vadd.f32 0.0, %v6399
      %v6401 = vpop.f32.mrb[0].mxu0
      %v6402 = vpop.f32.mrb[0].mxu0
      %v6403 = vadd.f32 0.0, %v6402
      %v6404 = vpop.f32.mrb[0].mxu0
      %6405 = vmatprep.mubr.bf16.mxu0 %v6319
      %6406 = vmatmul.mubr.bf16.gmra.mrb[0].mxu0 %v6235
      %v6407 = vpop.f32.mrb[0].mxu0
      %v6408 = vadd.f32 0.0, %v6407
      %v6409 = vpop.f32.mrb[0].mxu0
      %v6410 = vpop.f32.mrb[0].mxu0
      %v6411 = vadd.f32 0.0, %v6410
      %v6412 = vpop.f32.mrb[0].mxu0
      %6413 = vmatprep.mubr.bf16.mxu0 %v6322
      %6414 = vmatmul.mubr.bf16.gmra.mrb[0].mxu0 %v6237
      %v6415 = vpop.f32.mrb[0].mxu0
      %v6416 = vadd.f32 0.0, %v6415
      %v6417 = vpop.f32.mrb[0].mxu0
      %v6418 = vpop.f32.mrb[0].mxu0
      %v6419 = vadd.f32 0.0, %v6418
      %v6420 = vpop.f32.mrb[0].mxu0
      %6421 = vmatprep.mubr.bf16.mxu0 %v6325
      %6422 = vmatmul.mubr.bf16.gmra.mrb[0].mxu0 %v6239
      %v6423 = vpop.f32.mrb[0].mxu0
      %v6424 = vadd.f32 0.0, %v6423
      %v6425 = vpop.f32.mrb[0].mxu0
      %v6426 = vpop.f32.mrb[0].mxu0
      %v6427 = vadd.f32 0.0, %v6426
      %v6428 = vpop.f32.mrb[0].mxu0
      %6429 = vmatprep.mubr.bf16.mxu0 %v6328
      %6430 = vmatmul.mubr.bf16.gmra.mrb[0].mxu0 %v6241
      %v6431 = vpop.f32.mrb[0].mxu0
      %v6432 = vadd.f32 0.0, %v6431
      %v6433 = vpop.f32.mrb[0].mxu0
      %v6434 = vpop.f32.mrb[0].mxu0
      %v6435 = vadd.f32 0.0, %v6434
      %v6436 = vpop.f32.mrb[0].mxu0
      %6437 = vdwg.mxu0
      %v6438 = vadd.f32 %v6109, %v6368
      %v6439 = vadd.f32 %v6110, %v6371
      %v6440 = vadd.f32 %v6111, %v6376
      %v6441 = vadd.f32 %v6112, %v6379
      %v6442 = vadd.f32 %v6113, %v6384
      %v6443 = vadd.f32 %v6114, %v6387
      %v6444 = vadd.f32 %v6115, %v6392
      %v6445 = vadd.f32 %v6116, %v6395
      %v6446 = vadd.f32 %v6117, %v6400
      %v6447 = vadd.f32 %v6118, %v6403
      %v6448 = vadd.f32 %v6119, %v6408
      %v6449 = vadd.f32 %v6120, %v6411
      %v6450 = vadd.f32 %v6121, %v6416
      %v6451 = vadd.f32 %v6122, %v6419
      %v6452 = vadd.f32 %v6123, %v6424
      %v6453 = vadd.f32 %v6124, %v6427
      %v6454 = vadd.f32 %v6125, %v6432
      %v6455 = vadd.f32 %v6126, %v6435
      %s6456 = scalar_lea.vmem %s1, 1700
      %v6457 = vld [vmem:[%s6456] sm:$0xf]
      %v6458 = vld [vmem:[%s6456 + $0x4] sm:$0xf]
      %v6459 = vld [vmem:[%s6456 + $0x8] sm:$0xf]
      %v6460 = vld [vmem:[%s6456 + $0xc] sm:$0xf]
      %v6461 = vld [vmem:[%s6456 + $0x10] sm:$0xf]
      %v6462 = vld [vmem:[%s6456 + $0x14] sm:$0xf]
      %v6463 = vld [vmem:[%s6456 + $0x18] sm:$0xf]
      %v6464 = vld [vmem:[%s6456 + $0x1c] sm:$0xf]
      %v6465 = vld [vmem:[%s6456 + $0x20] sm:$0xf]
      %v6466 = vld [vmem:[%s6456 + $0x24] sm:$0xf]
      %v6467 = vld [vmem:[%s6456 + $0x28] sm:$0xf]
      %v6468 = vld [vmem:[%s6456 + $0x2c] sm:$0xf]
      %v6469 = vld [vmem:[%s6456 + $0x30] sm:$0xf]
      %v6470 = vld [vmem:[%s6456 + $0x34] sm:$0xf]
      %v6471 = vld [vmem:[%s6456 + $0x38] sm:$0xf]
      %v6472 = vld [vmem:[%s6456 + $0x3c] sm:$0xf]
      %v6473 = vld [vmem:[%s6456 + $0x40] sm:$0x3]
      %v6476 = vunpack.c.l.b16 %v6149
      %v6477 = vunpack.c.h.b16 %v6149
      %v6478 = vunpack.c.l.b16 %v6150
      %v6479 = vunpack.c.h.b16 %v6150
      %v6480 = vpack.c.b16 %v6478, %v6476
      %v6481 = vpack.c.b16 %v6479, %v6477
      %v6500 = vunpack.c.l.b16 %v6457
      %v6501 = vunpack.c.l.b16 %v6458
      %v6502 = vunpack.c.l.b16 %v6459
      %v6503 = vunpack.c.l.b16 %v6460
      %v6504 = vunpack.c.l.b16 %v6461
      %v6505 = vunpack.c.l.b16 %v6462
      %v6506 = vunpack.c.l.b16 %v6463
      %v6507 = vunpack.c.l.b16 %v6464
      %v6508 = vunpack.c.l.b16 %v6465
      %v6509 = vunpack.c.l.b16 %v6466
      %v6510 = vunpack.c.l.b16 %v6467
      %v6511 = vunpack.c.l.b16 %v6468
      %v6512 = vunpack.c.l.b16 %v6469
      %v6513 = vunpack.c.l.b16 %v6470
      %v6514 = vunpack.c.l.b16 %v6471
      %v6515 = vunpack.c.l.b16 %v6472
      %v6516 = vunpack.c.l.b16 %v6473
      %v6517 = vpack.c.b16 %v6501, %v6500
      %v6518 = vpack.c.b16 %v6503, %v6502
      %v6519 = vpack.c.b16 %v6505, %v6504
      %v6520 = vpack.c.b16 %v6507, %v6506
      %v6521 = vpack.c.b16 %v6509, %v6508
      %v6522 = vpack.c.b16 %v6511, %v6510
      %v6523 = vpack.c.b16 %v6513, %v6512
      %v6524 = vpack.c.b16 %v6515, %v6514
      %v6525 = vpack.c.b16 %v6516, %v6516
      %v6535 = vsel %vm405, %v6481, 0
      %v6538 = vsel %vm433, %v6525, 0
      %6540 = vmatprep.subr.bf16.mxu0 0
      %6541 = vmatpush1.bf16.msra.mxu0 %v6517
      %6542 = vmatprep.subr.bf16.mxu0 0
      %6543 = vmatpush1.bf16.msra.mxu0 %v6518
      %6544 = vmatprep.subr.bf16.mxu0 0
      %6545 = vmatpush1.bf16.msra.mxu0 %v6519
      %6546 = vmatprep.subr.bf16.mxu0 0
      %6547 = vmatpush1.bf16.msra.mxu0 %v6520
      %6548 = vmatprep.subr.bf16.mxu0 0
      %6549 = vmatpush1.bf16.msra.mxu0 %v6521
      %6550 = vmatprep.subr.bf16.mxu0 0
      %6551 = vmatpush1.bf16.msra.mxu0 %v6522
      %6552 = vmatprep.subr.bf16.mxu0 0
      %6553 = vmatpush1.bf16.msra.mxu0 %v6523
      %6554 = vmatprep.subr.bf16.mxu0 0
      %6555 = vmatpush1.bf16.msra.mxu0 %v6524
      %6556 = vmatprep.subr.bf16.mxu0 0
      %6557 = vmatpush1.bf16.msra.mxu0 %v6538
      %6558 = vmatprep.subr.bf16.mxu0 0
      %6559 = vmatpush1.bf16.msra.mxu0 0
      %6560 = vmatprep.subr.bf16.mxu0 0
      %6561 = vmatpush1.bf16.msra.mxu0 0
      %6562 = vmatprep.subr.bf16.mxu0 0
      %6563 = vmatpush1.bf16.msra.mxu0 0
      %6564 = vmatprep.subr.bf16.mxu0 0
      %6565 = vmatpush1.bf16.msra.mxu0 0
      %6566 = vmatprep.subr.bf16.mxu0 0
      %6567 = vmatpush1.bf16.msra.mxu0 0
      %6568 = vmatprep.subr.bf16.mxu0 0
      %6569 = vmatpush1.bf16.msra.mxu0 0
      %6570 = vmatprep.subr.bf16.mxu0 0
      %6571 = vmatpush1.bf16.msra.mxu0 0
      %6572 = vmatprep.mubr.bf16.mxu0 %v6307
      %6573 = vmatmul.mubr.bf16.gmra.mrb[0].mxu0 %v6227
      %v6574 = vpop.f32.mrb[0].mxu0
      %v6575 = vadd.f32 0.0, %v6574
      %v6576 = vpop.f32.mrb[0].mxu0
      %v6577 = vpop.f32.mrb[0].mxu0
      %v6578 = vadd.f32 0.0, %v6577
      %v6579 = vpop.f32.mrb[0].mxu0
      %6580 = vmatprep.mubr.bf16.mxu0 %v6310
      %6581 = vmatmul.mubr.bf16.gmra.mrb[0].mxu0 %v6229
      %v6582 = vpop.f32.mrb[0].mxu0
      %v6583 = vadd.f32 0.0, %v6582
      %v6584 = vpop.f32.mrb[0].mxu0
      %v6585 = vpop.f32.mrb[0].mxu0
      %v6586 = vadd.f32 0.0, %v6585
      %v6587 = vpop.f32.mrb[0].mxu0
      %6588 = vmatprep.mubr.bf16.mxu0 %v6313
      %6589 = vmatmul.mubr.bf16.gmra.mrb[0].mxu0 %v6231
      %v6590 = vpop.f32.mrb[0].mxu0
      %v6591 = vadd.f32 0.0, %v6590
      %v6592 = vpop.f32.mrb[0].mxu0
      %v6593 = vpop.f32.mrb[0].mxu0
      %v6594 = vadd.f32 0.0, %v6593
      %v6595 = vpop.f32.mrb[0].mxu0
      %6596 = vmatprep.mubr.bf16.mxu0 %v6316
      %6597 = vmatmul.mubr.bf16.gmra.mrb[0].mxu0 %v6233
      %v6598 = vpop.f32.mrb[0].mxu0
      %v6599 = vadd.f32 0.0, %v6598
      %v6600 = vpop.f32.mrb[0].mxu0
      %v6601 = vpop.f32.mrb[0].mxu0
      %v6602 = vadd.f32 0.0, %v6601
      %v6603 = vpop.f32.mrb[0].mxu0
      %6604 = vmatprep.mubr.bf16.mxu0 %v6319
      %6605 = vmatmul.mubr.bf16.gmra.mrb[0].mxu0 %v6235
      %v6606 = vpop.f32.mrb[0].mxu0
      %v6607 = vadd.f32 0.0, %v6606
      %v6608 = vpop.f32.mrb[0].mxu0
      %v6609 = vpop.f32.mrb[0].mxu0
      %v6610 = vadd.f32 0.0, %v6609
      %v6611 = vpop.f32.mrb[0].mxu0
      %6612 = vmatprep.mubr.bf16.mxu0 %v6322
      %6613 = vmatmul.mubr.bf16.gmra.mrb[0].mxu0 %v6237
      %v6614 = vpop.f32.mrb[0].mxu0
      %v6615 = vadd.f32 0.0, %v6614
      %v6616 = vpop.f32.mrb[0].mxu0
      %v6617 = vpop.f32.mrb[0].mxu0
      %v6618 = vadd.f32 0.0, %v6617
      %v6619 = vpop.f32.mrb[0].mxu0
      %6620 = vmatprep.mubr.bf16.mxu0 %v6325
      %6621 = vmatmul.mubr.bf16.gmra.mrb[0].mxu0 %v6239
      %v6622 = vpop.f32.mrb[0].mxu0
      %v6623 = vadd.f32 0.0, %v6622
      %v6624 = vpop.f32.mrb[0].mxu0
      %v6625 = vpop.f32.mrb[0].mxu0
      %v6626 = vadd.f32 0.0, %v6625
      %v6627 = vpop.f32.mrb[0].mxu0
      %6628 = vmatprep.mubr.bf16.mxu0 %v6328
      %6629 = vmatmul.mubr.bf16.gmra.mrb[0].mxu0 %v6241
      %v6630 = vpop.f32.mrb[0].mxu0
      %v6631 = vadd.f32 0.0, %v6630
      %v6632 = vpop.f32.mrb[0].mxu0
      %v6633 = vpop.f32.mrb[0].mxu0
      %v6634 = vadd.f32 0.0, %v6633
      %v6635 = vpop.f32.mrb[0].mxu0
      %6636 = vmatprep.mubr.bf16.mxu0 %v6535
      %6637 = vmatmul.mubr.bf16.gmra.mrb[0].mxu0 %v6480
      %v6638 = vpop.f32.mrb[0].mxu0
      %v6639 = vadd.f32 0.0, %v6638
      %v6640 = vpop.f32.mrb[0].mxu0
      %v6641 = vpop.f32.mrb[0].mxu0
      %v6642 = vadd.f32 0.0, %v6641
      %v6643 = vpop.f32.mrb[0].mxu0
      %6644 = vdwg.mxu0
      %v6645 = vadd.f32 %v6438, %v6575
      %v6646 = vadd.f32 %v6439, %v6578
      %v6647 = vadd.f32 %v6440, %v6583
      %v6648 = vadd.f32 %v6441, %v6586
      %v6649 = vadd.f32 %v6442, %v6591
      %v6650 = vadd.f32 %v6443, %v6594
      %v6651 = vadd.f32 %v6444, %v6599
      %v6652 = vadd.f32 %v6445, %v6602
      %v6653 = vadd.f32 %v6446, %v6607
      %v6654 = vadd.f32 %v6447, %v6610
      %v6655 = vadd.f32 %v6448, %v6615
      %v6656 = vadd.f32 %v6449, %v6618
      %v6657 = vadd.f32 %v6450, %v6623
      %v6658 = vadd.f32 %v6451, %v6626
      %v6659 = vadd.f32 %v6452, %v6631
      %v6660 = vadd.f32 %v6453, %v6634
      %v6661 = vadd.f32 %v6454, %v6639
      %v6662 = vadd.f32 %v6455, %v6642
      %s6663 = scalar_lea.vmem %s1, 1768
      %v6664 = vld [vmem:[%s6663] sm:$0xf]
      %v6665 = vld [vmem:[%s6663 + $0x4] sm:$0xf]
      %v6666 = vld [vmem:[%s6663 + $0x8] sm:$0xf]
      %v6667 = vld [vmem:[%s6663 + $0xc] sm:$0xf]
      %v6668 = vld [vmem:[%s6663 + $0x10] sm:$0xf]
      %v6669 = vld [vmem:[%s6663 + $0x14] sm:$0xf]
      %v6670 = vld [vmem:[%s6663 + $0x18] sm:$0xf]
      %v6671 = vld [vmem:[%s6663 + $0x1c] sm:$0xf]
      %v6672 = vld [vmem:[%s6663 + $0x20] sm:$0xf]
      %v6673 = vld [vmem:[%s6663 + $0x24] sm:$0xf]
      %v6674 = vld [vmem:[%s6663 + $0x28] sm:$0xf]
      %v6675 = vld [vmem:[%s6663 + $0x2c] sm:$0xf]
      %v6676 = vld [vmem:[%s6663 + $0x30] sm:$0xf]
      %v6677 = vld [vmem:[%s6663 + $0x34] sm:$0xf]
      %v6678 = vld [vmem:[%s6663 + $0x38] sm:$0xf]
      %v6679 = vld [vmem:[%s6663 + $0x3c] sm:$0xf]
      %v6680 = vld [vmem:[%s6663 + $0x40] sm:$0x3]
      %v6683 = vunpack.c.l.b16 %v6151
      %v6684 = vunpack.c.h.b16 %v6151
      %v6685 = vunpack.c.l.b16 %v6152
      %v6686 = vunpack.c.h.b16 %v6152
      %v6687 = vpack.c.b16 %v6685, %v6683
      %v6688 = vpack.c.b16 %v6686, %v6684
      %v6707 = vunpack.c.l.b16 %v6664
      %v6708 = vunpack.c.l.b16 %v6665
      %v6709 = vunpack.c.l.b16 %v6666
      %v6710 = vunpack.c.l.b16 %v6667
      %v6711 = vunpack.c.l.b16 %v6668
      %v6712 = vunpack.c.l.b16 %v6669
      %v6713 = vunpack.c.l.b16 %v6670
      %v6714 = vunpack.c.l.b16 %v6671
      %v6715 = vunpack.c.l.b16 %v6672
      %v6716 = vunpack.c.l.b16 %v6673
      %v6717 = vunpack.c.l.b16 %v6674
      %v6718 = vunpack.c.l.b16 %v6675
      %v6719 = vunpack.c.l.b16 %v6676
      %v6720 = vunpack.c.l.b16 %v6677
      %v6721 = vunpack.c.l.b16 %v6678
      %v6722 = vunpack.c.l.b16 %v6679
      %v6723 = vunpack.c.l.b16 %v6680
      %v6724 = vpack.c.b16 %v6708, %v6707
      %v6725 = vpack.c.b16 %v6710, %v6709
      %v6726 = vpack.c.b16 %v6712, %v6711
      %v6727 = vpack.c.b16 %v6714, %v6713
      %v6728 = vpack.c.b16 %v6716, %v6715
      %v6729 = vpack.c.b16 %v6718, %v6717
      %v6730 = vpack.c.b16 %v6720, %v6719
      %v6731 = vpack.c.b16 %v6722, %v6721
      %v6732 = vpack.c.b16 %v6723, %v6723
      %v6742 = vsel %vm405, %v6688, 0
      %v6745 = vsel %vm433, %v6732, 0
      %6747 = vmatprep.subr.bf16.mxu0 0
      %6748 = vmatpush1.bf16.msra.mxu0 %v6724
      %6749 = vmatprep.subr.bf16.mxu0 0
      %6750 = vmatpush1.bf16.msra.mxu0 %v6725
      %6751 = vmatprep.subr.bf16.mxu0 0
      %6752 = vmatpush1.bf16.msra.mxu0 %v6726
      %6753 = vmatprep.subr.bf16.mxu0 0
      %6754 = vmatpush1.bf16.msra.mxu0 %v6727
      %6755 = vmatprep.subr.bf16.mxu0 0
      %6756 = vmatpush1.bf16.msra.mxu0 %v6728
      %6757 = vmatprep.subr.bf16.mxu0 0
      %6758 = vmatpush1.bf16.msra.mxu0 %v6729
      %6759 = vmatprep.subr.bf16.mxu0 0
      %6760 = vmatpush1.bf16.msra.mxu0 %v6730
      %6761 = vmatprep.subr.bf16.mxu0 0
      %6762 = vmatpush1.bf16.msra.mxu0 %v6731
      %6763 = vmatprep.subr.bf16.mxu0 0
      %6764 = vmatpush1.bf16.msra.mxu0 %v6745
      %6765 = vmatprep.subr.bf16.mxu0 0
      %6766 = vmatpush1.bf16.msra.mxu0 0
      %6767 = vmatprep.subr.bf16.mxu0 0
      %6768 = vmatpush1.bf16.msra.mxu0 0
      %6769 = vmatprep.subr.bf16.mxu0 0
      %6770 = vmatpush1.bf16.msra.mxu0 0
      %6771 = vmatprep.subr.bf16.mxu0 0
      %6772 = vmatpush1.bf16.msra.mxu0 0
      %6773 = vmatprep.subr.bf16.mxu0 0
      %6774 = vmatpush1.bf16.msra.mxu0 0
      %6775 = vmatprep.subr.bf16.mxu0 0
      %6776 = vmatpush1.bf16.msra.mxu0 0
      %6777 = vmatprep.subr.bf16.mxu0 0
      %6778 = vmatpush1.bf16.msra.mxu0 0
      %6779 = vmatprep.mubr.bf16.mxu0 %v6310
      %6780 = vmatmul.mubr.bf16.gmra.mrb[0].mxu0 %v6229
      %v6781 = vpop.f32.mrb[0].mxu0
      %v6782 = vadd.f32 0.0, %v6781
      %v6783 = vpop.f32.mrb[0].mxu0
      %v6784 = vpop.f32.mrb[0].mxu0
      %v6785 = vadd.f32 0.0, %v6784
      %v6786 = vpop.f32.mrb[0].mxu0
      %6787 = vmatprep.mubr.bf16.mxu0 %v6313
      %6788 = vmatmul.mubr.bf16.gmra.mrb[0].mxu0 %v6231
      %v6789 = vpop.f32.mrb[0].mxu0
      %v6790 = vadd.f32 0.0, %v6789
      %v6791 = vpop.f32.mrb[0].mxu0
      %v6792 = vpop.f32.mrb[0].mxu0
      %v6793 = vadd.f32 0.0, %v6792
      %v6794 = vpop.f32.mrb[0].mxu0
      %6795 = vmatprep.mubr.bf16.mxu0 %v6316
      %6796 = vmatmul.mubr.bf16.gmra.mrb[0].mxu0 %v6233
      %v6797 = vpop.f32.mrb[0].mxu0
      %v6798 = vadd.f32 0.0, %v6797
      %v6799 = vpop.f32.mrb[0].mxu0
      %v6800 = vpop.f32.mrb[0].mxu0
      %v6801 = vadd.f32 0.0, %v6800
      %v6802 = vpop.f32.mrb[0].mxu0
      %6803 = vmatprep.mubr.bf16.mxu0 %v6319
      %6804 = vmatmul.mubr.bf16.gmra.mrb[0].mxu0 %v6235
      %v6805 = vpop.f32.mrb[0].mxu0
      %v6806 = vadd.f32 0.0, %v6805
      %v6807 = vpop.f32.mrb[0].mxu0
      %v6808 = vpop.f32.mrb[0].mxu0
      %v6809 = vadd.f32 0.0, %v6808
      %v6810 = vpop.f32.mrb[0].mxu0
      %6811 = vmatprep.mubr.bf16.mxu0 %v6322
      %6812 = vmatmul.mubr.bf16.gmra.mrb[0].mxu0 %v6237
      %v6813 = vpop.f32.mrb[0].mxu0
      %v6814 = vadd.f32 0.0, %v6813
      %v6815 = vpop.f32.mrb[0].mxu0
      %v6816 = vpop.f32.mrb[0].mxu0
      %v6817 = vadd.f32 0.0, %v6816
      %v6818 = vpop.f32.mrb[0].mxu0
      %6819 = vmatprep.mubr.bf16.mxu0 %v6325
      %6820 = vmatmul.mubr.bf16.gmra.mrb[0].mxu0 %v6239
      %v6821 = vpop.f32.mrb[0].mxu0
      %v6822 = vadd.f32 0.0, %v6821
      %v6823 = vpop.f32.mrb[0].mxu0
      %v6824 = vpop.f32.mrb[0].mxu0
      %v6825 = vadd.f32 0.0, %v6824
      %v6826 = vpop.f32.mrb[0].mxu0
      %6827 = vmatprep.mubr.bf16.mxu0 %v6328
      %6828 = vmatmul.mubr.bf16.gmra.mrb[0].mxu0 %v6241
      %v6829 = vpop.f32.mrb[0].mxu0
      %v6830 = vadd.f32 0.0, %v6829
      %v6831 = vpop.f32.mrb[0].mxu0
      %v6832 = vpop.f32.mrb[0].mxu0
      %v6833 = vadd.f32 0.0, %v6832
      %v6834 = vpop.f32.mrb[0].mxu0
      %6835 = vmatprep.mubr.bf16.mxu0 %v6535
      %6836 = vmatmul.mubr.bf16.gmra.mrb[0].mxu0 %v6480
      %v6837 = vpop.f32.mrb[0].mxu0
      %v6838 = vadd.f32 0.0, %v6837
      %v6839 = vpop.f32.mrb[0].mxu0
      %v6840 = vpop.f32.mrb[0].mxu0
      %v6841 = vadd.f32 0.0, %v6840
      %v6842 = vpop.f32.mrb[0].mxu0
      %6843 = vmatprep.mubr.bf16.mxu0 %v6742
      %6844 = vmatmul.mubr.bf16.gmra.mrb[0].mxu0 %v6687
      %v6845 = vpop.f32.mrb[0].mxu0
      %v6846 = vadd.f32 0.0, %v6845
      %v6847 = vpop.f32.mrb[0].mxu0
      %v6848 = vpop.f32.mrb[0].mxu0
      %v6849 = vadd.f32 0.0, %v6848
      %v6850 = vpop.f32.mrb[0].mxu0
      %6851 = vdwg.mxu0
      %v6852 = vadd.f32 %v6645, %v6782
      %v6853 = vadd.f32 %v6646, %v6785
      %v6854 = vadd.f32 %v6647, %v6790
      %v6855 = vadd.f32 %v6648, %v6793
      %v6856 = vadd.f32 %v6649, %v6798
      %v6857 = vadd.f32 %v6650, %v6801
      %v6858 = vadd.f32 %v6651, %v6806
      %v6859 = vadd.f32 %v6652, %v6809
      %v6860 = vadd.f32 %v6653, %v6814
      %v6861 = vadd.f32 %v6654, %v6817
      %v6862 = vadd.f32 %v6655, %v6822
      %v6863 = vadd.f32 %v6656, %v6825
      %v6864 = vadd.f32 %v6657, %v6830
      %v6865 = vadd.f32 %v6658, %v6833
      %v6866 = vadd.f32 %v6659, %v6838
      %v6867 = vadd.f32 %v6660, %v6841
      %v6868 = vadd.f32 %v6661, %v6846
      %v6869 = vadd.f32 %v6662, %v6849
      %v6870 = vld [vmem:[%s2] sm:$0x1]
      %v6872 = vlaneseq
      %v6873 = vshrl.u32 %v6872, 7
      %v6874 = vsub.s32 0, %v6873
      %v6875 = vrot.slane %v6870, %v6874
      %v6877 = vadd.f32 %v6852, %v6875
      %v6878 = vadd.f32 %v6853, %v6875
      %v6879 = vadd.f32 %v6854, %v6875
      %v6880 = vadd.f32 %v6855, %v6875
      %v6881 = vadd.f32 %v6856, %v6875
      %v6882 = vadd.f32 %v6857, %v6875
      %v6883 = vadd.f32 %v6858, %v6875
      %v6884 = vadd.f32 %v6859, %v6875
      %v6885 = vadd.f32 %v6860, %v6875
      %v6886 = vadd.f32 %v6861, %v6875
      %v6887 = vadd.f32 %v6862, %v6875
      %v6888 = vadd.f32 %v6863, %v6875
      %v6889 = vadd.f32 %v6864, %v6875
      %v6890 = vadd.f32 %v6865, %v6875
      %v6891 = vadd.f32 %v6866, %v6875
      %v6892 = vadd.f32 %v6867, %v6875
      %v6893 = vadd.f32 %v6868, %v6875
      %v6894 = vadd.f32 %v6869, %v6875
      %6895 = vst [vmem:[%s209] sm:$0xff] %v6877
      %6896 = vst [vmem:[%s209 + $0x8] sm:$0xff] %v6878
      %6897 = vst [vmem:[%s209 + $0x10] sm:$0xff] %v6879
      %6898 = vst [vmem:[%s209 + $0x18] sm:$0xff] %v6880
      %6899 = vst [vmem:[%s209 + $0x20] sm:$0xff] %v6881
      %6900 = vst [vmem:[%s209 + $0x28] sm:$0xff] %v6882
      %6901 = vst [vmem:[%s209 + $0x30] sm:$0xff] %v6883
      %6902 = vst [vmem:[%s209 + $0x38] sm:$0xff] %v6884
      %6903 = vst [vmem:[%s209 + $0x40] sm:$0xff] %v6885
      %6904 = vst [vmem:[%s209 + $0x48] sm:$0xff] %v6886
      %6905 = vst [vmem:[%s209 + $0x50] sm:$0xff] %v6887
      %6906 = vst [vmem:[%s209 + $0x58] sm:$0xff] %v6888
      %6907 = vst [vmem:[%s209 + $0x60] sm:$0xff] %v6889
      %6908 = vst [vmem:[%s209 + $0x68] sm:$0xff] %v6890
      %6909 = vst [vmem:[%s209 + $0x70] sm:$0xff] %v6891
      %6910 = vst [vmem:[%s209 + $0x78] sm:$0xff] %v6892
      %6911 = vst [vmem:[%s209 + $0x80] sm:$0xff] %v6893
      %6912 = vst [vmem:[%s209 + $0x88] sm:$0xff] %v6894
      %p6913 = scmp.lt.s32.totalorder %s19, 1
      %s6914 = scalar_select %p6913, %s19, 1
      %p6915 = scmp.lt.s32.totalorder %s20, 1
      %s6916 = scalar_select %p6915, %s20, 1
      %p6917 = scmp.lt.s32.totalorder %s21, 3
      %s6918 = scalar_select %p6917, %s21, 3
      %s6919 = smul.addr %s6918, 18
      %s6920 = smul.addr %s6916, 72
      %s6921 = sadd.s32 %s6919, %s6920
      %s6922 = smul.addr %s6914, 144
      %s6923 = sadd.s32 %s6921, %s6922
      %s6924 = smul.addr %s6923, 8
      %s6925 = scalar_lea.vmem %s3, %s6924
      // Predicated region
      $region33: #{conv_transpose5d.1} parent=31 // pred_check
        %p6926 = pneg %p123
      $region34: #{conv_transpose5d.1} parent=31 // pred_check_branch
        %6928 = sbr.rel (%p6926) target = $region36
      $region35: #{conv_transpose5d.1} parent=31 // pred_region
        _
      $region36: #{conv_transpose5d.1} parent=31 // pred_fallthru
        _
    $region32: #{conv_transpose5d.1} parent=5 // pred_fallthru
      _
    %p6929 = scmp.le.s32.totalorder 2, %s9
    // Predicated region
    $region37: #{conv_transpose5d.1} parent=5 // pred_check
      %p6930 = pneg %p6929
    $region38: #{conv_transpose5d.1} parent=5 // pred_check_branch
      %6932 = sbr.rel (%p6930) target = $region40
    $region39: #{conv_transpose5d.1} parent=5 // pred_region
      %s6933 = ssub.s32 %s9, 2
      // Predicated region
      $region41: #{conv_transpose5d.1} parent=39 // pred_check
        %p6934 = pneg %p129
      $region42: #{conv_transpose5d.1} parent=39 // pred_check_branch
        %6936 = sbr.rel (%p6934) target = $region44
      $region43: #{conv_transpose5d.1} parent=39 // pred_region
        %p6937 = scmp.lt.s32.totalorder %s22, 1
        %s6938 = scalar_select %p6937, %s22, 1
        %p6939 = scmp.lt.s32.totalorder %s23, 1
        %s6940 = scalar_select %p6939, %s23, 1
        %p6941 = scmp.lt.s32.totalorder %s24, 3
        %s6942 = scalar_select %p6941, %s24, 3
        %s6943 = smul.addr %s6942, 18
        %s6944 = smul.addr %s6940, 72
        %s6945 = sadd.s32 %s6943, %s6944
        %s6946 = smul.addr %s6938, 144
        %s6947 = sadd.s32 %s6945, %s6946
        %s6948 = smul.addr %s6947, 8
        %s6949 = scalar_lea.vmem %s3, %s6948
      $region44: #{conv_transpose5d.1} parent=39 // pred_fallthru
        _
    $region40: #{conv_transpose5d.1} parent=5 // pred_fallthru
      _
  $region6: #{conv_transpose5d.1} parent=0 // loop_footer
    %s13 = sadd.s32 1, %s9
  $region7: #{conv_transpose5d.1} parent=0 // loop_footer_branch
    %8 = sbr.rel target = $region3
  $region8: #{conv_transpose5d.1} parent=0 // loop_exit
    _

</llo_original>
